<compile_context>
chip_gen: v7x
topology: tpu7x:2x2x1
jax: 0.10.0
libtpu: 0.0.40
codegen_flags: <defaults>
</compile_context>

<pallas_src>
import functools

import jax
import jax.numpy as jnp
from jax import lax
from jax.experimental import pallas as pl
from jax.experimental.pallas import tpu as pltpu

MARGIN = 128            # lane margin of the wide scratches (>= tap reach, 128-aligned)
C_MID1, C_MID2 = 48, 24  # fixed hidden widths of ECNetwork


def ec_kernel(x_ref, m_ref, w_ref, b_ref, o_ref,
              xw_ref, h1_ref, h2_ref, stk_ref, *,
              nb_per_step, Wp, npad, nwide, cin_p, cout_p):
    S = MARGIN
    taps = [(dh, dw) for dh in (-1, 0, 1) for dw in (-1, 0, 1)]
    interior = m_ref[...] != 0.0                      # (1, NB*npad)

    # Stage the padded input planes into the wide input scratch (128-aligned
    # stores).  Margins stay uninitialized: they are only read for lanes whose
    # outputs are select-masked to zero below.
    for nb in range(nb_per_step):
        xw_ref[:, pl.ds(nb * nwide + S, npad)] = x_ref[nb]

    def conv(src_ref, cin, row0, ncout):
        # Stacked RHS: sublane block t <- tap-(dh,dw) lane-offset view.
        for t, (dh, dw) in enumerate(taps):
            off = S + dh * Wp + dw
            for nb in range(nb_per_step):
                stk_ref[pl.ds(t * cin, cin), pl.ds(nb * npad, npad)] = \
                    src_ref[:, pl.ds(nb * nwide + off, npad)]
        w = w_ref[pl.ds(row0, ncout), pl.ds(0, 9 * cin)]      # (ncout, 9*cin)
        rhs = stk_ref[pl.ds(0, 9 * cin), :]                   # (9*cin, NB*npad)
        out = jnp.dot(w, rhs, preferred_element_type=jnp.float32)
        return out + b_ref[pl.ds(row0, ncout), :]

    # conv1 + ReLU   (halo / tail lanes forced to 0 == PyTorch zero padding)
    h1 = jnp.where(interior,
                   jnp.maximum(conv(xw_ref, cin_p, 0, C_MID1), 0.0), 0.0)
    for nb in range(nb_per_step):
        h1_ref[:, pl.ds(nb * nwide + S, npad)] = h1[:, nb * npad:(nb + 1) * npad]

    # conv2 + ReLU
    h2 = jnp.where(interior,
                   jnp.maximum(conv(h1_ref, C_MID1, C_MID1, C_MID2), 0.0), 0.0)
    for nb in range(nb_per_step):
        h2_ref[:, pl.ds(nb * nwide + S, npad)] = h2[:, nb * npad:(nb + 1) * npad]

    # conv3 + Tanh   (full (cout_p, NB*npad) lane/sublane-dense store)
    h3 = conv(h2_ref, C_MID2, C_MID1 + C_MID2, cout_p)
    o_ref[0] = jnp.tanh(jnp.where(interior, h3, 0.0))


def ec_network(x, y, params):
    """ECNetwork forward.  x: (B, c1, H, W), y: (B, c2, H, W), NCHW."""
    w1, b1, w2, b2, w3, b3 = params                   # HWIO weights, (1, Cout) biases
    xy = jnp.concatenate([x, y], axis=1).astype(jnp.float32)
    B, Cin, H, W = xy.shape
    Cout = w3.shape[-1]
    Hp, Wp = H + 2, W + 2
    Np = Hp * Wp
    npad = ((Np + 127) // 128) * 128                  # lane-dense flat plane (384)
    cin_p = ((Cin + 7) // 8) * 8                      # sublane-pad input channels
    cout_p = ((Cout + 7) // 8) * 8                    # sublane-pad output channels
    nwide = npad + 2 * MARGIN                         # per-batch wide-slot width (640)
    NB = 2 if B % 2 == 0 else 1                       # batch elems folded per grid step
    KMAX = max(9 * cin_p, 9 * C_MID1, 9 * C_MID2)

    # Flat, spatially zero-padded input; pad channels to cin_p, lanes to npad.
    xp = jnp.pad(xy, ((0, 0), (0, 0), (1, 1), (1, 1))).reshape(B, Cin, Np)
    xp = jnp.pad(xp, ((0, 0), (0, cin_p - Cin), (0, npad - Np)))

    # Interior mask of the padded flat plane (1 inside HxW, 0 on halo/tail).
    rr, cc = jnp.arange(Hp), jnp.arange(Wp)
    m2 = ((rr >= 1) & (rr <= H))[:, None] & ((cc >= 1) & (cc <= W))[None, :]
    mask = jnp.pad(m2.reshape(Np).astype(jnp.float32), (0, npad - Np))
    mask = jnp.tile(mask, (NB,)).reshape(1, NB * npad)

    # Weight slab: rows = [conv1 | conv2 | conv3] output channels,
    # cols = tap-major 9*Cin contraction (zero-padded to KMAX lanes).
    def to_stack(w):                                  # (3,3,ci,co) -> (co, 9*ci)
        kh, kw, ci, co = w.shape
        return jnp.transpose(w.reshape(kh * kw, ci, co),
                             (2, 0, 1)).reshape(co, kh * kw * ci)

    w1s = to_stack(jnp.pad(w1, ((0, 0), (0, 0), (0, cin_p - Cin), (0, 0))))
    w2s = to_stack(w2)
    w3s = to_stack(jnp.pad(w3, ((0, 0), (0, 0), (0, 0), (0, cout_p - Cout))))
    padk = lambda w: jnp.pad(w, ((0, 0), (0, KMAX - w.shape[1])))
    wslab = jnp.concatenate([padk(w1s), padk(w2s), padk(w3s)], axis=0)
    b3p = jnp.pad(b3, ((0, 0), (0, cout_p - Cout)))
    bslab = jnp.concatenate(
        [b1.reshape(-1, 1), b2.reshape(-1, 1), b3p.reshape(-1, 1)], axis=0)
    nrows = C_MID1 + C_MID2 + cout_p

    kernel = functools.partial(
        ec_kernel, nb_per_step=NB, Wp=Wp, npad=npad, nwide=nwide,
        cin_p=cin_p, cout_p=cout_p)

    out_flat = pl.pallas_call(
        kernel,
        out_shape=jax.ShapeDtypeStruct((B // NB, cout_p, NB * npad), jnp.float32),
        grid=(B // NB,),
        in_specs=[
            pl.BlockSpec((NB, cin_p, npad), lambda g: (g, 0, 0)),
            pl.BlockSpec((1, NB * npad), lambda g: (0, 0)),
            pl.BlockSpec((nrows, KMAX), lambda g: (0, 0)),
            pl.BlockSpec((nrows, 1), lambda g: (0, 0)),
        ],
        out_specs=pl.BlockSpec((1, cout_p, NB * npad), lambda g: (g, 0, 0)),
        scratch_shapes=[
            pltpu.VMEM((cin_p, NB * nwide), jnp.float32),   # wide input
            pltpu.VMEM((C_MID1, NB * nwide), jnp.float32),  # wide h1
            pltpu.VMEM((C_MID2, NB * nwide), jnp.float32),  # wide h2
            pltpu.VMEM((KMAX, NB * npad), jnp.float32),     # stacked-RHS scratch
        ],
        compiler_params=pltpu.CompilerParams(
            dimension_semantics=("parallel",)),
    )(xp, mask, wslab, bslab)

    # (B//NB, cout_p, NB*npad) -> (B, Cout, H, W)
    out = out_flat.reshape(B // NB, cout_p, NB, npad).transpose(0, 2, 1, 3)
    out = out.reshape(B, cout_p, npad)[:, :Cout, :Np]
    return out.reshape(B, Cout, Hp, Wp)[:, :, 1:H + 1, 1:W + 1]


def init_params(key, c1, c2, c):
    """Deterministic init matching PyTorch Conv2d shapes (weights in HWIO)."""
    cin1 = c1 + c2
    dims = [(cin1, 48), (48, 24), (24, c)]
    params = []
    for i, (ci, co) in enumerate(dims):
        kw, kb = jax.random.split(jax.random.fold_in(key, i))
        bound = 1.0 / jnp.sqrt(ci * 9.0)
        w = jax.random.uniform(kw, (3, 3, ci, co), jnp.float32, -bound, bound)
        b = jax.random.uniform(kb, (1, co), jnp.float32, -bound, bound)
        params += [w, b]
    return tuple(params)


def ref_forward(x, y, params):
    """Pure-JAX reference (mirrors the PyTorch forward), high precision."""
    w1, b1, w2, b2, w3, b3 = params

    def conv(inp, w, b):
        out = lax.conv_general_dilated(
            inp.astype(jnp.float32), w, window_strides=(1, 1), padding="SAME",
            dimension_numbers=("NCHW", "HWIO", "NCHW"),
            precision=lax.Precision.HIGHEST)
        return out + b.reshape(1, -1, 1, 1)

    h = jax.nn.relu(conv(jnp.concatenate([x, y], axis=1), w1, b1))
    h = jax.nn.relu(conv(h, w2, b2))
    return jnp.tanh(conv(h, w3, b3))


if __name__ == "__main__":
    B, c1, c2, c, H, W = 2, 2, 2, 3, 16, 16
    key = jax.random.PRNGKey(0)
    kx, ky, kp = jax.random.split(key, 3)
    x = jax.random.normal(kx, (B, c1, H, W), jnp.float32)
    y = jax.random.normal(ky, (B, c2, H, W), jnp.float32)
    params = init_params(kp, c1, c2, c)

    out = jax.block_until_ready(jax.jit(ec_network)(x, y, params))

    ref = jax.block_until_ready(ref_forward(x, y, params))
    assert out.shape == (B, c, H, W), out.shape
    # Kernel runs the MXU at default precision (bf16-class passes) vs a
    # HIGHEST-precision reference -> ~1e-3 relative error budget.
    assert jnp.allclose(out, ref, rtol=3e-3, atol=3e-3), \
        float(jnp.max(jnp.abs(out - ref)))

    print("KERNEL_OK")
</pallas_src>

<mosaic_0001>
module attributes {stable_mosaic.version = 11 : i64} {
  func.func @ec_kernel(%arg0: i32, %arg1: memref<2x8x384xf32, #tpu.memory_space<vmem>>, %arg2: memref<1x768xf32, #tpu.memory_space<vmem>>, %arg3: memref<80x432xf32, #tpu.memory_space<vmem>>, %arg4: memref<80x1xf32, #tpu.memory_space<vmem>>, %arg5: memref<1x8x768xf32, #tpu.memory_space<vmem>>, %arg6: memref<8x1280xf32, #tpu.memory_space<vmem>>, %arg7: memref<48x1280xf32, #tpu.memory_space<vmem>>, %arg8: memref<24x1280xf32, #tpu.memory_space<vmem>>, %arg9: memref<432x768xf32, #tpu.memory_space<vmem>>) attributes {dimension_semantics = [#tpu.dimension_semantics<parallel>], iteration_bounds = array<i64: 1>, scalar_prefetch = 0 : i64, scratch_operands = 4 : i64, tpu.core_type = #tpu.core_type<tc>, window_params = [{transform_indices = @transform_0, window_bounds = array<i64: 2, 8, 384>}, {pipeline_mode = #tpu.pipeline_mode<synchronous>, transform_indices = @transform_1, window_bounds = array<i64: 1, 768>}, {pipeline_mode = #tpu.pipeline_mode<synchronous>, transform_indices = @transform_2, window_bounds = array<i64: 80, 432>}, {pipeline_mode = #tpu.pipeline_mode<synchronous>, transform_indices = @transform_3, window_bounds = array<i64: 80, 1>}, {transform_indices = @transform_4, window_bounds = array<i64: 1, 8, 768>}]} {
    %c0 = arith.constant 0 : index
    %c0_0 = arith.constant 0 : index
    %0 = vector.load %arg2[%c0, %c0_0] : memref<1x768xf32, #tpu.memory_space<vmem>>, vector<1x768xf32>
    %cst = arith.constant 0.000000e+00 : f32
    %1 = vector.broadcast %cst : f32 to vector<1x768xf32>
    %2 = arith.cmpf one, %0, %1 : vector<1x768xf32>
    %c0_1 = arith.constant 0 : index
    %c0_2 = arith.constant 0 : index
    %c0_3 = arith.constant 0 : index
    %3 = vector.load %arg1[%c0_1, %c0_2, %c0_3] : memref<2x8x384xf32, #tpu.memory_space<vmem>>, vector<1x8x384xf32>
    %4 = vector.shape_cast %3 : vector<1x8x384xf32> to vector<8x384xf32>
    %c0_4 = arith.constant 0 : index
    %c128 = arith.constant 128 : index
    %5 = vector.load %arg6[%c0_4, %c128] : memref<8x1280xf32, #tpu.memory_space<vmem>>, vector<8x384xf32>
    tpu.vector_store %arg6[%c0_4, %c128], %4 {strides = array<i32>} : memref<8x1280xf32, #tpu.memory_space<vmem>>, vector<8x384xf32>,
    %c1 = arith.constant 1 : index
    %c0_5 = arith.constant 0 : index
    %c0_6 = arith.constant 0 : index
    %6 = vector.load %arg1[%c1, %c0_5, %c0_6] : memref<2x8x384xf32, #tpu.memory_space<vmem>>, vector<1x8x384xf32>
    %7 = vector.shape_cast %6 : vector<1x8x384xf32> to vector<8x384xf32>
    %c0_7 = arith.constant 0 : index
    %c768 = arith.constant 768 : index
    %8 = vector.load %arg6[%c0_7, %c768] : memref<8x1280xf32, #tpu.memory_space<vmem>>, vector<8x384xf32>
    tpu.vector_store %arg6[%c0_7, %c768], %7 {strides = array<i32>} : memref<8x1280xf32, #tpu.memory_space<vmem>>, vector<8x384xf32>,
    %c0_8 = arith.constant 0 : index
    %c109 = arith.constant 109 : index
    %9 = vector.load %arg6[%c0_8, %c109] : memref<8x1280xf32, #tpu.memory_space<vmem>>, vector<8x384xf32>
    %c0_9 = arith.constant 0 : index
    %c0_10 = arith.constant 0 : index
    %10 = vector.load %arg9[%c0_9, %c0_10] : memref<432x768xf32, #tpu.memory_space<vmem>>, vector<8x384xf32>
    tpu.vector_store %arg9[%c0_9, %c0_10], %9 {strides = array<i32>} : memref<432x768xf32, #tpu.memory_space<vmem>>, vector<8x384xf32>,
    %c0_11 = arith.constant 0 : index
    %c749 = arith.constant 749 : index
    %11 = vector.load %arg6[%c0_11, %c749] : memref<8x1280xf32, #tpu.memory_space<vmem>>, vector<8x384xf32>
    %c0_12 = arith.constant 0 : index
    %c384 = arith.constant 384 : index
    %12 = vector.load %arg9[%c0_12, %c384] : memref<432x768xf32, #tpu.memory_space<vmem>>, vector<8x384xf32>
    tpu.vector_store %arg9[%c0_12, %c384], %11 {strides = array<i32>} : memref<432x768xf32, #tpu.memory_space<vmem>>, vector<8x384xf32>,
    %c0_13 = arith.constant 0 : index
    %c110 = arith.constant 110 : index
    %13 = vector.load %arg6[%c0_13, %c110] : memref<8x1280xf32, #tpu.memory_space<vmem>>, vector<8x384xf32>
    %c8 = arith.constant 8 : index
    %c0_14 = arith.constant 0 : index
    %14 = vector.load %arg9[%c8, %c0_14] : memref<432x768xf32, #tpu.memory_space<vmem>>, vector<8x384xf32>
    tpu.vector_store %arg9[%c8, %c0_14], %13 {strides = array<i32>} : memref<432x768xf32, #tpu.memory_space<vmem>>, vector<8x384xf32>,
    %c0_15 = arith.constant 0 : index
    %c750 = arith.constant 750 : index
    %15 = vector.load %arg6[%c0_15, %c750] : memref<8x1280xf32, #tpu.memory_space<vmem>>, vector<8x384xf32>
    %c8_16 = arith.constant 8 : index
    %c384_17 = arith.constant 384 : index
    %16 = vector.load %arg9[%c8_16, %c384_17] : memref<432x768xf32, #tpu.memory_space<vmem>>, vector<8x384xf32>
    tpu.vector_store %arg9[%c8_16, %c384_17], %15 {strides = array<i32>} : memref<432x768xf32, #tpu.memory_space<vmem>>, vector<8x384xf32>,
    %c0_18 = arith.constant 0 : index
    %c111 = arith.constant 111 : index
    %17 = vector.load %arg6[%c0_18, %c111] : memref<8x1280xf32, #tpu.memory_space<vmem>>, vector<8x384xf32>
    %c16 = arith.constant 16 : index
    %c0_19 = arith.constant 0 : index
    %18 = vector.load %arg9[%c16, %c0_19] : memref<432x768xf32, #tpu.memory_space<vmem>>, vector<8x384xf32>
    tpu.vector_store %arg9[%c16, %c0_19], %17 {strides = array<i32>} : memref<432x768xf32, #tpu.memory_space<vmem>>, vector<8x384xf32>,
    %c0_20 = arith.constant 0 : index
    %c751 = arith.constant 751 : index
    %19 = vector.load %arg6[%c0_20, %c751] : memref<8x1280xf32, #tpu.memory_space<vmem>>, vector<8x384xf32>
    %c16_21 = arith.constant 16 : index
    %c384_22 = arith.constant 384 : index
    %20 = vector.load %arg9[%c16_21, %c384_22] : memref<432x768xf32, #tpu.memory_space<vmem>>, vector<8x384xf32>
    tpu.vector_store %arg9[%c16_21, %c384_22], %19 {strides = array<i32>} : memref<432x768xf32, #tpu.memory_space<vmem>>, vector<8x384xf32>,
    %c0_23 = arith.constant 0 : index
    %c127 = arith.constant 127 : index
    %21 = vector.load %arg6[%c0_23, %c127] : memref<8x1280xf32, #tpu.memory_space<vmem>>, vector<8x384xf32>
    %c24 = arith.constant 24 : index
    %c0_24 = arith.constant 0 : index
    %22 = vector.load %arg9[%c24, %c0_24] : memref<432x768xf32, #tpu.memory_space<vmem>>, vector<8x384xf32>
    tpu.vector_store %arg9[%c24, %c0_24], %21 {strides = array<i32>} : memref<432x768xf32, #tpu.memory_space<vmem>>, vector<8x384xf32>,
    %c0_25 = arith.constant 0 : index
    %c767 = arith.constant 767 : index
    %23 = vector.load %arg6[%c0_25, %c767] : memref<8x1280xf32, #tpu.memory_space<vmem>>, vector<8x384xf32>
    %c24_26 = arith.constant 24 : index
    %c384_27 = arith.constant 384 : index
    %24 = vector.load %arg9[%c24_26, %c384_27] : memref<432x768xf32, #tpu.memory_space<vmem>>, vector<8x384xf32>
    tpu.vector_store %arg9[%c24_26, %c384_27], %23 {strides = array<i32>} : memref<432x768xf32, #tpu.memory_space<vmem>>, vector<8x384xf32>,
    %c0_28 = arith.constant 0 : index
    %c128_29 = arith.constant 128 : index
    %25 = vector.load %arg6[%c0_28, %c128_29] : memref<8x1280xf32, #tpu.memory_space<vmem>>, vector<8x384xf32>
    %c32 = arith.constant 32 : index
    %c0_30 = arith.constant 0 : index
    %26 = vector.load %arg9[%c32, %c0_30] : memref<432x768xf32, #tpu.memory_space<vmem>>, vector<8x384xf32>
    tpu.vector_store %arg9[%c32, %c0_30], %25 {strides = array<i32>} : memref<432x768xf32, #tpu.memory_space<vmem>>, vector<8x384xf32>,
    %c0_31 = arith.constant 0 : index
    %c768_32 = arith.constant 768 : index
    %27 = vector.load %arg6[%c0_31, %c768_32] : memref<8x1280xf32, #tpu.memory_space<vmem>>, vector<8x384xf32>
    %c32_33 = arith.constant 32 : index
    %c384_34 = arith.constant 384 : index
    %28 = vector.load %arg9[%c32_33, %c384_34] : memref<432x768xf32, #tpu.memory_space<vmem>>, vector<8x384xf32>
    tpu.vector_store %arg9[%c32_33, %c384_34], %27 {strides = array<i32>} : memref<432x768xf32, #tpu.memory_space<vmem>>, vector<8x384xf32>,
    %c0_35 = arith.constant 0 : index
    %c129 = arith.constant 129 : index
    %29 = vector.load %arg6[%c0_35, %c129] : memref<8x1280xf32, #tpu.memory_space<vmem>>, vector<8x384xf32>
    %c40 = arith.constant 40 : index
    %c0_36 = arith.constant 0 : index
    %30 = vector.load %arg9[%c40, %c0_36] : memref<432x768xf32, #tpu.memory_space<vmem>>, vector<8x384xf32>
    tpu.vector_store %arg9[%c40, %c0_36], %29 {strides = array<i32>} : memref<432x768xf32, #tpu.memory_space<vmem>>, vector<8x384xf32>,
    %c0_37 = arith.constant 0 : index
    %c769 = arith.constant 769 : index
    %31 = vector.load %arg6[%c0_37, %c769] : memref<8x1280xf32, #tpu.memory_space<vmem>>, vector<8x384xf32>
    %c40_38 = arith.constant 40 : index
    %c384_39 = arith.constant 384 : index
    %32 = vector.load %arg9[%c40_38, %c384_39] : memref<432x768xf32, #tpu.memory_space<vmem>>, vector<8x384xf32>
    tpu.vector_store %arg9[%c40_38, %c384_39], %31 {strides = array<i32>} : memref<432x768xf32, #tpu.memory_space<vmem>>, vector<8x384xf32>,
    %c0_40 = arith.constant 0 : index
    %c145 = arith.constant 145 : index
    %33 = vector.load %arg6[%c0_40, %c145] : memref<8x1280xf32, #tpu.memory_space<vmem>>, vector<8x384xf32>
    %c48 = arith.constant 48 : index
    %c0_41 = arith.constant 0 : index
    %34 = vector.load %arg9[%c48, %c0_41] : memref<432x768xf32, #tpu.memory_space<vmem>>, vector<8x384xf32>
    tpu.vector_store %arg9[%c48, %c0_41], %33 {strides = array<i32>} : memref<432x768xf32, #tpu.memory_space<vmem>>, vector<8x384xf32>,
    %c0_42 = arith.constant 0 : index
    %c785 = arith.constant 785 : index
    %35 = vector.load %arg6[%c0_42, %c785] : memref<8x1280xf32, #tpu.memory_space<vmem>>, vector<8x384xf32>
    %c48_43 = arith.constant 48 : index
    %c384_44 = arith.constant 384 : index
    %36 = vector.load %arg9[%c48_43, %c384_44] : memref<432x768xf32, #tpu.memory_space<vmem>>, vector<8x384xf32>
    tpu.vector_store %arg9[%c48_43, %c384_44], %35 {strides = array<i32>} : memref<432x768xf32, #tpu.memory_space<vmem>>, vector<8x384xf32>,
    %c0_45 = arith.constant 0 : index
    %c146 = arith.constant 146 : index
    %37 = vector.load %arg6[%c0_45, %c146] : memref<8x1280xf32, #tpu.memory_space<vmem>>, vector<8x384xf32>
    %c56 = arith.constant 56 : index
    %c0_46 = arith.constant 0 : index
    %38 = vector.load %arg9[%c56, %c0_46] : memref<432x768xf32, #tpu.memory_space<vmem>>, vector<8x384xf32>
    tpu.vector_store %arg9[%c56, %c0_46], %37 {strides = array<i32>} : memref<432x768xf32, #tpu.memory_space<vmem>>, vector<8x384xf32>,
    %c0_47 = arith.constant 0 : index
    %c786 = arith.constant 786 : index
    %39 = vector.load %arg6[%c0_47, %c786] : memref<8x1280xf32, #tpu.memory_space<vmem>>, vector<8x384xf32>
    %c56_48 = arith.constant 56 : index
    %c384_49 = arith.constant 384 : index
    %40 = vector.load %arg9[%c56_48, %c384_49] : memref<432x768xf32, #tpu.memory_space<vmem>>, vector<8x384xf32>
    tpu.vector_store %arg9[%c56_48, %c384_49], %39 {strides = array<i32>} : memref<432x768xf32, #tpu.memory_space<vmem>>, vector<8x384xf32>,
    %c0_50 = arith.constant 0 : index
    %c147 = arith.constant 147 : index
    %41 = vector.load %arg6[%c0_50, %c147] : memref<8x1280xf32, #tpu.memory_space<vmem>>, vector<8x384xf32>
    %c64 = arith.constant 64 : index
    %c0_51 = arith.constant 0 : index
    %42 = vector.load %arg9[%c64, %c0_51] : memref<432x768xf32, #tpu.memory_space<vmem>>, vector<8x384xf32>
    tpu.vector_store %arg9[%c64, %c0_51], %41 {strides = array<i32>} : memref<432x768xf32, #tpu.memory_space<vmem>>, vector<8x384xf32>,
    %c0_52 = arith.constant 0 : index
    %c787 = arith.constant 787 : index
    %43 = vector.load %arg6[%c0_52, %c787] : memref<8x1280xf32, #tpu.memory_space<vmem>>, vector<8x384xf32>
    %c64_53 = arith.constant 64 : index
    %c384_54 = arith.constant 384 : index
    %44 = vector.load %arg9[%c64_53, %c384_54] : memref<432x768xf32, #tpu.memory_space<vmem>>, vector<8x384xf32>
    tpu.vector_store %arg9[%c64_53, %c384_54], %43 {strides = array<i32>} : memref<432x768xf32, #tpu.memory_space<vmem>>, vector<8x384xf32>,
    %c0_55 = arith.constant 0 : index
    %c0_56 = arith.constant 0 : index
    %45 = vector.load %arg3[%c0_55, %c0_56] : memref<80x432xf32, #tpu.memory_space<vmem>>, vector<48x72xf32>
    %c0_57 = arith.constant 0 : index
    %c0_58 = arith.constant 0 : index
    %46 = vector.load %arg9[%c0_57, %c0_58] : memref<432x768xf32, #tpu.memory_space<vmem>>, vector<72x768xf32>
    %cst_59 = arith.constant dense<0.000000e+00> : vector<48x768xf32>
    %47 = tpu.matmul %45, %46, %cst_59 {dimension_numbers = #tpu.dot_dimension_numbers<[1], [0], [0], [1], [0, 0, 1, 1], [], []>} : vector<48x72xf32>, vector<72x768xf32>, vector<48x768xf32> -> vector<48x768xf32>
    %c0_60 = arith.constant 0 : index
    %c0_61 = arith.constant 0 : index
    %48 = vector.load %arg4[%c0_60, %c0_61] : memref<80x1xf32, #tpu.memory_space<vmem>>, vector<48x1xf32>
    %49 = vector.broadcast %48 : vector<48x1xf32> to vector<48x768xf32>
    %50 = arith.addf %47, %49 : vector<48x768xf32>
    %cst_62 = arith.constant 0.000000e+00 : f32
    %51 = vector.broadcast %cst_62 : f32 to vector<48x768xf32>
    %52 = arith.maximumf %50, %51 : vector<48x768xf32>
    %cst_63 = arith.constant 0.000000e+00 : f32
    %53 = vector.shape_cast %2 : vector<1x768xi1> to vector<1x768xi1>
    %54 = vector.broadcast %53 : vector<1x768xi1> to vector<48x768xi1>
    %55 = vector.broadcast %cst_63 : f32 to vector<48x768xf32>
    %56 = arith.select %54, %52, %55 : vector<48x768xi1>, vector<48x768xf32>
    %57 = vector.extract_strided_slice %56 {offsets = [0, 0], sizes = [48, 384], strides = [1, 1]} : vector<48x768xf32> to vector<48x384xf32>
    %c0_64 = arith.constant 0 : index
    %c128_65 = arith.constant 128 : index
    %58 = vector.load %arg7[%c0_64, %c128_65] : memref<48x1280xf32, #tpu.memory_space<vmem>>, vector<48x384xf32>
    tpu.vector_store %arg7[%c0_64, %c128_65], %57 {strides = array<i32>} : memref<48x1280xf32, #tpu.memory_space<vmem>>, vector<48x384xf32>,
    %59 = vector.extract_strided_slice %56 {offsets = [0, 384], sizes = [48, 384], strides = [1, 1]} : vector<48x768xf32> to vector<48x384xf32>
    %c0_66 = arith.constant 0 : index
    %c768_67 = arith.constant 768 : index
    %60 = vector.load %arg7[%c0_66, %c768_67] : memref<48x1280xf32, #tpu.memory_space<vmem>>, vector<48x384xf32>
    tpu.vector_store %arg7[%c0_66, %c768_67], %59 {strides = array<i32>} : memref<48x1280xf32, #tpu.memory_space<vmem>>, vector<48x384xf32>,
    %c0_68 = arith.constant 0 : index
    %c109_69 = arith.constant 109 : index
    %61 = vector.load %arg7[%c0_68, %c109_69] : memref<48x1280xf32, #tpu.memory_space<vmem>>, vector<48x384xf32>
    %c0_70 = arith.constant 0 : index
    %c0_71 = arith.constant 0 : index
    %62 = vector.load %arg9[%c0_70, %c0_71] : memref<432x768xf32, #tpu.memory_space<vmem>>, vector<48x384xf32>
    tpu.vector_store %arg9[%c0_70, %c0_71], %61 {strides = array<i32>} : memref<432x768xf32, #tpu.memory_space<vmem>>, vector<48x384xf32>,
    %c0_72 = arith.constant 0 : index
    %c749_73 = arith.constant 749 : index
    %63 = vector.load %arg7[%c0_72, %c749_73] : memref<48x1280xf32, #tpu.memory_space<vmem>>, vector<48x384xf32>
    %c0_74 = arith.constant 0 : index
    %c384_75 = arith.constant 384 : index
    %64 = vector.load %arg9[%c0_74, %c384_75] : memref<432x768xf32, #tpu.memory_space<vmem>>, vector<48x384xf32>
    tpu.vector_store %arg9[%c0_74, %c384_75], %63 {strides = array<i32>} : memref<432x768xf32, #tpu.memory_space<vmem>>, vector<48x384xf32>,
    %c0_76 = arith.constant 0 : index
    %c110_77 = arith.constant 110 : index
    %65 = vector.load %arg7[%c0_76, %c110_77] : memref<48x1280xf32, #tpu.memory_space<vmem>>, vector<48x384xf32>
    %c48_78 = arith.constant 48 : index
    %c0_79 = arith.constant 0 : index
    %66 = vector.load %arg9[%c48_78, %c0_79] : memref<432x768xf32, #tpu.memory_space<vmem>>, vector<48x384xf32>
    tpu.vector_store %arg9[%c48_78, %c0_79], %65 {strides = array<i32>} : memref<432x768xf32, #tpu.memory_space<vmem>>, vector<48x384xf32>,
    %c0_80 = arith.constant 0 : index
    %c750_81 = arith.constant 750 : index
    %67 = vector.load %arg7[%c0_80, %c750_81] : memref<48x1280xf32, #tpu.memory_space<vmem>>, vector<48x384xf32>
    %c48_82 = arith.constant 48 : index
    %c384_83 = arith.constant 384 : index
    %68 = vector.load %arg9[%c48_82, %c384_83] : memref<432x768xf32, #tpu.memory_space<vmem>>, vector<48x384xf32>
    tpu.vector_store %arg9[%c48_82, %c384_83], %67 {strides = array<i32>} : memref<432x768xf32, #tpu.memory_space<vmem>>, vector<48x384xf32>,
    %c0_84 = arith.constant 0 : index
    %c111_85 = arith.constant 111 : index
    %69 = vector.load %arg7[%c0_84, %c111_85] : memref<48x1280xf32, #tpu.memory_space<vmem>>, vector<48x384xf32>
    %c96 = arith.constant 96 : index
    %c0_86 = arith.constant 0 : index
    %70 = vector.load %arg9[%c96, %c0_86] : memref<432x768xf32, #tpu.memory_space<vmem>>, vector<48x384xf32>
    tpu.vector_store %arg9[%c96, %c0_86], %69 {strides = array<i32>} : memref<432x768xf32, #tpu.memory_space<vmem>>, vector<48x384xf32>,
    %c0_87 = arith.constant 0 : index
    %c751_88 = arith.constant 751 : index
    %71 = vector.load %arg7[%c0_87, %c751_88] : memref<48x1280xf32, #tpu.memory_space<vmem>>, vector<48x384xf32>
    %c96_89 = arith.constant 96 : index
    %c384_90 = arith.constant 384 : index
    %72 = vector.load %arg9[%c96_89, %c384_90] : memref<432x768xf32, #tpu.memory_space<vmem>>, vector<48x384xf32>
    tpu.vector_store %arg9[%c96_89, %c384_90], %71 {strides = array<i32>} : memref<432x768xf32, #tpu.memory_space<vmem>>, vector<48x384xf32>,
    %c0_91 = arith.constant 0 : index
    %c127_92 = arith.constant 127 : index
    %73 = vector.load %arg7[%c0_91, %c127_92] : memref<48x1280xf32, #tpu.memory_space<vmem>>, vector<48x384xf32>
    %c144 = arith.constant 144 : index
    %c0_93 = arith.constant 0 : index
    %74 = vector.load %arg9[%c144, %c0_93] : memref<432x768xf32, #tpu.memory_space<vmem>>, vector<48x384xf32>
    tpu.vector_store %arg9[%c144, %c0_93], %73 {strides = array<i32>} : memref<432x768xf32, #tpu.memory_space<vmem>>, vector<48x384xf32>,
    %c0_94 = arith.constant 0 : index
    %c767_95 = arith.constant 767 : index
    %75 = vector.load %arg7[%c0_94, %c767_95] : memref<48x1280xf32, #tpu.memory_space<vmem>>, vector<48x384xf32>
    %c144_96 = arith.constant 144 : index
    %c384_97 = arith.constant 384 : index
    %76 = vector.load %arg9[%c144_96, %c384_97] : memref<432x768xf32, #tpu.memory_space<vmem>>, vector<48x384xf32>
    tpu.vector_store %arg9[%c144_96, %c384_97], %75 {strides = array<i32>} : memref<432x768xf32, #tpu.memory_space<vmem>>, vector<48x384xf32>,
    %c0_98 = arith.constant 0 : index
    %c128_99 = arith.constant 128 : index
    %77 = vector.load %arg7[%c0_98, %c128_99] : memref<48x1280xf32, #tpu.memory_space<vmem>>, vector<48x384xf32>
    %c192 = arith.constant 192 : index
    %c0_100 = arith.constant 0 : index
    %78 = vector.load %arg9[%c192, %c0_100] : memref<432x768xf32, #tpu.memory_space<vmem>>, vector<48x384xf32>
    tpu.vector_store %arg9[%c192, %c0_100], %77 {strides = array<i32>} : memref<432x768xf32, #tpu.memory_space<vmem>>, vector<48x384xf32>,
    %c0_101 = arith.constant 0 : index
    %c768_102 = arith.constant 768 : index
    %79 = vector.load %arg7[%c0_101, %c768_102] : memref<48x1280xf32, #tpu.memory_space<vmem>>, vector<48x384xf32>
    %c192_103 = arith.constant 192 : index
    %c384_104 = arith.constant 384 : index
    %80 = vector.load %arg9[%c192_103, %c384_104] : memref<432x768xf32, #tpu.memory_space<vmem>>, vector<48x384xf32>
    tpu.vector_store %arg9[%c192_103, %c384_104], %79 {strides = array<i32>} : memref<432x768xf32, #tpu.memory_space<vmem>>, vector<48x384xf32>,
    %c0_105 = arith.constant 0 : index
    %c129_106 = arith.constant 129 : index
    %81 = vector.load %arg7[%c0_105, %c129_106] : memref<48x1280xf32, #tpu.memory_space<vmem>>, vector<48x384xf32>
    %c240 = arith.constant 240 : index
    %c0_107 = arith.constant 0 : index
    %82 = vector.load %arg9[%c240, %c0_107] : memref<432x768xf32, #tpu.memory_space<vmem>>, vector<48x384xf32>
    tpu.vector_store %arg9[%c240, %c0_107], %81 {strides = array<i32>} : memref<432x768xf32, #tpu.memory_space<vmem>>, vector<48x384xf32>,
    %c0_108 = arith.constant 0 : index
    %c769_109 = arith.constant 769 : index
    %83 = vector.load %arg7[%c0_108, %c769_109] : memref<48x1280xf32, #tpu.memory_space<vmem>>, vector<48x384xf32>
    %c240_110 = arith.constant 240 : index
    %c384_111 = arith.constant 384 : index
    %84 = vector.load %arg9[%c240_110, %c384_111] : memref<432x768xf32, #tpu.memory_space<vmem>>, vector<48x384xf32>
    tpu.vector_store %arg9[%c240_110, %c384_111], %83 {strides = array<i32>} : memref<432x768xf32, #tpu.memory_space<vmem>>, vector<48x384xf32>,
    %c0_112 = arith.constant 0 : index
    %c145_113 = arith.constant 145 : index
    %85 = vector.load %arg7[%c0_112, %c145_113] : memref<48x1280xf32, #tpu.memory_space<vmem>>, vector<48x384xf32>
    %c288 = arith.constant 288 : index
    %c0_114 = arith.constant 0 : index
    %86 = vector.load %arg9[%c288, %c0_114] : memref<432x768xf32, #tpu.memory_space<vmem>>, vector<48x384xf32>
    tpu.vector_store %arg9[%c288, %c0_114], %85 {strides = array<i32>} : memref<432x768xf32, #tpu.memory_space<vmem>>, vector<48x384xf32>,
    %c0_115 = arith.constant 0 : index
    %c785_116 = arith.constant 785 : index
    %87 = vector.load %arg7[%c0_115, %c785_116] : memref<48x1280xf32, #tpu.memory_space<vmem>>, vector<48x384xf32>
    %c288_117 = arith.constant 288 : index
    %c384_118 = arith.constant 384 : index
    %88 = vector.load %arg9[%c288_117, %c384_118] : memref<432x768xf32, #tpu.memory_space<vmem>>, vector<48x384xf32>
    tpu.vector_store %arg9[%c288_117, %c384_118], %87 {strides = array<i32>} : memref<432x768xf32, #tpu.memory_space<vmem>>, vector<48x384xf32>,
    %c0_119 = arith.constant 0 : index
    %c146_120 = arith.constant 146 : index
    %89 = vector.load %arg7[%c0_119, %c146_120] : memref<48x1280xf32, #tpu.memory_space<vmem>>, vector<48x384xf32>
    %c336 = arith.constant 336 : index
    %c0_121 = arith.constant 0 : index
    %90 = vector.load %arg9[%c336, %c0_121] : memref<432x768xf32, #tpu.memory_space<vmem>>, vector<48x384xf32>
    tpu.vector_store %arg9[%c336, %c0_121], %89 {strides = array<i32>} : memref<432x768xf32, #tpu.memory_space<vmem>>, vector<48x384xf32>,
    %c0_122 = arith.constant 0 : index
    %c786_123 = arith.constant 786 : index
    %91 = vector.load %arg7[%c0_122, %c786_123] : memref<48x1280xf32, #tpu.memory_space<vmem>>, vector<48x384xf32>
    %c336_124 = arith.constant 336 : index
    %c384_125 = arith.constant 384 : index
    %92 = vector.load %arg9[%c336_124, %c384_125] : memref<432x768xf32, #tpu.memory_space<vmem>>, vector<48x384xf32>
    tpu.vector_store %arg9[%c336_124, %c384_125], %91 {strides = array<i32>} : memref<432x768xf32, #tpu.memory_space<vmem>>, vector<48x384xf32>,
    %c0_126 = arith.constant 0 : index
    %c147_127 = arith.constant 147 : index
    %93 = vector.load %arg7[%c0_126, %c147_127] : memref<48x1280xf32, #tpu.memory_space<vmem>>, vector<48x384xf32>
    %c384_128 = arith.constant 384 : index
    %c0_129 = arith.constant 0 : index
    %94 = vector.load %arg9[%c384_128, %c0_129] : memref<432x768xf32, #tpu.memory_space<vmem>>, vector<48x384xf32>
    tpu.vector_store %arg9[%c384_128, %c0_129], %93 {strides = array<i32>} : memref<432x768xf32, #tpu.memory_space<vmem>>, vector<48x384xf32>,
    %c0_130 = arith.constant 0 : index
    %c787_131 = arith.constant 787 : index
    %95 = vector.load %arg7[%c0_130, %c787_131] : memref<48x1280xf32, #tpu.memory_space<vmem>>, vector<48x384xf32>
    %c384_132 = arith.constant 384 : index
    %c384_133 = arith.constant 384 : index
    %96 = vector.load %arg9[%c384_132, %c384_133] : memref<432x768xf32, #tpu.memory_space<vmem>>, vector<48x384xf32>
    tpu.vector_store %arg9[%c384_132, %c384_133], %95 {strides = array<i32>} : memref<432x768xf32, #tpu.memory_space<vmem>>, vector<48x384xf32>,
    %c48_134 = arith.constant 48 : index
    %c0_135 = arith.constant 0 : index
    %97 = vector.load %arg3[%c48_134, %c0_135] : memref<80x432xf32, #tpu.memory_space<vmem>>, vector<24x432xf32>
    %c0_136 = arith.constant 0 : index
    %c0_137 = arith.constant 0 : index
    %98 = vector.load %arg9[%c0_136, %c0_137] : memref<432x768xf32, #tpu.memory_space<vmem>>, vector<432x768xf32>
    %cst_138 = arith.constant dense<0.000000e+00> : vector<24x768xf32>
    %99 = tpu.matmul %97, %98, %cst_138 {dimension_numbers = #tpu.dot_dimension_numbers<[1], [0], [0], [1], [0, 0, 1, 1], [], []>} : vector<24x432xf32>, vector<432x768xf32>, vector<24x768xf32> -> vector<24x768xf32>
    %c48_139 = arith.constant 48 : index
    %c0_140 = arith.constant 0 : index
    %100 = vector.load %arg4[%c48_139, %c0_140] : memref<80x1xf32, #tpu.memory_space<vmem>>, vector<24x1xf32>
    %101 = vector.broadcast %100 : vector<24x1xf32> to vector<24x768xf32>
    %102 = arith.addf %99, %101 : vector<24x768xf32>
    %cst_141 = arith.constant 0.000000e+00 : f32
    %103 = vector.broadcast %cst_141 : f32 to vector<24x768xf32>
    %104 = arith.maximumf %102, %103 : vector<24x768xf32>
    %cst_142 = arith.constant 0.000000e+00 : f32
    %105 = vector.shape_cast %2 : vector<1x768xi1> to vector<1x768xi1>
    %106 = vector.broadcast %105 : vector<1x768xi1> to vector<24x768xi1>
    %107 = vector.broadcast %cst_142 : f32 to vector<24x768xf32>
    %108 = arith.select %106, %104, %107 : vector<24x768xi1>, vector<24x768xf32>
    %109 = vector.extract_strided_slice %108 {offsets = [0, 0], sizes = [24, 384], strides = [1, 1]} : vector<24x768xf32> to vector<24x384xf32>
    %c0_143 = arith.constant 0 : index
    %c128_144 = arith.constant 128 : index
    %110 = vector.load %arg8[%c0_143, %c128_144] : memref<24x1280xf32, #tpu.memory_space<vmem>>, vector<24x384xf32>
    tpu.vector_store %arg8[%c0_143, %c128_144], %109 {strides = array<i32>} : memref<24x1280xf32, #tpu.memory_space<vmem>>, vector<24x384xf32>,
    %111 = vector.extract_strided_slice %108 {offsets = [0, 384], sizes = [24, 384], strides = [1, 1]} : vector<24x768xf32> to vector<24x384xf32>
    %c0_145 = arith.constant 0 : index
    %c768_146 = arith.constant 768 : index
    %112 = vector.load %arg8[%c0_145, %c768_146] : memref<24x1280xf32, #tpu.memory_space<vmem>>, vector<24x384xf32>
    tpu.vector_store %arg8[%c0_145, %c768_146], %111 {strides = array<i32>} : memref<24x1280xf32, #tpu.memory_space<vmem>>, vector<24x384xf32>,
    %c0_147 = arith.constant 0 : index
    %c109_148 = arith.constant 109 : index
    %113 = vector.load %arg8[%c0_147, %c109_148] : memref<24x1280xf32, #tpu.memory_space<vmem>>, vector<24x384xf32>
    %c0_149 = arith.constant 0 : index
    %c0_150 = arith.constant 0 : index
    %114 = vector.load %arg9[%c0_149, %c0_150] : memref<432x768xf32, #tpu.memory_space<vmem>>, vector<24x384xf32>
    tpu.vector_store %arg9[%c0_149, %c0_150], %113 {strides = array<i32>} : memref<432x768xf32, #tpu.memory_space<vmem>>, vector<24x384xf32>,
    %c0_151 = arith.constant 0 : index
    %c749_152 = arith.constant 749 : index
    %115 = vector.load %arg8[%c0_151, %c749_152] : memref<24x1280xf32, #tpu.memory_space<vmem>>, vector<24x384xf32>
    %c0_153 = arith.constant 0 : index
    %c384_154 = arith.constant 384 : index
    %116 = vector.load %arg9[%c0_153, %c384_154] : memref<432x768xf32, #tpu.memory_space<vmem>>, vector<24x384xf32>
    tpu.vector_store %arg9[%c0_153, %c384_154], %115 {strides = array<i32>} : memref<432x768xf32, #tpu.memory_space<vmem>>, vector<24x384xf32>,
    %c0_155 = arith.constant 0 : index
    %c110_156 = arith.constant 110 : index
    %117 = vector.load %arg8[%c0_155, %c110_156] : memref<24x1280xf32, #tpu.memory_space<vmem>>, vector<24x384xf32>
    %c24_157 = arith.constant 24 : index
    %c0_158 = arith.constant 0 : index
    %118 = vector.load %arg9[%c24_157, %c0_158] : memref<432x768xf32, #tpu.memory_space<vmem>>, vector<24x384xf32>
    tpu.vector_store %arg9[%c24_157, %c0_158], %117 {strides = array<i32>} : memref<432x768xf32, #tpu.memory_space<vmem>>, vector<24x384xf32>,
    %c0_159 = arith.constant 0 : index
    %c750_160 = arith.constant 750 : index
    %119 = vector.load %arg8[%c0_159, %c750_160] : memref<24x1280xf32, #tpu.memory_space<vmem>>, vector<24x384xf32>
    %c24_161 = arith.constant 24 : index
    %c384_162 = arith.constant 384 : index
    %120 = vector.load %arg9[%c24_161, %c384_162] : memref<432x768xf32, #tpu.memory_space<vmem>>, vector<24x384xf32>
    tpu.vector_store %arg9[%c24_161, %c384_162], %119 {strides = array<i32>} : memref<432x768xf32, #tpu.memory_space<vmem>>, vector<24x384xf32>,
    %c0_163 = arith.constant 0 : index
    %c111_164 = arith.constant 111 : index
    %121 = vector.load %arg8[%c0_163, %c111_164] : memref<24x1280xf32, #tpu.memory_space<vmem>>, vector<24x384xf32>
    %c48_165 = arith.constant 48 : index
    %c0_166 = arith.constant 0 : index
    %122 = vector.load %arg9[%c48_165, %c0_166] : memref<432x768xf32, #tpu.memory_space<vmem>>, vector<24x384xf32>
    tpu.vector_store %arg9[%c48_165, %c0_166], %121 {strides = array<i32>} : memref<432x768xf32, #tpu.memory_space<vmem>>, vector<24x384xf32>,
    %c0_167 = arith.constant 0 : index
    %c751_168 = arith.constant 751 : index
    %123 = vector.load %arg8[%c0_167, %c751_168] : memref<24x1280xf32, #tpu.memory_space<vmem>>, vector<24x384xf32>
    %c48_169 = arith.constant 48 : index
    %c384_170 = arith.constant 384 : index
    %124 = vector.load %arg9[%c48_169, %c384_170] : memref<432x768xf32, #tpu.memory_space<vmem>>, vector<24x384xf32>
    tpu.vector_store %arg9[%c48_169, %c384_170], %123 {strides = array<i32>} : memref<432x768xf32, #tpu.memory_space<vmem>>, vector<24x384xf32>,
    %c0_171 = arith.constant 0 : index
    %c127_172 = arith.constant 127 : index
    %125 = vector.load %arg8[%c0_171, %c127_172] : memref<24x1280xf32, #tpu.memory_space<vmem>>, vector<24x384xf32>
    %c72 = arith.constant 72 : index
    %c0_173 = arith.constant 0 : index
    %126 = vector.load %arg9[%c72, %c0_173] : memref<432x768xf32, #tpu.memory_space<vmem>>, vector<24x384xf32>
    tpu.vector_store %arg9[%c72, %c0_173], %125 {strides = array<i32>} : memref<432x768xf32, #tpu.memory_space<vmem>>, vector<24x384xf32>,
    %c0_174 = arith.constant 0 : index
    %c767_175 = arith.constant 767 : index
    %127 = vector.load %arg8[%c0_174, %c767_175] : memref<24x1280xf32, #tpu.memory_space<vmem>>, vector<24x384xf32>
    %c72_176 = arith.constant 72 : index
    %c384_177 = arith.constant 384 : index
    %128 = vector.load %arg9[%c72_176, %c384_177] : memref<432x768xf32, #tpu.memory_space<vmem>>, vector<24x384xf32>
    tpu.vector_store %arg9[%c72_176, %c384_177], %127 {strides = array<i32>} : memref<432x768xf32, #tpu.memory_space<vmem>>, vector<24x384xf32>,
    %c0_178 = arith.constant 0 : index
    %c128_179 = arith.constant 128 : index
    %129 = vector.load %arg8[%c0_178, %c128_179] : memref<24x1280xf32, #tpu.memory_space<vmem>>, vector<24x384xf32>
    %c96_180 = arith.constant 96 : index
    %c0_181 = arith.constant 0 : index
    %130 = vector.load %arg9[%c96_180, %c0_181] : memref<432x768xf32, #tpu.memory_space<vmem>>, vector<24x384xf32>
    tpu.vector_store %arg9[%c96_180, %c0_181], %129 {strides = array<i32>} : memref<432x768xf32, #tpu.memory_space<vmem>>, vector<24x384xf32>,
    %c0_182 = arith.constant 0 : index
    %c768_183 = arith.constant 768 : index
    %131 = vector.load %arg8[%c0_182, %c768_183] : memref<24x1280xf32, #tpu.memory_space<vmem>>, vector<24x384xf32>
    %c96_184 = arith.constant 96 : index
    %c384_185 = arith.constant 384 : index
    %132 = vector.load %arg9[%c96_184, %c384_185] : memref<432x768xf32, #tpu.memory_space<vmem>>, vector<24x384xf32>
    tpu.vector_store %arg9[%c96_184, %c384_185], %131 {strides = array<i32>} : memref<432x768xf32, #tpu.memory_space<vmem>>, vector<24x384xf32>,
    %c0_186 = arith.constant 0 : index
    %c129_187 = arith.constant 129 : index
    %133 = vector.load %arg8[%c0_186, %c129_187] : memref<24x1280xf32, #tpu.memory_space<vmem>>, vector<24x384xf32>
    %c120 = arith.constant 120 : index
    %c0_188 = arith.constant 0 : index
    %134 = vector.load %arg9[%c120, %c0_188] : memref<432x768xf32, #tpu.memory_space<vmem>>, vector<24x384xf32>
    tpu.vector_store %arg9[%c120, %c0_188], %133 {strides = array<i32>} : memref<432x768xf32, #tpu.memory_space<vmem>>, vector<24x384xf32>,
    %c0_189 = arith.constant 0 : index
    %c769_190 = arith.constant 769 : index
    %135 = vector.load %arg8[%c0_189, %c769_190] : memref<24x1280xf32, #tpu.memory_space<vmem>>, vector<24x384xf32>
    %c120_191 = arith.constant 120 : index
    %c384_192 = arith.constant 384 : index
    %136 = vector.load %arg9[%c120_191, %c384_192] : memref<432x768xf32, #tpu.memory_space<vmem>>, vector<24x384xf32>
    tpu.vector_store %arg9[%c120_191, %c384_192], %135 {strides = array<i32>} : memref<432x768xf32, #tpu.memory_space<vmem>>, vector<24x384xf32>,
    %c0_193 = arith.constant 0 : index
    %c145_194 = arith.constant 145 : index
    %137 = vector.load %arg8[%c0_193, %c145_194] : memref<24x1280xf32, #tpu.memory_space<vmem>>, vector<24x384xf32>
    %c144_195 = arith.constant 144 : index
    %c0_196 = arith.constant 0 : index
    %138 = vector.load %arg9[%c144_195, %c0_196] : memref<432x768xf32, #tpu.memory_space<vmem>>, vector<24x384xf32>
    tpu.vector_store %arg9[%c144_195, %c0_196], %137 {strides = array<i32>} : memref<432x768xf32, #tpu.memory_space<vmem>>, vector<24x384xf32>,
    %c0_197 = arith.constant 0 : index
    %c785_198 = arith.constant 785 : index
    %139 = vector.load %arg8[%c0_197, %c785_198] : memref<24x1280xf32, #tpu.memory_space<vmem>>, vector<24x384xf32>
    %c144_199 = arith.constant 144 : index
    %c384_200 = arith.constant 384 : index
    %140 = vector.load %arg9[%c144_199, %c384_200] : memref<432x768xf32, #tpu.memory_space<vmem>>, vector<24x384xf32>
    tpu.vector_store %arg9[%c144_199, %c384_200], %139 {strides = array<i32>} : memref<432x768xf32, #tpu.memory_space<vmem>>, vector<24x384xf32>,
    %c0_201 = arith.constant 0 : index
    %c146_202 = arith.constant 146 : index
    %141 = vector.load %arg8[%c0_201, %c146_202] : memref<24x1280xf32, #tpu.memory_space<vmem>>, vector<24x384xf32>
    %c168 = arith.constant 168 : index
    %c0_203 = arith.constant 0 : index
    %142 = vector.load %arg9[%c168, %c0_203] : memref<432x768xf32, #tpu.memory_space<vmem>>, vector<24x384xf32>
    tpu.vector_store %arg9[%c168, %c0_203], %141 {strides = array<i32>} : memref<432x768xf32, #tpu.memory_space<vmem>>, vector<24x384xf32>,
    %c0_204 = arith.constant 0 : index
    %c786_205 = arith.constant 786 : index
    %143 = vector.load %arg8[%c0_204, %c786_205] : memref<24x1280xf32, #tpu.memory_space<vmem>>, vector<24x384xf32>
    %c168_206 = arith.constant 168 : index
    %c384_207 = arith.constant 384 : index
    %144 = vector.load %arg9[%c168_206, %c384_207] : memref<432x768xf32, #tpu.memory_space<vmem>>, vector<24x384xf32>
    tpu.vector_store %arg9[%c168_206, %c384_207], %143 {strides = array<i32>} : memref<432x768xf32, #tpu.memory_space<vmem>>, vector<24x384xf32>,
    %c0_208 = arith.constant 0 : index
    %c147_209 = arith.constant 147 : index
    %145 = vector.load %arg8[%c0_208, %c147_209] : memref<24x1280xf32, #tpu.memory_space<vmem>>, vector<24x384xf32>
    %c192_210 = arith.constant 192 : index
    %c0_211 = arith.constant 0 : index
    %146 = vector.load %arg9[%c192_210, %c0_211] : memref<432x768xf32, #tpu.memory_space<vmem>>, vector<24x384xf32>
    tpu.vector_store %arg9[%c192_210, %c0_211], %145 {strides = array<i32>} : memref<432x768xf32, #tpu.memory_space<vmem>>, vector<24x384xf32>,
    %c0_212 = arith.constant 0 : index
    %c787_213 = arith.constant 787 : index
    %147 = vector.load %arg8[%c0_212, %c787_213] : memref<24x1280xf32, #tpu.memory_space<vmem>>, vector<24x384xf32>
    %c192_214 = arith.constant 192 : index
    %c384_215 = arith.constant 384 : index
    %148 = vector.load %arg9[%c192_214, %c384_215] : memref<432x768xf32, #tpu.memory_space<vmem>>, vector<24x384xf32>
    tpu.vector_store %arg9[%c192_214, %c384_215], %147 {strides = array<i32>} : memref<432x768xf32, #tpu.memory_space<vmem>>, vector<24x384xf32>,
    %c72_216 = arith.constant 72 : index
    %c0_217 = arith.constant 0 : index
    %149 = vector.load %arg3[%c72_216, %c0_217] : memref<80x432xf32, #tpu.memory_space<vmem>>, vector<8x216xf32>
    %c0_218 = arith.constant 0 : index
    %c0_219 = arith.constant 0 : index
    %150 = vector.load %arg9[%c0_218, %c0_219] : memref<432x768xf32, #tpu.memory_space<vmem>>, vector<216x768xf32>
    %cst_220 = arith.constant dense<0.000000e+00> : vector<8x768xf32>
    %151 = tpu.matmul %149, %150, %cst_220 {dimension_numbers = #tpu.dot_dimension_numbers<[1], [0], [0], [1], [0, 0, 1, 1], [], []>} : vector<8x216xf32>, vector<216x768xf32>, vector<8x768xf32> -> vector<8x768xf32>
    %c72_221 = arith.constant 72 : index
    %c0_222 = arith.constant 0 : index
    %152 = vector.load %arg4[%c72_221, %c0_222] : memref<80x1xf32, #tpu.memory_space<vmem>>, vector<8x1xf32>
    %153 = vector.broadcast %152 : vector<8x1xf32> to vector<8x768xf32>
    %154 = arith.addf %151, %153 : vector<8x768xf32>
    %cst_223 = arith.constant 0.000000e+00 : f32
    %155 = vector.shape_cast %2 : vector<1x768xi1> to vector<1x768xi1>
    %156 = vector.broadcast %155 : vector<1x768xi1> to vector<8x768xi1>
    %157 = vector.broadcast %cst_223 : f32 to vector<8x768xf32>
    %158 = arith.select %156, %154, %157 : vector<8x768xi1>, vector<8x768xf32>
    %159 = math.tanh %158 : vector<8x768xf32>
    %c0_224 = arith.constant 0 : index
    %c0_225 = arith.constant 0 : index
    %c0_226 = arith.constant 0 : index
    %160 = vector.load %arg5[%c0_224, %c0_225, %c0_226] : memref<1x8x768xf32, #tpu.memory_space<vmem>>, vector<1x8x768xf32>
    %161 = vector.shape_cast %160 : vector<1x8x768xf32> to vector<8x768xf32>
    %162 = vector.shape_cast %159 : vector<8x768xf32> to vector<1x8x768xf32>
    tpu.vector_store %arg5[%c0_224, %c0_225, %c0_226], %162 {strides = array<i32>} : memref<1x8x768xf32, #tpu.memory_space<vmem>>, vector<1x8x768xf32>,
    return
  }
  func.func @transform_0(%arg0: i32) -> (i32, i32, i32) {
    %c0_i32 = arith.constant 0 : i32
    %c0_i32_0 = arith.constant 0 : i32
    %c0_i32_1 = arith.constant 0 : i32
    return %arg0, %c0_i32, %c0_i32_0 : i32, i32, i32
  }
  func.func @transform_1(%arg0: i32) -> (i32, i32) {
    %c0_i32 = arith.constant 0 : i32
    %c0_i32_0 = arith.constant 0 : i32
    %c0_i32_1 = arith.constant 0 : i32
    return %c0_i32, %c0_i32_0 : i32, i32
  }
  func.func @transform_2(%arg0: i32) -> (i32, i32) {
    %c0_i32 = arith.constant 0 : i32
    %c0_i32_0 = arith.constant 0 : i32
    %c0_i32_1 = arith.constant 0 : i32
    return %c0_i32, %c0_i32_0 : i32, i32
  }
  func.func @transform_3(%arg0: i32) -> (i32, i32) {
    %c0_i32 = arith.constant 0 : i32
    %c0_i32_0 = arith.constant 0 : i32
    %c0_i32_1 = arith.constant 0 : i32
    return %c0_i32, %c0_i32_0 : i32, i32
  }
  func.func @transform_4(%arg0: i32) -> (i32, i32, i32) {
    %c0_i32 = arith.constant 0 : i32
    %c0_i32_0 = arith.constant 0 : i32
    %c0_i32_1 = arith.constant 0 : i32
    return %arg0, %c0_i32, %c0_i32_0 : i32, i32, i32
  }
}

</mosaic_0001>

<llo_original>
// kernel: ec_network.1
$region0: #{ec_network.1}
  #allocation0 [shape = 'u32[]', space=smem, size = 0x4, offset = 0x4, fixed_abs, tag = 'smem constant byte address 0x4 - core index']
  #allocation1 [shape = 'u32[144,128]{1,0:T(1,128)}', space=vmem, size = 0x12000, scoped, tag = 'internal scratch']
  #allocation2 [shape = 'f32[8,1280]{1,0:T(8,128)}', space=vmem, size = 0xa000, scoped, tag = 'scratch operand']
  #allocation3 [shape = 'f32[48,1280]{1,0:T(8,128)}', space=vmem, size = 0x3c000, scoped, tag = 'scratch operand']
  #allocation4 [shape = 'f32[24,1280]{1,0:T(8,128)}', space=vmem, size = 0x1e000, scoped, tag = 'scratch operand']
  #allocation5 [shape = 'f32[432,768]{1,0:T(8,128)}', space=vmem, size = 0x144000, scoped, tag = 'scratch operand']
  %s0 = inlined_call_operand.vmem [shape: f32[2,8,384], index: 0, kind: input, shape index: {}]
  %s1 = inlined_call_operand.vmem [shape: f32[1,768], index: 1, kind: input, shape index: {}]
  %s2 = inlined_call_operand.vmem [shape: f32[80,432], index: 2, kind: input, shape index: {}]
  %s3 = inlined_call_operand.vmem [shape: f32[80,1], index: 3, kind: input, shape index: {}]
  %s4 = inlined_call_operand.vmem [shape: f32[1,8,768], index: 4, kind: output, shape index: {}]
  %s5 = sld [smem:[#allocation0]]
  $region26: #{ec_network.1} parent=0
    _
  %s7 = ssub.s32 1, %s5
  %s8 = scalar_select 0, %s7, %s5
  // Predicated region
  $region2: #{ec_network.1} parent=0 // pred_check
    _
  $region3: #{ec_network.1} parent=0 // pred_check_branch
    %10 = sbr.rel (0) target = $region5
  $region4: #{ec_network.1} parent=0 // pred_region
    _
  $region5: #{ec_network.1} parent=0 // pred_fallthru
    _
  // Predicated region
  $region6: #{ec_network.1} parent=0 // pred_check
    _
  $region7: #{ec_network.1} parent=0 // pred_check_branch
    %12 = sbr.rel (0) target = $region9
  $region8: #{ec_network.1} parent=0 // pred_region
    _
  $region9: #{ec_network.1} parent=0 // pred_fallthru
    _
  // Predicated region
  $region10: #{ec_network.1} parent=0 // pred_check
    _
  $region11: #{ec_network.1} parent=0 // pred_check_branch
    %14 = sbr.rel (0) target = $region13
  $region12: #{ec_network.1} parent=0 // pred_region
    _
  $region13: #{ec_network.1} parent=0 // pred_fallthru
    _
  // Predicated region
  $region14: #{ec_network.1} parent=0 // pred_check
    _
  $region15: #{ec_network.1} parent=0 // pred_check_branch
    %16 = sbr.rel (0) target = $region17
  $region16: #{ec_network.1} parent=0 // pred_region
    _
  $region17: #{ec_network.1} parent=0 // pred_fallthru
    _
  %v17 = vld [vmem:[%s1] sm:$0x3f]
  %vm18 = vcmp.ne.f32.partialorder %v17, 0.0
  %v19 = vld [vmem:[%s0] sm:$0xff]
  %v20 = vld [vmem:[%s0 + $0x8] sm:$0xff]
  %v21 = vld [vmem:[%s0 + $0x10] sm:$0xff]
  %22 = vst [vmem:[#allocation2 + $0x8] sm:$0xff] %v19
  %23 = vst [vmem:[#allocation2 + $0x10] sm:$0xff] %v20
  %24 = vst [vmem:[#allocation2 + $0x18] sm:$0xff] %v21
  %s25 = scalar_lea.vmem %s0, 24
  %v26 = vld [vmem:[%s25] sm:$0xff]
  %v27 = vld [vmem:[%s25 + $0x8] sm:$0xff]
  %v28 = vld [vmem:[%s25 + $0x10] sm:$0xff]
  %29 = vst [vmem:[#allocation2 + $0x30] sm:$0xff] %v26
  %30 = vst [vmem:[#allocation2 + $0x38] sm:$0xff] %v27
  %31 = vst [vmem:[#allocation2 + $0x40] sm:$0xff] %v28
  %v32 = vld [vmem:[#allocation2] sm:$0xff]
  %v33 = vld [vmem:[#allocation2 + $0x8] sm:$0xff]
  %v34 = vld [vmem:[#allocation2 + $0x10] sm:$0xff]
  %v35 = vld [vmem:[#allocation2 + $0x18] sm:$0xff]
  %40 = vrot.lane.b32.xlu0 %v32, 19
  %v41 = vpop.permute.xlu0 %40
  %42 = vrot.lane.b32.xlu0 %v33, 19
  %v43 = vpop.permute.xlu0 %42
  %44 = vrot.lane.b32.xlu0 %v34, 19
  %v45 = vpop.permute.xlu0 %44
  %46 = vrot.lane.b32.xlu0 %v35, 19
  %v47 = vpop.permute.xlu0 %46
  %vm48 = vcmask 154624
  %v49 = vsel %vm48, %v41, %v43
  %v50 = vsel %vm48, %v43, %v45
  %v51 = vsel %vm48, %v45, %v47
  %55 = vst [vmem:[#allocation5] sm:$0xff] %v49
  %56 = vst [vmem:[#allocation5 + $0x8] sm:$0xff] %v50
  %57 = vst [vmem:[#allocation5 + $0x10] sm:$0xff] %v51
  %v58 = vld [vmem:[#allocation2 + $0x28] sm:$0xff]
  %v59 = vld [vmem:[#allocation2 + $0x30] sm:$0xff]
  %v60 = vld [vmem:[#allocation2 + $0x38] sm:$0xff]
  %v61 = vld [vmem:[#allocation2 + $0x40] sm:$0xff]
  %66 = vrot.lane.b32.xlu0 %v58, 19
  %v67 = vpop.permute.xlu0 %66
  %68 = vrot.lane.b32.xlu0 %v59, 19
  %v69 = vpop.permute.xlu0 %68
  %70 = vrot.lane.b32.xlu0 %v60, 19
  %v71 = vpop.permute.xlu0 %70
  %72 = vrot.lane.b32.xlu0 %v61, 19
  %v73 = vpop.permute.xlu0 %72
  %v74 = vsel %vm48, %v67, %v69
  %v75 = vsel %vm48, %v69, %v71
  %v76 = vsel %vm48, %v71, %v73
  %80 = vst [vmem:[#allocation5 + $0x18] sm:$0xff] %v74
  %81 = vst [vmem:[#allocation5 + $0x20] sm:$0xff] %v75
  %82 = vst [vmem:[#allocation5 + $0x28] sm:$0xff] %v76
  %v83 = vld [vmem:[#allocation2] sm:$0xff]
  %v84 = vld [vmem:[#allocation2 + $0x8] sm:$0xff]
  %v85 = vld [vmem:[#allocation2 + $0x10] sm:$0xff]
  %v86 = vld [vmem:[#allocation2 + $0x18] sm:$0xff]
  %91 = vrot.lane.b32.xlu0 %v83, 18
  %v92 = vpop.permute.xlu0 %91
  %93 = vrot.lane.b32.xlu0 %v84, 18
  %v94 = vpop.permute.xlu0 %93
  %95 = vrot.lane.b32.xlu0 %v85, 18
  %v96 = vpop.permute.xlu0 %95
  %97 = vrot.lane.b32.xlu0 %v86, 18
  %v98 = vpop.permute.xlu0 %97
  %vm99 = vcmask 146432
  %v100 = vsel %vm99, %v92, %v94
  %v101 = vsel %vm99, %v94, %v96
  %v102 = vsel %vm99, %v96, %v98
  %106 = vst [vmem:[#allocation5 + $0x30] sm:$0xff] %v100
  %107 = vst [vmem:[#allocation5 + $0x38] sm:$0xff] %v101
  %108 = vst [vmem:[#allocation5 + $0x40] sm:$0xff] %v102
  %v109 = vld [vmem:[#allocation2 + $0x28] sm:$0xff]
  %v110 = vld [vmem:[#allocation2 + $0x30] sm:$0xff]
  %v111 = vld [vmem:[#allocation2 + $0x38] sm:$0xff]
  %v112 = vld [vmem:[#allocation2 + $0x40] sm:$0xff]
  %117 = vrot.lane.b32.xlu0 %v109, 18
  %v118 = vpop.permute.xlu0 %117
  %119 = vrot.lane.b32.xlu0 %v110, 18
  %v120 = vpop.permute.xlu0 %119
  %121 = vrot.lane.b32.xlu0 %v111, 18
  %v122 = vpop.permute.xlu0 %121
  %123 = vrot.lane.b32.xlu0 %v112, 18
  %v124 = vpop.permute.xlu0 %123
  %v125 = vsel %vm99, %v118, %v120
  %v126 = vsel %vm99, %v120, %v122
  %v127 = vsel %vm99, %v122, %v124
  %131 = vst [vmem:[#allocation5 + $0x48] sm:$0xff] %v125
  %132 = vst [vmem:[#allocation5 + $0x50] sm:$0xff] %v126
  %133 = vst [vmem:[#allocation5 + $0x58] sm:$0xff] %v127
  %v134 = vld [vmem:[#allocation2] sm:$0xff]
  %v135 = vld [vmem:[#allocation2 + $0x8] sm:$0xff]
  %v136 = vld [vmem:[#allocation2 + $0x10] sm:$0xff]
  %v137 = vld [vmem:[#allocation2 + $0x18] sm:$0xff]
  %142 = vrot.lane.b32.xlu0 %v134, 17
  %v143 = vpop.permute.xlu0 %142
  %144 = vrot.lane.b32.xlu0 %v135, 17
  %v145 = vpop.permute.xlu0 %144
  %146 = vrot.lane.b32.xlu0 %v136, 17
  %v147 = vpop.permute.xlu0 %146
  %148 = vrot.lane.b32.xlu0 %v137, 17
  %v149 = vpop.permute.xlu0 %148
  %vm150 = vcmask 138240
  %v151 = vsel %vm150, %v143, %v145
  %v152 = vsel %vm150, %v145, %v147
  %v153 = vsel %vm150, %v147, %v149
  %157 = vst [vmem:[#allocation5 + $0x60] sm:$0xff] %v151
  %158 = vst [vmem:[#allocation5 + $0x68] sm:$0xff] %v152
  %159 = vst [vmem:[#allocation5 + $0x70] sm:$0xff] %v153
  %v160 = vld [vmem:[#allocation2 + $0x28] sm:$0xff]
  %v161 = vld [vmem:[#allocation2 + $0x30] sm:$0xff]
  %v162 = vld [vmem:[#allocation2 + $0x38] sm:$0xff]
  %v163 = vld [vmem:[#allocation2 + $0x40] sm:$0xff]
  %168 = vrot.lane.b32.xlu0 %v160, 17
  %v169 = vpop.permute.xlu0 %168
  %170 = vrot.lane.b32.xlu0 %v161, 17
  %v171 = vpop.permute.xlu0 %170
  %172 = vrot.lane.b32.xlu0 %v162, 17
  %v173 = vpop.permute.xlu0 %172
  %174 = vrot.lane.b32.xlu0 %v163, 17
  %v175 = vpop.permute.xlu0 %174
  %v176 = vsel %vm150, %v169, %v171
  %v177 = vsel %vm150, %v171, %v173
  %v178 = vsel %vm150, %v173, %v175
  %182 = vst [vmem:[#allocation5 + $0x78] sm:$0xff] %v176
  %183 = vst [vmem:[#allocation5 + $0x80] sm:$0xff] %v177
  %184 = vst [vmem:[#allocation5 + $0x88] sm:$0xff] %v178
  %v185 = vld [vmem:[#allocation2] sm:$0xff]
  %v186 = vld [vmem:[#allocation2 + $0x8] sm:$0xff]
  %v187 = vld [vmem:[#allocation2 + $0x10] sm:$0xff]
  %v188 = vld [vmem:[#allocation2 + $0x18] sm:$0xff]
  %193 = vrot.lane.b32.xlu0 %v185, 1
  %v194 = vpop.permute.xlu0 %193
  %195 = vrot.lane.b32.xlu0 %v186, 1
  %v196 = vpop.permute.xlu0 %195
  %197 = vrot.lane.b32.xlu0 %v187, 1
  %v198 = vpop.permute.xlu0 %197
  %199 = vrot.lane.b32.xlu0 %v188, 1
  %v200 = vpop.permute.xlu0 %199
  %vm201 = vcmask 7168
  %v202 = vsel %vm201, %v194, %v196
  %v203 = vsel %vm201, %v196, %v198
  %v204 = vsel %vm201, %v198, %v200
  %208 = vst [vmem:[#allocation5 + $0x90] sm:$0xff] %v202
  %209 = vst [vmem:[#allocation5 + $0x98] sm:$0xff] %v203
  %210 = vst [vmem:[#allocation5 + $0xa0] sm:$0xff] %v204
  %v211 = vld [vmem:[#allocation2 + $0x28] sm:$0xff]
  %v212 = vld [vmem:[#allocation2 + $0x30] sm:$0xff]
  %v213 = vld [vmem:[#allocation2 + $0x38] sm:$0xff]
  %v214 = vld [vmem:[#allocation2 + $0x40] sm:$0xff]
  %219 = vrot.lane.b32.xlu0 %v211, 1
  %v220 = vpop.permute.xlu0 %219
  %221 = vrot.lane.b32.xlu0 %v212, 1
  %v222 = vpop.permute.xlu0 %221
  %223 = vrot.lane.b32.xlu0 %v213, 1
  %v224 = vpop.permute.xlu0 %223
  %225 = vrot.lane.b32.xlu0 %v214, 1
  %v226 = vpop.permute.xlu0 %225
  %v227 = vsel %vm201, %v220, %v222
  %v228 = vsel %vm201, %v222, %v224
  %v229 = vsel %vm201, %v224, %v226
  %233 = vst [vmem:[#allocation5 + $0xa8] sm:$0xff] %v227
  %234 = vst [vmem:[#allocation5 + $0xb0] sm:$0xff] %v228
  %235 = vst [vmem:[#allocation5 + $0xb8] sm:$0xff] %v229
  %v236 = vld [vmem:[#allocation2 + $0x8] sm:$0xff]
  %v237 = vld [vmem:[#allocation2 + $0x10] sm:$0xff]
  %v238 = vld [vmem:[#allocation2 + $0x18] sm:$0xff]
  %239 = vst [vmem:[#allocation5 + $0xc0] sm:$0xff] %v236
  %240 = vst [vmem:[#allocation5 + $0xc8] sm:$0xff] %v237
  %241 = vst [vmem:[#allocation5 + $0xd0] sm:$0xff] %v238
  %v242 = vld [vmem:[#allocation2 + $0x30] sm:$0xff]
  %v243 = vld [vmem:[#allocation2 + $0x38] sm:$0xff]
  %v244 = vld [vmem:[#allocation2 + $0x40] sm:$0xff]
  %245 = vst [vmem:[#allocation5 + $0xd8] sm:$0xff] %v242
  %246 = vst [vmem:[#allocation5 + $0xe0] sm:$0xff] %v243
  %247 = vst [vmem:[#allocation5 + $0xe8] sm:$0xff] %v244
  %v248 = vld [vmem:[#allocation2 + $0x8] sm:$0xff]
  %v249 = vld [vmem:[#allocation2 + $0x10] sm:$0xff]
  %v250 = vld [vmem:[#allocation2 + $0x18] sm:$0xff]
  %v251 = vld [vmem:[#allocation2 + $0x20] sm:$0xff]
  %256 = vrot.lane.b32.xlu0 %v248, 127
  %v257 = vpop.permute.xlu0 %256
  %258 = vrot.lane.b32.xlu0 %v249, 127
  %v259 = vpop.permute.xlu0 %258
  %260 = vrot.lane.b32.xlu0 %v250, 127
  %v261 = vpop.permute.xlu0 %260
  %262 = vrot.lane.b32.xlu0 %v251, 127
  %v263 = vpop.permute.xlu0 %262
  %vm264 = vcmask 1039360
  %v265 = vsel %vm264, %v257, %v259
  %v266 = vsel %vm264, %v259, %v261
  %v267 = vsel %vm264, %v261, %v263
  %271 = vst [vmem:[#allocation5 + $0xf0] sm:$0xff] %v265
  %272 = vst [vmem:[#allocation5 + $0xf8] sm:$0xff] %v266
  %273 = vst [vmem:[#allocation5 + $0x100] sm:$0xff] %v267
  %v274 = vld [vmem:[#allocation2 + $0x30] sm:$0xff]
  %v275 = vld [vmem:[#allocation2 + $0x38] sm:$0xff]
  %v276 = vld [vmem:[#allocation2 + $0x40] sm:$0xff]
  %v277 = vld [vmem:[#allocation2 + $0x48] sm:$0xff]
  %282 = vrot.lane.b32.xlu0 %v274, 127
  %v283 = vpop.permute.xlu0 %282
  %284 = vrot.lane.b32.xlu0 %v275, 127
  %v285 = vpop.permute.xlu0 %284
  %286 = vrot.lane.b32.xlu0 %v276, 127
  %v287 = vpop.permute.xlu0 %286
  %288 = vrot.lane.b32.xlu0 %v277, 127
  %v289 = vpop.permute.xlu0 %288
  %v290 = vsel %vm264, %v283, %v285
  %v291 = vsel %vm264, %v285, %v287
  %v292 = vsel %vm264, %v287, %v289
  %296 = vst [vmem:[#allocation5 + $0x108] sm:$0xff] %v290
  %297 = vst [vmem:[#allocation5 + $0x110] sm:$0xff] %v291
  %298 = vst [vmem:[#allocation5 + $0x118] sm:$0xff] %v292
  %v299 = vld [vmem:[#allocation2 + $0x8] sm:$0xff]
  %v300 = vld [vmem:[#allocation2 + $0x10] sm:$0xff]
  %v301 = vld [vmem:[#allocation2 + $0x18] sm:$0xff]
  %v302 = vld [vmem:[#allocation2 + $0x20] sm:$0xff]
  %307 = vrot.lane.b32.xlu0 %v299, 111
  %v308 = vpop.permute.xlu0 %307
  %309 = vrot.lane.b32.xlu0 %v300, 111
  %v310 = vpop.permute.xlu0 %309
  %311 = vrot.lane.b32.xlu0 %v301, 111
  %v312 = vpop.permute.xlu0 %311
  %313 = vrot.lane.b32.xlu0 %v302, 111
  %v314 = vpop.permute.xlu0 %313
  %vm315 = vcmask 908288
  %v316 = vsel %vm315, %v308, %v310
  %v317 = vsel %vm315, %v310, %v312
  %v318 = vsel %vm315, %v312, %v314
  %322 = vst [vmem:[#allocation5 + $0x120] sm:$0xff] %v316
  %323 = vst [vmem:[#allocation5 + $0x128] sm:$0xff] %v317
  %324 = vst [vmem:[#allocation5 + $0x130] sm:$0xff] %v318
  %v325 = vld [vmem:[#allocation2 + $0x30] sm:$0xff]
  %v326 = vld [vmem:[#allocation2 + $0x38] sm:$0xff]
  %v327 = vld [vmem:[#allocation2 + $0x40] sm:$0xff]
  %v328 = vld [vmem:[#allocation2 + $0x48] sm:$0xff]
  %333 = vrot.lane.b32.xlu0 %v325, 111
  %v334 = vpop.permute.xlu0 %333
  %335 = vrot.lane.b32.xlu0 %v326, 111
  %v336 = vpop.permute.xlu0 %335
  %337 = vrot.lane.b32.xlu0 %v327, 111
  %v338 = vpop.permute.xlu0 %337
  %339 = vrot.lane.b32.xlu0 %v328, 111
  %v340 = vpop.permute.xlu0 %339
  %v341 = vsel %vm315, %v334, %v336
  %v342 = vsel %vm315, %v336, %v338
  %v343 = vsel %vm315, %v338, %v340
  %347 = vst [vmem:[#allocation5 + $0x138] sm:$0xff] %v341
  %348 = vst [vmem:[#allocation5 + $0x140] sm:$0xff] %v342
  %349 = vst [vmem:[#allocation5 + $0x148] sm:$0xff] %v343
  %v350 = vld [vmem:[#allocation2 + $0x8] sm:$0xff]
  %v351 = vld [vmem:[#allocation2 + $0x10] sm:$0xff]
  %v352 = vld [vmem:[#allocation2 + $0x18] sm:$0xff]
  %v353 = vld [vmem:[#allocation2 + $0x20] sm:$0xff]
  %358 = vrot.lane.b32.xlu0 %v350, 110
  %v359 = vpop.permute.xlu0 %358
  %360 = vrot.lane.b32.xlu0 %v351, 110
  %v361 = vpop.permute.xlu0 %360
  %362 = vrot.lane.b32.xlu0 %v352, 110
  %v363 = vpop.permute.xlu0 %362
  %364 = vrot.lane.b32.xlu0 %v353, 110
  %v365 = vpop.permute.xlu0 %364
  %vm366 = vcmask 900096
  %v367 = vsel %vm366, %v359, %v361
  %v368 = vsel %vm366, %v361, %v363
  %v369 = vsel %vm366, %v363, %v365
  %373 = vst [vmem:[#allocation5 + $0x150] sm:$0xff] %v367
  %374 = vst [vmem:[#allocation5 + $0x158] sm:$0xff] %v368
  %375 = vst [vmem:[#allocation5 + $0x160] sm:$0xff] %v369
  %v376 = vld [vmem:[#allocation2 + $0x30] sm:$0xff]
  %v377 = vld [vmem:[#allocation2 + $0x38] sm:$0xff]
  %v378 = vld [vmem:[#allocation2 + $0x40] sm:$0xff]
  %v379 = vld [vmem:[#allocation2 + $0x48] sm:$0xff]
  %384 = vrot.lane.b32.xlu0 %v376, 110
  %v385 = vpop.permute.xlu0 %384
  %386 = vrot.lane.b32.xlu0 %v377, 110
  %v387 = vpop.permute.xlu0 %386
  %388 = vrot.lane.b32.xlu0 %v378, 110
  %v389 = vpop.permute.xlu0 %388
  %390 = vrot.lane.b32.xlu0 %v379, 110
  %v391 = vpop.permute.xlu0 %390
  %v392 = vsel %vm366, %v385, %v387
  %v393 = vsel %vm366, %v387, %v389
  %v394 = vsel %vm366, %v389, %v391
  %398 = vst [vmem:[#allocation5 + $0x168] sm:$0xff] %v392
  %399 = vst [vmem:[#allocation5 + $0x170] sm:$0xff] %v393
  %400 = vst [vmem:[#allocation5 + $0x178] sm:$0xff] %v394
  %v401 = vld [vmem:[#allocation2 + $0x8] sm:$0xff]
  %v402 = vld [vmem:[#allocation2 + $0x10] sm:$0xff]
  %v403 = vld [vmem:[#allocation2 + $0x18] sm:$0xff]
  %v404 = vld [vmem:[#allocation2 + $0x20] sm:$0xff]
  %409 = vrot.lane.b32.xlu0 %v401, 109
  %v410 = vpop.permute.xlu0 %409
  %411 = vrot.lane.b32.xlu0 %v402, 109
  %v412 = vpop.permute.xlu0 %411
  %413 = vrot.lane.b32.xlu0 %v403, 109
  %v414 = vpop.permute.xlu0 %413
  %415 = vrot.lane.b32.xlu0 %v404, 109
  %v416 = vpop.permute.xlu0 %415
  %vm417 = vcmask 891904
  %v418 = vsel %vm417, %v410, %v412
  %v419 = vsel %vm417, %v412, %v414
  %v420 = vsel %vm417, %v414, %v416
  %424 = vst [vmem:[#allocation5 + $0x180] sm:$0xff] %v418
  %425 = vst [vmem:[#allocation5 + $0x188] sm:$0xff] %v419
  %426 = vst [vmem:[#allocation5 + $0x190] sm:$0xff] %v420
  %v427 = vld [vmem:[#allocation2 + $0x30] sm:$0xff]
  %v428 = vld [vmem:[#allocation2 + $0x38] sm:$0xff]
  %v429 = vld [vmem:[#allocation2 + $0x40] sm:$0xff]
  %v430 = vld [vmem:[#allocation2 + $0x48] sm:$0xff]
  %435 = vrot.lane.b32.xlu0 %v427, 109
  %v436 = vpop.permute.xlu0 %435
  %437 = vrot.lane.b32.xlu0 %v428, 109
  %v438 = vpop.permute.xlu0 %437
  %439 = vrot.lane.b32.xlu0 %v429, 109
  %v440 = vpop.permute.xlu0 %439
  %441 = vrot.lane.b32.xlu0 %v430, 109
  %v442 = vpop.permute.xlu0 %441
  %v443 = vsel %vm417, %v436, %v438
  %v444 = vsel %vm417, %v438, %v440
  %v445 = vsel %vm417, %v440, %v442
  %449 = vst [vmem:[#allocation5 + $0x198] sm:$0xff] %v443
  %450 = vst [vmem:[#allocation5 + $0x1a0] sm:$0xff] %v444
  %451 = vst [vmem:[#allocation5 + $0x1a8] sm:$0xff] %v445
  %v452 = vld [vmem:[%s2] sm:$0xff]
  %v453 = vld [vmem:[%s2 + $0x20] sm:$0xff]
  %v454 = vld [vmem:[%s2 + $0x40] sm:$0xff]
  %v455 = vld [vmem:[%s2 + $0x60] sm:$0xff]
  %v456 = vld [vmem:[%s2 + $0x80] sm:$0xff]
  %v457 = vld [vmem:[%s2 + $0xa0] sm:$0xff]
  %v458 = vld [vmem:[#allocation5] sm:$0xff]
  %v459 = vld [vmem:[#allocation5 + $0x8] sm:$0xff]
  %v460 = vld [vmem:[#allocation5 + $0x10] sm:$0xff]
  %v461 = vld [vmem:[#allocation5 + $0x18] sm:$0xff]
  %v462 = vld [vmem:[#allocation5 + $0x20] sm:$0xff]
  %v463 = vld [vmem:[#allocation5 + $0x28] sm:$0xff]
  %v464 = vld [vmem:[#allocation5 + $0x30] sm:$0xff]
  %v465 = vld [vmem:[#allocation5 + $0x38] sm:$0xff]
  %v466 = vld [vmem:[#allocation5 + $0x40] sm:$0xff]
  %v467 = vld [vmem:[#allocation5 + $0x48] sm:$0xff]
  %v468 = vld [vmem:[#allocation5 + $0x50] sm:$0xff]
  %v469 = vld [vmem:[#allocation5 + $0x58] sm:$0xff]
  %v470 = vld [vmem:[#allocation5 + $0x60] sm:$0xff]
  %v471 = vld [vmem:[#allocation5 + $0x68] sm:$0xff]
  %v472 = vld [vmem:[#allocation5 + $0x70] sm:$0xff]
  %v473 = vld [vmem:[#allocation5 + $0x78] sm:$0xff]
  %v474 = vld [vmem:[#allocation5 + $0x80] sm:$0xff]
  %v475 = vld [vmem:[#allocation5 + $0x88] sm:$0xff]
  %v476 = vld [vmem:[#allocation5 + $0x90] sm:$0xff]
  %v477 = vld [vmem:[#allocation5 + $0x98] sm:$0xff]
  %v478 = vld [vmem:[#allocation5 + $0xa0] sm:$0xff]
  %v479 = vld [vmem:[#allocation5 + $0xa8] sm:$0xff]
  %v480 = vld [vmem:[#allocation5 + $0xb0] sm:$0xff]
  %v481 = vld [vmem:[#allocation5 + $0xb8] sm:$0xff]
  %v482 = vld [vmem:[#allocation5 + $0xc0] sm:$0xff]
  %v483 = vld [vmem:[#allocation5 + $0xc8] sm:$0xff]
  %v484 = vld [vmem:[#allocation5 + $0xd0] sm:$0xff]
  %v485 = vld [vmem:[#allocation5 + $0xd8] sm:$0xff]
  %v486 = vld [vmem:[#allocation5 + $0xe0] sm:$0xff]
  %v487 = vld [vmem:[#allocation5 + $0xe8] sm:$0xff]
  %v488 = vld [vmem:[#allocation5 + $0xf0] sm:$0xff]
  %v489 = vld [vmem:[#allocation5 + $0xf8] sm:$0xff]
  %v490 = vld [vmem:[#allocation5 + $0x100] sm:$0xff]
  %v491 = vld [vmem:[#allocation5 + $0x108] sm:$0xff]
  %v492 = vld [vmem:[#allocation5 + $0x110] sm:$0xff]
  %v493 = vld [vmem:[#allocation5 + $0x118] sm:$0xff]
  %v494 = vld [vmem:[#allocation5 + $0x120] sm:$0xff]
  %v495 = vld [vmem:[#allocation5 + $0x128] sm:$0xff]
  %v496 = vld [vmem:[#allocation5 + $0x130] sm:$0xff]
  %v497 = vld [vmem:[#allocation5 + $0x138] sm:$0xff]
  %v498 = vld [vmem:[#allocation5 + $0x140] sm:$0xff]
  %v499 = vld [vmem:[#allocation5 + $0x148] sm:$0xff]
  %v500 = vld [vmem:[#allocation5 + $0x150] sm:$0xff]
  %v501 = vld [vmem:[#allocation5 + $0x158] sm:$0xff]
  %v502 = vld [vmem:[#allocation5 + $0x160] sm:$0xff]
  %v503 = vld [vmem:[#allocation5 + $0x168] sm:$0xff]
  %v504 = vld [vmem:[#allocation5 + $0x170] sm:$0xff]
  %v505 = vld [vmem:[#allocation5 + $0x178] sm:$0xff]
  %v506 = vld [vmem:[#allocation5 + $0x180] sm:$0xff]
  %v507 = vld [vmem:[#allocation5 + $0x188] sm:$0xff]
  %v508 = vld [vmem:[#allocation5 + $0x190] sm:$0xff]
  %v509 = vld [vmem:[#allocation5 + $0x198] sm:$0xff]
  %v510 = vld [vmem:[#allocation5 + $0x1a0] sm:$0xff]
  %v511 = vld [vmem:[#allocation5 + $0x1a8] sm:$0xff]
  %v512 = vld [vmem:[%s3] sm:$0xff]
  %v513 = vld [vmem:[%s3 + $0x8] sm:$0xff]
  %v514 = vld [vmem:[%s3 + $0x10] sm:$0xff]
  %v515 = vld [vmem:[%s3 + $0x18] sm:$0xff]
  %v516 = vld [vmem:[%s3 + $0x20] sm:$0xff]
  %v517 = vld [vmem:[%s3 + $0x28] sm:$0xff]
  %519 = vset.pattern.permute.xlu0 0
  %520 = vperm.xlu0 %519, %v512
  %v521 = vpop.permute.xlu0 %520
  %524 = vset.pattern.permute.xlu0 0
  %525 = vperm.xlu0 %524, %v513
  %v526 = vpop.permute.xlu0 %525
  %529 = vset.pattern.permute.xlu0 0
  %530 = vperm.xlu0 %529, %v514
  %v531 = vpop.permute.xlu0 %530
  %534 = vset.pattern.permute.xlu0 0
  %535 = vperm.xlu0 %534, %v515
  %v536 = vpop.permute.xlu0 %535
  %539 = vset.pattern.permute.xlu0 0
  %540 = vperm.xlu0 %539, %v516
  %v541 = vpop.permute.xlu0 %540
  %544 = vset.pattern.permute.xlu0 0
  %545 = vperm.xlu0 %544, %v517
  %v546 = vpop.permute.xlu0 %545
  %vm548 = vcmask 588800
  %v550 = vsel %vm548, %v452, 0
  %v553 = vsel %vm548, %v453, 0
  %v556 = vsel %vm548, %v454, 0
  %v559 = vsel %vm548, %v455, 0
  %v562 = vsel %vm548, %v456, 0
  %v565 = vsel %vm548, %v457, 0
  %567 = vmatprep.subr.mxu0 %v459
  %568 = vmatpush1.msra.mxu0 %v458
  %569 = vmatprep.subr.mxu0 %v465
  %570 = vmatpush1.msra.mxu0 %v464
  %571 = vmatprep.subr.mxu0 %v471
  %572 = vmatpush1.msra.mxu0 %v470
  %573 = vmatprep.subr.mxu0 %v477
  %574 = vmatpush1.msra.mxu0 %v476
  %575 = vmatprep.subr.mxu0 %v483
  %576 = vmatpush1.msra.mxu0 %v482
  %577 = vmatprep.subr.mxu0 %v489
  %578 = vmatpush1.msra.mxu0 %v488
  %579 = vmatprep.subr.mxu0 %v495
  %580 = vmatpush1.msra.mxu0 %v494
  %581 = vmatprep.subr.mxu0 %v501
  %582 = vmatpush1.msra.mxu0 %v500
  %583 = vmatprep.subr.mxu0 %v507
  %584 = vmatpush1.msra.mxu0 %v506
  %585 = vmatprep.subr.mxu0 0.0
  %586 = vmatpush1.msra.mxu0 0.0
  %587 = vmatprep.subr.mxu0 0.0
  %588 = vmatpush1.msra.mxu0 0.0
  %589 = vmatprep.subr.mxu0 0.0
  %590 = vmatpush1.msra.mxu0 0.0
  %591 = vmatprep.subr.mxu0 0.0
  %592 = vmatpush1.msra.mxu0 0.0
  %593 = vmatprep.subr.mxu0 0.0
  %594 = vmatpush1.msra.mxu0 0.0
  %595 = vmatprep.subr.mxu0 0.0
  %596 = vmatpush1.msra.mxu0 0.0
  %597 = vmatprep.subr.mxu0 0.0
  %598 = vmatpush1.msra.mxu0 0.0
  %599 = vmatprep.subr.mxu0 0.0
  %600 = vmatpush1.msra.mxu0 0.0
  %601 = vmatprep.subr.mxu0 0.0
  %602 = vmatpush1.msra.mxu0 0.0
  %603 = vmatprep.subr.mxu0 0.0
  %604 = vmatpush1.msra.mxu0 0.0
  %605 = vmatprep.subr.mxu0 0.0
  %606 = vmatpush1.msra.mxu0 0.0
  %607 = vmatprep.subr.mxu0 0.0
  %608 = vmatpush1.msra.mxu0 0.0
  %609 = vmatprep.subr.mxu0 0.0
  %610 = vmatpush1.msra.mxu0 0.0
  %611 = vmatprep.subr.mxu0 0.0
  %612 = vmatpush1.msra.mxu0 0.0
  %613 = vmatprep.subr.mxu0 0.0
  %614 = vmatpush1.msra.mxu0 0.0
  %615 = vmatprep.subr.mxu0 0.0
  %616 = vmatpush1.msra.mxu0 0.0
  %617 = vmatprep.subr.mxu0 0.0
  %618 = vmatpush1.msra.mxu0 0.0
  %619 = vmatprep.subr.mxu0 0.0
  %620 = vmatpush1.msra.mxu0 0.0
  %621 = vmatprep.subr.mxu0 0.0
  %622 = vmatpush1.msra.mxu0 0.0
  %623 = vmatprep.subr.mxu0 0.0
  %624 = vmatpush1.msra.mxu0 0.0
  %625 = vmatprep.subr.mxu0 0.0
  %626 = vmatpush1.msra.mxu0 0.0
  %627 = vmatprep.subr.mxu0 0.0
  %628 = vmatpush1.msra.mxu0 0.0
  %629 = vmatprep.subr.mxu0 0.0
  %630 = vmatpush1.msra.mxu0 0.0
  %631 = vmatprep.mubr.f32.mxu0 0.0
  %632 = vmatmul.mubr.f32.gmra.mrb[0].mxu0 %v550
  %v633 = vpop.f32.mrb[0].mxu0
  %v634 = vadd.f32 %v521, %v633
  %v635 = vpop.f32.mrb[0].mxu0
  %v636 = vadd.f32 %v521, %v635
  %637 = vmatprep.mubr.f32.mxu0 0.0
  %638 = vmatmul.mubr.f32.gmra.mrb[0].mxu0 %v553
  %v639 = vpop.f32.mrb[0].mxu0
  %v640 = vadd.f32 %v526, %v639
  %v641 = vpop.f32.mrb[0].mxu0
  %v642 = vadd.f32 %v526, %v641
  %643 = vmatprep.mubr.f32.mxu0 0.0
  %644 = vmatmul.mubr.f32.gmra.mrb[0].mxu0 %v556
  %v645 = vpop.f32.mrb[0].mxu0
  %v646 = vadd.f32 %v531, %v645
  %v647 = vpop.f32.mrb[0].mxu0
  %v648 = vadd.f32 %v531, %v647
  %649 = vmatprep.mubr.f32.mxu0 0.0
  %650 = vmatmul.mubr.f32.gmra.mrb[0].mxu0 %v559
  %v651 = vpop.f32.mrb[0].mxu0
  %v652 = vadd.f32 %v536, %v651
  %v653 = vpop.f32.mrb[0].mxu0
  %v654 = vadd.f32 %v536, %v653
  %655 = vmatprep.mubr.f32.mxu0 0.0
  %656 = vmatmul.mubr.f32.gmra.mrb[0].mxu0 %v562
  %v657 = vpop.f32.mrb[0].mxu0
  %v658 = vadd.f32 %v541, %v657
  %v659 = vpop.f32.mrb[0].mxu0
  %v660 = vadd.f32 %v541, %v659
  %661 = vmatprep.mubr.f32.mxu0 0.0
  %662 = vmatmul.mubr.f32.gmra.mrb[0].mxu0 %v565
  %v663 = vpop.f32.mrb[0].mxu0
  %v664 = vadd.f32 %v546, %v663
  %v665 = vpop.f32.mrb[0].mxu0
  %v666 = vadd.f32 %v546, %v665
  %667 = vdwg.mxu0
  %668 = vmatprep.subr.mxu0 %v461
  %669 = vmatpush1.msra.mxu0 %v460
  %670 = vmatprep.subr.mxu0 %v467
  %671 = vmatpush1.msra.mxu0 %v466
  %672 = vmatprep.subr.mxu0 %v473
  %673 = vmatpush1.msra.mxu0 %v472
  %674 = vmatprep.subr.mxu0 %v479
  %675 = vmatpush1.msra.mxu0 %v478
  %676 = vmatprep.subr.mxu0 %v485
  %677 = vmatpush1.msra.mxu0 %v484
  %678 = vmatprep.subr.mxu0 %v491
  %679 = vmatpush1.msra.mxu0 %v490
  %680 = vmatprep.subr.mxu0 %v497
  %681 = vmatpush1.msra.mxu0 %v496
  %682 = vmatprep.subr.mxu0 %v503
  %683 = vmatpush1.msra.mxu0 %v502
  %684 = vmatprep.subr.mxu0 %v509
  %685 = vmatpush1.msra.mxu0 %v508
  %686 = vmatprep.subr.mxu0 0.0
  %687 = vmatpush1.msra.mxu0 0.0
  %688 = vmatprep.subr.mxu0 0.0
  %689 = vmatpush1.msra.mxu0 0.0
  %690 = vmatprep.subr.mxu0 0.0
  %691 = vmatpush1.msra.mxu0 0.0
  %692 = vmatprep.subr.mxu0 0.0
  %693 = vmatpush1.msra.mxu0 0.0
  %694 = vmatprep.subr.mxu0 0.0
  %695 = vmatpush1.msra.mxu0 0.0
  %696 = vmatprep.subr.mxu0 0.0
  %697 = vmatpush1.msra.mxu0 0.0
  %698 = vmatprep.subr.mxu0 0.0
  %699 = vmatpush1.msra.mxu0 0.0
  %700 = vmatprep.subr.mxu0 0.0
  %701 = vmatpush1.msra.mxu0 0.0
  %702 = vmatprep.subr.mxu0 0.0
  %703 = vmatpush1.msra.mxu0 0.0
  %704 = vmatprep.subr.mxu0 0.0
  %705 = vmatpush1.msra.mxu0 0.0
  %706 = vmatprep.subr.mxu0 0.0
  %707 = vmatpush1.msra.mxu0 0.0
  %708 = vmatprep.subr.mxu0 0.0
  %709 = vmatpush1.msra.mxu0 0.0
  %710 = vmatprep.subr.mxu0 0.0
  %711 = vmatpush1.msra.mxu0 0.0
  %712 = vmatprep.subr.mxu0 0.0
  %713 = vmatpush1.msra.mxu0 0.0
  %714 = vmatprep.subr.mxu0 0.0
  %715 = vmatpush1.msra.mxu0 0.0
  %716 = vmatprep.subr.mxu0 0.0
  %717 = vmatpush1.msra.mxu0 0.0
  %718 = vmatprep.subr.mxu0 0.0
  %719 = vmatpush1.msra.mxu0 0.0
  %720 = vmatprep.subr.mxu0 0.0
  %721 = vmatpush1.msra.mxu0 0.0
  %722 = vmatprep.subr.mxu0 0.0
  %723 = vmatpush1.msra.mxu0 0.0
  %724 = vmatprep.subr.mxu0 0.0
  %725 = vmatpush1.msra.mxu0 0.0
  %726 = vmatprep.subr.mxu0 0.0
  %727 = vmatpush1.msra.mxu0 0.0
  %728 = vmatprep.subr.mxu0 0.0
  %729 = vmatpush1.msra.mxu0 0.0
  %730 = vmatprep.subr.mxu0 0.0
  %731 = vmatpush1.msra.mxu0 0.0
  %732 = vmatprep.mubr.f32.mxu0 0.0
  %733 = vmatmul.mubr.f32.gmra.mrb[0].mxu0 %v550
  %v734 = vpop.f32.mrb[0].mxu0
  %v735 = vadd.f32 %v521, %v734
  %v736 = vpop.f32.mrb[0].mxu0
  %v737 = vadd.f32 %v521, %v736
  %738 = vmatprep.mubr.f32.mxu0 0.0
  %739 = vmatmul.mubr.f32.gmra.mrb[0].mxu0 %v553
  %v740 = vpop.f32.mrb[0].mxu0
  %v741 = vadd.f32 %v526, %v740
  %v742 = vpop.f32.mrb[0].mxu0
  %v743 = vadd.f32 %v526, %v742
  %744 = vmatprep.mubr.f32.mxu0 0.0
  %745 = vmatmul.mubr.f32.gmra.mrb[0].mxu0 %v556
  %v746 = vpop.f32.mrb[0].mxu0
  %v747 = vadd.f32 %v531, %v746
  %v748 = vpop.f32.mrb[0].mxu0
  %v749 = vadd.f32 %v531, %v748
  %750 = vmatprep.mubr.f32.mxu0 0.0
  %751 = vmatmul.mubr.f32.gmra.mrb[0].mxu0 %v559
  %v752 = vpop.f32.mrb[0].mxu0
  %v753 = vadd.f32 %v536, %v752
  %v754 = vpop.f32.mrb[0].mxu0
  %v755 = vadd.f32 %v536, %v754
  %756 = vmatprep.mubr.f32.mxu0 0.0
  %757 = vmatmul.mubr.f32.gmra.mrb[0].mxu0 %v562
  %v758 = vpop.f32.mrb[0].mxu0
  %v759 = vadd.f32 %v541, %v758
  %v760 = vpop.f32.mrb[0].mxu0
  %v761 = vadd.f32 %v541, %v760
  %762 = vmatprep.mubr.f32.mxu0 0.0
  %763 = vmatmul.mubr.f32.gmra.mrb[0].mxu0 %v565
  %v764 = vpop.f32.mrb[0].mxu0
  %v765 = vadd.f32 %v546, %v764
  %v766 = vpop.f32.mrb[0].mxu0
  %v767 = vadd.f32 %v546, %v766
  %768 = vdwg.mxu0
  %769 = vmatprep.subr.mxu0 %v463
  %770 = vmatpush1.msra.mxu0 %v462
  %771 = vmatprep.subr.mxu0 %v469
  %772 = vmatpush1.msra.mxu0 %v468
  %773 = vmatprep.subr.mxu0 %v475
  %774 = vmatpush1.msra.mxu0 %v474
  %775 = vmatprep.subr.mxu0 %v481
  %776 = vmatpush1.msra.mxu0 %v480
  %777 = vmatprep.subr.mxu0 %v487
  %778 = vmatpush1.msra.mxu0 %v486
  %779 = vmatprep.subr.mxu0 %v493
  %780 = vmatpush1.msra.mxu0 %v492
  %781 = vmatprep.subr.mxu0 %v499
  %782 = vmatpush1.msra.mxu0 %v498
  %783 = vmatprep.subr.mxu0 %v505
  %784 = vmatpush1.msra.mxu0 %v504
  %785 = vmatprep.subr.mxu0 %v511
  %786 = vmatpush1.msra.mxu0 %v510
  %787 = vmatprep.subr.mxu0 0.0
  %788 = vmatpush1.msra.mxu0 0.0
  %789 = vmatprep.subr.mxu0 0.0
  %790 = vmatpush1.msra.mxu0 0.0
  %791 = vmatprep.subr.mxu0 0.0
  %792 = vmatpush1.msra.mxu0 0.0
  %793 = vmatprep.subr.mxu0 0.0
  %794 = vmatpush1.msra.mxu0 0.0
  %795 = vmatprep.subr.mxu0 0.0
  %796 = vmatpush1.msra.mxu0 0.0
  %797 = vmatprep.subr.mxu0 0.0
  %798 = vmatpush1.msra.mxu0 0.0
  %799 = vmatprep.subr.mxu0 0.0
  %800 = vmatpush1.msra.mxu0 0.0
  %801 = vmatprep.subr.mxu0 0.0
  %802 = vmatpush1.msra.mxu0 0.0
  %803 = vmatprep.subr.mxu0 0.0
  %804 = vmatpush1.msra.mxu0 0.0
  %805 = vmatprep.subr.mxu0 0.0
  %806 = vmatpush1.msra.mxu0 0.0
  %807 = vmatprep.subr.mxu0 0.0
  %808 = vmatpush1.msra.mxu0 0.0
  %809 = vmatprep.subr.mxu0 0.0
  %810 = vmatpush1.msra.mxu0 0.0
  %811 = vmatprep.subr.mxu0 0.0
  %812 = vmatpush1.msra.mxu0 0.0
  %813 = vmatprep.subr.mxu0 0.0
  %814 = vmatpush1.msra.mxu0 0.0
  %815 = vmatprep.subr.mxu0 0.0
  %816 = vmatpush1.msra.mxu0 0.0
  %817 = vmatprep.subr.mxu0 0.0
  %818 = vmatpush1.msra.mxu0 0.0
  %819 = vmatprep.subr.mxu0 0.0
  %820 = vmatpush1.msra.mxu0 0.0
  %821 = vmatprep.subr.mxu0 0.0
  %822 = vmatpush1.msra.mxu0 0.0
  %823 = vmatprep.subr.mxu0 0.0
  %824 = vmatpush1.msra.mxu0 0.0
  %825 = vmatprep.subr.mxu0 0.0
  %826 = vmatpush1.msra.mxu0 0.0
  %827 = vmatprep.subr.mxu0 0.0
  %828 = vmatpush1.msra.mxu0 0.0
  %829 = vmatprep.subr.mxu0 0.0
  %830 = vmatpush1.msra.mxu0 0.0
  %831 = vmatprep.subr.mxu0 0.0
  %832 = vmatpush1.msra.mxu0 0.0
  %833 = vmatprep.mubr.f32.mxu0 0.0
  %834 = vmatmul.mubr.f32.gmra.mrb[0].mxu0 %v550
  %v835 = vpop.f32.mrb[0].mxu0
  %v836 = vadd.f32 %v521, %v835
  %v837 = vpop.f32.mrb[0].mxu0
  %v838 = vadd.f32 %v521, %v837
  %839 = vmatprep.mubr.f32.mxu0 0.0
  %840 = vmatmul.mubr.f32.gmra.mrb[0].mxu0 %v553
  %v841 = vpop.f32.mrb[0].mxu0
  %v842 = vadd.f32 %v526, %v841
  %v843 = vpop.f32.mrb[0].mxu0
  %v844 = vadd.f32 %v526, %v843
  %845 = vmatprep.mubr.f32.mxu0 0.0
  %846 = vmatmul.mubr.f32.gmra.mrb[0].mxu0 %v556
  %v847 = vpop.f32.mrb[0].mxu0
  %v848 = vadd.f32 %v531, %v847
  %v849 = vpop.f32.mrb[0].mxu0
  %v850 = vadd.f32 %v531, %v849
  %851 = vmatprep.mubr.f32.mxu0 0.0
  %852 = vmatmul.mubr.f32.gmra.mrb[0].mxu0 %v559
  %v853 = vpop.f32.mrb[0].mxu0
  %v854 = vadd.f32 %v536, %v853
  %v855 = vpop.f32.mrb[0].mxu0
  %v856 = vadd.f32 %v536, %v855
  %857 = vmatprep.mubr.f32.mxu0 0.0
  %858 = vmatmul.mubr.f32.gmra.mrb[0].mxu0 %v562
  %v859 = vpop.f32.mrb[0].mxu0
  %v860 = vadd.f32 %v541, %v859
  %v861 = vpop.f32.mrb[0].mxu0
  %v862 = vadd.f32 %v541, %v861
  %863 = vmatprep.mubr.f32.mxu0 0.0
  %864 = vmatmul.mubr.f32.gmra.mrb[0].mxu0 %v565
  %v865 = vpop.f32.mrb[0].mxu0
  %v866 = vadd.f32 %v546, %v865
  %v867 = vpop.f32.mrb[0].mxu0
  %v868 = vadd.f32 %v546, %v867
  %869 = vdwg.mxu0
  %v870 = vmax.f32 %v634, 0.0
  %v871 = vmax.f32 %v636, 0.0
  %v872 = vmax.f32 %v735, 0.0
  %v873 = vmax.f32 %v737, 0.0
  %v874 = vmax.f32 %v836, 0.0
  %v875 = vmax.f32 %v838, 0.0
  %v876 = vmax.f32 %v640, 0.0
  %v877 = vmax.f32 %v642, 0.0
  %v878 = vmax.f32 %v741, 0.0
  %v879 = vmax.f32 %v743, 0.0
  %v880 = vmax.f32 %v842, 0.0
  %v881 = vmax.f32 %v844, 0.0
  %v882 = vmax.f32 %v646, 0.0
  %v883 = vmax.f32 %v648, 0.0
  %v884 = vmax.f32 %v747, 0.0
  %v885 = vmax.f32 %v749, 0.0
  %v886 = vmax.f32 %v848, 0.0
  %v887 = vmax.f32 %v850, 0.0
  %v888 = vmax.f32 %v652, 0.0
  %v889 = vmax.f32 %v654, 0.0
  %v890 = vmax.f32 %v753, 0.0
  %v891 = vmax.f32 %v755, 0.0
  %v892 = vmax.f32 %v854, 0.0
  %v893 = vmax.f32 %v856, 0.0
  %v894 = vmax.f32 %v658, 0.0
  %v895 = vmax.f32 %v660, 0.0
  %v896 = vmax.f32 %v759, 0.0
  %v897 = vmax.f32 %v761, 0.0
  %v898 = vmax.f32 %v860, 0.0
  %v899 = vmax.f32 %v862, 0.0
  %v900 = vmax.f32 %v664, 0.0
  %v901 = vmax.f32 %v666, 0.0
  %v902 = vmax.f32 %v765, 0.0
  %v903 = vmax.f32 %v767, 0.0
  %v904 = vmax.f32 %v866, 0.0
  %v905 = vmax.f32 %v868, 0.0
  %v906 = vsel %vm18, 1, 0
  %v907 = vlaneseq
  %v908 = vshrl.u32 %v907, 7
  %v909 = vsub.s32 0, %v908
  %v910 = vrot.slane %v906, %v909
  %v911 = vlaneseq
  %v912 = vshrl.u32 %v911, 7
  %v913 = vsub.s32 1, %v912
  %v914 = vrot.slane %v906, %v913
  %v915 = vlaneseq
  %v916 = vshrl.u32 %v915, 7
  %v917 = vsub.s32 2, %v916
  %v918 = vrot.slane %v906, %v917
  %v919 = vlaneseq
  %v920 = vshrl.u32 %v919, 7
  %v921 = vsub.s32 3, %v920
  %v922 = vrot.slane %v906, %v921
  %v923 = vlaneseq
  %v924 = vshrl.u32 %v923, 7
  %v925 = vsub.s32 4, %v924
  %v926 = vrot.slane %v906, %v925
  %v927 = vlaneseq
  %v928 = vshrl.u32 %v927, 7
  %v929 = vsub.s32 5, %v928
  %v930 = vrot.slane %v906, %v929
  %vm931 = vcmp.eq.s32.totalorder %v910, 1
  %vm932 = vcmp.eq.s32.totalorder %v914, 1
  %vm933 = vcmp.eq.s32.totalorder %v918, 1
  %vm934 = vcmp.eq.s32.totalorder %v922, 1
  %vm935 = vcmp.eq.s32.totalorder %v926, 1
  %vm936 = vcmp.eq.s32.totalorder %v930, 1
  %v937 = vsel %vm931, %v870, 0.0
  %v938 = vsel %vm932, %v871, 0.0
  %v939 = vsel %vm933, %v872, 0.0
  %v940 = vsel %vm934, %v873, 0.0
  %v941 = vsel %vm935, %v874, 0.0
  %v942 = vsel %vm936, %v875, 0.0
  %v943 = vsel %vm931, %v876, 0.0
  %v944 = vsel %vm932, %v877, 0.0
  %v945 = vsel %vm933, %v878, 0.0
  %v946 = vsel %vm934, %v879, 0.0
  %v947 = vsel %vm935, %v880, 0.0
  %v948 = vsel %vm936, %v881, 0.0
  %v949 = vsel %vm931, %v882, 0.0
  %v950 = vsel %vm932, %v883, 0.0
  %v951 = vsel %vm933, %v884, 0.0
  %v952 = vsel %vm934, %v885, 0.0
  %v953 = vsel %vm935, %v886, 0.0
  %v954 = vsel %vm936, %v887, 0.0
  %v955 = vsel %vm931, %v888, 0.0
  %v956 = vsel %vm932, %v889, 0.0
  %v957 = vsel %vm933, %v890, 0.0
  %v958 = vsel %vm934, %v891, 0.0
  %v959 = vsel %vm935, %v892, 0.0
  %v960 = vsel %vm936, %v893, 0.0
  %v961 = vsel %vm931, %v894, 0.0
  %v962 = vsel %vm932, %v895, 0.0
  %v963 = vsel %vm933, %v896, 0.0
  %v964 = vsel %vm934, %v897, 0.0
  %v965 = vsel %vm935, %v898, 0.0
  %v966 = vsel %vm936, %v899, 0.0
  %v967 = vsel %vm931, %v900, 0.0
  %v968 = vsel %vm932, %v901, 0.0
  %v969 = vsel %vm933, %v902, 0.0
  %v970 = vsel %vm934, %v903, 0.0
  %v971 = vsel %vm935, %v904, 0.0
  %v972 = vsel %vm936, %v905, 0.0
  %973 = vst [vmem:[#allocation3 + $0x8] sm:$0xff] %v937
  %974 = vst [vmem:[#allocation3 + $0x10] sm:$0xff] %v938
  %975 = vst [vmem:[#allocation3 + $0x18] sm:$0xff] %v939
  %976 = vst [vmem:[#allocation3 + $0x58] sm:$0xff] %v943
  %977 = vst [vmem:[#allocation3 + $0x60] sm:$0xff] %v944
  %978 = vst [vmem:[#allocation3 + $0x68] sm:$0xff] %v945
  %979 = vst [vmem:[#allocation3 + $0xa8] sm:$0xff] %v949
  %980 = vst [vmem:[#allocation3 + $0xb0] sm:$0xff] %v950
  %981 = vst [vmem:[#allocation3 + $0xb8] sm:$0xff] %v951
  %982 = vst [vmem:[#allocation3 + $0xf8] sm:$0xff] %v955
  %983 = vst [vmem:[#allocation3 + $0x100] sm:$0xff] %v956
  %984 = vst [vmem:[#allocation3 + $0x108] sm:$0xff] %v957
  %985 = vst [vmem:[#allocation3 + $0x148] sm:$0xff] %v961
  %986 = vst [vmem:[#allocation3 + $0x150] sm:$0xff] %v962
  %987 = vst [vmem:[#allocation3 + $0x158] sm:$0xff] %v963
  %988 = vst [vmem:[#allocation3 + $0x198] sm:$0xff] %v967
  %989 = vst [vmem:[#allocation3 + $0x1a0] sm:$0xff] %v968
  %990 = vst [vmem:[#allocation3 + $0x1a8] sm:$0xff] %v969
  %991 = vst [vmem:[#allocation3 + $0x30] sm:$0xff] %v940
  %992 = vst [vmem:[#allocation3 + $0x38] sm:$0xff] %v941
  %993 = vst [vmem:[#allocation3 + $0x40] sm:$0xff] %v942
  %994 = vst [vmem:[#allocation3 + $0x80] sm:$0xff] %v946
  %995 = vst [vmem:[#allocation3 + $0x88] sm:$0xff] %v947
  %996 = vst [vmem:[#allocation3 + $0x90] sm:$0xff] %v948
  %997 = vst [vmem:[#allocation3 + $0xd0] sm:$0xff] %v952
  %998 = vst [vmem:[#allocation3 + $0xd8] sm:$0xff] %v953
  %999 = vst [vmem:[#allocation3 + $0xe0] sm:$0xff] %v954
  %1000 = vst [vmem:[#allocation3 + $0x120] sm:$0xff] %v958
  %1001 = vst [vmem:[#allocation3 + $0x128] sm:$0xff] %v959
  %1002 = vst [vmem:[#allocation3 + $0x130] sm:$0xff] %v960
  %1003 = vst [vmem:[#allocation3 + $0x170] sm:$0xff] %v964
  %1004 = vst [vmem:[#allocation3 + $0x178] sm:$0xff] %v965
  %1005 = vst [vmem:[#allocation3 + $0x180] sm:$0xff] %v966
  %1006 = vst [vmem:[#allocation3 + $0x1c0] sm:$0xff] %v970
  %1007 = vst [vmem:[#allocation3 + $0x1c8] sm:$0xff] %v971
  %1008 = vst [vmem:[#allocation3 + $0x1d0] sm:$0xff] %v972
  %v1009 = vld [vmem:[#allocation3] sm:$0xff]
  %v1010 = vld [vmem:[#allocation3 + $0x8] sm:$0xff]
  %v1011 = vld [vmem:[#allocation3 + $0x10] sm:$0xff]
  %v1012 = vld [vmem:[#allocation3 + $0x18] sm:$0xff]
  %v1013 = vld [vmem:[#allocation3 + $0x50] sm:$0xff]
  %v1014 = vld [vmem:[#allocation3 + $0x58] sm:$0xff]
  %v1015 = vld [vmem:[#allocation3 + $0x60] sm:$0xff]
  %v1016 = vld [vmem:[#allocation3 + $0x68] sm:$0xff]
  %v1017 = vld [vmem:[#allocation3 + $0xa0] sm:$0xff]
  %v1018 = vld [vmem:[#allocation3 + $0xa8] sm:$0xff]
  %v1019 = vld [vmem:[#allocation3 + $0xb0] sm:$0xff]
  %v1020 = vld [vmem:[#allocation3 + $0xb8] sm:$0xff]
  %v1021 = vld [vmem:[#allocation3 + $0xf0] sm:$0xff]
  %v1022 = vld [vmem:[#allocation3 + $0xf8] sm:$0xff]
  %v1023 = vld [vmem:[#allocation3 + $0x100] sm:$0xff]
  %v1024 = vld [vmem:[#allocation3 + $0x108] sm:$0xff]
  %v1025 = vld [vmem:[#allocation3 + $0x140] sm:$0xff]
  %v1026 = vld [vmem:[#allocation3 + $0x148] sm:$0xff]
  %v1027 = vld [vmem:[#allocation3 + $0x150] sm:$0xff]
  %v1028 = vld [vmem:[#allocation3 + $0x158] sm:$0xff]
  %v1029 = vld [vmem:[#allocation3 + $0x190] sm:$0xff]
  %v1030 = vld [vmem:[#allocation3 + $0x198] sm:$0xff]
  %v1031 = vld [vmem:[#allocation3 + $0x1a0] sm:$0xff]
  %v1032 = vld [vmem:[#allocation3 + $0x1a8] sm:$0xff]
  %1057 = vrot.lane.b32.xlu0 %v1009, 19
  %v1058 = vpop.permute.xlu0 %1057
  %1059 = vrot.lane.b32.xlu0 %v1010, 19
  %v1060 = vpop.permute.xlu0 %1059
  %1061 = vrot.lane.b32.xlu0 %v1011, 19
  %v1062 = vpop.permute.xlu0 %1061
  %1063 = vrot.lane.b32.xlu0 %v1012, 19
  %v1064 = vpop.permute.xlu0 %1063
  %1065 = vrot.lane.b32.xlu0 %v1013, 19
  %v1066 = vpop.permute.xlu0 %1065
  %1067 = vrot.lane.b32.xlu0 %v1014, 19
  %v1068 = vpop.permute.xlu0 %1067
  %1069 = vrot.lane.b32.xlu0 %v1015, 19
  %v1070 = vpop.permute.xlu0 %1069
  %1071 = vrot.lane.b32.xlu0 %v1016, 19
  %v1072 = vpop.permute.xlu0 %1071
  %1073 = vrot.lane.b32.xlu0 %v1017, 19
  %v1074 = vpop.permute.xlu0 %1073
  %1075 = vrot.lane.b32.xlu0 %v1018, 19
  %v1076 = vpop.permute.xlu0 %1075
  %1077 = vrot.lane.b32.xlu0 %v1019, 19
  %v1078 = vpop.permute.xlu0 %1077
  %1079 = vrot.lane.b32.xlu0 %v1020, 19
  %v1080 = vpop.permute.xlu0 %1079
  %1081 = vrot.lane.b32.xlu0 %v1021, 19
  %v1082 = vpop.permute.xlu0 %1081
  %1083 = vrot.lane.b32.xlu0 %v1022, 19
  %v1084 = vpop.permute.xlu0 %1083
  %1085 = vrot.lane.b32.xlu0 %v1023, 19
  %v1086 = vpop.permute.xlu0 %1085
  %1087 = vrot.lane.b32.xlu0 %v1024, 19
  %v1088 = vpop.permute.xlu0 %1087
  %1089 = vrot.lane.b32.xlu0 %v1025, 19
  %v1090 = vpop.permute.xlu0 %1089
  %1091 = vrot.lane.b32.xlu0 %v1026, 19
  %v1092 = vpop.permute.xlu0 %1091
  %1093 = vrot.lane.b32.xlu0 %v1027, 19
  %v1094 = vpop.permute.xlu0 %1093
  %1095 = vrot.lane.b32.xlu0 %v1028, 19
  %v1096 = vpop.permute.xlu0 %1095
  %1097 = vrot.lane.b32.xlu0 %v1029, 19
  %v1098 = vpop.permute.xlu0 %1097
  %1099 = vrot.lane.b32.xlu0 %v1030, 19
  %v1100 = vpop.permute.xlu0 %1099
  %1101 = vrot.lane.b32.xlu0 %v1031, 19
  %v1102 = vpop.permute.xlu0 %1101
  %1103 = vrot.lane.b32.xlu0 %v1032, 19
  %v1104 = vpop.permute.xlu0 %1103
  %v1105 = vsel %vm48, %v1058, %v1060
  %v1106 = vsel %vm48, %v1060, %v1062
  %v1107 = vsel %vm48, %v1062, %v1064
  %v1108 = vsel %vm48, %v1066, %v1068
  %v1109 = vsel %vm48, %v1068, %v1070
  %v1110 = vsel %vm48, %v1070, %v1072
  %v1111 = vsel %vm48, %v1074, %v1076
  %v1112 = vsel %vm48, %v1076, %v1078
  %v1113 = vsel %vm48, %v1078, %v1080
  %v1114 = vsel %vm48, %v1082, %v1084
  %v1115 = vsel %vm48, %v1084, %v1086
  %v1116 = vsel %vm48, %v1086, %v1088
  %v1117 = vsel %vm48, %v1090, %v1092
  %v1118 = vsel %vm48, %v1092, %v1094
  %v1119 = vsel %vm48, %v1094, %v1096
  %v1120 = vsel %vm48, %v1098, %v1100
  %v1121 = vsel %vm48, %v1100, %v1102
  %v1122 = vsel %vm48, %v1102, %v1104
  %1141 = vst [vmem:[#allocation5] sm:$0xff] %v1105
  %1142 = vst [vmem:[#allocation5 + $0x8] sm:$0xff] %v1106
  %1143 = vst [vmem:[#allocation5 + $0x10] sm:$0xff] %v1107
  %1144 = vst [vmem:[#allocation5 + $0x30] sm:$0xff] %v1108
  %1145 = vst [vmem:[#allocation5 + $0x38] sm:$0xff] %v1109
  %1146 = vst [vmem:[#allocation5 + $0x40] sm:$0xff] %v1110
  %1147 = vst [vmem:[#allocation5 + $0x60] sm:$0xff] %v1111
  %1148 = vst [vmem:[#allocation5 + $0x68] sm:$0xff] %v1112
  %1149 = vst [vmem:[#allocation5 + $0x70] sm:$0xff] %v1113
  %1150 = vst [vmem:[#allocation5 + $0x90] sm:$0xff] %v1114
  %1151 = vst [vmem:[#allocation5 + $0x98] sm:$0xff] %v1115
  %1152 = vst [vmem:[#allocation5 + $0xa0] sm:$0xff] %v1116
  %1153 = vst [vmem:[#allocation5 + $0xc0] sm:$0xff] %v1117
  %1154 = vst [vmem:[#allocation5 + $0xc8] sm:$0xff] %v1118
  %1155 = vst [vmem:[#allocation5 + $0xd0] sm:$0xff] %v1119
  %1156 = vst [vmem:[#allocation5 + $0xf0] sm:$0xff] %v1120
  %1157 = vst [vmem:[#allocation5 + $0xf8] sm:$0xff] %v1121
  %1158 = vst [vmem:[#allocation5 + $0x100] sm:$0xff] %v1122
  %v1159 = vld [vmem:[#allocation3 + $0x28] sm:$0xff]
  %v1160 = vld [vmem:[#allocation3 + $0x30] sm:$0xff]
  %v1161 = vld [vmem:[#allocation3 + $0x38] sm:$0xff]
  %v1162 = vld [vmem:[#allocation3 + $0x40] sm:$0xff]
  %v1163 = vld [vmem:[#allocation3 + $0x78] sm:$0xff]
  %v1164 = vld [vmem:[#allocation3 + $0x80] sm:$0xff]
  %v1165 = vld [vmem:[#allocation3 + $0x88] sm:$0xff]
  %v1166 = vld [vmem:[#allocation3 + $0x90] sm:$0xff]
  %v1167 = vld [vmem:[#allocation3 + $0xc8] sm:$0xff]
  %v1168 = vld [vmem:[#allocation3 + $0xd0] sm:$0xff]
  %v1169 = vld [vmem:[#allocation3 + $0xd8] sm:$0xff]
  %v1170 = vld [vmem:[#allocation3 + $0xe0] sm:$0xff]
  %v1171 = vld [vmem:[#allocation3 + $0x118] sm:$0xff]
  %v1172 = vld [vmem:[#allocation3 + $0x120] sm:$0xff]
  %v1173 = vld [vmem:[#allocation3 + $0x128] sm:$0xff]
  %v1174 = vld [vmem:[#allocation3 + $0x130] sm:$0xff]
  %v1175 = vld [vmem:[#allocation3 + $0x168] sm:$0xff]
  %v1176 = vld [vmem:[#allocation3 + $0x170] sm:$0xff]
  %v1177 = vld [vmem:[#allocation3 + $0x178] sm:$0xff]
  %v1178 = vld [vmem:[#allocation3 + $0x180] sm:$0xff]
  %v1179 = vld [vmem:[#allocation3 + $0x1b8] sm:$0xff]
  %v1180 = vld [vmem:[#allocation3 + $0x1c0] sm:$0xff]
  %v1181 = vld [vmem:[#allocation3 + $0x1c8] sm:$0xff]
  %v1182 = vld [vmem:[#allocation3 + $0x1d0] sm:$0xff]
  %1207 = vrot.lane.b32.xlu0 %v1159, 19
  %v1208 = vpop.permute.xlu0 %1207
  %1209 = vrot.lane.b32.xlu0 %v1160, 19
  %v1210 = vpop.permute.xlu0 %1209
  %1211 = vrot.lane.b32.xlu0 %v1161, 19
  %v1212 = vpop.permute.xlu0 %1211
  %1213 = vrot.lane.b32.xlu0 %v1162, 19
  %v1214 = vpop.permute.xlu0 %1213
  %1215 = vrot.lane.b32.xlu0 %v1163, 19
  %v1216 = vpop.permute.xlu0 %1215
  %1217 = vrot.lane.b32.xlu0 %v1164, 19
  %v1218 = vpop.permute.xlu0 %1217
  %1219 = vrot.lane.b32.xlu0 %v1165, 19
  %v1220 = vpop.permute.xlu0 %1219
  %1221 = vrot.lane.b32.xlu0 %v1166, 19
  %v1222 = vpop.permute.xlu0 %1221
  %1223 = vrot.lane.b32.xlu0 %v1167, 19
  %v1224 = vpop.permute.xlu0 %1223
  %1225 = vrot.lane.b32.xlu0 %v1168, 19
  %v1226 = vpop.permute.xlu0 %1225
  %1227 = vrot.lane.b32.xlu0 %v1169, 19
  %v1228 = vpop.permute.xlu0 %1227
  %1229 = vrot.lane.b32.xlu0 %v1170, 19
  %v1230 = vpop.permute.xlu0 %1229
  %1231 = vrot.lane.b32.xlu0 %v1171, 19
  %v1232 = vpop.permute.xlu0 %1231
  %1233 = vrot.lane.b32.xlu0 %v1172, 19
  %v1234 = vpop.permute.xlu0 %1233
  %1235 = vrot.lane.b32.xlu0 %v1173, 19
  %v1236 = vpop.permute.xlu0 %1235
  %1237 = vrot.lane.b32.xlu0 %v1174, 19
  %v1238 = vpop.permute.xlu0 %1237
  %1239 = vrot.lane.b32.xlu0 %v1175, 19
  %v1240 = vpop.permute.xlu0 %1239
  %1241 = vrot.lane.b32.xlu0 %v1176, 19
  %v1242 = vpop.permute.xlu0 %1241
  %1243 = vrot.lane.b32.xlu0 %v1177, 19
  %v1244 = vpop.permute.xlu0 %1243
  %1245 = vrot.lane.b32.xlu0 %v1178, 19
  %v1246 = vpop.permute.xlu0 %1245
  %1247 = vrot.lane.b32.xlu0 %v1179, 19
  %v1248 = vpop.permute.xlu0 %1247
  %1249 = vrot.lane.b32.xlu0 %v1180, 19
  %v1250 = vpop.permute.xlu0 %1249
  %1251 = vrot.lane.b32.xlu0 %v1181, 19
  %v1252 = vpop.permute.xlu0 %1251
  %1253 = vrot.lane.b32.xlu0 %v1182, 19
  %v1254 = vpop.permute.xlu0 %1253
  %v1255 = vsel %vm48, %v1208, %v1210
  %v1256 = vsel %vm48, %v1210, %v1212
  %v1257 = vsel %vm48, %v1212, %v1214
  %v1258 = vsel %vm48, %v1216, %v1218
  %v1259 = vsel %vm48, %v1218, %v1220
  %v1260 = vsel %vm48, %v1220, %v1222
  %v1261 = vsel %vm48, %v1224, %v1226
  %v1262 = vsel %vm48, %v1226, %v1228
  %v1263 = vsel %vm48, %v1228, %v1230
  %v1264 = vsel %vm48, %v1232, %v1234
  %v1265 = vsel %vm48, %v1234, %v1236
  %v1266 = vsel %vm48, %v1236, %v1238
  %v1267 = vsel %vm48, %v1240, %v1242
  %v1268 = vsel %vm48, %v1242, %v1244
  %v1269 = vsel %vm48, %v1244, %v1246
  %v1270 = vsel %vm48, %v1248, %v1250
  %v1271 = vsel %vm48, %v1250, %v1252
  %v1272 = vsel %vm48, %v1252, %v1254
  %1291 = vst [vmem:[#allocation5 + $0x18] sm:$0xff] %v1255
  %1292 = vst [vmem:[#allocation5 + $0x20] sm:$0xff] %v1256
  %1293 = vst [vmem:[#allocation5 + $0x28] sm:$0xff] %v1257
  %1294 = vst [vmem:[#allocation5 + $0x48] sm:$0xff] %v1258
  %1295 = vst [vmem:[#allocation5 + $0x50] sm:$0xff] %v1259
  %1296 = vst [vmem:[#allocation5 + $0x58] sm:$0xff] %v1260
  %1297 = vst [vmem:[#allocation5 + $0x78] sm:$0xff] %v1261
  %1298 = vst [vmem:[#allocation5 + $0x80] sm:$0xff] %v1262
  %1299 = vst [vmem:[#allocation5 + $0x88] sm:$0xff] %v1263
  %1300 = vst [vmem:[#allocation5 + $0xa8] sm:$0xff] %v1264
  %1301 = vst [vmem:[#allocation5 + $0xb0] sm:$0xff] %v1265
  %1302 = vst [vmem:[#allocation5 + $0xb8] sm:$0xff] %v1266
  %1303 = vst [vmem:[#allocation5 + $0xd8] sm:$0xff] %v1267
  %1304 = vst [vmem:[#allocation5 + $0xe0] sm:$0xff] %v1268
  %1305 = vst [vmem:[#allocation5 + $0xe8] sm:$0xff] %v1269
  %1306 = vst [vmem:[#allocation5 + $0x108] sm:$0xff] %v1270
  %1307 = vst [vmem:[#allocation5 + $0x110] sm:$0xff] %v1271
  %1308 = vst [vmem:[#allocation5 + $0x118] sm:$0xff] %v1272
  %v1309 = vld [vmem:[#allocation3] sm:$0xff]
  %v1310 = vld [vmem:[#allocation3 + $0x8] sm:$0xff]
  %v1311 = vld [vmem:[#allocation3 + $0x10] sm:$0xff]
  %v1312 = vld [vmem:[#allocation3 + $0x18] sm:$0xff]
  %v1313 = vld [vmem:[#allocation3 + $0x50] sm:$0xff]
  %v1314 = vld [vmem:[#allocation3 + $0x58] sm:$0xff]
  %v1315 = vld [vmem:[#allocation3 + $0x60] sm:$0xff]
  %v1316 = vld [vmem:[#allocation3 + $0x68] sm:$0xff]
  %v1317 = vld [vmem:[#allocation3 + $0xa0] sm:$0xff]
  %v1318 = vld [vmem:[#allocation3 + $0xa8] sm:$0xff]
  %v1319 = vld [vmem:[#allocation3 + $0xb0] sm:$0xff]
  %v1320 = vld [vmem:[#allocation3 + $0xb8] sm:$0xff]
  %v1321 = vld [vmem:[#allocation3 + $0xf0] sm:$0xff]
  %v1322 = vld [vmem:[#allocation3 + $0xf8] sm:$0xff]
  %v1323 = vld [vmem:[#allocation3 + $0x100] sm:$0xff]
  %v1324 = vld [vmem:[#allocation3 + $0x108] sm:$0xff]
  %v1325 = vld [vmem:[#allocation3 + $0x140] sm:$0xff]
  %v1326 = vld [vmem:[#allocation3 + $0x148] sm:$0xff]
  %v1327 = vld [vmem:[#allocation3 + $0x150] sm:$0xff]
  %v1328 = vld [vmem:[#allocation3 + $0x158] sm:$0xff]
  %v1329 = vld [vmem:[#allocation3 + $0x190] sm:$0xff]
  %v1330 = vld [vmem:[#allocation3 + $0x198] sm:$0xff]
  %v1331 = vld [vmem:[#allocation3 + $0x1a0] sm:$0xff]
  %v1332 = vld [vmem:[#allocation3 + $0x1a8] sm:$0xff]
  %1357 = vrot.lane.b32.xlu0 %v1309, 18
  %v1358 = vpop.permute.xlu0 %1357
  %1359 = vrot.lane.b32.xlu0 %v1310, 18
  %v1360 = vpop.permute.xlu0 %1359
  %1361 = vrot.lane.b32.xlu0 %v1311, 18
  %v1362 = vpop.permute.xlu0 %1361
  %1363 = vrot.lane.b32.xlu0 %v1312, 18
  %v1364 = vpop.permute.xlu0 %1363
  %1365 = vrot.lane.b32.xlu0 %v1313, 18
  %v1366 = vpop.permute.xlu0 %1365
  %1367 = vrot.lane.b32.xlu0 %v1314, 18
  %v1368 = vpop.permute.xlu0 %1367
  %1369 = vrot.lane.b32.xlu0 %v1315, 18
  %v1370 = vpop.permute.xlu0 %1369
  %1371 = vrot.lane.b32.xlu0 %v1316, 18
  %v1372 = vpop.permute.xlu0 %1371
  %1373 = vrot.lane.b32.xlu0 %v1317, 18
  %v1374 = vpop.permute.xlu0 %1373
  %1375 = vrot.lane.b32.xlu0 %v1318, 18
  %v1376 = vpop.permute.xlu0 %1375
  %1377 = vrot.lane.b32.xlu0 %v1319, 18
  %v1378 = vpop.permute.xlu0 %1377
  %1379 = vrot.lane.b32.xlu0 %v1320, 18
  %v1380 = vpop.permute.xlu0 %1379
  %1381 = vrot.lane.b32.xlu0 %v1321, 18
  %v1382 = vpop.permute.xlu0 %1381
  %1383 = vrot.lane.b32.xlu0 %v1322, 18
  %v1384 = vpop.permute.xlu0 %1383
  %1385 = vrot.lane.b32.xlu0 %v1323, 18
  %v1386 = vpop.permute.xlu0 %1385
  %1387 = vrot.lane.b32.xlu0 %v1324, 18
  %v1388 = vpop.permute.xlu0 %1387
  %1389 = vrot.lane.b32.xlu0 %v1325, 18
  %v1390 = vpop.permute.xlu0 %1389
  %1391 = vrot.lane.b32.xlu0 %v1326, 18
  %v1392 = vpop.permute.xlu0 %1391
  %1393 = vrot.lane.b32.xlu0 %v1327, 18
  %v1394 = vpop.permute.xlu0 %1393
  %1395 = vrot.lane.b32.xlu0 %v1328, 18
  %v1396 = vpop.permute.xlu0 %1395
  %1397 = vrot.lane.b32.xlu0 %v1329, 18
  %v1398 = vpop.permute.xlu0 %1397
  %1399 = vrot.lane.b32.xlu0 %v1330, 18
  %v1400 = vpop.permute.xlu0 %1399
  %1401 = vrot.lane.b32.xlu0 %v1331, 18
  %v1402 = vpop.permute.xlu0 %1401
  %1403 = vrot.lane.b32.xlu0 %v1332, 18
  %v1404 = vpop.permute.xlu0 %1403
  %v1405 = vsel %vm99, %v1358, %v1360
  %v1406 = vsel %vm99, %v1360, %v1362
  %v1407 = vsel %vm99, %v1362, %v1364
  %v1408 = vsel %vm99, %v1366, %v1368
  %v1409 = vsel %vm99, %v1368, %v1370
  %v1410 = vsel %vm99, %v1370, %v1372
  %v1411 = vsel %vm99, %v1374, %v1376
  %v1412 = vsel %vm99, %v1376, %v1378
  %v1413 = vsel %vm99, %v1378, %v1380
  %v1414 = vsel %vm99, %v1382, %v1384
  %v1415 = vsel %vm99, %v1384, %v1386
  %v1416 = vsel %vm99, %v1386, %v1388
  %v1417 = vsel %vm99, %v1390, %v1392
  %v1418 = vsel %vm99, %v1392, %v1394
  %v1419 = vsel %vm99, %v1394, %v1396
  %v1420 = vsel %vm99, %v1398, %v1400
  %v1421 = vsel %vm99, %v1400, %v1402
  %v1422 = vsel %vm99, %v1402, %v1404
  %1441 = vst [vmem:[#allocation5 + $0x120] sm:$0xff] %v1405
  %1442 = vst [vmem:[#allocation5 + $0x128] sm:$0xff] %v1406
  %1443 = vst [vmem:[#allocation5 + $0x130] sm:$0xff] %v1407
  %1444 = vst [vmem:[#allocation5 + $0x150] sm:$0xff] %v1408
  %1445 = vst [vmem:[#allocation5 + $0x158] sm:$0xff] %v1409
  %1446 = vst [vmem:[#allocation5 + $0x160] sm:$0xff] %v1410
  %1447 = vst [vmem:[#allocation5 + $0x180] sm:$0xff] %v1411
  %1448 = vst [vmem:[#allocation5 + $0x188] sm:$0xff] %v1412
  %1449 = vst [vmem:[#allocation5 + $0x190] sm:$0xff] %v1413
  %1450 = vst [vmem:[#allocation5 + $0x1b0] sm:$0xff] %v1414
  %1451 = vst [vmem:[#allocation5 + $0x1b8] sm:$0xff] %v1415
  %1452 = vst [vmem:[#allocation5 + $0x1c0] sm:$0xff] %v1416
  %1453 = vst [vmem:[#allocation5 + $0x1e0] sm:$0xff] %v1417
  %1454 = vst [vmem:[#allocation5 + $0x1e8] sm:$0xff] %v1418
  %1455 = vst [vmem:[#allocation5 + $0x1f0] sm:$0xff] %v1419
  %1456 = vst [vmem:[#allocation5 + $0x210] sm:$0xff] %v1420
  %1457 = vst [vmem:[#allocation5 + $0x218] sm:$0xff] %v1421
  %1458 = vst [vmem:[#allocation5 + $0x220] sm:$0xff] %v1422
  %v1459 = vld [vmem:[#allocation3 + $0x28] sm:$0xff]
  %v1460 = vld [vmem:[#allocation3 + $0x30] sm:$0xff]
  %v1461 = vld [vmem:[#allocation3 + $0x38] sm:$0xff]
  %v1462 = vld [vmem:[#allocation3 + $0x40] sm:$0xff]
  %v1463 = vld [vmem:[#allocation3 + $0x78] sm:$0xff]
  %v1464 = vld [vmem:[#allocation3 + $0x80] sm:$0xff]
  %v1465 = vld [vmem:[#allocation3 + $0x88] sm:$0xff]
  %v1466 = vld [vmem:[#allocation3 + $0x90] sm:$0xff]
  %v1467 = vld [vmem:[#allocation3 + $0xc8] sm:$0xff]
  %v1468 = vld [vmem:[#allocation3 + $0xd0] sm:$0xff]
  %v1469 = vld [vmem:[#allocation3 + $0xd8] sm:$0xff]
  %v1470 = vld [vmem:[#allocation3 + $0xe0] sm:$0xff]
  %v1471 = vld [vmem:[#allocation3 + $0x118] sm:$0xff]
  %v1472 = vld [vmem:[#allocation3 + $0x120] sm:$0xff]
  %v1473 = vld [vmem:[#allocation3 + $0x128] sm:$0xff]
  %v1474 = vld [vmem:[#allocation3 + $0x130] sm:$0xff]
  %v1475 = vld [vmem:[#allocation3 + $0x168] sm:$0xff]
  %v1476 = vld [vmem:[#allocation3 + $0x170] sm:$0xff]
  %v1477 = vld [vmem:[#allocation3 + $0x178] sm:$0xff]
  %v1478 = vld [vmem:[#allocation3 + $0x180] sm:$0xff]
  %v1479 = vld [vmem:[#allocation3 + $0x1b8] sm:$0xff]
  %v1480 = vld [vmem:[#allocation3 + $0x1c0] sm:$0xff]
  %v1481 = vld [vmem:[#allocation3 + $0x1c8] sm:$0xff]
  %v1482 = vld [vmem:[#allocation3 + $0x1d0] sm:$0xff]
  %1507 = vrot.lane.b32.xlu0 %v1459, 18
  %v1508 = vpop.permute.xlu0 %1507
  %1509 = vrot.lane.b32.xlu0 %v1460, 18
  %v1510 = vpop.permute.xlu0 %1509
  %1511 = vrot.lane.b32.xlu0 %v1461, 18
  %v1512 = vpop.permute.xlu0 %1511
  %1513 = vrot.lane.b32.xlu0 %v1462, 18
  %v1514 = vpop.permute.xlu0 %1513
  %1515 = vrot.lane.b32.xlu0 %v1463, 18
  %v1516 = vpop.permute.xlu0 %1515
  %1517 = vrot.lane.b32.xlu0 %v1464, 18
  %v1518 = vpop.permute.xlu0 %1517
  %1519 = vrot.lane.b32.xlu0 %v1465, 18
  %v1520 = vpop.permute.xlu0 %1519
  %1521 = vrot.lane.b32.xlu0 %v1466, 18
  %v1522 = vpop.permute.xlu0 %1521
  %1523 = vrot.lane.b32.xlu0 %v1467, 18
  %v1524 = vpop.permute.xlu0 %1523
  %1525 = vrot.lane.b32.xlu0 %v1468, 18
  %v1526 = vpop.permute.xlu0 %1525
  %1527 = vrot.lane.b32.xlu0 %v1469, 18
  %v1528 = vpop.permute.xlu0 %1527
  %1529 = vrot.lane.b32.xlu0 %v1470, 18
  %v1530 = vpop.permute.xlu0 %1529
  %1531 = vrot.lane.b32.xlu0 %v1471, 18
  %v1532 = vpop.permute.xlu0 %1531
  %1533 = vrot.lane.b32.xlu0 %v1472, 18
  %v1534 = vpop.permute.xlu0 %1533
  %1535 = vrot.lane.b32.xlu0 %v1473, 18
  %v1536 = vpop.permute.xlu0 %1535
  %1537 = vrot.lane.b32.xlu0 %v1474, 18
  %v1538 = vpop.permute.xlu0 %1537
  %1539 = vrot.lane.b32.xlu0 %v1475, 18
  %v1540 = vpop.permute.xlu0 %1539
  %1541 = vrot.lane.b32.xlu0 %v1476, 18
  %v1542 = vpop.permute.xlu0 %1541
  %1543 = vrot.lane.b32.xlu0 %v1477, 18
  %v1544 = vpop.permute.xlu0 %1543
  %1545 = vrot.lane.b32.xlu0 %v1478, 18
  %v1546 = vpop.permute.xlu0 %1545
  %1547 = vrot.lane.b32.xlu0 %v1479, 18
  %v1548 = vpop.permute.xlu0 %1547
  %1549 = vrot.lane.b32.xlu0 %v1480, 18
  %v1550 = vpop.permute.xlu0 %1549
  %1551 = vrot.lane.b32.xlu0 %v1481, 18
  %v1552 = vpop.permute.xlu0 %1551
  %1553 = vrot.lane.b32.xlu0 %v1482, 18
  %v1554 = vpop.permute.xlu0 %1553
  %v1555 = vsel %vm99, %v1508, %v1510
  %v1556 = vsel %vm99, %v1510, %v1512
  %v1557 = vsel %vm99, %v1512, %v1514
  %v1558 = vsel %vm99, %v1516, %v1518
  %v1559 = vsel %vm99, %v1518, %v1520
  %v1560 = vsel %vm99, %v1520, %v1522
  %v1561 = vsel %vm99, %v1524, %v1526
  %v1562 = vsel %vm99, %v1526, %v1528
  %v1563 = vsel %vm99, %v1528, %v1530
  %v1564 = vsel %vm99, %v1532, %v1534
  %v1565 = vsel %vm99, %v1534, %v1536
  %v1566 = vsel %vm99, %v1536, %v1538
  %v1567 = vsel %vm99, %v1540, %v1542
  %v1568 = vsel %vm99, %v1542, %v1544
  %v1569 = vsel %vm99, %v1544, %v1546
  %v1570 = vsel %vm99, %v1548, %v1550
  %v1571 = vsel %vm99, %v1550, %v1552
  %v1572 = vsel %vm99, %v1552, %v1554
  %1591 = vst [vmem:[#allocation5 + $0x138] sm:$0xff] %v1555
  %1592 = vst [vmem:[#allocation5 + $0x140] sm:$0xff] %v1556
  %1593 = vst [vmem:[#allocation5 + $0x148] sm:$0xff] %v1557
  %1594 = vst [vmem:[#allocation5 + $0x168] sm:$0xff] %v1558
  %1595 = vst [vmem:[#allocation5 + $0x170] sm:$0xff] %v1559
  %1596 = vst [vmem:[#allocation5 + $0x178] sm:$0xff] %v1560
  %1597 = vst [vmem:[#allocation5 + $0x198] sm:$0xff] %v1561
  %1598 = vst [vmem:[#allocation5 + $0x1a0] sm:$0xff] %v1562
  %1599 = vst [vmem:[#allocation5 + $0x1a8] sm:$0xff] %v1563
  %1600 = vst [vmem:[#allocation5 + $0x1c8] sm:$0xff] %v1564
  %1601 = vst [vmem:[#allocation5 + $0x1d0] sm:$0xff] %v1565
  %1602 = vst [vmem:[#allocation5 + $0x1d8] sm:$0xff] %v1566
  %1603 = vst [vmem:[#allocation5 + $0x1f8] sm:$0xff] %v1567
  %1604 = vst [vmem:[#allocation5 + $0x200] sm:$0xff] %v1568
  %1605 = vst [vmem:[#allocation5 + $0x208] sm:$0xff] %v1569
  %1606 = vst [vmem:[#allocation5 + $0x228] sm:$0xff] %v1570
  %1607 = vst [vmem:[#allocation5 + $0x230] sm:$0xff] %v1571
  %1608 = vst [vmem:[#allocation5 + $0x238] sm:$0xff] %v1572
  %v1609 = vld [vmem:[#allocation3] sm:$0xff]
  %v1610 = vld [vmem:[#allocation3 + $0x8] sm:$0xff]
  %v1611 = vld [vmem:[#allocation3 + $0x10] sm:$0xff]
  %v1612 = vld [vmem:[#allocation3 + $0x18] sm:$0xff]
  %v1613 = vld [vmem:[#allocation3 + $0x50] sm:$0xff]
  %v1614 = vld [vmem:[#allocation3 + $0x58] sm:$0xff]
  %v1615 = vld [vmem:[#allocation3 + $0x60] sm:$0xff]
  %v1616 = vld [vmem:[#allocation3 + $0x68] sm:$0xff]
  %v1617 = vld [vmem:[#allocation3 + $0xa0] sm:$0xff]
  %v1618 = vld [vmem:[#allocation3 + $0xa8] sm:$0xff]
  %v1619 = vld [vmem:[#allocation3 + $0xb0] sm:$0xff]
  %v1620 = vld [vmem:[#allocation3 + $0xb8] sm:$0xff]
  %v1621 = vld [vmem:[#allocation3 + $0xf0] sm:$0xff]
  %v1622 = vld [vmem:[#allocation3 + $0xf8] sm:$0xff]
  %v1623 = vld [vmem:[#allocation3 + $0x100] sm:$0xff]
  %v1624 = vld [vmem:[#allocation3 + $0x108] sm:$0xff]
  %v1625 = vld [vmem:[#allocation3 + $0x140] sm:$0xff]
  %v1626 = vld [vmem:[#allocation3 + $0x148] sm:$0xff]
  %v1627 = vld [vmem:[#allocation3 + $0x150] sm:$0xff]
  %v1628 = vld [vmem:[#allocation3 + $0x158] sm:$0xff]
  %v1629 = vld [vmem:[#allocation3 + $0x190] sm:$0xff]
  %v1630 = vld [vmem:[#allocation3 + $0x198] sm:$0xff]
  %v1631 = vld [vmem:[#allocation3 + $0x1a0] sm:$0xff]
  %v1632 = vld [vmem:[#allocation3 + $0x1a8] sm:$0xff]
  %1657 = vrot.lane.b32.xlu0 %v1609, 17
  %v1658 = vpop.permute.xlu0 %1657
  %1659 = vrot.lane.b32.xlu0 %v1610, 17
  %v1660 = vpop.permute.xlu0 %1659
  %1661 = vrot.lane.b32.xlu0 %v1611, 17
  %v1662 = vpop.permute.xlu0 %1661
  %1663 = vrot.lane.b32.xlu0 %v1612, 17
  %v1664 = vpop.permute.xlu0 %1663
  %1665 = vrot.lane.b32.xlu0 %v1613, 17
  %v1666 = vpop.permute.xlu0 %1665
  %1667 = vrot.lane.b32.xlu0 %v1614, 17
  %v1668 = vpop.permute.xlu0 %1667
  %1669 = vrot.lane.b32.xlu0 %v1615, 17
  %v1670 = vpop.permute.xlu0 %1669
  %1671 = vrot.lane.b32.xlu0 %v1616, 17
  %v1672 = vpop.permute.xlu0 %1671
  %1673 = vrot.lane.b32.xlu0 %v1617, 17
  %v1674 = vpop.permute.xlu0 %1673
  %1675 = vrot.lane.b32.xlu0 %v1618, 17
  %v1676 = vpop.permute.xlu0 %1675
  %1677 = vrot.lane.b32.xlu0 %v1619, 17
  %v1678 = vpop.permute.xlu0 %1677
  %1679 = vrot.lane.b32.xlu0 %v1620, 17
  %v1680 = vpop.permute.xlu0 %1679
  %1681 = vrot.lane.b32.xlu0 %v1621, 17
  %v1682 = vpop.permute.xlu0 %1681
  %1683 = vrot.lane.b32.xlu0 %v1622, 17
  %v1684 = vpop.permute.xlu0 %1683
  %1685 = vrot.lane.b32.xlu0 %v1623, 17
  %v1686 = vpop.permute.xlu0 %1685
  %1687 = vrot.lane.b32.xlu0 %v1624, 17
  %v1688 = vpop.permute.xlu0 %1687
  %1689 = vrot.lane.b32.xlu0 %v1625, 17
  %v1690 = vpop.permute.xlu0 %1689
  %1691 = vrot.lane.b32.xlu0 %v1626, 17
  %v1692 = vpop.permute.xlu0 %1691
  %1693 = vrot.lane.b32.xlu0 %v1627, 17
  %v1694 = vpop.permute.xlu0 %1693
  %1695 = vrot.lane.b32.xlu0 %v1628, 17
  %v1696 = vpop.permute.xlu0 %1695
  %1697 = vrot.lane.b32.xlu0 %v1629, 17
  %v1698 = vpop.permute.xlu0 %1697
  %1699 = vrot.lane.b32.xlu0 %v1630, 17
  %v1700 = vpop.permute.xlu0 %1699
  %1701 = vrot.lane.b32.xlu0 %v1631, 17
  %v1702 = vpop.permute.xlu0 %1701
  %1703 = vrot.lane.b32.xlu0 %v1632, 17
  %v1704 = vpop.permute.xlu0 %1703
  %v1705 = vsel %vm150, %v1658, %v1660
  %v1706 = vsel %vm150, %v1660, %v1662
  %v1707 = vsel %vm150, %v1662, %v1664
  %v1708 = vsel %vm150, %v1666, %v1668
  %v1709 = vsel %vm150, %v1668, %v1670
  %v1710 = vsel %vm150, %v1670, %v1672
  %v1711 = vsel %vm150, %v1674, %v1676
  %v1712 = vsel %vm150, %v1676, %v1678
  %v1713 = vsel %vm150, %v1678, %v1680
  %v1714 = vsel %vm150, %v1682, %v1684
  %v1715 = vsel %vm150, %v1684, %v1686
  %v1716 = vsel %vm150, %v1686, %v1688
  %v1717 = vsel %vm150, %v1690, %v1692
  %v1718 = vsel %vm150, %v1692, %v1694
  %v1719 = vsel %vm150, %v1694, %v1696
  %v1720 = vsel %vm150, %v1698, %v1700
  %v1721 = vsel %vm150, %v1700, %v1702
  %v1722 = vsel %vm150, %v1702, %v1704
  %1741 = vst [vmem:[#allocation5 + $0x240] sm:$0xff] %v1705
  %1742 = vst [vmem:[#allocation5 + $0x248] sm:$0xff] %v1706
  %1743 = vst [vmem:[#allocation5 + $0x250] sm:$0xff] %v1707
  %1744 = vst [vmem:[#allocation5 + $0x270] sm:$0xff] %v1708
  %1745 = vst [vmem:[#allocation5 + $0x278] sm:$0xff] %v1709
  %1746 = vst [vmem:[#allocation5 + $0x280] sm:$0xff] %v1710
  %1747 = vst [vmem:[#allocation5 + $0x2a0] sm:$0xff] %v1711
  %1748 = vst [vmem:[#allocation5 + $0x2a8] sm:$0xff] %v1712
  %1749 = vst [vmem:[#allocation5 + $0x2b0] sm:$0xff] %v1713
  %1750 = vst [vmem:[#allocation5 + $0x2d0] sm:$0xff] %v1714
  %1751 = vst [vmem:[#allocation5 + $0x2d8] sm:$0xff] %v1715
  %1752 = vst [vmem:[#allocation5 + $0x2e0] sm:$0xff] %v1716
  %1753 = vst [vmem:[#allocation5 + $0x300] sm:$0xff] %v1717
  %1754 = vst [vmem:[#allocation5 + $0x308] sm:$0xff] %v1718
  %1755 = vst [vmem:[#allocation5 + $0x310] sm:$0xff] %v1719
  %1756 = vst [vmem:[#allocation5 + $0x330] sm:$0xff] %v1720
  %1757 = vst [vmem:[#allocation5 + $0x338] sm:$0xff] %v1721
  %1758 = vst [vmem:[#allocation5 + $0x340] sm:$0xff] %v1722
  %v1759 = vld [vmem:[#allocation3 + $0x28] sm:$0xff]
  %v1760 = vld [vmem:[#allocation3 + $0x30] sm:$0xff]
  %v1761 = vld [vmem:[#allocation3 + $0x38] sm:$0xff]
  %v1762 = vld [vmem:[#allocation3 + $0x40] sm:$0xff]
  %v1763 = vld [vmem:[#allocation3 + $0x78] sm:$0xff]
  %v1764 = vld [vmem:[#allocation3 + $0x80] sm:$0xff]
  %v1765 = vld [vmem:[#allocation3 + $0x88] sm:$0xff]
  %v1766 = vld [vmem:[#allocation3 + $0x90] sm:$0xff]
  %v1767 = vld [vmem:[#allocation3 + $0xc8] sm:$0xff]
  %v1768 = vld [vmem:[#allocation3 + $0xd0] sm:$0xff]
  %v1769 = vld [vmem:[#allocation3 + $0xd8] sm:$0xff]
  %v1770 = vld [vmem:[#allocation3 + $0xe0] sm:$0xff]
  %v1771 = vld [vmem:[#allocation3 + $0x118] sm:$0xff]
  %v1772 = vld [vmem:[#allocation3 + $0x120] sm:$0xff]
  %v1773 = vld [vmem:[#allocation3 + $0x128] sm:$0xff]
  %v1774 = vld [vmem:[#allocation3 + $0x130] sm:$0xff]
  %v1775 = vld [vmem:[#allocation3 + $0x168] sm:$0xff]
  %v1776 = vld [vmem:[#allocation3 + $0x170] sm:$0xff]
  %v1777 = vld [vmem:[#allocation3 + $0x178] sm:$0xff]
  %v1778 = vld [vmem:[#allocation3 + $0x180] sm:$0xff]
  %v1779 = vld [vmem:[#allocation3 + $0x1b8] sm:$0xff]
  %v1780 = vld [vmem:[#allocation3 + $0x1c0] sm:$0xff]
  %v1781 = vld [vmem:[#allocation3 + $0x1c8] sm:$0xff]
  %v1782 = vld [vmem:[#allocation3 + $0x1d0] sm:$0xff]
  %1807 = vrot.lane.b32.xlu0 %v1759, 17
  %v1808 = vpop.permute.xlu0 %1807
  %1809 = vrot.lane.b32.xlu0 %v1760, 17
  %v1810 = vpop.permute.xlu0 %1809
  %1811 = vrot.lane.b32.xlu0 %v1761, 17
  %v1812 = vpop.permute.xlu0 %1811
  %1813 = vrot.lane.b32.xlu0 %v1762, 17
  %v1814 = vpop.permute.xlu0 %1813
  %1815 = vrot.lane.b32.xlu0 %v1763, 17
  %v1816 = vpop.permute.xlu0 %1815
  %1817 = vrot.lane.b32.xlu0 %v1764, 17
  %v1818 = vpop.permute.xlu0 %1817
  %1819 = vrot.lane.b32.xlu0 %v1765, 17
  %v1820 = vpop.permute.xlu0 %1819
  %1821 = vrot.lane.b32.xlu0 %v1766, 17
  %v1822 = vpop.permute.xlu0 %1821
  %1823 = vrot.lane.b32.xlu0 %v1767, 17
  %v1824 = vpop.permute.xlu0 %1823
  %1825 = vrot.lane.b32.xlu0 %v1768, 17
  %v1826 = vpop.permute.xlu0 %1825
  %1827 = vrot.lane.b32.xlu0 %v1769, 17
  %v1828 = vpop.permute.xlu0 %1827
  %1829 = vrot.lane.b32.xlu0 %v1770, 17
  %v1830 = vpop.permute.xlu0 %1829
  %1831 = vrot.lane.b32.xlu0 %v1771, 17
  %v1832 = vpop.permute.xlu0 %1831
  %1833 = vrot.lane.b32.xlu0 %v1772, 17
  %v1834 = vpop.permute.xlu0 %1833
  %1835 = vrot.lane.b32.xlu0 %v1773, 17
  %v1836 = vpop.permute.xlu0 %1835
  %1837 = vrot.lane.b32.xlu0 %v1774, 17
  %v1838 = vpop.permute.xlu0 %1837
  %1839 = vrot.lane.b32.xlu0 %v1775, 17
  %v1840 = vpop.permute.xlu0 %1839
  %1841 = vrot.lane.b32.xlu0 %v1776, 17
  %v1842 = vpop.permute.xlu0 %1841
  %1843 = vrot.lane.b32.xlu0 %v1777, 17
  %v1844 = vpop.permute.xlu0 %1843
  %1845 = vrot.lane.b32.xlu0 %v1778, 17
  %v1846 = vpop.permute.xlu0 %1845
  %1847 = vrot.lane.b32.xlu0 %v1779, 17
  %v1848 = vpop.permute.xlu0 %1847
  %1849 = vrot.lane.b32.xlu0 %v1780, 17
  %v1850 = vpop.permute.xlu0 %1849
  %1851 = vrot.lane.b32.xlu0 %v1781, 17
  %v1852 = vpop.permute.xlu0 %1851
  %1853 = vrot.lane.b32.xlu0 %v1782, 17
  %v1854 = vpop.permute.xlu0 %1853
  %v1855 = vsel %vm150, %v1808, %v1810
  %v1856 = vsel %vm150, %v1810, %v1812
  %v1857 = vsel %vm150, %v1812, %v1814
  %v1858 = vsel %vm150, %v1816, %v1818
  %v1859 = vsel %vm150, %v1818, %v1820
  %v1860 = vsel %vm150, %v1820, %v1822
  %v1861 = vsel %vm150, %v1824, %v1826
  %v1862 = vsel %vm150, %v1826, %v1828
  %v1863 = vsel %vm150, %v1828, %v1830
  %v1864 = vsel %vm150, %v1832, %v1834
  %v1865 = vsel %vm150, %v1834, %v1836
  %v1866 = vsel %vm150, %v1836, %v1838
  %v1867 = vsel %vm150, %v1840, %v1842
  %v1868 = vsel %vm150, %v1842, %v1844
  %v1869 = vsel %vm150, %v1844, %v1846
  %v1870 = vsel %vm150, %v1848, %v1850
  %v1871 = vsel %vm150, %v1850, %v1852
  %v1872 = vsel %vm150, %v1852, %v1854
  %1891 = vst [vmem:[#allocation5 + $0x258] sm:$0xff] %v1855
  %1892 = vst [vmem:[#allocation5 + $0x260] sm:$0xff] %v1856
  %1893 = vst [vmem:[#allocation5 + $0x268] sm:$0xff] %v1857
  %1894 = vst [vmem:[#allocation5 + $0x288] sm:$0xff] %v1858
  %1895 = vst [vmem:[#allocation5 + $0x290] sm:$0xff] %v1859
  %1896 = vst [vmem:[#allocation5 + $0x298] sm:$0xff] %v1860
  %1897 = vst [vmem:[#allocation5 + $0x2b8] sm:$0xff] %v1861
  %1898 = vst [vmem:[#allocation5 + $0x2c0] sm:$0xff] %v1862
  %1899 = vst [vmem:[#allocation5 + $0x2c8] sm:$0xff] %v1863
  %1900 = vst [vmem:[#allocation5 + $0x2e8] sm:$0xff] %v1864
  %1901 = vst [vmem:[#allocation5 + $0x2f0] sm:$0xff] %v1865
  %1902 = vst [vmem:[#allocation5 + $0x2f8] sm:$0xff] %v1866
  %1903 = vst [vmem:[#allocation5 + $0x318] sm:$0xff] %v1867
  %1904 = vst [vmem:[#allocation5 + $0x320] sm:$0xff] %v1868
  %1905 = vst [vmem:[#allocation5 + $0x328] sm:$0xff] %v1869
  %1906 = vst [vmem:[#allocation5 + $0x348] sm:$0xff] %v1870
  %1907 = vst [vmem:[#allocation5 + $0x350] sm:$0xff] %v1871
  %1908 = vst [vmem:[#allocation5 + $0x358] sm:$0xff] %v1872
  %v1909 = vld [vmem:[#allocation3] sm:$0xff]
  %v1910 = vld [vmem:[#allocation3 + $0x8] sm:$0xff]
  %v1911 = vld [vmem:[#allocation3 + $0x10] sm:$0xff]
  %v1912 = vld [vmem:[#allocation3 + $0x18] sm:$0xff]
  %v1913 = vld [vmem:[#allocation3 + $0x50] sm:$0xff]
  %v1914 = vld [vmem:[#allocation3 + $0x58] sm:$0xff]
  %v1915 = vld [vmem:[#allocation3 + $0x60] sm:$0xff]
  %v1916 = vld [vmem:[#allocation3 + $0x68] sm:$0xff]
  %v1917 = vld [vmem:[#allocation3 + $0xa0] sm:$0xff]
  %v1918 = vld [vmem:[#allocation3 + $0xa8] sm:$0xff]
  %v1919 = vld [vmem:[#allocation3 + $0xb0] sm:$0xff]
  %v1920 = vld [vmem:[#allocation3 + $0xb8] sm:$0xff]
  %v1921 = vld [vmem:[#allocation3 + $0xf0] sm:$0xff]
  %v1922 = vld [vmem:[#allocation3 + $0xf8] sm:$0xff]
  %v1923 = vld [vmem:[#allocation3 + $0x100] sm:$0xff]
  %v1924 = vld [vmem:[#allocation3 + $0x108] sm:$0xff]
  %v1925 = vld [vmem:[#allocation3 + $0x140] sm:$0xff]
  %v1926 = vld [vmem:[#allocation3 + $0x148] sm:$0xff]
  %v1927 = vld [vmem:[#allocation3 + $0x150] sm:$0xff]
  %v1928 = vld [vmem:[#allocation3 + $0x158] sm:$0xff]
  %v1929 = vld [vmem:[#allocation3 + $0x190] sm:$0xff]
  %v1930 = vld [vmem:[#allocation3 + $0x198] sm:$0xff]
  %v1931 = vld [vmem:[#allocation3 + $0x1a0] sm:$0xff]
  %v1932 = vld [vmem:[#allocation3 + $0x1a8] sm:$0xff]
  %1957 = vrot.lane.b32.xlu0 %v1909, 1
  %v1958 = vpop.permute.xlu0 %1957
  %1959 = vrot.lane.b32.xlu0 %v1910, 1
  %v1960 = vpop.permute.xlu0 %1959
  %1961 = vrot.lane.b32.xlu0 %v1911, 1
  %v1962 = vpop.permute.xlu0 %1961
  %1963 = vrot.lane.b32.xlu0 %v1912, 1
  %v1964 = vpop.permute.xlu0 %1963
  %1965 = vrot.lane.b32.xlu0 %v1913, 1
  %v1966 = vpop.permute.xlu0 %1965
  %1967 = vrot.lane.b32.xlu0 %v1914, 1
  %v1968 = vpop.permute.xlu0 %1967
  %1969 = vrot.lane.b32.xlu0 %v1915, 1
  %v1970 = vpop.permute.xlu0 %1969
  %1971 = vrot.lane.b32.xlu0 %v1916, 1
  %v1972 = vpop.permute.xlu0 %1971
  %1973 = vrot.lane.b32.xlu0 %v1917, 1
  %v1974 = vpop.permute.xlu0 %1973
  %1975 = vrot.lane.b32.xlu0 %v1918, 1
  %v1976 = vpop.permute.xlu0 %1975
  %1977 = vrot.lane.b32.xlu0 %v1919, 1
  %v1978 = vpop.permute.xlu0 %1977
  %1979 = vrot.lane.b32.xlu0 %v1920, 1
  %v1980 = vpop.permute.xlu0 %1979
  %1981 = vrot.lane.b32.xlu0 %v1921, 1
  %v1982 = vpop.permute.xlu0 %1981
  %1983 = vrot.lane.b32.xlu0 %v1922, 1
  %v1984 = vpop.permute.xlu0 %1983
  %1985 = vrot.lane.b32.xlu0 %v1923, 1
  %v1986 = vpop.permute.xlu0 %1985
  %1987 = vrot.lane.b32.xlu0 %v1924, 1
  %v1988 = vpop.permute.xlu0 %1987
  %1989 = vrot.lane.b32.xlu0 %v1925, 1
  %v1990 = vpop.permute.xlu0 %1989
  %1991 = vrot.lane.b32.xlu0 %v1926, 1
  %v1992 = vpop.permute.xlu0 %1991
  %1993 = vrot.lane.b32.xlu0 %v1927, 1
  %v1994 = vpop.permute.xlu0 %1993
  %1995 = vrot.lane.b32.xlu0 %v1928, 1
  %v1996 = vpop.permute.xlu0 %1995
  %1997 = vrot.lane.b32.xlu0 %v1929, 1
  %v1998 = vpop.permute.xlu0 %1997
  %1999 = vrot.lane.b32.xlu0 %v1930, 1
  %v2000 = vpop.permute.xlu0 %1999
  %2001 = vrot.lane.b32.xlu0 %v1931, 1
  %v2002 = vpop.permute.xlu0 %2001
  %2003 = vrot.lane.b32.xlu0 %v1932, 1
  %v2004 = vpop.permute.xlu0 %2003
  %v2005 = vsel %vm201, %v1958, %v1960
  %v2006 = vsel %vm201, %v1960, %v1962
  %v2007 = vsel %vm201, %v1962, %v1964
  %v2008 = vsel %vm201, %v1966, %v1968
  %v2009 = vsel %vm201, %v1968, %v1970
  %v2010 = vsel %vm201, %v1970, %v1972
  %v2011 = vsel %vm201, %v1974, %v1976
  %v2012 = vsel %vm201, %v1976, %v1978
  %v2013 = vsel %vm201, %v1978, %v1980
  %v2014 = vsel %vm201, %v1982, %v1984
  %v2015 = vsel %vm201, %v1984, %v1986
  %v2016 = vsel %vm201, %v1986, %v1988
  %v2017 = vsel %vm201, %v1990, %v1992
  %v2018 = vsel %vm201, %v1992, %v1994
  %v2019 = vsel %vm201, %v1994, %v1996
  %v2020 = vsel %vm201, %v1998, %v2000
  %v2021 = vsel %vm201, %v2000, %v2002
  %v2022 = vsel %vm201, %v2002, %v2004
  %2041 = vst [vmem:[#allocation5 + $0x360] sm:$0xff] %v2005
  %2042 = vst [vmem:[#allocation5 + $0x368] sm:$0xff] %v2006
  %2043 = vst [vmem:[#allocation5 + $0x370] sm:$0xff] %v2007
  %2044 = vst [vmem:[#allocation5 + $0x390] sm:$0xff] %v2008
  %2045 = vst [vmem:[#allocation5 + $0x398] sm:$0xff] %v2009
  %2046 = vst [vmem:[#allocation5 + $0x3a0] sm:$0xff] %v2010
  %2047 = vst [vmem:[#allocation5 + $0x3c0] sm:$0xff] %v2011
  %2048 = vst [vmem:[#allocation5 + $0x3c8] sm:$0xff] %v2012
  %2049 = vst [vmem:[#allocation5 + $0x3d0] sm:$0xff] %v2013
  %2050 = vst [vmem:[#allocation5 + $0x3f0] sm:$0xff] %v2014
  %2051 = vst [vmem:[#allocation5 + $0x3f8] sm:$0xff] %v2015
  %2052 = vst [vmem:[#allocation5 + $0x400] sm:$0xff] %v2016
  %2053 = vst [vmem:[#allocation5 + $0x420] sm:$0xff] %v2017
  %2054 = vst [vmem:[#allocation5 + $0x428] sm:$0xff] %v2018
  %2055 = vst [vmem:[#allocation5 + $0x430] sm:$0xff] %v2019
  %2056 = vst [vmem:[#allocation5 + $0x450] sm:$0xff] %v2020
  %2057 = vst [vmem:[#allocation5 + $0x458] sm:$0xff] %v2021
  %2058 = vst [vmem:[#allocation5 + $0x460] sm:$0xff] %v2022
  %v2059 = vld [vmem:[#allocation3 + $0x28] sm:$0xff]
  %v2060 = vld [vmem:[#allocation3 + $0x30] sm:$0xff]
  %v2061 = vld [vmem:[#allocation3 + $0x38] sm:$0xff]
  %v2062 = vld [vmem:[#allocation3 + $0x40] sm:$0xff]
  %v2063 = vld [vmem:[#allocation3 + $0x78] sm:$0xff]
  %v2064 = vld [vmem:[#allocation3 + $0x80] sm:$0xff]
  %v2065 = vld [vmem:[#allocation3 + $0x88] sm:$0xff]
  %v2066 = vld [vmem:[#allocation3 + $0x90] sm:$0xff]
  %v2067 = vld [vmem:[#allocation3 + $0xc8] sm:$0xff]
  %v2068 = vld [vmem:[#allocation3 + $0xd0] sm:$0xff]
  %v2069 = vld [vmem:[#allocation3 + $0xd8] sm:$0xff]
  %v2070 = vld [vmem:[#allocation3 + $0xe0] sm:$0xff]
  %v2071 = vld [vmem:[#allocation3 + $0x118] sm:$0xff]
  %v2072 = vld [vmem:[#allocation3 + $0x120] sm:$0xff]
  %v2073 = vld [vmem:[#allocation3 + $0x128] sm:$0xff]
  %v2074 = vld [vmem:[#allocation3 + $0x130] sm:$0xff]
  %v2075 = vld [vmem:[#allocation3 + $0x168] sm:$0xff]
  %v2076 = vld [vmem:[#allocation3 + $0x170] sm:$0xff]
  %v2077 = vld [vmem:[#allocation3 + $0x178] sm:$0xff]
  %v2078 = vld [vmem:[#allocation3 + $0x180] sm:$0xff]
  %v2079 = vld [vmem:[#allocation3 + $0x1b8] sm:$0xff]
  %v2080 = vld [vmem:[#allocation3 + $0x1c0] sm:$0xff]
  %v2081 = vld [vmem:[#allocation3 + $0x1c8] sm:$0xff]
  %v2082 = vld [vmem:[#allocation3 + $0x1d0] sm:$0xff]
  %2107 = vrot.lane.b32.xlu0 %v2059, 1
  %v2108 = vpop.permute.xlu0 %2107
  %2109 = vrot.lane.b32.xlu0 %v2060, 1
  %v2110 = vpop.permute.xlu0 %2109
  %2111 = vrot.lane.b32.xlu0 %v2061, 1
  %v2112 = vpop.permute.xlu0 %2111
  %2113 = vrot.lane.b32.xlu0 %v2062, 1
  %v2114 = vpop.permute.xlu0 %2113
  %2115 = vrot.lane.b32.xlu0 %v2063, 1
  %v2116 = vpop.permute.xlu0 %2115
  %2117 = vrot.lane.b32.xlu0 %v2064, 1
  %v2118 = vpop.permute.xlu0 %2117
  %2119 = vrot.lane.b32.xlu0 %v2065, 1
  %v2120 = vpop.permute.xlu0 %2119
  %2121 = vrot.lane.b32.xlu0 %v2066, 1
  %v2122 = vpop.permute.xlu0 %2121
  %2123 = vrot.lane.b32.xlu0 %v2067, 1
  %v2124 = vpop.permute.xlu0 %2123
  %2125 = vrot.lane.b32.xlu0 %v2068, 1
  %v2126 = vpop.permute.xlu0 %2125
  %2127 = vrot.lane.b32.xlu0 %v2069, 1
  %v2128 = vpop.permute.xlu0 %2127
  %2129 = vrot.lane.b32.xlu0 %v2070, 1
  %v2130 = vpop.permute.xlu0 %2129
  %2131 = vrot.lane.b32.xlu0 %v2071, 1
  %v2132 = vpop.permute.xlu0 %2131
  %2133 = vrot.lane.b32.xlu0 %v2072, 1
  %v2134 = vpop.permute.xlu0 %2133
  %2135 = vrot.lane.b32.xlu0 %v2073, 1
  %v2136 = vpop.permute.xlu0 %2135
  %2137 = vrot.lane.b32.xlu0 %v2074, 1
  %v2138 = vpop.permute.xlu0 %2137
  %2139 = vrot.lane.b32.xlu0 %v2075, 1
  %v2140 = vpop.permute.xlu0 %2139
  %2141 = vrot.lane.b32.xlu0 %v2076, 1
  %v2142 = vpop.permute.xlu0 %2141
  %2143 = vrot.lane.b32.xlu0 %v2077, 1
  %v2144 = vpop.permute.xlu0 %2143
  %2145 = vrot.lane.b32.xlu0 %v2078, 1
  %v2146 = vpop.permute.xlu0 %2145
  %2147 = vrot.lane.b32.xlu0 %v2079, 1
  %v2148 = vpop.permute.xlu0 %2147
  %2149 = vrot.lane.b32.xlu0 %v2080, 1
  %v2150 = vpop.permute.xlu0 %2149
  %2151 = vrot.lane.b32.xlu0 %v2081, 1
  %v2152 = vpop.permute.xlu0 %2151
  %2153 = vrot.lane.b32.xlu0 %v2082, 1
  %v2154 = vpop.permute.xlu0 %2153
  %v2155 = vsel %vm201, %v2108, %v2110
  %v2156 = vsel %vm201, %v2110, %v2112
  %v2157 = vsel %vm201, %v2112, %v2114
  %v2158 = vsel %vm201, %v2116, %v2118
  %v2159 = vsel %vm201, %v2118, %v2120
  %v2160 = vsel %vm201, %v2120, %v2122
  %v2161 = vsel %vm201, %v2124, %v2126
  %v2162 = vsel %vm201, %v2126, %v2128
  %v2163 = vsel %vm201, %v2128, %v2130
  %v2164 = vsel %vm201, %v2132, %v2134
  %v2165 = vsel %vm201, %v2134, %v2136
  %v2166 = vsel %vm201, %v2136, %v2138
  %v2167 = vsel %vm201, %v2140, %v2142
  %v2168 = vsel %vm201, %v2142, %v2144
  %v2169 = vsel %vm201, %v2144, %v2146
  %v2170 = vsel %vm201, %v2148, %v2150
  %v2171 = vsel %vm201, %v2150, %v2152
  %v2172 = vsel %vm201, %v2152, %v2154
  %2191 = vst [vmem:[#allocation5 + $0x378] sm:$0xff] %v2155
  %2192 = vst [vmem:[#allocation5 + $0x380] sm:$0xff] %v2156
  %2193 = vst [vmem:[#allocation5 + $0x388] sm:$0xff] %v2157
  %2194 = vst [vmem:[#allocation5 + $0x3a8] sm:$0xff] %v2158
  %2195 = vst [vmem:[#allocation5 + $0x3b0] sm:$0xff] %v2159
  %2196 = vst [vmem:[#allocation5 + $0x3b8] sm:$0xff] %v2160
  %2197 = vst [vmem:[#allocation5 + $0x3d8] sm:$0xff] %v2161
  %2198 = vst [vmem:[#allocation5 + $0x3e0] sm:$0xff] %v2162
  %2199 = vst [vmem:[#allocation5 + $0x3e8] sm:$0xff] %v2163
  %2200 = vst [vmem:[#allocation5 + $0x408] sm:$0xff] %v2164
  %2201 = vst [vmem:[#allocation5 + $0x410] sm:$0xff] %v2165
  %2202 = vst [vmem:[#allocation5 + $0x418] sm:$0xff] %v2166
  %2203 = vst [vmem:[#allocation5 + $0x438] sm:$0xff] %v2167
  %2204 = vst [vmem:[#allocation5 + $0x440] sm:$0xff] %v2168
  %2205 = vst [vmem:[#allocation5 + $0x448] sm:$0xff] %v2169
  %2206 = vst [vmem:[#allocation5 + $0x468] sm:$0xff] %v2170
  %2207 = vst [vmem:[#allocation5 + $0x470] sm:$0xff] %v2171
  %2208 = vst [vmem:[#allocation5 + $0x478] sm:$0xff] %v2172
  %v2209 = vld [vmem:[#allocation3 + $0x8] sm:$0xff]
  %v2210 = vld [vmem:[#allocation3 + $0x10] sm:$0xff]
  %v2211 = vld [vmem:[#allocation3 + $0x18] sm:$0xff]
  %v2212 = vld [vmem:[#allocation3 + $0x58] sm:$0xff]
  %v2213 = vld [vmem:[#allocation3 + $0x60] sm:$0xff]
  %v2214 = vld [vmem:[#allocation3 + $0x68] sm:$0xff]
  %v2215 = vld [vmem:[#allocation3 + $0xa8] sm:$0xff]
  %v2216 = vld [vmem:[#allocation3 + $0xb0] sm:$0xff]
  %v2217 = vld [vmem:[#allocation3 + $0xb8] sm:$0xff]
  %v2218 = vld [vmem:[#allocation3 + $0xf8] sm:$0xff]
  %v2219 = vld [vmem:[#allocation3 + $0x100] sm:$0xff]
  %v2220 = vld [vmem:[#allocation3 + $0x108] sm:$0xff]
  %v2221 = vld [vmem:[#allocation3 + $0x148] sm:$0xff]
  %v2222 = vld [vmem:[#allocation3 + $0x150] sm:$0xff]
  %v2223 = vld [vmem:[#allocation3 + $0x158] sm:$0xff]
  %v2224 = vld [vmem:[#allocation3 + $0x198] sm:$0xff]
  %v2225 = vld [vmem:[#allocation3 + $0x1a0] sm:$0xff]
  %v2226 = vld [vmem:[#allocation3 + $0x1a8] sm:$0xff]
  %2227 = vst [vmem:[#allocation5 + $0x480] sm:$0xff] %v2209
  %2228 = vst [vmem:[#allocation5 + $0x488] sm:$0xff] %v2210
  %2229 = vst [vmem:[#allocation5 + $0x490] sm:$0xff] %v2211
  %2230 = vst [vmem:[#allocation5 + $0x4b0] sm:$0xff] %v2212
  %2231 = vst [vmem:[#allocation5 + $0x4b8] sm:$0xff] %v2213
  %2232 = vst [vmem:[#allocation5 + $0x4c0] sm:$0xff] %v2214
  %2233 = vst [vmem:[#allocation5 + $0x4e0] sm:$0xff] %v2215
  %2234 = vst [vmem:[#allocation5 + $0x4e8] sm:$0xff] %v2216
  %2235 = vst [vmem:[#allocation5 + $0x4f0] sm:$0xff] %v2217
  %2236 = vst [vmem:[#allocation5 + $0x510] sm:$0xff] %v2218
  %2237 = vst [vmem:[#allocation5 + $0x518] sm:$0xff] %v2219
  %2238 = vst [vmem:[#allocation5 + $0x520] sm:$0xff] %v2220
  %2239 = vst [vmem:[#allocation5 + $0x540] sm:$0xff] %v2221
  %2240 = vst [vmem:[#allocation5 + $0x548] sm:$0xff] %v2222
  %2241 = vst [vmem:[#allocation5 + $0x550] sm:$0xff] %v2223
  %2242 = vst [vmem:[#allocation5 + $0x570] sm:$0xff] %v2224
  %2243 = vst [vmem:[#allocation5 + $0x578] sm:$0xff] %v2225
  %2244 = vst [vmem:[#allocation5 + $0x580] sm:$0xff] %v2226
  %v2245 = vld [vmem:[#allocation3 + $0x30] sm:$0xff]
  %v2246 = vld [vmem:[#allocation3 + $0x38] sm:$0xff]
  %v2247 = vld [vmem:[#allocation3 + $0x40] sm:$0xff]
  %v2248 = vld [vmem:[#allocation3 + $0x80] sm:$0xff]
  %v2249 = vld [vmem:[#allocation3 + $0x88] sm:$0xff]
  %v2250 = vld [vmem:[#allocation3 + $0x90] sm:$0xff]
  %v2251 = vld [vmem:[#allocation3 + $0xd0] sm:$0xff]
  %v2252 = vld [vmem:[#allocation3 + $0xd8] sm:$0xff]
  %v2253 = vld [vmem:[#allocation3 + $0xe0] sm:$0xff]
  %v2254 = vld [vmem:[#allocation3 + $0x120] sm:$0xff]
  %v2255 = vld [vmem:[#allocation3 + $0x128] sm:$0xff]
  %v2256 = vld [vmem:[#allocation3 + $0x130] sm:$0xff]
  %v2257 = vld [vmem:[#allocation3 + $0x170] sm:$0xff]
  %v2258 = vld [vmem:[#allocation3 + $0x178] sm:$0xff]
  %v2259 = vld [vmem:[#allocation3 + $0x180] sm:$0xff]
  %v2260 = vld [vmem:[#allocation3 + $0x1c0] sm:$0xff]
  %v2261 = vld [vmem:[#allocation3 + $0x1c8] sm:$0xff]
  %v2262 = vld [vmem:[#allocation3 + $0x1d0] sm:$0xff]
  %2263 = vst [vmem:[#allocation5 + $0x498] sm:$0xff] %v2245
  %2264 = vst [vmem:[#allocation5 + $0x4a0] sm:$0xff] %v2246
  %2265 = vst [vmem:[#allocation5 + $0x4a8] sm:$0xff] %v2247
  %2266 = vst [vmem:[#allocation5 + $0x4c8] sm:$0xff] %v2248
  %2267 = vst [vmem:[#allocation5 + $0x4d0] sm:$0xff] %v2249
  %2268 = vst [vmem:[#allocation5 + $0x4d8] sm:$0xff] %v2250
  %2269 = vst [vmem:[#allocation5 + $0x4f8] sm:$0xff] %v2251
  %2270 = vst [vmem:[#allocation5 + $0x500] sm:$0xff] %v2252
  %2271 = vst [vmem:[#allocation5 + $0x508] sm:$0xff] %v2253
  %2272 = vst [vmem:[#allocation5 + $0x528] sm:$0xff] %v2254
  %2273 = vst [vmem:[#allocation5 + $0x530] sm:$0xff] %v2255
  %2274 = vst [vmem:[#allocation5 + $0x538] sm:$0xff] %v2256
  %2275 = vst [vmem:[#allocation5 + $0x558] sm:$0xff] %v2257
  %2276 = vst [vmem:[#allocation5 + $0x560] sm:$0xff] %v2258
  %2277 = vst [vmem:[#allocation5 + $0x568] sm:$0xff] %v2259
  %2278 = vst [vmem:[#allocation5 + $0x588] sm:$0xff] %v2260
  %2279 = vst [vmem:[#allocation5 + $0x590] sm:$0xff] %v2261
  %2280 = vst [vmem:[#allocation5 + $0x598] sm:$0xff] %v2262
  %v2281 = vld [vmem:[#allocation3 + $0x8] sm:$0xff]
  %v2282 = vld [vmem:[#allocation3 + $0x10] sm:$0xff]
  %v2283 = vld [vmem:[#allocation3 + $0x18] sm:$0xff]
  %v2284 = vld [vmem:[#allocation3 + $0x20] sm:$0xff]
  %v2285 = vld [vmem:[#allocation3 + $0x58] sm:$0xff]
  %v2286 = vld [vmem:[#allocation3 + $0x60] sm:$0xff]
  %v2287 = vld [vmem:[#allocation3 + $0x68] sm:$0xff]
  %v2288 = vld [vmem:[#allocation3 + $0x70] sm:$0xff]
  %v2289 = vld [vmem:[#allocation3 + $0xa8] sm:$0xff]
  %v2290 = vld [vmem:[#allocation3 + $0xb0] sm:$0xff]
  %v2291 = vld [vmem:[#allocation3 + $0xb8] sm:$0xff]
  %v2292 = vld [vmem:[#allocation3 + $0xc0] sm:$0xff]
  %v2293 = vld [vmem:[#allocation3 + $0xf8] sm:$0xff]
  %v2294 = vld [vmem:[#allocation3 + $0x100] sm:$0xff]
  %v2295 = vld [vmem:[#allocation3 + $0x108] sm:$0xff]
  %v2296 = vld [vmem:[#allocation3 + $0x110] sm:$0xff]
  %v2297 = vld [vmem:[#allocation3 + $0x148] sm:$0xff]
  %v2298 = vld [vmem:[#allocation3 + $0x150] sm:$0xff]
  %v2299 = vld [vmem:[#allocation3 + $0x158] sm:$0xff]
  %v2300 = vld [vmem:[#allocation3 + $0x160] sm:$0xff]
  %v2301 = vld [vmem:[#allocation3 + $0x198] sm:$0xff]
  %v2302 = vld [vmem:[#allocation3 + $0x1a0] sm:$0xff]
  %v2303 = vld [vmem:[#allocation3 + $0x1a8] sm:$0xff]
  %v2304 = vld [vmem:[#allocation3 + $0x1b0] sm:$0xff]
  %2329 = vrot.lane.b32.xlu0 %v2281, 127
  %v2330 = vpop.permute.xlu0 %2329
  %2331 = vrot.lane.b32.xlu0 %v2282, 127
  %v2332 = vpop.permute.xlu0 %2331
  %2333 = vrot.lane.b32.xlu0 %v2283, 127
  %v2334 = vpop.permute.xlu0 %2333
  %2335 = vrot.lane.b32.xlu0 %v2284, 127
  %v2336 = vpop.permute.xlu0 %2335
  %2337 = vrot.lane.b32.xlu0 %v2285, 127
  %v2338 = vpop.permute.xlu0 %2337
  %2339 = vrot.lane.b32.xlu0 %v2286, 127
  %v2340 = vpop.permute.xlu0 %2339
  %2341 = vrot.lane.b32.xlu0 %v2287, 127
  %v2342 = vpop.permute.xlu0 %2341
  %2343 = vrot.lane.b32.xlu0 %v2288, 127
  %v2344 = vpop.permute.xlu0 %2343
  %2345 = vrot.lane.b32.xlu0 %v2289, 127
  %v2346 = vpop.permute.xlu0 %2345
  %2347 = vrot.lane.b32.xlu0 %v2290, 127
  %v2348 = vpop.permute.xlu0 %2347
  %2349 = vrot.lane.b32.xlu0 %v2291, 127
  %v2350 = vpop.permute.xlu0 %2349
  %2351 = vrot.lane.b32.xlu0 %v2292, 127
  %v2352 = vpop.permute.xlu0 %2351
  %2353 = vrot.lane.b32.xlu0 %v2293, 127
  %v2354 = vpop.permute.xlu0 %2353
  %2355 = vrot.lane.b32.xlu0 %v2294, 127
  %v2356 = vpop.permute.xlu0 %2355
  %2357 = vrot.lane.b32.xlu0 %v2295, 127
  %v2358 = vpop.permute.xlu0 %2357
  %2359 = vrot.lane.b32.xlu0 %v2296, 127
  %v2360 = vpop.permute.xlu0 %2359
  %2361 = vrot.lane.b32.xlu0 %v2297, 127
  %v2362 = vpop.permute.xlu0 %2361
  %2363 = vrot.lane.b32.xlu0 %v2298, 127
  %v2364 = vpop.permute.xlu0 %2363
  %2365 = vrot.lane.b32.xlu0 %v2299, 127
  %v2366 = vpop.permute.xlu0 %2365
  %2367 = vrot.lane.b32.xlu0 %v2300, 127
  %v2368 = vpop.permute.xlu0 %2367
  %2369 = vrot.lane.b32.xlu0 %v2301, 127
  %v2370 = vpop.permute.xlu0 %2369
  %2371 = vrot.lane.b32.xlu0 %v2302, 127
  %v2372 = vpop.permute.xlu0 %2371
  %2373 = vrot.lane.b32.xlu0 %v2303, 127
  %v2374 = vpop.permute.xlu0 %2373
  %2375 = vrot.lane.b32.xlu0 %v2304, 127
  %v2376 = vpop.permute.xlu0 %2375
  %v2377 = vsel %vm264, %v2330, %v2332
  %v2378 = vsel %vm264, %v2332, %v2334
  %v2379 = vsel %vm264, %v2334, %v2336
  %v2380 = vsel %vm264, %v2338, %v2340
  %v2381 = vsel %vm264, %v2340, %v2342
  %v2382 = vsel %vm264, %v2342, %v2344
  %v2383 = vsel %vm264, %v2346, %v2348
  %v2384 = vsel %vm264, %v2348, %v2350
  %v2385 = vsel %vm264, %v2350, %v2352
  %v2386 = vsel %vm264, %v2354, %v2356
  %v2387 = vsel %vm264, %v2356, %v2358
  %v2388 = vsel %vm264, %v2358, %v2360
  %v2389 = vsel %vm264, %v2362, %v2364
  %v2390 = vsel %vm264, %v2364, %v2366
  %v2391 = vsel %vm264, %v2366, %v2368
  %v2392 = vsel %vm264, %v2370, %v2372
  %v2393 = vsel %vm264, %v2372, %v2374
  %v2394 = vsel %vm264, %v2374, %v2376
  %2413 = vst [vmem:[#allocation5 + $0x5a0] sm:$0xff] %v2377
  %2414 = vst [vmem:[#allocation5 + $0x5a8] sm:$0xff] %v2378
  %2415 = vst [vmem:[#allocation5 + $0x5b0] sm:$0xff] %v2379
  %2416 = vst [vmem:[#allocation5 + $0x5d0] sm:$0xff] %v2380
  %2417 = vst [vmem:[#allocation5 + $0x5d8] sm:$0xff] %v2381
  %2418 = vst [vmem:[#allocation5 + $0x5e0] sm:$0xff] %v2382
  %2419 = vst [vmem:[#allocation5 + $0x600] sm:$0xff] %v2383
  %2420 = vst [vmem:[#allocation5 + $0x608] sm:$0xff] %v2384
  %2421 = vst [vmem:[#allocation5 + $0x610] sm:$0xff] %v2385
  %2422 = vst [vmem:[#allocation5 + $0x630] sm:$0xff] %v2386
  %2423 = vst [vmem:[#allocation5 + $0x638] sm:$0xff] %v2387
  %2424 = vst [vmem:[#allocation5 + $0x640] sm:$0xff] %v2388
  %2425 = vst [vmem:[#allocation5 + $0x660] sm:$0xff] %v2389
  %2426 = vst [vmem:[#allocation5 + $0x668] sm:$0xff] %v2390
  %2427 = vst [vmem:[#allocation5 + $0x670] sm:$0xff] %v2391
  %2428 = vst [vmem:[#allocation5 + $0x690] sm:$0xff] %v2392
  %2429 = vst [vmem:[#allocation5 + $0x698] sm:$0xff] %v2393
  %2430 = vst [vmem:[#allocation5 + $0x6a0] sm:$0xff] %v2394
  %v2431 = vld [vmem:[#allocation3 + $0x30] sm:$0xff]
  %v2432 = vld [vmem:[#allocation3 + $0x38] sm:$0xff]
  %v2433 = vld [vmem:[#allocation3 + $0x40] sm:$0xff]
  %v2434 = vld [vmem:[#allocation3 + $0x48] sm:$0xff]
  %v2435 = vld [vmem:[#allocation3 + $0x80] sm:$0xff]
  %v2436 = vld [vmem:[#allocation3 + $0x88] sm:$0xff]
  %v2437 = vld [vmem:[#allocation3 + $0x90] sm:$0xff]
  %v2438 = vld [vmem:[#allocation3 + $0x98] sm:$0xff]
  %v2439 = vld [vmem:[#allocation3 + $0xd0] sm:$0xff]
  %v2440 = vld [vmem:[#allocation3 + $0xd8] sm:$0xff]
  %v2441 = vld [vmem:[#allocation3 + $0xe0] sm:$0xff]
  %v2442 = vld [vmem:[#allocation3 + $0xe8] sm:$0xff]
  %v2443 = vld [vmem:[#allocation3 + $0x120] sm:$0xff]
  %v2444 = vld [vmem:[#allocation3 + $0x128] sm:$0xff]
  %v2445 = vld [vmem:[#allocation3 + $0x130] sm:$0xff]
  %v2446 = vld [vmem:[#allocation3 + $0x138] sm:$0xff]
  %v2447 = vld [vmem:[#allocation3 + $0x170] sm:$0xff]
  %v2448 = vld [vmem:[#allocation3 + $0x178] sm:$0xff]
  %v2449 = vld [vmem:[#allocation3 + $0x180] sm:$0xff]
  %v2450 = vld [vmem:[#allocation3 + $0x188] sm:$0xff]
  %v2451 = vld [vmem:[#allocation3 + $0x1c0] sm:$0xff]
  %v2452 = vld [vmem:[#allocation3 + $0x1c8] sm:$0xff]
  %v2453 = vld [vmem:[#allocation3 + $0x1d0] sm:$0xff]
  %v2454 = vld [vmem:[#allocation3 + $0x1d8] sm:$0xff]
  %2479 = vrot.lane.b32.xlu0 %v2431, 127
  %v2480 = vpop.permute.xlu0 %2479
  %2481 = vrot.lane.b32.xlu0 %v2432, 127
  %v2482 = vpop.permute.xlu0 %2481
  %2483 = vrot.lane.b32.xlu0 %v2433, 127
  %v2484 = vpop.permute.xlu0 %2483
  %2485 = vrot.lane.b32.xlu0 %v2434, 127
  %v2486 = vpop.permute.xlu0 %2485
  %2487 = vrot.lane.b32.xlu0 %v2435, 127
  %v2488 = vpop.permute.xlu0 %2487
  %2489 = vrot.lane.b32.xlu0 %v2436, 127
  %v2490 = vpop.permute.xlu0 %2489
  %2491 = vrot.lane.b32.xlu0 %v2437, 127
  %v2492 = vpop.permute.xlu0 %2491
  %2493 = vrot.lane.b32.xlu0 %v2438, 127
  %v2494 = vpop.permute.xlu0 %2493
  %2495 = vrot.lane.b32.xlu0 %v2439, 127
  %v2496 = vpop.permute.xlu0 %2495
  %2497 = vrot.lane.b32.xlu0 %v2440, 127
  %v2498 = vpop.permute.xlu0 %2497
  %2499 = vrot.lane.b32.xlu0 %v2441, 127
  %v2500 = vpop.permute.xlu0 %2499
  %2501 = vrot.lane.b32.xlu0 %v2442, 127
  %v2502 = vpop.permute.xlu0 %2501
  %2503 = vrot.lane.b32.xlu0 %v2443, 127
  %v2504 = vpop.permute.xlu0 %2503
  %2505 = vrot.lane.b32.xlu0 %v2444, 127
  %v2506 = vpop.permute.xlu0 %2505
  %2507 = vrot.lane.b32.xlu0 %v2445, 127
  %v2508 = vpop.permute.xlu0 %2507
  %2509 = vrot.lane.b32.xlu0 %v2446, 127
  %v2510 = vpop.permute.xlu0 %2509
  %2511 = vrot.lane.b32.xlu0 %v2447, 127
  %v2512 = vpop.permute.xlu0 %2511
  %2513 = vrot.lane.b32.xlu0 %v2448, 127
  %v2514 = vpop.permute.xlu0 %2513
  %2515 = vrot.lane.b32.xlu0 %v2449, 127
  %v2516 = vpop.permute.xlu0 %2515
  %2517 = vrot.lane.b32.xlu0 %v2450, 127
  %v2518 = vpop.permute.xlu0 %2517
  %2519 = vrot.lane.b32.xlu0 %v2451, 127
  %v2520 = vpop.permute.xlu0 %2519
  %2521 = vrot.lane.b32.xlu0 %v2452, 127
  %v2522 = vpop.permute.xlu0 %2521
  %2523 = vrot.lane.b32.xlu0 %v2453, 127
  %v2524 = vpop.permute.xlu0 %2523
  %2525 = vrot.lane.b32.xlu0 %v2454, 127
  %v2526 = vpop.permute.xlu0 %2525
  %v2527 = vsel %vm264, %v2480, %v2482
  %v2528 = vsel %vm264, %v2482, %v2484
  %v2529 = vsel %vm264, %v2484, %v2486
  %v2530 = vsel %vm264, %v2488, %v2490
  %v2531 = vsel %vm264, %v2490, %v2492
  %v2532 = vsel %vm264, %v2492, %v2494
  %v2533 = vsel %vm264, %v2496, %v2498
  %v2534 = vsel %vm264, %v2498, %v2500
  %v2535 = vsel %vm264, %v2500, %v2502
  %v2536 = vsel %vm264, %v2504, %v2506
  %v2537 = vsel %vm264, %v2506, %v2508
  %v2538 = vsel %vm264, %v2508, %v2510
  %v2539 = vsel %vm264, %v2512, %v2514
  %v2540 = vsel %vm264, %v2514, %v2516
  %v2541 = vsel %vm264, %v2516, %v2518
  %v2542 = vsel %vm264, %v2520, %v2522
  %v2543 = vsel %vm264, %v2522, %v2524
  %v2544 = vsel %vm264, %v2524, %v2526
  %2563 = vst [vmem:[#allocation5 + $0x5b8] sm:$0xff] %v2527
  %2564 = vst [vmem:[#allocation5 + $0x5c0] sm:$0xff] %v2528
  %2565 = vst [vmem:[#allocation5 + $0x5c8] sm:$0xff] %v2529
  %2566 = vst [vmem:[#allocation5 + $0x5e8] sm:$0xff] %v2530
  %2567 = vst [vmem:[#allocation5 + $0x5f0] sm:$0xff] %v2531
  %2568 = vst [vmem:[#allocation5 + $0x5f8] sm:$0xff] %v2532
  %2569 = vst [vmem:[#allocation5 + $0x618] sm:$0xff] %v2533
  %2570 = vst [vmem:[#allocation5 + $0x620] sm:$0xff] %v2534
  %2571 = vst [vmem:[#allocation5 + $0x628] sm:$0xff] %v2535
  %2572 = vst [vmem:[#allocation5 + $0x648] sm:$0xff] %v2536
  %2573 = vst [vmem:[#allocation5 + $0x650] sm:$0xff] %v2537
  %2574 = vst [vmem:[#allocation5 + $0x658] sm:$0xff] %v2538
  %2575 = vst [vmem:[#allocation5 + $0x678] sm:$0xff] %v2539
  %2576 = vst [vmem:[#allocation5 + $0x680] sm:$0xff] %v2540
  %2577 = vst [vmem:[#allocation5 + $0x688] sm:$0xff] %v2541
  %2578 = vst [vmem:[#allocation5 + $0x6a8] sm:$0xff] %v2542
  %2579 = vst [vmem:[#allocation5 + $0x6b0] sm:$0xff] %v2543
  %2580 = vst [vmem:[#allocation5 + $0x6b8] sm:$0xff] %v2544
  %v2581 = vld [vmem:[#allocation3 + $0x8] sm:$0xff]
  %v2582 = vld [vmem:[#allocation3 + $0x10] sm:$0xff]
  %v2583 = vld [vmem:[#allocation3 + $0x18] sm:$0xff]
  %v2584 = vld [vmem:[#allocation3 + $0x20] sm:$0xff]
  %v2585 = vld [vmem:[#allocation3 + $0x58] sm:$0xff]
  %v2586 = vld [vmem:[#allocation3 + $0x60] sm:$0xff]
  %v2587 = vld [vmem:[#allocation3 + $0x68] sm:$0xff]
  %v2588 = vld [vmem:[#allocation3 + $0x70] sm:$0xff]
  %v2589 = vld [vmem:[#allocation3 + $0xa8] sm:$0xff]
  %v2590 = vld [vmem:[#allocation3 + $0xb0] sm:$0xff]
  %v2591 = vld [vmem:[#allocation3 + $0xb8] sm:$0xff]
  %v2592 = vld [vmem:[#allocation3 + $0xc0] sm:$0xff]
  %v2593 = vld [vmem:[#allocation3 + $0xf8] sm:$0xff]
  %v2594 = vld [vmem:[#allocation3 + $0x100] sm:$0xff]
  %v2595 = vld [vmem:[#allocation3 + $0x108] sm:$0xff]
  %v2596 = vld [vmem:[#allocation3 + $0x110] sm:$0xff]
  %v2597 = vld [vmem:[#allocation3 + $0x148] sm:$0xff]
  %v2598 = vld [vmem:[#allocation3 + $0x150] sm:$0xff]
  %v2599 = vld [vmem:[#allocation3 + $0x158] sm:$0xff]
  %v2600 = vld [vmem:[#allocation3 + $0x160] sm:$0xff]
  %v2601 = vld [vmem:[#allocation3 + $0x198] sm:$0xff]
  %v2602 = vld [vmem:[#allocation3 + $0x1a0] sm:$0xff]
  %v2603 = vld [vmem:[#allocation3 + $0x1a8] sm:$0xff]
  %v2604 = vld [vmem:[#allocation3 + $0x1b0] sm:$0xff]
  %2629 = vrot.lane.b32.xlu0 %v2581, 111
  %v2630 = vpop.permute.xlu0 %2629
  %2631 = vrot.lane.b32.xlu0 %v2582, 111
  %v2632 = vpop.permute.xlu0 %2631
  %2633 = vrot.lane.b32.xlu0 %v2583, 111
  %v2634 = vpop.permute.xlu0 %2633
  %2635 = vrot.lane.b32.xlu0 %v2584, 111
  %v2636 = vpop.permute.xlu0 %2635
  %2637 = vrot.lane.b32.xlu0 %v2585, 111
  %v2638 = vpop.permute.xlu0 %2637
  %2639 = vrot.lane.b32.xlu0 %v2586, 111
  %v2640 = vpop.permute.xlu0 %2639
  %2641 = vrot.lane.b32.xlu0 %v2587, 111
  %v2642 = vpop.permute.xlu0 %2641
  %2643 = vrot.lane.b32.xlu0 %v2588, 111
  %v2644 = vpop.permute.xlu0 %2643
  %2645 = vrot.lane.b32.xlu0 %v2589, 111
  %v2646 = vpop.permute.xlu0 %2645
  %2647 = vrot.lane.b32.xlu0 %v2590, 111
  %v2648 = vpop.permute.xlu0 %2647
  %2649 = vrot.lane.b32.xlu0 %v2591, 111
  %v2650 = vpop.permute.xlu0 %2649
  %2651 = vrot.lane.b32.xlu0 %v2592, 111
  %v2652 = vpop.permute.xlu0 %2651
  %2653 = vrot.lane.b32.xlu0 %v2593, 111
  %v2654 = vpop.permute.xlu0 %2653
  %2655 = vrot.lane.b32.xlu0 %v2594, 111
  %v2656 = vpop.permute.xlu0 %2655
  %2657 = vrot.lane.b32.xlu0 %v2595, 111
  %v2658 = vpop.permute.xlu0 %2657
  %2659 = vrot.lane.b32.xlu0 %v2596, 111
  %v2660 = vpop.permute.xlu0 %2659
  %2661 = vrot.lane.b32.xlu0 %v2597, 111
  %v2662 = vpop.permute.xlu0 %2661
  %2663 = vrot.lane.b32.xlu0 %v2598, 111
  %v2664 = vpop.permute.xlu0 %2663
  %2665 = vrot.lane.b32.xlu0 %v2599, 111
  %v2666 = vpop.permute.xlu0 %2665
  %2667 = vrot.lane.b32.xlu0 %v2600, 111
  %v2668 = vpop.permute.xlu0 %2667
  %2669 = vrot.lane.b32.xlu0 %v2601, 111
  %v2670 = vpop.permute.xlu0 %2669
  %2671 = vrot.lane.b32.xlu0 %v2602, 111
  %v2672 = vpop.permute.xlu0 %2671
  %2673 = vrot.lane.b32.xlu0 %v2603, 111
  %v2674 = vpop.permute.xlu0 %2673
  %2675 = vrot.lane.b32.xlu0 %v2604, 111
  %v2676 = vpop.permute.xlu0 %2675
  %v2677 = vsel %vm315, %v2630, %v2632
  %v2678 = vsel %vm315, %v2632, %v2634
  %v2679 = vsel %vm315, %v2634, %v2636
  %v2680 = vsel %vm315, %v2638, %v2640
  %v2681 = vsel %vm315, %v2640, %v2642
  %v2682 = vsel %vm315, %v2642, %v2644
  %v2683 = vsel %vm315, %v2646, %v2648
  %v2684 = vsel %vm315, %v2648, %v2650
  %v2685 = vsel %vm315, %v2650, %v2652
  %v2686 = vsel %vm315, %v2654, %v2656
  %v2687 = vsel %vm315, %v2656, %v2658
  %v2688 = vsel %vm315, %v2658, %v2660
  %v2689 = vsel %vm315, %v2662, %v2664
  %v2690 = vsel %vm315, %v2664, %v2666
  %v2691 = vsel %vm315, %v2666, %v2668
  %v2692 = vsel %vm315, %v2670, %v2672
  %v2693 = vsel %vm315, %v2672, %v2674
  %v2694 = vsel %vm315, %v2674, %v2676
  %2713 = vst [vmem:[#allocation5 + $0x6c0] sm:$0xff] %v2677
  %2714 = vst [vmem:[#allocation5 + $0x6c8] sm:$0xff] %v2678
  %2715 = vst [vmem:[#allocation5 + $0x6d0] sm:$0xff] %v2679
  %2716 = vst [vmem:[#allocation5 + $0x6f0] sm:$0xff] %v2680
  %2717 = vst [vmem:[#allocation5 + $0x6f8] sm:$0xff] %v2681
  %2718 = vst [vmem:[#allocation5 + $0x700] sm:$0xff] %v2682
  %2719 = vst [vmem:[#allocation5 + $0x720] sm:$0xff] %v2683
  %2720 = vst [vmem:[#allocation5 + $0x728] sm:$0xff] %v2684
  %2721 = vst [vmem:[#allocation5 + $0x730] sm:$0xff] %v2685
  %2722 = vst [vmem:[#allocation5 + $0x750] sm:$0xff] %v2686
  %2723 = vst [vmem:[#allocation5 + $0x758] sm:$0xff] %v2687
  %2724 = vst [vmem:[#allocation5 + $0x760] sm:$0xff] %v2688
  %2725 = vst [vmem:[#allocation5 + $0x780] sm:$0xff] %v2689
  %2726 = vst [vmem:[#allocation5 + $0x788] sm:$0xff] %v2690
  %2727 = vst [vmem:[#allocation5 + $0x790] sm:$0xff] %v2691
  %2728 = vst [vmem:[#allocation5 + $0x7b0] sm:$0xff] %v2692
  %2729 = vst [vmem:[#allocation5 + $0x7b8] sm:$0xff] %v2693
  %2730 = vst [vmem:[#allocation5 + $0x7c0] sm:$0xff] %v2694
  %v2731 = vld [vmem:[#allocation3 + $0x30] sm:$0xff]
  %v2732 = vld [vmem:[#allocation3 + $0x38] sm:$0xff]
  %v2733 = vld [vmem:[#allocation3 + $0x40] sm:$0xff]
  %v2734 = vld [vmem:[#allocation3 + $0x48] sm:$0xff]
  %v2735 = vld [vmem:[#allocation3 + $0x80] sm:$0xff]
  %v2736 = vld [vmem:[#allocation3 + $0x88] sm:$0xff]
  %v2737 = vld [vmem:[#allocation3 + $0x90] sm:$0xff]
  %v2738 = vld [vmem:[#allocation3 + $0x98] sm:$0xff]
  %v2739 = vld [vmem:[#allocation3 + $0xd0] sm:$0xff]
  %v2740 = vld [vmem:[#allocation3 + $0xd8] sm:$0xff]
  %v2741 = vld [vmem:[#allocation3 + $0xe0] sm:$0xff]
  %v2742 = vld [vmem:[#allocation3 + $0xe8] sm:$0xff]
  %v2743 = vld [vmem:[#allocation3 + $0x120] sm:$0xff]
  %v2744 = vld [vmem:[#allocation3 + $0x128] sm:$0xff]
  %v2745 = vld [vmem:[#allocation3 + $0x130] sm:$0xff]
  %v2746 = vld [vmem:[#allocation3 + $0x138] sm:$0xff]
  %v2747 = vld [vmem:[#allocation3 + $0x170] sm:$0xff]
  %v2748 = vld [vmem:[#allocation3 + $0x178] sm:$0xff]
  %v2749 = vld [vmem:[#allocation3 + $0x180] sm:$0xff]
  %v2750 = vld [vmem:[#allocation3 + $0x188] sm:$0xff]
  %v2751 = vld [vmem:[#allocation3 + $0x1c0] sm:$0xff]
  %v2752 = vld [vmem:[#allocation3 + $0x1c8] sm:$0xff]
  %v2753 = vld [vmem:[#allocation3 + $0x1d0] sm:$0xff]
  %v2754 = vld [vmem:[#allocation3 + $0x1d8] sm:$0xff]
  %2779 = vrot.lane.b32.xlu0 %v2731, 111
  %v2780 = vpop.permute.xlu0 %2779
  %2781 = vrot.lane.b32.xlu0 %v2732, 111
  %v2782 = vpop.permute.xlu0 %2781
  %2783 = vrot.lane.b32.xlu0 %v2733, 111
  %v2784 = vpop.permute.xlu0 %2783
  %2785 = vrot.lane.b32.xlu0 %v2734, 111
  %v2786 = vpop.permute.xlu0 %2785
  %2787 = vrot.lane.b32.xlu0 %v2735, 111
  %v2788 = vpop.permute.xlu0 %2787
  %2789 = vrot.lane.b32.xlu0 %v2736, 111
  %v2790 = vpop.permute.xlu0 %2789
  %2791 = vrot.lane.b32.xlu0 %v2737, 111
  %v2792 = vpop.permute.xlu0 %2791
  %2793 = vrot.lane.b32.xlu0 %v2738, 111
  %v2794 = vpop.permute.xlu0 %2793
  %2795 = vrot.lane.b32.xlu0 %v2739, 111
  %v2796 = vpop.permute.xlu0 %2795
  %2797 = vrot.lane.b32.xlu0 %v2740, 111
  %v2798 = vpop.permute.xlu0 %2797
  %2799 = vrot.lane.b32.xlu0 %v2741, 111
  %v2800 = vpop.permute.xlu0 %2799
  %2801 = vrot.lane.b32.xlu0 %v2742, 111
  %v2802 = vpop.permute.xlu0 %2801
  %2803 = vrot.lane.b32.xlu0 %v2743, 111
  %v2804 = vpop.permute.xlu0 %2803
  %2805 = vrot.lane.b32.xlu0 %v2744, 111
  %v2806 = vpop.permute.xlu0 %2805
  %2807 = vrot.lane.b32.xlu0 %v2745, 111
  %v2808 = vpop.permute.xlu0 %2807
  %2809 = vrot.lane.b32.xlu0 %v2746, 111
  %v2810 = vpop.permute.xlu0 %2809
  %2811 = vrot.lane.b32.xlu0 %v2747, 111
  %v2812 = vpop.permute.xlu0 %2811
  %2813 = vrot.lane.b32.xlu0 %v2748, 111
  %v2814 = vpop.permute.xlu0 %2813
  %2815 = vrot.lane.b32.xlu0 %v2749, 111
  %v2816 = vpop.permute.xlu0 %2815
  %2817 = vrot.lane.b32.xlu0 %v2750, 111
  %v2818 = vpop.permute.xlu0 %2817
  %2819 = vrot.lane.b32.xlu0 %v2751, 111
  %v2820 = vpop.permute.xlu0 %2819
  %2821 = vrot.lane.b32.xlu0 %v2752, 111
  %v2822 = vpop.permute.xlu0 %2821
  %2823 = vrot.lane.b32.xlu0 %v2753, 111
  %v2824 = vpop.permute.xlu0 %2823
  %2825 = vrot.lane.b32.xlu0 %v2754, 111
  %v2826 = vpop.permute.xlu0 %2825
  %v2827 = vsel %vm315, %v2780, %v2782
  %v2828 = vsel %vm315, %v2782, %v2784
  %v2829 = vsel %vm315, %v2784, %v2786
  %v2830 = vsel %vm315, %v2788, %v2790
  %v2831 = vsel %vm315, %v2790, %v2792
  %v2832 = vsel %vm315, %v2792, %v2794
  %v2833 = vsel %vm315, %v2796, %v2798
  %v2834 = vsel %vm315, %v2798, %v2800
  %v2835 = vsel %vm315, %v2800, %v2802
  %v2836 = vsel %vm315, %v2804, %v2806
  %v2837 = vsel %vm315, %v2806, %v2808
  %v2838 = vsel %vm315, %v2808, %v2810
  %v2839 = vsel %vm315, %v2812, %v2814
  %v2840 = vsel %vm315, %v2814, %v2816
  %v2841 = vsel %vm315, %v2816, %v2818
  %v2842 = vsel %vm315, %v2820, %v2822
  %v2843 = vsel %vm315, %v2822, %v2824
  %v2844 = vsel %vm315, %v2824, %v2826
  %2863 = vst [vmem:[#allocation5 + $0x6d8] sm:$0xff] %v2827
  %2864 = vst [vmem:[#allocation5 + $0x6e0] sm:$0xff] %v2828
  %2865 = vst [vmem:[#allocation5 + $0x6e8] sm:$0xff] %v2829
  %2866 = vst [vmem:[#allocation5 + $0x708] sm:$0xff] %v2830
  %2867 = vst [vmem:[#allocation5 + $0x710] sm:$0xff] %v2831
  %2868 = vst [vmem:[#allocation5 + $0x718] sm:$0xff] %v2832
  %2869 = vst [vmem:[#allocation5 + $0x738] sm:$0xff] %v2833
  %2870 = vst [vmem:[#allocation5 + $0x740] sm:$0xff] %v2834
  %2871 = vst [vmem:[#allocation5 + $0x748] sm:$0xff] %v2835
  %2872 = vst [vmem:[#allocation5 + $0x768] sm:$0xff] %v2836
  %2873 = vst [vmem:[#allocation5 + $0x770] sm:$0xff] %v2837
  %2874 = vst [vmem:[#allocation5 + $0x778] sm:$0xff] %v2838
  %2875 = vst [vmem:[#allocation5 + $0x798] sm:$0xff] %v2839
  %2876 = vst [vmem:[#allocation5 + $0x7a0] sm:$0xff] %v2840
  %2877 = vst [vmem:[#allocation5 + $0x7a8] sm:$0xff] %v2841
  %2878 = vst [vmem:[#allocation5 + $0x7c8] sm:$0xff] %v2842
  %2879 = vst [vmem:[#allocation5 + $0x7d0] sm:$0xff] %v2843
  %2880 = vst [vmem:[#allocation5 + $0x7d8] sm:$0xff] %v2844
  %v2881 = vld [vmem:[#allocation3 + $0x8] sm:$0xff]
  %v2882 = vld [vmem:[#allocation3 + $0x10] sm:$0xff]
  %v2883 = vld [vmem:[#allocation3 + $0x18] sm:$0xff]
  %v2884 = vld [vmem:[#allocation3 + $0x20] sm:$0xff]
  %v2885 = vld [vmem:[#allocation3 + $0x58] sm:$0xff]
  %v2886 = vld [vmem:[#allocation3 + $0x60] sm:$0xff]
  %v2887 = vld [vmem:[#allocation3 + $0x68] sm:$0xff]
  %v2888 = vld [vmem:[#allocation3 + $0x70] sm:$0xff]
  %v2889 = vld [vmem:[#allocation3 + $0xa8] sm:$0xff]
  %v2890 = vld [vmem:[#allocation3 + $0xb0] sm:$0xff]
  %v2891 = vld [vmem:[#allocation3 + $0xb8] sm:$0xff]
  %v2892 = vld [vmem:[#allocation3 + $0xc0] sm:$0xff]
  %v2893 = vld [vmem:[#allocation3 + $0xf8] sm:$0xff]
  %v2894 = vld [vmem:[#allocation3 + $0x100] sm:$0xff]
  %v2895 = vld [vmem:[#allocation3 + $0x108] sm:$0xff]
  %v2896 = vld [vmem:[#allocation3 + $0x110] sm:$0xff]
  %v2897 = vld [vmem:[#allocation3 + $0x148] sm:$0xff]
  %v2898 = vld [vmem:[#allocation3 + $0x150] sm:$0xff]
  %v2899 = vld [vmem:[#allocation3 + $0x158] sm:$0xff]
  %v2900 = vld [vmem:[#allocation3 + $0x160] sm:$0xff]
  %v2901 = vld [vmem:[#allocation3 + $0x198] sm:$0xff]
  %v2902 = vld [vmem:[#allocation3 + $0x1a0] sm:$0xff]
  %v2903 = vld [vmem:[#allocation3 + $0x1a8] sm:$0xff]
  %v2904 = vld [vmem:[#allocation3 + $0x1b0] sm:$0xff]
  %2929 = vrot.lane.b32.xlu0 %v2881, 110
  %v2930 = vpop.permute.xlu0 %2929
  %2931 = vrot.lane.b32.xlu0 %v2882, 110
  %v2932 = vpop.permute.xlu0 %2931
  %2933 = vrot.lane.b32.xlu0 %v2883, 110
  %v2934 = vpop.permute.xlu0 %2933
  %2935 = vrot.lane.b32.xlu0 %v2884, 110
  %v2936 = vpop.permute.xlu0 %2935
  %2937 = vrot.lane.b32.xlu0 %v2885, 110
  %v2938 = vpop.permute.xlu0 %2937
  %2939 = vrot.lane.b32.xlu0 %v2886, 110
  %v2940 = vpop.permute.xlu0 %2939
  %2941 = vrot.lane.b32.xlu0 %v2887, 110
  %v2942 = vpop.permute.xlu0 %2941
  %2943 = vrot.lane.b32.xlu0 %v2888, 110
  %v2944 = vpop.permute.xlu0 %2943
  %2945 = vrot.lane.b32.xlu0 %v2889, 110
  %v2946 = vpop.permute.xlu0 %2945
  %2947 = vrot.lane.b32.xlu0 %v2890, 110
  %v2948 = vpop.permute.xlu0 %2947
  %2949 = vrot.lane.b32.xlu0 %v2891, 110
  %v2950 = vpop.permute.xlu0 %2949
  %2951 = vrot.lane.b32.xlu0 %v2892, 110
  %v2952 = vpop.permute.xlu0 %2951
  %2953 = vrot.lane.b32.xlu0 %v2893, 110
  %v2954 = vpop.permute.xlu0 %2953
  %2955 = vrot.lane.b32.xlu0 %v2894, 110
  %v2956 = vpop.permute.xlu0 %2955
  %2957 = vrot.lane.b32.xlu0 %v2895, 110
  %v2958 = vpop.permute.xlu0 %2957
  %2959 = vrot.lane.b32.xlu0 %v2896, 110
  %v2960 = vpop.permute.xlu0 %2959
  %2961 = vrot.lane.b32.xlu0 %v2897, 110
  %v2962 = vpop.permute.xlu0 %2961
  %2963 = vrot.lane.b32.xlu0 %v2898, 110
  %v2964 = vpop.permute.xlu0 %2963
  %2965 = vrot.lane.b32.xlu0 %v2899, 110
  %v2966 = vpop.permute.xlu0 %2965
  %2967 = vrot.lane.b32.xlu0 %v2900, 110
  %v2968 = vpop.permute.xlu0 %2967
  %2969 = vrot.lane.b32.xlu0 %v2901, 110
  %v2970 = vpop.permute.xlu0 %2969
  %2971 = vrot.lane.b32.xlu0 %v2902, 110
  %v2972 = vpop.permute.xlu0 %2971
  %2973 = vrot.lane.b32.xlu0 %v2903, 110
  %v2974 = vpop.permute.xlu0 %2973
  %2975 = vrot.lane.b32.xlu0 %v2904, 110
  %v2976 = vpop.permute.xlu0 %2975
  %v2977 = vsel %vm366, %v2930, %v2932
  %v2978 = vsel %vm366, %v2932, %v2934
  %v2979 = vsel %vm366, %v2934, %v2936
  %v2980 = vsel %vm366, %v2938, %v2940
  %v2981 = vsel %vm366, %v2940, %v2942
  %v2982 = vsel %vm366, %v2942, %v2944
  %v2983 = vsel %vm366, %v2946, %v2948
  %v2984 = vsel %vm366, %v2948, %v2950
  %v2985 = vsel %vm366, %v2950, %v2952
  %v2986 = vsel %vm366, %v2954, %v2956
  %v2987 = vsel %vm366, %v2956, %v2958
  %v2988 = vsel %vm366, %v2958, %v2960
  %v2989 = vsel %vm366, %v2962, %v2964
  %v2990 = vsel %vm366, %v2964, %v2966
  %v2991 = vsel %vm366, %v2966, %v2968
  %v2992 = vsel %vm366, %v2970, %v2972
  %v2993 = vsel %vm366, %v2972, %v2974
  %v2994 = vsel %vm366, %v2974, %v2976
  %3013 = vst [vmem:[#allocation5 + $0x7e0] sm:$0xff] %v2977
  %3014 = vst [vmem:[#allocation5 + $0x7e8] sm:$0xff] %v2978
  %3015 = vst [vmem:[#allocation5 + $0x7f0] sm:$0xff] %v2979
  %3016 = vst [vmem:[#allocation5 + $0x810] sm:$0xff] %v2980
  %3017 = vst [vmem:[#allocation5 + $0x818] sm:$0xff] %v2981
  %3018 = vst [vmem:[#allocation5 + $0x820] sm:$0xff] %v2982
  %3019 = vst [vmem:[#allocation5 + $0x840] sm:$0xff] %v2983
  %3020 = vst [vmem:[#allocation5 + $0x848] sm:$0xff] %v2984
  %3021 = vst [vmem:[#allocation5 + $0x850] sm:$0xff] %v2985
  %3022 = vst [vmem:[#allocation5 + $0x870] sm:$0xff] %v2986
  %3023 = vst [vmem:[#allocation5 + $0x878] sm:$0xff] %v2987
  %3024 = vst [vmem:[#allocation5 + $0x880] sm:$0xff] %v2988
  %3025 = vst [vmem:[#allocation5 + $0x8a0] sm:$0xff] %v2989
  %3026 = vst [vmem:[#allocation5 + $0x8a8] sm:$0xff] %v2990
  %3027 = vst [vmem:[#allocation5 + $0x8b0] sm:$0xff] %v2991
  %3028 = vst [vmem:[#allocation5 + $0x8d0] sm:$0xff] %v2992
  %3029 = vst [vmem:[#allocation5 + $0x8d8] sm:$0xff] %v2993
  %3030 = vst [vmem:[#allocation5 + $0x8e0] sm:$0xff] %v2994
  %v3031 = vld [vmem:[#allocation3 + $0x30] sm:$0xff]
  %v3032 = vld [vmem:[#allocation3 + $0x38] sm:$0xff]
  %v3033 = vld [vmem:[#allocation3 + $0x40] sm:$0xff]
  %v3034 = vld [vmem:[#allocation3 + $0x48] sm:$0xff]
  %v3035 = vld [vmem:[#allocation3 + $0x80] sm:$0xff]
  %v3036 = vld [vmem:[#allocation3 + $0x88] sm:$0xff]
  %v3037 = vld [vmem:[#allocation3 + $0x90] sm:$0xff]
  %v3038 = vld [vmem:[#allocation3 + $0x98] sm:$0xff]
  %v3039 = vld [vmem:[#allocation3 + $0xd0] sm:$0xff]
  %v3040 = vld [vmem:[#allocation3 + $0xd8] sm:$0xff]
  %v3041 = vld [vmem:[#allocation3 + $0xe0] sm:$0xff]
  %v3042 = vld [vmem:[#allocation3 + $0xe8] sm:$0xff]
  %v3043 = vld [vmem:[#allocation3 + $0x120] sm:$0xff]
  %v3044 = vld [vmem:[#allocation3 + $0x128] sm:$0xff]
  %v3045 = vld [vmem:[#allocation3 + $0x130] sm:$0xff]
  %v3046 = vld [vmem:[#allocation3 + $0x138] sm:$0xff]
  %v3047 = vld [vmem:[#allocation3 + $0x170] sm:$0xff]
  %v3048 = vld [vmem:[#allocation3 + $0x178] sm:$0xff]
  %v3049 = vld [vmem:[#allocation3 + $0x180] sm:$0xff]
  %v3050 = vld [vmem:[#allocation3 + $0x188] sm:$0xff]
  %v3051 = vld [vmem:[#allocation3 + $0x1c0] sm:$0xff]
  %v3052 = vld [vmem:[#allocation3 + $0x1c8] sm:$0xff]
  %v3053 = vld [vmem:[#allocation3 + $0x1d0] sm:$0xff]
  %v3054 = vld [vmem:[#allocation3 + $0x1d8] sm:$0xff]
  %3079 = vrot.lane.b32.xlu0 %v3031, 110
  %v3080 = vpop.permute.xlu0 %3079
  %3081 = vrot.lane.b32.xlu0 %v3032, 110
  %v3082 = vpop.permute.xlu0 %3081
  %3083 = vrot.lane.b32.xlu0 %v3033, 110
  %v3084 = vpop.permute.xlu0 %3083
  %3085 = vrot.lane.b32.xlu0 %v3034, 110
  %v3086 = vpop.permute.xlu0 %3085
  %3087 = vrot.lane.b32.xlu0 %v3035, 110
  %v3088 = vpop.permute.xlu0 %3087
  %3089 = vrot.lane.b32.xlu0 %v3036, 110
  %v3090 = vpop.permute.xlu0 %3089
  %3091 = vrot.lane.b32.xlu0 %v3037, 110
  %v3092 = vpop.permute.xlu0 %3091
  %3093 = vrot.lane.b32.xlu0 %v3038, 110
  %v3094 = vpop.permute.xlu0 %3093
  %3095 = vrot.lane.b32.xlu0 %v3039, 110
  %v3096 = vpop.permute.xlu0 %3095
  %3097 = vrot.lane.b32.xlu0 %v3040, 110
  %v3098 = vpop.permute.xlu0 %3097
  %3099 = vrot.lane.b32.xlu0 %v3041, 110
  %v3100 = vpop.permute.xlu0 %3099
  %3101 = vrot.lane.b32.xlu0 %v3042, 110
  %v3102 = vpop.permute.xlu0 %3101
  %3103 = vrot.lane.b32.xlu0 %v3043, 110
  %v3104 = vpop.permute.xlu0 %3103
  %3105 = vrot.lane.b32.xlu0 %v3044, 110
  %v3106 = vpop.permute.xlu0 %3105
  %3107 = vrot.lane.b32.xlu0 %v3045, 110
  %v3108 = vpop.permute.xlu0 %3107
  %3109 = vrot.lane.b32.xlu0 %v3046, 110
  %v3110 = vpop.permute.xlu0 %3109
  %3111 = vrot.lane.b32.xlu0 %v3047, 110
  %v3112 = vpop.permute.xlu0 %3111
  %3113 = vrot.lane.b32.xlu0 %v3048, 110
  %v3114 = vpop.permute.xlu0 %3113
  %3115 = vrot.lane.b32.xlu0 %v3049, 110
  %v3116 = vpop.permute.xlu0 %3115
  %3117 = vrot.lane.b32.xlu0 %v3050, 110
  %v3118 = vpop.permute.xlu0 %3117
  %3119 = vrot.lane.b32.xlu0 %v3051, 110
  %v3120 = vpop.permute.xlu0 %3119
  %3121 = vrot.lane.b32.xlu0 %v3052, 110
  %v3122 = vpop.permute.xlu0 %3121
  %3123 = vrot.lane.b32.xlu0 %v3053, 110
  %v3124 = vpop.permute.xlu0 %3123
  %3125 = vrot.lane.b32.xlu0 %v3054, 110
  %v3126 = vpop.permute.xlu0 %3125
  %v3127 = vsel %vm366, %v3080, %v3082
  %v3128 = vsel %vm366, %v3082, %v3084
  %v3129 = vsel %vm366, %v3084, %v3086
  %v3130 = vsel %vm366, %v3088, %v3090
  %v3131 = vsel %vm366, %v3090, %v3092
  %v3132 = vsel %vm366, %v3092, %v3094
  %v3133 = vsel %vm366, %v3096, %v3098
  %v3134 = vsel %vm366, %v3098, %v3100
  %v3135 = vsel %vm366, %v3100, %v3102
  %v3136 = vsel %vm366, %v3104, %v3106
  %v3137 = vsel %vm366, %v3106, %v3108
  %v3138 = vsel %vm366, %v3108, %v3110
  %v3139 = vsel %vm366, %v3112, %v3114
  %v3140 = vsel %vm366, %v3114, %v3116
  %v3141 = vsel %vm366, %v3116, %v3118
  %v3142 = vsel %vm366, %v3120, %v3122
  %v3143 = vsel %vm366, %v3122, %v3124
  %v3144 = vsel %vm366, %v3124, %v3126
  %3163 = vst [vmem:[#allocation5 + $0x7f8] sm:$0xff] %v3127
  %3164 = vst [vmem:[#allocation5 + $0x800] sm:$0xff] %v3128
  %3165 = vst [vmem:[#allocation5 + $0x808] sm:$0xff] %v3129
  %3166 = vst [vmem:[#allocation5 + $0x828] sm:$0xff] %v3130
  %3167 = vst [vmem:[#allocation5 + $0x830] sm:$0xff] %v3131
  %3168 = vst [vmem:[#allocation5 + $0x838] sm:$0xff] %v3132
  %3169 = vst [vmem:[#allocation5 + $0x858] sm:$0xff] %v3133
  %3170 = vst [vmem:[#allocation5 + $0x860] sm:$0xff] %v3134
  %3171 = vst [vmem:[#allocation5 + $0x868] sm:$0xff] %v3135
  %3172 = vst [vmem:[#allocation5 + $0x888] sm:$0xff] %v3136
  %3173 = vst [vmem:[#allocation5 + $0x890] sm:$0xff] %v3137
  %3174 = vst [vmem:[#allocation5 + $0x898] sm:$0xff] %v3138
  %3175 = vst [vmem:[#allocation5 + $0x8b8] sm:$0xff] %v3139
  %3176 = vst [vmem:[#allocation5 + $0x8c0] sm:$0xff] %v3140
  %3177 = vst [vmem:[#allocation5 + $0x8c8] sm:$0xff] %v3141
  %3178 = vst [vmem:[#allocation5 + $0x8e8] sm:$0xff] %v3142
  %3179 = vst [vmem:[#allocation5 + $0x8f0] sm:$0xff] %v3143
  %3180 = vst [vmem:[#allocation5 + $0x8f8] sm:$0xff] %v3144
  %v3181 = vld [vmem:[#allocation3 + $0x8] sm:$0xff]
  %v3182 = vld [vmem:[#allocation3 + $0x10] sm:$0xff]
  %v3183 = vld [vmem:[#allocation3 + $0x18] sm:$0xff]
  %v3184 = vld [vmem:[#allocation3 + $0x20] sm:$0xff]
  %v3185 = vld [vmem:[#allocation3 + $0x58] sm:$0xff]
  %v3186 = vld [vmem:[#allocation3 + $0x60] sm:$0xff]
  %v3187 = vld [vmem:[#allocation3 + $0x68] sm:$0xff]
  %v3188 = vld [vmem:[#allocation3 + $0x70] sm:$0xff]
  %v3189 = vld [vmem:[#allocation3 + $0xa8] sm:$0xff]
  %v3190 = vld [vmem:[#allocation3 + $0xb0] sm:$0xff]
  %v3191 = vld [vmem:[#allocation3 + $0xb8] sm:$0xff]
  %v3192 = vld [vmem:[#allocation3 + $0xc0] sm:$0xff]
  %v3193 = vld [vmem:[#allocation3 + $0xf8] sm:$0xff]
  %v3194 = vld [vmem:[#allocation3 + $0x100] sm:$0xff]
  %v3195 = vld [vmem:[#allocation3 + $0x108] sm:$0xff]
  %v3196 = vld [vmem:[#allocation3 + $0x110] sm:$0xff]
  %v3197 = vld [vmem:[#allocation3 + $0x148] sm:$0xff]
  %v3198 = vld [vmem:[#allocation3 + $0x150] sm:$0xff]
  %v3199 = vld [vmem:[#allocation3 + $0x158] sm:$0xff]
  %v3200 = vld [vmem:[#allocation3 + $0x160] sm:$0xff]
  %v3201 = vld [vmem:[#allocation3 + $0x198] sm:$0xff]
  %v3202 = vld [vmem:[#allocation3 + $0x1a0] sm:$0xff]
  %v3203 = vld [vmem:[#allocation3 + $0x1a8] sm:$0xff]
  %v3204 = vld [vmem:[#allocation3 + $0x1b0] sm:$0xff]
  %3229 = vrot.lane.b32.xlu0 %v3181, 109
  %v3230 = vpop.permute.xlu0 %3229
  %3231 = vrot.lane.b32.xlu0 %v3182, 109
  %v3232 = vpop.permute.xlu0 %3231
  %3233 = vrot.lane.b32.xlu0 %v3183, 109
  %v3234 = vpop.permute.xlu0 %3233
  %3235 = vrot.lane.b32.xlu0 %v3184, 109
  %v3236 = vpop.permute.xlu0 %3235
  %3237 = vrot.lane.b32.xlu0 %v3185, 109
  %v3238 = vpop.permute.xlu0 %3237
  %3239 = vrot.lane.b32.xlu0 %v3186, 109
  %v3240 = vpop.permute.xlu0 %3239
  %3241 = vrot.lane.b32.xlu0 %v3187, 109
  %v3242 = vpop.permute.xlu0 %3241
  %3243 = vrot.lane.b32.xlu0 %v3188, 109
  %v3244 = vpop.permute.xlu0 %3243
  %3245 = vrot.lane.b32.xlu0 %v3189, 109
  %v3246 = vpop.permute.xlu0 %3245
  %3247 = vrot.lane.b32.xlu0 %v3190, 109
  %v3248 = vpop.permute.xlu0 %3247
  %3249 = vrot.lane.b32.xlu0 %v3191, 109
  %v3250 = vpop.permute.xlu0 %3249
  %3251 = vrot.lane.b32.xlu0 %v3192, 109
  %v3252 = vpop.permute.xlu0 %3251
  %3253 = vrot.lane.b32.xlu0 %v3193, 109
  %v3254 = vpop.permute.xlu0 %3253
  %3255 = vrot.lane.b32.xlu0 %v3194, 109
  %v3256 = vpop.permute.xlu0 %3255
  %3257 = vrot.lane.b32.xlu0 %v3195, 109
  %v3258 = vpop.permute.xlu0 %3257
  %3259 = vrot.lane.b32.xlu0 %v3196, 109
  %v3260 = vpop.permute.xlu0 %3259
  %3261 = vrot.lane.b32.xlu0 %v3197, 109
  %v3262 = vpop.permute.xlu0 %3261
  %3263 = vrot.lane.b32.xlu0 %v3198, 109
  %v3264 = vpop.permute.xlu0 %3263
  %3265 = vrot.lane.b32.xlu0 %v3199, 109
  %v3266 = vpop.permute.xlu0 %3265
  %3267 = vrot.lane.b32.xlu0 %v3200, 109
  %v3268 = vpop.permute.xlu0 %3267
  %3269 = vrot.lane.b32.xlu0 %v3201, 109
  %v3270 = vpop.permute.xlu0 %3269
  %3271 = vrot.lane.b32.xlu0 %v3202, 109
  %v3272 = vpop.permute.xlu0 %3271
  %3273 = vrot.lane.b32.xlu0 %v3203, 109
  %v3274 = vpop.permute.xlu0 %3273
  %3275 = vrot.lane.b32.xlu0 %v3204, 109
  %v3276 = vpop.permute.xlu0 %3275
  %v3277 = vsel %vm417, %v3230, %v3232
  %v3278 = vsel %vm417, %v3232, %v3234
  %v3279 = vsel %vm417, %v3234, %v3236
  %v3280 = vsel %vm417, %v3238, %v3240
  %v3281 = vsel %vm417, %v3240, %v3242
  %v3282 = vsel %vm417, %v3242, %v3244
  %v3283 = vsel %vm417, %v3246, %v3248
  %v3284 = vsel %vm417, %v3248, %v3250
  %v3285 = vsel %vm417, %v3250, %v3252
  %v3286 = vsel %vm417, %v3254, %v3256
  %v3287 = vsel %vm417, %v3256, %v3258
  %v3288 = vsel %vm417, %v3258, %v3260
  %v3289 = vsel %vm417, %v3262, %v3264
  %v3290 = vsel %vm417, %v3264, %v3266
  %v3291 = vsel %vm417, %v3266, %v3268
  %v3292 = vsel %vm417, %v3270, %v3272
  %v3293 = vsel %vm417, %v3272, %v3274
  %v3294 = vsel %vm417, %v3274, %v3276
  %3313 = vst [vmem:[#allocation5 + $0x900] sm:$0xff] %v3277
  %3314 = vst [vmem:[#allocation5 + $0x908] sm:$0xff] %v3278
  %3315 = vst [vmem:[#allocation5 + $0x910] sm:$0xff] %v3279
  %3316 = vst [vmem:[#allocation5 + $0x930] sm:$0xff] %v3280
  %3317 = vst [vmem:[#allocation5 + $0x938] sm:$0xff] %v3281
  %3318 = vst [vmem:[#allocation5 + $0x940] sm:$0xff] %v3282
  %3319 = vst [vmem:[#allocation5 + $0x960] sm:$0xff] %v3283
  %3320 = vst [vmem:[#allocation5 + $0x968] sm:$0xff] %v3284
  %3321 = vst [vmem:[#allocation5 + $0x970] sm:$0xff] %v3285
  %3322 = vst [vmem:[#allocation5 + $0x990] sm:$0xff] %v3286
  %3323 = vst [vmem:[#allocation5 + $0x998] sm:$0xff] %v3287
  %3324 = vst [vmem:[#allocation5 + $0x9a0] sm:$0xff] %v3288
  %3325 = vst [vmem:[#allocation5 + $0x9c0] sm:$0xff] %v3289
  %3326 = vst [vmem:[#allocation5 + $0x9c8] sm:$0xff] %v3290
  %3327 = vst [vmem:[#allocation5 + $0x9d0] sm:$0xff] %v3291
  %3328 = vst [vmem:[#allocation5 + $0x9f0] sm:$0xff] %v3292
  %3329 = vst [vmem:[#allocation5 + $0x9f8] sm:$0xff] %v3293
  %3330 = vst [vmem:[#allocation5 + $0xa00] sm:$0xff] %v3294
  %v3331 = vld [vmem:[#allocation3 + $0x30] sm:$0xff]
  %v3332 = vld [vmem:[#allocation3 + $0x38] sm:$0xff]
  %v3333 = vld [vmem:[#allocation3 + $0x40] sm:$0xff]
  %v3334 = vld [vmem:[#allocation3 + $0x48] sm:$0xff]
  %v3335 = vld [vmem:[#allocation3 + $0x80] sm:$0xff]
  %v3336 = vld [vmem:[#allocation3 + $0x88] sm:$0xff]
  %v3337 = vld [vmem:[#allocation3 + $0x90] sm:$0xff]
  %v3338 = vld [vmem:[#allocation3 + $0x98] sm:$0xff]
  %v3339 = vld [vmem:[#allocation3 + $0xd0] sm:$0xff]
  %v3340 = vld [vmem:[#allocation3 + $0xd8] sm:$0xff]
  %v3341 = vld [vmem:[#allocation3 + $0xe0] sm:$0xff]
  %v3342 = vld [vmem:[#allocation3 + $0xe8] sm:$0xff]
  %v3343 = vld [vmem:[#allocation3 + $0x120] sm:$0xff]
  %v3344 = vld [vmem:[#allocation3 + $0x128] sm:$0xff]
  %v3345 = vld [vmem:[#allocation3 + $0x130] sm:$0xff]
  %v3346 = vld [vmem:[#allocation3 + $0x138] sm:$0xff]
  %v3347 = vld [vmem:[#allocation3 + $0x170] sm:$0xff]
  %v3348 = vld [vmem:[#allocation3 + $0x178] sm:$0xff]
  %v3349 = vld [vmem:[#allocation3 + $0x180] sm:$0xff]
  %v3350 = vld [vmem:[#allocation3 + $0x188] sm:$0xff]
  %v3351 = vld [vmem:[#allocation3 + $0x1c0] sm:$0xff]
  %v3352 = vld [vmem:[#allocation3 + $0x1c8] sm:$0xff]
  %v3353 = vld [vmem:[#allocation3 + $0x1d0] sm:$0xff]
  %v3354 = vld [vmem:[#allocation3 + $0x1d8] sm:$0xff]
  %3379 = vrot.lane.b32.xlu0 %v3331, 109
  %v3380 = vpop.permute.xlu0 %3379
  %3381 = vrot.lane.b32.xlu0 %v3332, 109
  %v3382 = vpop.permute.xlu0 %3381
  %3383 = vrot.lane.b32.xlu0 %v3333, 109
  %v3384 = vpop.permute.xlu0 %3383
  %3385 = vrot.lane.b32.xlu0 %v3334, 109
  %v3386 = vpop.permute.xlu0 %3385
  %3387 = vrot.lane.b32.xlu0 %v3335, 109
  %v3388 = vpop.permute.xlu0 %3387
  %3389 = vrot.lane.b32.xlu0 %v3336, 109
  %v3390 = vpop.permute.xlu0 %3389
  %3391 = vrot.lane.b32.xlu0 %v3337, 109
  %v3392 = vpop.permute.xlu0 %3391
  %3393 = vrot.lane.b32.xlu0 %v3338, 109
  %v3394 = vpop.permute.xlu0 %3393
  %3395 = vrot.lane.b32.xlu0 %v3339, 109
  %v3396 = vpop.permute.xlu0 %3395
  %3397 = vrot.lane.b32.xlu0 %v3340, 109
  %v3398 = vpop.permute.xlu0 %3397
  %3399 = vrot.lane.b32.xlu0 %v3341, 109
  %v3400 = vpop.permute.xlu0 %3399
  %3401 = vrot.lane.b32.xlu0 %v3342, 109
  %v3402 = vpop.permute.xlu0 %3401
  %3403 = vrot.lane.b32.xlu0 %v3343, 109
  %v3404 = vpop.permute.xlu0 %3403
  %3405 = vrot.lane.b32.xlu0 %v3344, 109
  %v3406 = vpop.permute.xlu0 %3405
  %3407 = vrot.lane.b32.xlu0 %v3345, 109
  %v3408 = vpop.permute.xlu0 %3407
  %3409 = vrot.lane.b32.xlu0 %v3346, 109
  %v3410 = vpop.permute.xlu0 %3409
  %3411 = vrot.lane.b32.xlu0 %v3347, 109
  %v3412 = vpop.permute.xlu0 %3411
  %3413 = vrot.lane.b32.xlu0 %v3348, 109
  %v3414 = vpop.permute.xlu0 %3413
  %3415 = vrot.lane.b32.xlu0 %v3349, 109
  %v3416 = vpop.permute.xlu0 %3415
  %3417 = vrot.lane.b32.xlu0 %v3350, 109
  %v3418 = vpop.permute.xlu0 %3417
  %3419 = vrot.lane.b32.xlu0 %v3351, 109
  %v3420 = vpop.permute.xlu0 %3419
  %3421 = vrot.lane.b32.xlu0 %v3352, 109
  %v3422 = vpop.permute.xlu0 %3421
  %3423 = vrot.lane.b32.xlu0 %v3353, 109
  %v3424 = vpop.permute.xlu0 %3423
  %3425 = vrot.lane.b32.xlu0 %v3354, 109
  %v3426 = vpop.permute.xlu0 %3425
  %v3427 = vsel %vm417, %v3380, %v3382
  %v3428 = vsel %vm417, %v3382, %v3384
  %v3429 = vsel %vm417, %v3384, %v3386
  %v3430 = vsel %vm417, %v3388, %v3390
  %v3431 = vsel %vm417, %v3390, %v3392
  %v3432 = vsel %vm417, %v3392, %v3394
  %v3433 = vsel %vm417, %v3396, %v3398
  %v3434 = vsel %vm417, %v3398, %v3400
  %v3435 = vsel %vm417, %v3400, %v3402
  %v3436 = vsel %vm417, %v3404, %v3406
  %v3437 = vsel %vm417, %v3406, %v3408
  %v3438 = vsel %vm417, %v3408, %v3410
  %v3439 = vsel %vm417, %v3412, %v3414
  %v3440 = vsel %vm417, %v3414, %v3416
  %v3441 = vsel %vm417, %v3416, %v3418
  %v3442 = vsel %vm417, %v3420, %v3422
  %v3443 = vsel %vm417, %v3422, %v3424
  %v3444 = vsel %vm417, %v3424, %v3426
  %3463 = vst [vmem:[#allocation5 + $0x918] sm:$0xff] %v3427
  %3464 = vst [vmem:[#allocation5 + $0x920] sm:$0xff] %v3428
  %3465 = vst [vmem:[#allocation5 + $0x928] sm:$0xff] %v3429
  %3466 = vst [vmem:[#allocation5 + $0x948] sm:$0xff] %v3430
  %3467 = vst [vmem:[#allocation5 + $0x950] sm:$0xff] %v3431
  %3468 = vst [vmem:[#allocation5 + $0x958] sm:$0xff] %v3432
  %3469 = vst [vmem:[#allocation5 + $0x978] sm:$0xff] %v3433
  %3470 = vst [vmem:[#allocation5 + $0x980] sm:$0xff] %v3434
  %3471 = vst [vmem:[#allocation5 + $0x988] sm:$0xff] %v3435
  %3472 = vst [vmem:[#allocation5 + $0x9a8] sm:$0xff] %v3436
  %3473 = vst [vmem:[#allocation5 + $0x9b0] sm:$0xff] %v3437
  %3474 = vst [vmem:[#allocation5 + $0x9b8] sm:$0xff] %v3438
  %3475 = vst [vmem:[#allocation5 + $0x9d8] sm:$0xff] %v3439
  %3476 = vst [vmem:[#allocation5 + $0x9e0] sm:$0xff] %v3440
  %3477 = vst [vmem:[#allocation5 + $0x9e8] sm:$0xff] %v3441
  %3478 = vst [vmem:[#allocation5 + $0xa08] sm:$0xff] %v3442
  %3479 = vst [vmem:[#allocation5 + $0xa10] sm:$0xff] %v3443
  %3480 = vst [vmem:[#allocation5 + $0xa18] sm:$0xff] %v3444
  %v3481 = vld [vmem:[%s2 + $0xc0] sm:$0xff]
  %v3482 = vld [vmem:[%s2 + $0xc8] sm:$0xff]
  %v3483 = vld [vmem:[%s2 + $0xd0] sm:$0xff]
  %v3484 = vld [vmem:[%s2 + $0xd8] sm:$0xff]
  %v3485 = vld [vmem:[%s2 + $0xe0] sm:$0xff]
  %v3486 = vld [vmem:[%s2 + $0xe8] sm:$0xff]
  %v3487 = vld [vmem:[%s2 + $0xf0] sm:$0xff]
  %v3488 = vld [vmem:[%s2 + $0xf8] sm:$0xff]
  %v3489 = vld [vmem:[%s2 + $0x100] sm:$0xff]
  %v3490 = vld [vmem:[%s2 + $0x108] sm:$0xff]
  %v3491 = vld [vmem:[%s2 + $0x110] sm:$0xff]
  %v3492 = vld [vmem:[%s2 + $0x118] sm:$0xff]
  %v3493 = vld [vmem:[#allocation5] sm:$0xff]
  %v3494 = vld [vmem:[#allocation5 + $0x8] sm:$0xff]
  %v3495 = vld [vmem:[#allocation5 + $0x10] sm:$0xff]
  %v3496 = vld [vmem:[#allocation5 + $0x18] sm:$0xff]
  %v3497 = vld [vmem:[#allocation5 + $0x20] sm:$0xff]
  %v3498 = vld [vmem:[#allocation5 + $0x28] sm:$0xff]
  %v3499 = vld [vmem:[#allocation5 + $0x30] sm:$0xff]
  %v3500 = vld [vmem:[#allocation5 + $0x38] sm:$0xff]
  %v3501 = vld [vmem:[#allocation5 + $0x40] sm:$0xff]
  %v3502 = vld [vmem:[#allocation5 + $0x48] sm:$0xff]
  %v3503 = vld [vmem:[#allocation5 + $0x50] sm:$0xff]
  %v3504 = vld [vmem:[#allocation5 + $0x58] sm:$0xff]
  %v3505 = vld [vmem:[#allocation5 + $0x60] sm:$0xff]
  %v3506 = vld [vmem:[#allocation5 + $0x68] sm:$0xff]
  %v3507 = vld [vmem:[#allocation5 + $0x70] sm:$0xff]
  %v3508 = vld [vmem:[#allocation5 + $0x78] sm:$0xff]
  %v3509 = vld [vmem:[#allocation5 + $0x80] sm:$0xff]
  %v3510 = vld [vmem:[#allocation5 + $0x88] sm:$0xff]
  %v3511 = vld [vmem:[#allocation5 + $0x90] sm:$0xff]
  %v3512 = vld [vmem:[#allocation5 + $0x98] sm:$0xff]
  %v3513 = vld [vmem:[#allocation5 + $0xa0] sm:$0xff]
  %v3514 = vld [vmem:[#allocation5 + $0xa8] sm:$0xff]
  %v3515 = vld [vmem:[#allocation5 + $0xb0] sm:$0xff]
  %v3516 = vld [vmem:[#allocation5 + $0xb8] sm:$0xff]
  %v3517 = vld [vmem:[#allocation5 + $0xc0] sm:$0xff]
  %v3518 = vld [vmem:[#allocation5 + $0xc8] sm:$0xff]
  %v3519 = vld [vmem:[#allocation5 + $0xd0] sm:$0xff]
  %v3520 = vld [vmem:[#allocation5 + $0xd8] sm:$0xff]
  %v3521 = vld [vmem:[#allocation5 + $0xe0] sm:$0xff]
  %v3522 = vld [vmem:[#allocation5 + $0xe8] sm:$0xff]
  %v3523 = vld [vmem:[#allocation5 + $0xf0] sm:$0xff]
  %v3524 = vld [vmem:[#allocation5 + $0xf8] sm:$0xff]
  %v3525 = vld [vmem:[#allocation5 + $0x100] sm:$0xff]
  %v3526 = vld [vmem:[#allocation5 + $0x108] sm:$0xff]
  %v3527 = vld [vmem:[#allocation5 + $0x110] sm:$0xff]
  %v3528 = vld [vmem:[#allocation5 + $0x118] sm:$0xff]
  %v3529 = vld [vmem:[#allocation5 + $0x120] sm:$0xff]
  %v3530 = vld [vmem:[#allocation5 + $0x128] sm:$0xff]
  %v3531 = vld [vmem:[#allocation5 + $0x130] sm:$0xff]
  %v3532 = vld [vmem:[#allocation5 + $0x138] sm:$0xff]
  %v3533 = vld [vmem:[#allocation5 + $0x140] sm:$0xff]
  %v3534 = vld [vmem:[#allocation5 + $0x148] sm:$0xff]
  %v3535 = vld [vmem:[#allocation5 + $0x150] sm:$0xff]
  %v3536 = vld [vmem:[#allocation5 + $0x158] sm:$0xff]
  %v3537 = vld [vmem:[#allocation5 + $0x160] sm:$0xff]
  %v3538 = vld [vmem:[#allocation5 + $0x168] sm:$0xff]
  %v3539 = vld [vmem:[#allocation5 + $0x170] sm:$0xff]
  %v3540 = vld [vmem:[#allocation5 + $0x178] sm:$0xff]
  %v3541 = vld [vmem:[#allocation5 + $0x180] sm:$0xff]
  %v3542 = vld [vmem:[#allocation5 + $0x188] sm:$0xff]
  %v3543 = vld [vmem:[#allocation5 + $0x190] sm:$0xff]
  %v3544 = vld [vmem:[#allocation5 + $0x198] sm:$0xff]
  %v3545 = vld [vmem:[#allocation5 + $0x1a0] sm:$0xff]
  %v3546 = vld [vmem:[#allocation5 + $0x1a8] sm:$0xff]
  %v3547 = vld [vmem:[#allocation5 + $0x1b0] sm:$0xff]
  %v3548 = vld [vmem:[#allocation5 + $0x1b8] sm:$0xff]
  %v3549 = vld [vmem:[#allocation5 + $0x1c0] sm:$0xff]
  %v3550 = vld [vmem:[#allocation5 + $0x1c8] sm:$0xff]
  %v3551 = vld [vmem:[#allocation5 + $0x1d0] sm:$0xff]
  %v3552 = vld [vmem:[#allocation5 + $0x1d8] sm:$0xff]
  %v3553 = vld [vmem:[#allocation5 + $0x1e0] sm:$0xff]
  %v3554 = vld [vmem:[#allocation5 + $0x1e8] sm:$0xff]
  %v3555 = vld [vmem:[#allocation5 + $0x1f0] sm:$0xff]
  %v3556 = vld [vmem:[#allocation5 + $0x1f8] sm:$0xff]
  %v3557 = vld [vmem:[#allocation5 + $0x200] sm:$0xff]
  %v3558 = vld [vmem:[#allocation5 + $0x208] sm:$0xff]
  %v3559 = vld [vmem:[#allocation5 + $0x210] sm:$0xff]
  %v3560 = vld [vmem:[#allocation5 + $0x218] sm:$0xff]
  %v3561 = vld [vmem:[#allocation5 + $0x220] sm:$0xff]
  %v3562 = vld [vmem:[#allocation5 + $0x228] sm:$0xff]
  %v3563 = vld [vmem:[#allocation5 + $0x230] sm:$0xff]
  %v3564 = vld [vmem:[#allocation5 + $0x238] sm:$0xff]
  %v3565 = vld [vmem:[#allocation5 + $0x240] sm:$0xff]
  %v3566 = vld [vmem:[#allocation5 + $0x248] sm:$0xff]
  %v3567 = vld [vmem:[#allocation5 + $0x250] sm:$0xff]
  %v3568 = vld [vmem:[#allocation5 + $0x258] sm:$0xff]
  %v3569 = vld [vmem:[#allocation5 + $0x260] sm:$0xff]
  %v3570 = vld [vmem:[#allocation5 + $0x268] sm:$0xff]
  %v3571 = vld [vmem:[#allocation5 + $0x270] sm:$0xff]
  %v3572 = vld [vmem:[#allocation5 + $0x278] sm:$0xff]
  %v3573 = vld [vmem:[#allocation5 + $0x280] sm:$0xff]
  %v3574 = vld [vmem:[#allocation5 + $0x288] sm:$0xff]
  %v3575 = vld [vmem:[#allocation5 + $0x290] sm:$0xff]
  %v3576 = vld [vmem:[#allocation5 + $0x298] sm:$0xff]
  %v3577 = vld [vmem:[#allocation5 + $0x2a0] sm:$0xff]
  %v3578 = vld [vmem:[#allocation5 + $0x2a8] sm:$0xff]
  %v3579 = vld [vmem:[#allocation5 + $0x2b0] sm:$0xff]
  %v3580 = vld [vmem:[#allocation5 + $0x2b8] sm:$0xff]
  %v3581 = vld [vmem:[#allocation5 + $0x2c0] sm:$0xff]
  %v3582 = vld [vmem:[#allocation5 + $0x2c8] sm:$0xff]
  %v3583 = vld [vmem:[#allocation5 + $0x2d0] sm:$0xff]
  %v3584 = vld [vmem:[#allocation5 + $0x2d8] sm:$0xff]
  %v3585 = vld [vmem:[#allocation5 + $0x2e0] sm:$0xff]
  %v3586 = vld [vmem:[#allocation5 + $0x2e8] sm:$0xff]
  %v3587 = vld [vmem:[#allocation5 + $0x2f0] sm:$0xff]
  %v3588 = vld [vmem:[#allocation5 + $0x2f8] sm:$0xff]
  %v3589 = vld [vmem:[#allocation5 + $0x300] sm:$0xff]
  %v3590 = vld [vmem:[#allocation5 + $0x308] sm:$0xff]
  %v3591 = vld [vmem:[#allocation5 + $0x310] sm:$0xff]
  %v3592 = vld [vmem:[#allocation5 + $0x318] sm:$0xff]
  %v3593 = vld [vmem:[#allocation5 + $0x320] sm:$0xff]
  %v3594 = vld [vmem:[#allocation5 + $0x328] sm:$0xff]
  %v3595 = vld [vmem:[#allocation5 + $0x330] sm:$0xff]
  %v3596 = vld [vmem:[#allocation5 + $0x338] sm:$0xff]
  %v3597 = vld [vmem:[#allocation5 + $0x340] sm:$0xff]
  %v3598 = vld [vmem:[#allocation5 + $0x348] sm:$0xff]
  %v3599 = vld [vmem:[#allocation5 + $0x350] sm:$0xff]
  %v3600 = vld [vmem:[#allocation5 + $0x358] sm:$0xff]
  %v3601 = vld [vmem:[#allocation5 + $0x360] sm:$0xff]
  %v3602 = vld [vmem:[#allocation5 + $0x368] sm:$0xff]
  %v3603 = vld [vmem:[#allocation5 + $0x370] sm:$0xff]
  %v3604 = vld [vmem:[#allocation5 + $0x378] sm:$0xff]
  %v3605 = vld [vmem:[#allocation5 + $0x380] sm:$0xff]
  %v3606 = vld [vmem:[#allocation5 + $0x388] sm:$0xff]
  %v3607 = vld [vmem:[#allocation5 + $0x390] sm:$0xff]
  %v3608 = vld [vmem:[#allocation5 + $0x398] sm:$0xff]
  %v3609 = vld [vmem:[#allocation5 + $0x3a0] sm:$0xff]
  %v3610 = vld [vmem:[#allocation5 + $0x3a8] sm:$0xff]
  %v3611 = vld [vmem:[#allocation5 + $0x3b0] sm:$0xff]
  %v3612 = vld [vmem:[#allocation5 + $0x3b8] sm:$0xff]
  %v3613 = vld [vmem:[#allocation5 + $0x3c0] sm:$0xff]
  %v3614 = vld [vmem:[#allocation5 + $0x3c8] sm:$0xff]
  %v3615 = vld [vmem:[#allocation5 + $0x3d0] sm:$0xff]
  %v3616 = vld [vmem:[#allocation5 + $0x3d8] sm:$0xff]
  %v3617 = vld [vmem:[#allocation5 + $0x3e0] sm:$0xff]
  %v3618 = vld [vmem:[#allocation5 + $0x3e8] sm:$0xff]
  %v3619 = vld [vmem:[#allocation5 + $0x3f0] sm:$0xff]
  %v3620 = vld [vmem:[#allocation5 + $0x3f8] sm:$0xff]
  %v3621 = vld [vmem:[#allocation5 + $0x400] sm:$0xff]
  %v3622 = vld [vmem:[#allocation5 + $0x408] sm:$0xff]
  %v3623 = vld [vmem:[#allocation5 + $0x410] sm:$0xff]
  %v3624 = vld [vmem:[#allocation5 + $0x418] sm:$0xff]
  %v3625 = vld [vmem:[#allocation5 + $0x420] sm:$0xff]
  %v3626 = vld [vmem:[#allocation5 + $0x428] sm:$0xff]
  %v3627 = vld [vmem:[#allocation5 + $0x430] sm:$0xff]
  %v3628 = vld [vmem:[#allocation5 + $0x438] sm:$0xff]
  %v3629 = vld [vmem:[#allocation5 + $0x440] sm:$0xff]
  %v3630 = vld [vmem:[#allocation5 + $0x448] sm:$0xff]
  %v3631 = vld [vmem:[#allocation5 + $0x450] sm:$0xff]
  %v3632 = vld [vmem:[#allocation5 + $0x458] sm:$0xff]
  %v3633 = vld [vmem:[#allocation5 + $0x460] sm:$0xff]
  %v3634 = vld [vmem:[#allocation5 + $0x468] sm:$0xff]
  %v3635 = vld [vmem:[#allocation5 + $0x470] sm:$0xff]
  %v3636 = vld [vmem:[#allocation5 + $0x478] sm:$0xff]
  %v3637 = vld [vmem:[#allocation5 + $0x480] sm:$0xff]
  %v3638 = vld [vmem:[#allocation5 + $0x488] sm:$0xff]
  %v3639 = vld [vmem:[#allocation5 + $0x490] sm:$0xff]
  %v3640 = vld [vmem:[#allocation5 + $0x498] sm:$0xff]
  %v3641 = vld [vmem:[#allocation5 + $0x4a0] sm:$0xff]
  %v3642 = vld [vmem:[#allocation5 + $0x4a8] sm:$0xff]
  %v3643 = vld [vmem:[#allocation5 + $0x4b0] sm:$0xff]
  %v3644 = vld [vmem:[#allocation5 + $0x4b8] sm:$0xff]
  %v3645 = vld [vmem:[#allocation5 + $0x4c0] sm:$0xff]
  %v3646 = vld [vmem:[#allocation5 + $0x4c8] sm:$0xff]
  %v3647 = vld [vmem:[#allocation5 + $0x4d0] sm:$0xff]
  %v3648 = vld [vmem:[#allocation5 + $0x4d8] sm:$0xff]
  %v3649 = vld [vmem:[#allocation5 + $0x4e0] sm:$0xff]
  %v3650 = vld [vmem:[#allocation5 + $0x4e8] sm:$0xff]
  %v3651 = vld [vmem:[#allocation5 + $0x4f0] sm:$0xff]
  %v3652 = vld [vmem:[#allocation5 + $0x4f8] sm:$0xff]
  %v3653 = vld [vmem:[#allocation5 + $0x500] sm:$0xff]
  %v3654 = vld [vmem:[#allocation5 + $0x508] sm:$0xff]
  %v3655 = vld [vmem:[#allocation5 + $0x510] sm:$0xff]
  %v3656 = vld [vmem:[#allocation5 + $0x518] sm:$0xff]
  %v3657 = vld [vmem:[#allocation5 + $0x520] sm:$0xff]
  %v3658 = vld [vmem:[#allocation5 + $0x528] sm:$0xff]
  %v3659 = vld [vmem:[#allocation5 + $0x530] sm:$0xff]
  %v3660 = vld [vmem:[#allocation5 + $0x538] sm:$0xff]
  %v3661 = vld [vmem:[#allocation5 + $0x540] sm:$0xff]
  %v3662 = vld [vmem:[#allocation5 + $0x548] sm:$0xff]
  %v3663 = vld [vmem:[#allocation5 + $0x550] sm:$0xff]
  %v3664 = vld [vmem:[#allocation5 + $0x558] sm:$0xff]
  %v3665 = vld [vmem:[#allocation5 + $0x560] sm:$0xff]
  %v3666 = vld [vmem:[#allocation5 + $0x568] sm:$0xff]
  %v3667 = vld [vmem:[#allocation5 + $0x570] sm:$0xff]
  %v3668 = vld [vmem:[#allocation5 + $0x578] sm:$0xff]
  %v3669 = vld [vmem:[#allocation5 + $0x580] sm:$0xff]
  %v3670 = vld [vmem:[#allocation5 + $0x588] sm:$0xff]
  %v3671 = vld [vmem:[#allocation5 + $0x590] sm:$0xff]
  %v3672 = vld [vmem:[#allocation5 + $0x598] sm:$0xff]
  %v3673 = vld [vmem:[#allocation5 + $0x5a0] sm:$0xff]
  %v3674 = vld [vmem:[#allocation5 + $0x5a8] sm:$0xff]
  %v3675 = vld [vmem:[#allocation5 + $0x5b0] sm:$0xff]
  %v3676 = vld [vmem:[#allocation5 + $0x5b8] sm:$0xff]
  %v3677 = vld [vmem:[#allocation5 + $0x5c0] sm:$0xff]
  %v3678 = vld [vmem:[#allocation5 + $0x5c8] sm:$0xff]
  %v3679 = vld [vmem:[#allocation5 + $0x5d0] sm:$0xff]
  %v3680 = vld [vmem:[#allocation5 + $0x5d8] sm:$0xff]
  %v3681 = vld [vmem:[#allocation5 + $0x5e0] sm:$0xff]
  %v3682 = vld [vmem:[#allocation5 + $0x5e8] sm:$0xff]
  %v3683 = vld [vmem:[#allocation5 + $0x5f0] sm:$0xff]
  %v3684 = vld [vmem:[#allocation5 + $0x5f8] sm:$0xff]
  %v3685 = vld [vmem:[#allocation5 + $0x600] sm:$0xff]
  %v3686 = vld [vmem:[#allocation5 + $0x608] sm:$0xff]
  %v3687 = vld [vmem:[#allocation5 + $0x610] sm:$0xff]
  %v3688 = vld [vmem:[#allocation5 + $0x618] sm:$0xff]
  %v3689 = vld [vmem:[#allocation5 + $0x620] sm:$0xff]
  %v3690 = vld [vmem:[#allocation5 + $0x628] sm:$0xff]
  %v3691 = vld [vmem:[#allocation5 + $0x630] sm:$0xff]
  %v3692 = vld [vmem:[#allocation5 + $0x638] sm:$0xff]
  %v3693 = vld [vmem:[#allocation5 + $0x640] sm:$0xff]
  %v3694 = vld [vmem:[#allocation5 + $0x648] sm:$0xff]
  %v3695 = vld [vmem:[#allocation5 + $0x650] sm:$0xff]
  %v3696 = vld [vmem:[#allocation5 + $0x658] sm:$0xff]
  %v3697 = vld [vmem:[#allocation5 + $0x660] sm:$0xff]
  %v3698 = vld [vmem:[#allocation5 + $0x668] sm:$0xff]
  %v3699 = vld [vmem:[#allocation5 + $0x670] sm:$0xff]
  %v3700 = vld [vmem:[#allocation5 + $0x678] sm:$0xff]
  %v3701 = vld [vmem:[#allocation5 + $0x680] sm:$0xff]
  %v3702 = vld [vmem:[#allocation5 + $0x688] sm:$0xff]
  %v3703 = vld [vmem:[#allocation5 + $0x690] sm:$0xff]
  %v3704 = vld [vmem:[#allocation5 + $0x698] sm:$0xff]
  %v3705 = vld [vmem:[#allocation5 + $0x6a0] sm:$0xff]
  %v3706 = vld [vmem:[#allocation5 + $0x6a8] sm:$0xff]
  %v3707 = vld [vmem:[#allocation5 + $0x6b0] sm:$0xff]
  %v3708 = vld [vmem:[#allocation5 + $0x6b8] sm:$0xff]
  %v3709 = vld [vmem:[#allocation5 + $0x6c0] sm:$0xff]
  %v3710 = vld [vmem:[#allocation5 + $0x6c8] sm:$0xff]
  %v3711 = vld [vmem:[#allocation5 + $0x6d0] sm:$0xff]
  %v3712 = vld [vmem:[#allocation5 + $0x6d8] sm:$0xff]
  %v3713 = vld [vmem:[#allocation5 + $0x6e0] sm:$0xff]
  %v3714 = vld [vmem:[#allocation5 + $0x6e8] sm:$0xff]
  %v3715 = vld [vmem:[#allocation5 + $0x6f0] sm:$0xff]
  %v3716 = vld [vmem:[#allocation5 + $0x6f8] sm:$0xff]
  %v3717 = vld [vmem:[#allocation5 + $0x700] sm:$0xff]
  %v3718 = vld [vmem:[#allocation5 + $0x708] sm:$0xff]
  %v3719 = vld [vmem:[#allocation5 + $0x710] sm:$0xff]
  %v3720 = vld [vmem:[#allocation5 + $0x718] sm:$0xff]
  %v3721 = vld [vmem:[#allocation5 + $0x720] sm:$0xff]
  %v3722 = vld [vmem:[#allocation5 + $0x728] sm:$0xff]
  %v3723 = vld [vmem:[#allocation5 + $0x730] sm:$0xff]
  %v3724 = vld [vmem:[#allocation5 + $0x738] sm:$0xff]
  %v3725 = vld [vmem:[#allocation5 + $0x740] sm:$0xff]
  %v3726 = vld [vmem:[#allocation5 + $0x748] sm:$0xff]
  %v3727 = vld [vmem:[#allocation5 + $0x750] sm:$0xff]
  %v3728 = vld [vmem:[#allocation5 + $0x758] sm:$0xff]
  %v3729 = vld [vmem:[#allocation5 + $0x760] sm:$0xff]
  %v3730 = vld [vmem:[#allocation5 + $0x768] sm:$0xff]
  %v3731 = vld [vmem:[#allocation5 + $0x770] sm:$0xff]
  %v3732 = vld [vmem:[#allocation5 + $0x778] sm:$0xff]
  %v3733 = vld [vmem:[#allocation5 + $0x780] sm:$0xff]
  %v3734 = vld [vmem:[#allocation5 + $0x788] sm:$0xff]
  %v3735 = vld [vmem:[#allocation5 + $0x790] sm:$0xff]
  %v3736 = vld [vmem:[#allocation5 + $0x798] sm:$0xff]
  %v3737 = vld [vmem:[#allocation5 + $0x7a0] sm:$0xff]
  %v3738 = vld [vmem:[#allocation5 + $0x7a8] sm:$0xff]
  %v3739 = vld [vmem:[#allocation5 + $0x7b0] sm:$0xff]
  %v3740 = vld [vmem:[#allocation5 + $0x7b8] sm:$0xff]
  %v3741 = vld [vmem:[#allocation5 + $0x7c0] sm:$0xff]
  %v3742 = vld [vmem:[#allocation5 + $0x7c8] sm:$0xff]
  %v3743 = vld [vmem:[#allocation5 + $0x7d0] sm:$0xff]
  %v3744 = vld [vmem:[#allocation5 + $0x7d8] sm:$0xff]
  %v3745 = vld [vmem:[#allocation5 + $0x7e0] sm:$0xff]
  %v3746 = vld [vmem:[#allocation5 + $0x7e8] sm:$0xff]
  %v3747 = vld [vmem:[#allocation5 + $0x7f0] sm:$0xff]
  %v3748 = vld [vmem:[#allocation5 + $0x7f8] sm:$0xff]
  %v3749 = vld [vmem:[#allocation5 + $0x800] sm:$0xff]
  %v3750 = vld [vmem:[#allocation5 + $0x808] sm:$0xff]
  %v3751 = vld [vmem:[#allocation5 + $0x810] sm:$0xff]
  %v3752 = vld [vmem:[#allocation5 + $0x818] sm:$0xff]
  %v3753 = vld [vmem:[#allocation5 + $0x820] sm:$0xff]
  %v3754 = vld [vmem:[#allocation5 + $0x828] sm:$0xff]
  %v3755 = vld [vmem:[#allocation5 + $0x830] sm:$0xff]
  %v3756 = vld [vmem:[#allocation5 + $0x838] sm:$0xff]
  %v3757 = vld [vmem:[#allocation5 + $0x840] sm:$0xff]
  %v3758 = vld [vmem:[#allocation5 + $0x848] sm:$0xff]
  %v3759 = vld [vmem:[#allocation5 + $0x850] sm:$0xff]
  %v3760 = vld [vmem:[#allocation5 + $0x858] sm:$0xff]
  %v3761 = vld [vmem:[#allocation5 + $0x860] sm:$0xff]
  %v3762 = vld [vmem:[#allocation5 + $0x868] sm:$0xff]
  %v3763 = vld [vmem:[#allocation5 + $0x870] sm:$0xff]
  %v3764 = vld [vmem:[#allocation5 + $0x878] sm:$0xff]
  %v3765 = vld [vmem:[#allocation5 + $0x880] sm:$0xff]
  %v3766 = vld [vmem:[#allocation5 + $0x888] sm:$0xff]
  %v3767 = vld [vmem:[#allocation5 + $0x890] sm:$0xff]
  %v3768 = vld [vmem:[#allocation5 + $0x898] sm:$0xff]
  %v3769 = vld [vmem:[#allocation5 + $0x8a0] sm:$0xff]
  %v3770 = vld [vmem:[#allocation5 + $0x8a8] sm:$0xff]
  %v3771 = vld [vmem:[#allocation5 + $0x8b0] sm:$0xff]
  %v3772 = vld [vmem:[#allocation5 + $0x8b8] sm:$0xff]
  %v3773 = vld [vmem:[#allocation5 + $0x8c0] sm:$0xff]
  %v3774 = vld [vmem:[#allocation5 + $0x8c8] sm:$0xff]
  %v3775 = vld [vmem:[#allocation5 + $0x8d0] sm:$0xff]
  %v3776 = vld [vmem:[#allocation5 + $0x8d8] sm:$0xff]
  %v3777 = vld [vmem:[#allocation5 + $0x8e0] sm:$0xff]
  %v3778 = vld [vmem:[#allocation5 + $0x8e8] sm:$0xff]
  %v3779 = vld [vmem:[#allocation5 + $0x8f0] sm:$0xff]
  %v3780 = vld [vmem:[#allocation5 + $0x8f8] sm:$0xff]
  %v3781 = vld [vmem:[#allocation5 + $0x900] sm:$0xff]
  %v3782 = vld [vmem:[#allocation5 + $0x908] sm:$0xff]
  %v3783 = vld [vmem:[#allocation5 + $0x910] sm:$0xff]
  %v3784 = vld [vmem:[#allocation5 + $0x918] sm:$0xff]
  %v3785 = vld [vmem:[#allocation5 + $0x920] sm:$0xff]
  %v3786 = vld [vmem:[#allocation5 + $0x928] sm:$0xff]
  %v3787 = vld [vmem:[#allocation5 + $0x930] sm:$0xff]
  %v3788 = vld [vmem:[#allocation5 + $0x938] sm:$0xff]
  %v3789 = vld [vmem:[#allocation5 + $0x940] sm:$0xff]
  %v3790 = vld [vmem:[#allocation5 + $0x948] sm:$0xff]
  %v3791 = vld [vmem:[#allocation5 + $0x950] sm:$0xff]
  %v3792 = vld [vmem:[#allocation5 + $0x958] sm:$0xff]
  %v3793 = vld [vmem:[#allocation5 + $0x960] sm:$0xff]
  %v3794 = vld [vmem:[#allocation5 + $0x968] sm:$0xff]
  %v3795 = vld [vmem:[#allocation5 + $0x970] sm:$0xff]
  %v3796 = vld [vmem:[#allocation5 + $0x978] sm:$0xff]
  %v3797 = vld [vmem:[#allocation5 + $0x980] sm:$0xff]
  %v3798 = vld [vmem:[#allocation5 + $0x988] sm:$0xff]
  %v3799 = vld [vmem:[#allocation5 + $0x990] sm:$0xff]
  %v3800 = vld [vmem:[#allocation5 + $0x998] sm:$0xff]
  %v3801 = vld [vmem:[#allocation5 + $0x9a0] sm:$0xff]
  %v3802 = vld [vmem:[#allocation5 + $0x9a8] sm:$0xff]
  %v3803 = vld [vmem:[#allocation5 + $0x9b0] sm:$0xff]
  %v3804 = vld [vmem:[#allocation5 + $0x9b8] sm:$0xff]
  %v3805 = vld [vmem:[#allocation5 + $0x9c0] sm:$0xff]
  %v3806 = vld [vmem:[#allocation5 + $0x9c8] sm:$0xff]
  %v3807 = vld [vmem:[#allocation5 + $0x9d0] sm:$0xff]
  %v3808 = vld [vmem:[#allocation5 + $0x9d8] sm:$0xff]
  %v3809 = vld [vmem:[#allocation5 + $0x9e0] sm:$0xff]
  %v3810 = vld [vmem:[#allocation5 + $0x9e8] sm:$0xff]
  %v3811 = vld [vmem:[#allocation5 + $0x9f0] sm:$0xff]
  %v3812 = vld [vmem:[#allocation5 + $0x9f8] sm:$0xff]
  %v3813 = vld [vmem:[#allocation5 + $0xa00] sm:$0xff]
  %v3814 = vld [vmem:[#allocation5 + $0xa08] sm:$0xff]
  %v3815 = vld [vmem:[#allocation5 + $0xa10] sm:$0xff]
  %v3816 = vld [vmem:[#allocation5 + $0xa18] sm:$0xff]
  %v3817 = vld [vmem:[%s3 + $0x30] sm:$0xff]
  %v3818 = vld [vmem:[%s3 + $0x38] sm:$0xff]
  %v3819 = vld [vmem:[%s3 + $0x40] sm:$0xff]
  %3821 = vset.pattern.permute.xlu0 0
  %3822 = vperm.xlu0 %3821, %v3817
  %v3823 = vpop.permute.xlu0 %3822
  %3826 = vset.pattern.permute.xlu0 0
  %3827 = vperm.xlu0 %3826, %v3818
  %v3828 = vpop.permute.xlu0 %3827
  %3831 = vset.pattern.permute.xlu0 0
  %3832 = vperm.xlu0 %3831, %v3819
  %v3833 = vpop.permute.xlu0 %3832
  %vm3835 = vcmask 392192
  %v3837 = vsel %vm3835, %v3484, 0
  %v3840 = vsel %vm3835, %v3488, 0
  %v3843 = vsel %vm3835, %v3492, 0
  %3845 = vmatprep.subr.mxu0 %v3494
  %3846 = vmatpush1.msra.mxu0 %v3493
  %3847 = vmatprep.subr.mxu0 %v3500
  %3848 = vmatpush1.msra.mxu0 %v3499
  %3849 = vmatprep.subr.mxu0 %v3506
  %3850 = vmatpush1.msra.mxu0 %v3505
  %3851 = vmatprep.subr.mxu0 %v3512
  %3852 = vmatpush1.msra.mxu0 %v3511
  %3853 = vmatprep.subr.mxu0 %v3518
  %3854 = vmatpush1.msra.mxu0 %v3517
  %3855 = vmatprep.subr.mxu0 %v3524
  %3856 = vmatpush1.msra.mxu0 %v3523
  %3857 = vmatprep.subr.mxu0 %v3530
  %3858 = vmatpush1.msra.mxu0 %v3529
  %3859 = vmatprep.subr.mxu0 %v3536
  %3860 = vmatpush1.msra.mxu0 %v3535
  %3861 = vmatprep.subr.mxu0 %v3542
  %3862 = vmatpush1.msra.mxu0 %v3541
  %3863 = vmatprep.subr.mxu0 %v3548
  %3864 = vmatpush1.msra.mxu0 %v3547
  %3865 = vmatprep.subr.mxu0 %v3554
  %3866 = vmatpush1.msra.mxu0 %v3553
  %3867 = vmatprep.subr.mxu0 %v3560
  %3868 = vmatpush1.msra.mxu0 %v3559
  %3869 = vmatprep.subr.mxu0 %v3566
  %3870 = vmatpush1.msra.mxu0 %v3565
  %3871 = vmatprep.subr.mxu0 %v3572
  %3872 = vmatpush1.msra.mxu0 %v3571
  %3873 = vmatprep.subr.mxu0 %v3578
  %3874 = vmatpush1.msra.mxu0 %v3577
  %3875 = vmatprep.subr.mxu0 %v3584
  %3876 = vmatpush1.msra.mxu0 %v3583
  %3877 = vmatprep.subr.mxu0 %v3590
  %3878 = vmatpush1.msra.mxu0 %v3589
  %3879 = vmatprep.subr.mxu0 %v3596
  %3880 = vmatpush1.msra.mxu0 %v3595
  %3881 = vmatprep.subr.mxu0 %v3602
  %3882 = vmatpush1.msra.mxu0 %v3601
  %3883 = vmatprep.subr.mxu0 %v3608
  %3884 = vmatpush1.msra.mxu0 %v3607
  %3885 = vmatprep.subr.mxu0 %v3614
  %3886 = vmatpush1.msra.mxu0 %v3613
  %3887 = vmatprep.subr.mxu0 %v3620
  %3888 = vmatpush1.msra.mxu0 %v3619
  %3889 = vmatprep.subr.mxu0 %v3626
  %3890 = vmatpush1.msra.mxu0 %v3625
  %3891 = vmatprep.subr.mxu0 %v3632
  %3892 = vmatpush1.msra.mxu0 %v3631
  %3893 = vmatprep.subr.mxu0 %v3638
  %3894 = vmatpush1.msra.mxu0 %v3637
  %3895 = vmatprep.subr.mxu0 %v3644
  %3896 = vmatpush1.msra.mxu0 %v3643
  %3897 = vmatprep.subr.mxu0 %v3650
  %3898 = vmatpush1.msra.mxu0 %v3649
  %3899 = vmatprep.subr.mxu0 %v3656
  %3900 = vmatpush1.msra.mxu0 %v3655
  %3901 = vmatprep.subr.mxu0 %v3662
  %3902 = vmatpush1.msra.mxu0 %v3661
  %3903 = vmatprep.subr.mxu0 %v3668
  %3904 = vmatpush1.msra.mxu0 %v3667
  %3905 = vmatprep.subr.mxu0 %v3674
  %3906 = vmatpush1.msra.mxu0 %v3673
  %3907 = vmatprep.subr.mxu0 %v3680
  %3908 = vmatpush1.msra.mxu0 %v3679
  %3909 = vmatprep.mubr.f32.mxu0 %v3482
  %3910 = vmatmul.mubr.f32.gmra.mrb[0].mxu0 %v3481
  %v3911 = vpop.f32.mrb[0].mxu0
  %v3912 = vadd.f32 %v3823, %v3911
  %v3913 = vpop.f32.mrb[0].mxu0
  %v3914 = vadd.f32 %v3823, %v3913
  %3915 = vmatprep.mubr.f32.mxu0 %v3486
  %3916 = vmatmul.mubr.f32.gmra.mrb[0].mxu0 %v3485
  %v3917 = vpop.f32.mrb[0].mxu0
  %v3918 = vadd.f32 %v3828, %v3917
  %v3919 = vpop.f32.mrb[0].mxu0
  %v3920 = vadd.f32 %v3828, %v3919
  %3921 = vmatprep.mubr.f32.mxu0 %v3490
  %3922 = vmatmul.mubr.f32.gmra.mrb[0].mxu0 %v3489
  %v3923 = vpop.f32.mrb[0].mxu0
  %v3924 = vadd.f32 %v3833, %v3923
  %v3925 = vpop.f32.mrb[0].mxu0
  %v3926 = vadd.f32 %v3833, %v3925
  %3927 = vdwg.mxu0
  %3928 = vmatprep.subr.mxu0 %v3686
  %3929 = vmatpush1.msra.mxu0 %v3685
  %3930 = vmatprep.subr.mxu0 %v3692
  %3931 = vmatpush1.msra.mxu0 %v3691
  %3932 = vmatprep.subr.mxu0 %v3698
  %3933 = vmatpush1.msra.mxu0 %v3697
  %3934 = vmatprep.subr.mxu0 %v3704
  %3935 = vmatpush1.msra.mxu0 %v3703
  %3936 = vmatprep.subr.mxu0 %v3710
  %3937 = vmatpush1.msra.mxu0 %v3709
  %3938 = vmatprep.subr.mxu0 %v3716
  %3939 = vmatpush1.msra.mxu0 %v3715
  %3940 = vmatprep.subr.mxu0 %v3722
  %3941 = vmatpush1.msra.mxu0 %v3721
  %3942 = vmatprep.subr.mxu0 %v3728
  %3943 = vmatpush1.msra.mxu0 %v3727
  %3944 = vmatprep.subr.mxu0 %v3734
  %3945 = vmatpush1.msra.mxu0 %v3733
  %3946 = vmatprep.subr.mxu0 %v3740
  %3947 = vmatpush1.msra.mxu0 %v3739
  %3948 = vmatprep.subr.mxu0 %v3746
  %3949 = vmatpush1.msra.mxu0 %v3745
  %3950 = vmatprep.subr.mxu0 %v3752
  %3951 = vmatpush1.msra.mxu0 %v3751
  %3952 = vmatprep.subr.mxu0 %v3758
  %3953 = vmatpush1.msra.mxu0 %v3757
  %3954 = vmatprep.subr.mxu0 %v3764
  %3955 = vmatpush1.msra.mxu0 %v3763
  %3956 = vmatprep.subr.mxu0 %v3770
  %3957 = vmatpush1.msra.mxu0 %v3769
  %3958 = vmatprep.subr.mxu0 %v3776
  %3959 = vmatpush1.msra.mxu0 %v3775
  %3960 = vmatprep.subr.mxu0 %v3782
  %3961 = vmatpush1.msra.mxu0 %v3781
  %3962 = vmatprep.subr.mxu0 %v3788
  %3963 = vmatpush1.msra.mxu0 %v3787
  %3964 = vmatprep.subr.mxu0 %v3794
  %3965 = vmatpush1.msra.mxu0 %v3793
  %3966 = vmatprep.subr.mxu0 %v3800
  %3967 = vmatpush1.msra.mxu0 %v3799
  %3968 = vmatprep.subr.mxu0 %v3806
  %3969 = vmatpush1.msra.mxu0 %v3805
  %3970 = vmatprep.subr.mxu0 %v3812
  %3971 = vmatpush1.msra.mxu0 %v3811
  %3972 = vmatprep.subr.mxu0 0.0
  %3973 = vmatpush1.msra.mxu0 0.0
  %3974 = vmatprep.subr.mxu0 0.0
  %3975 = vmatpush1.msra.mxu0 0.0
  %3976 = vmatprep.subr.mxu0 0.0
  %3977 = vmatpush1.msra.mxu0 0.0
  %3978 = vmatprep.subr.mxu0 0.0
  %3979 = vmatpush1.msra.mxu0 0.0
  %3980 = vmatprep.subr.mxu0 0.0
  %3981 = vmatpush1.msra.mxu0 0.0
  %3982 = vmatprep.subr.mxu0 0.0
  %3983 = vmatpush1.msra.mxu0 0.0
  %3984 = vmatprep.subr.mxu0 0.0
  %3985 = vmatpush1.msra.mxu0 0.0
  %3986 = vmatprep.subr.mxu0 0.0
  %3987 = vmatpush1.msra.mxu0 0.0
  %3988 = vmatprep.subr.mxu0 0.0
  %3989 = vmatpush1.msra.mxu0 0.0
  %3990 = vmatprep.subr.mxu0 0.0
  %3991 = vmatpush1.msra.mxu0 0.0
  %3992 = vmatprep.mubr.f32.mxu0 %v3837
  %3993 = vmatmul.mubr.f32.gmra.mrb[0].mxu0 %v3483
  %v3994 = vpop.f32.mrb[0].mxu0
  %v3995 = vadd.f32 %v3912, %v3994
  %v3996 = vpop.f32.mrb[0].mxu0
  %v3997 = vadd.f32 %v3914, %v3996
  %3998 = vmatprep.mubr.f32.mxu0 %v3840
  %3999 = vmatmul.mubr.f32.gmra.mrb[0].mxu0 %v3487
  %v4000 = vpop.f32.mrb[0].mxu0
  %v4001 = vadd.f32 %v3918, %v4000
  %v4002 = vpop.f32.mrb[0].mxu0
  %v4003 = vadd.f32 %v3920, %v4002
  %4004 = vmatprep.mubr.f32.mxu0 %v3843
  %4005 = vmatmul.mubr.f32.gmra.mrb[0].mxu0 %v3491
  %v4006 = vpop.f32.mrb[0].mxu0
  %v4007 = vadd.f32 %v3924, %v4006
  %v4008 = vpop.f32.mrb[0].mxu0
  %v4009 = vadd.f32 %v3926, %v4008
  %4010 = vdwg.mxu0
  %4011 = vmatprep.subr.mxu0 %v3496
  %4012 = vmatpush1.msra.mxu0 %v3495
  %4013 = vmatprep.subr.mxu0 %v3502
  %4014 = vmatpush1.msra.mxu0 %v3501
  %4015 = vmatprep.subr.mxu0 %v3508
  %4016 = vmatpush1.msra.mxu0 %v3507
  %4017 = vmatprep.subr.mxu0 %v3514
  %4018 = vmatpush1.msra.mxu0 %v3513
  %4019 = vmatprep.subr.mxu0 %v3520
  %4020 = vmatpush1.msra.mxu0 %v3519
  %4021 = vmatprep.subr.mxu0 %v3526
  %4022 = vmatpush1.msra.mxu0 %v3525
  %4023 = vmatprep.subr.mxu0 %v3532
  %4024 = vmatpush1.msra.mxu0 %v3531
  %4025 = vmatprep.subr.mxu0 %v3538
  %4026 = vmatpush1.msra.mxu0 %v3537
  %4027 = vmatprep.subr.mxu0 %v3544
  %4028 = vmatpush1.msra.mxu0 %v3543
  %4029 = vmatprep.subr.mxu0 %v3550
  %4030 = vmatpush1.msra.mxu0 %v3549
  %4031 = vmatprep.subr.mxu0 %v3556
  %4032 = vmatpush1.msra.mxu0 %v3555
  %4033 = vmatprep.subr.mxu0 %v3562
  %4034 = vmatpush1.msra.mxu0 %v3561
  %4035 = vmatprep.subr.mxu0 %v3568
  %4036 = vmatpush1.msra.mxu0 %v3567
  %4037 = vmatprep.subr.mxu0 %v3574
  %4038 = vmatpush1.msra.mxu0 %v3573
  %4039 = vmatprep.subr.mxu0 %v3580
  %4040 = vmatpush1.msra.mxu0 %v3579
  %4041 = vmatprep.subr.mxu0 %v3586
  %4042 = vmatpush1.msra.mxu0 %v3585
  %4043 = vmatprep.subr.mxu0 %v3592
  %4044 = vmatpush1.msra.mxu0 %v3591
  %4045 = vmatprep.subr.mxu0 %v3598
  %4046 = vmatpush1.msra.mxu0 %v3597
  %4047 = vmatprep.subr.mxu0 %v3604
  %4048 = vmatpush1.msra.mxu0 %v3603
  %4049 = vmatprep.subr.mxu0 %v3610
  %4050 = vmatpush1.msra.mxu0 %v3609
  %4051 = vmatprep.subr.mxu0 %v3616
  %4052 = vmatpush1.msra.mxu0 %v3615
  %4053 = vmatprep.subr.mxu0 %v3622
  %4054 = vmatpush1.msra.mxu0 %v3621
  %4055 = vmatprep.subr.mxu0 %v3628
  %4056 = vmatpush1.msra.mxu0 %v3627
  %4057 = vmatprep.subr.mxu0 %v3634
  %4058 = vmatpush1.msra.mxu0 %v3633
  %4059 = vmatprep.subr.mxu0 %v3640
  %4060 = vmatpush1.msra.mxu0 %v3639
  %4061 = vmatprep.subr.mxu0 %v3646
  %4062 = vmatpush1.msra.mxu0 %v3645
  %4063 = vmatprep.subr.mxu0 %v3652
  %4064 = vmatpush1.msra.mxu0 %v3651
  %4065 = vmatprep.subr.mxu0 %v3658
  %4066 = vmatpush1.msra.mxu0 %v3657
  %4067 = vmatprep.subr.mxu0 %v3664
  %4068 = vmatpush1.msra.mxu0 %v3663
  %4069 = vmatprep.subr.mxu0 %v3670
  %4070 = vmatpush1.msra.mxu0 %v3669
  %4071 = vmatprep.subr.mxu0 %v3676
  %4072 = vmatpush1.msra.mxu0 %v3675
  %4073 = vmatprep.subr.mxu0 %v3682
  %4074 = vmatpush1.msra.mxu0 %v3681
  %4075 = vmatprep.mubr.f32.mxu0 %v3482
  %4076 = vmatmul.mubr.f32.gmra.mrb[0].mxu0 %v3481
  %v4077 = vpop.f32.mrb[0].mxu0
  %v4078 = vadd.f32 %v3823, %v4077
  %v4079 = vpop.f32.mrb[0].mxu0
  %v4080 = vadd.f32 %v3823, %v4079
  %4081 = vmatprep.mubr.f32.mxu0 %v3486
  %4082 = vmatmul.mubr.f32.gmra.mrb[0].mxu0 %v3485
  %v4083 = vpop.f32.mrb[0].mxu0
  %v4084 = vadd.f32 %v3828, %v4083
  %v4085 = vpop.f32.mrb[0].mxu0
  %v4086 = vadd.f32 %v3828, %v4085
  %4087 = vmatprep.mubr.f32.mxu0 %v3490
  %4088 = vmatmul.mubr.f32.gmra.mrb[0].mxu0 %v3489
  %v4089 = vpop.f32.mrb[0].mxu0
  %v4090 = vadd.f32 %v3833, %v4089
  %v4091 = vpop.f32.mrb[0].mxu0
  %v4092 = vadd.f32 %v3833, %v4091
  %4093 = vdwg.mxu0
  %4094 = vmatprep.subr.mxu0 %v3688
  %4095 = vmatpush1.msra.mxu0 %v3687
  %4096 = vmatprep.subr.mxu0 %v3694
  %4097 = vmatpush1.msra.mxu0 %v3693
  %4098 = vmatprep.subr.mxu0 %v3700
  %4099 = vmatpush1.msra.mxu0 %v3699
  %4100 = vmatprep.subr.mxu0 %v3706
  %4101 = vmatpush1.msra.mxu0 %v3705
  %4102 = vmatprep.subr.mxu0 %v3712
  %4103 = vmatpush1.msra.mxu0 %v3711
  %4104 = vmatprep.subr.mxu0 %v3718
  %4105 = vmatpush1.msra.mxu0 %v3717
  %4106 = vmatprep.subr.mxu0 %v3724
  %4107 = vmatpush1.msra.mxu0 %v3723
  %4108 = vmatprep.subr.mxu0 %v3730
  %4109 = vmatpush1.msra.mxu0 %v3729
  %4110 = vmatprep.subr.mxu0 %v3736
  %4111 = vmatpush1.msra.mxu0 %v3735
  %4112 = vmatprep.subr.mxu0 %v3742
  %4113 = vmatpush1.msra.mxu0 %v3741
  %4114 = vmatprep.subr.mxu0 %v3748
  %4115 = vmatpush1.msra.mxu0 %v3747
  %4116 = vmatprep.subr.mxu0 %v3754
  %4117 = vmatpush1.msra.mxu0 %v3753
  %4118 = vmatprep.subr.mxu0 %v3760
  %4119 = vmatpush1.msra.mxu0 %v3759
  %4120 = vmatprep.subr.mxu0 %v3766
  %4121 = vmatpush1.msra.mxu0 %v3765
  %4122 = vmatprep.subr.mxu0 %v3772
  %4123 = vmatpush1.msra.mxu0 %v3771
  %4124 = vmatprep.subr.mxu0 %v3778
  %4125 = vmatpush1.msra.mxu0 %v3777
  %4126 = vmatprep.subr.mxu0 %v3784
  %4127 = vmatpush1.msra.mxu0 %v3783
  %4128 = vmatprep.subr.mxu0 %v3790
  %4129 = vmatpush1.msra.mxu0 %v3789
  %4130 = vmatprep.subr.mxu0 %v3796
  %4131 = vmatpush1.msra.mxu0 %v3795
  %4132 = vmatprep.subr.mxu0 %v3802
  %4133 = vmatpush1.msra.mxu0 %v3801
  %4134 = vmatprep.subr.mxu0 %v3808
  %4135 = vmatpush1.msra.mxu0 %v3807
  %4136 = vmatprep.subr.mxu0 %v3814
  %4137 = vmatpush1.msra.mxu0 %v3813
  %4138 = vmatprep.subr.mxu0 0.0
  %4139 = vmatpush1.msra.mxu0 0.0
  %4140 = vmatprep.subr.mxu0 0.0
  %4141 = vmatpush1.msra.mxu0 0.0
  %4142 = vmatprep.subr.mxu0 0.0
  %4143 = vmatpush1.msra.mxu0 0.0
  %4144 = vmatprep.subr.mxu0 0.0
  %4145 = vmatpush1.msra.mxu0 0.0
  %4146 = vmatprep.subr.mxu0 0.0
  %4147 = vmatpush1.msra.mxu0 0.0
  %4148 = vmatprep.subr.mxu0 0.0
  %4149 = vmatpush1.msra.mxu0 0.0
  %4150 = vmatprep.subr.mxu0 0.0
  %4151 = vmatpush1.msra.mxu0 0.0
  %4152 = vmatprep.subr.mxu0 0.0
  %4153 = vmatpush1.msra.mxu0 0.0
  %4154 = vmatprep.subr.mxu0 0.0
  %4155 = vmatpush1.msra.mxu0 0.0
  %4156 = vmatprep.subr.mxu0 0.0
  %4157 = vmatpush1.msra.mxu0 0.0
  %4158 = vmatprep.mubr.f32.mxu0 %v3837
  %4159 = vmatmul.mubr.f32.gmra.mrb[0].mxu0 %v3483
  %v4160 = vpop.f32.mrb[0].mxu0
  %v4161 = vadd.f32 %v4078, %v4160
  %v4162 = vpop.f32.mrb[0].mxu0
  %v4163 = vadd.f32 %v4080, %v4162
  %4164 = vmatprep.mubr.f32.mxu0 %v3840
  %4165 = vmatmul.mubr.f32.gmra.mrb[0].mxu0 %v3487
  %v4166 = vpop.f32.mrb[0].mxu0
  %v4167 = vadd.f32 %v4084, %v4166
  %v4168 = vpop.f32.mrb[0].mxu0
  %v4169 = vadd.f32 %v4086, %v4168
  %4170 = vmatprep.mubr.f32.mxu0 %v3843
  %4171 = vmatmul.mubr.f32.gmra.mrb[0].mxu0 %v3491
  %v4172 = vpop.f32.mrb[0].mxu0
  %v4173 = vadd.f32 %v4090, %v4172
  %v4174 = vpop.f32.mrb[0].mxu0
  %v4175 = vadd.f32 %v4092, %v4174
  %4176 = vdwg.mxu0
  %4177 = vmatprep.subr.mxu0 %v3498
  %4178 = vmatpush1.msra.mxu0 %v3497
  %4179 = vmatprep.subr.mxu0 %v3504
  %4180 = vmatpush1.msra.mxu0 %v3503
  %4181 = vmatprep.subr.mxu0 %v3510
  %4182 = vmatpush1.msra.mxu0 %v3509
  %4183 = vmatprep.subr.mxu0 %v3516
  %4184 = vmatpush1.msra.mxu0 %v3515
  %4185 = vmatprep.subr.mxu0 %v3522
  %4186 = vmatpush1.msra.mxu0 %v3521
  %4187 = vmatprep.subr.mxu0 %v3528
  %4188 = vmatpush1.msra.mxu0 %v3527
  %4189 = vmatprep.subr.mxu0 %v3534
  %4190 = vmatpush1.msra.mxu0 %v3533
  %4191 = vmatprep.subr.mxu0 %v3540
  %4192 = vmatpush1.msra.mxu0 %v3539
  %4193 = vmatprep.subr.mxu0 %v3546
  %4194 = vmatpush1.msra.mxu0 %v3545
  %4195 = vmatprep.subr.mxu0 %v3552
  %4196 = vmatpush1.msra.mxu0 %v3551
  %4197 = vmatprep.subr.mxu0 %v3558
  %4198 = vmatpush1.msra.mxu0 %v3557
  %4199 = vmatprep.subr.mxu0 %v3564
  %4200 = vmatpush1.msra.mxu0 %v3563
  %4201 = vmatprep.subr.mxu0 %v3570
  %4202 = vmatpush1.msra.mxu0 %v3569
  %4203 = vmatprep.subr.mxu0 %v3576
  %4204 = vmatpush1.msra.mxu0 %v3575
  %4205 = vmatprep.subr.mxu0 %v3582
  %4206 = vmatpush1.msra.mxu0 %v3581
  %4207 = vmatprep.subr.mxu0 %v3588
  %4208 = vmatpush1.msra.mxu0 %v3587
  %4209 = vmatprep.subr.mxu0 %v3594
  %4210 = vmatpush1.msra.mxu0 %v3593
  %4211 = vmatprep.subr.mxu0 %v3600
  %4212 = vmatpush1.msra.mxu0 %v3599
  %4213 = vmatprep.subr.mxu0 %v3606
  %4214 = vmatpush1.msra.mxu0 %v3605
  %4215 = vmatprep.subr.mxu0 %v3612
  %4216 = vmatpush1.msra.mxu0 %v3611
  %4217 = vmatprep.subr.mxu0 %v3618
  %4218 = vmatpush1.msra.mxu0 %v3617
  %4219 = vmatprep.subr.mxu0 %v3624
  %4220 = vmatpush1.msra.mxu0 %v3623
  %4221 = vmatprep.subr.mxu0 %v3630
  %4222 = vmatpush1.msra.mxu0 %v3629
  %4223 = vmatprep.subr.mxu0 %v3636
  %4224 = vmatpush1.msra.mxu0 %v3635
  %4225 = vmatprep.subr.mxu0 %v3642
  %4226 = vmatpush1.msra.mxu0 %v3641
  %4227 = vmatprep.subr.mxu0 %v3648
  %4228 = vmatpush1.msra.mxu0 %v3647
  %4229 = vmatprep.subr.mxu0 %v3654
  %4230 = vmatpush1.msra.mxu0 %v3653
  %4231 = vmatprep.subr.mxu0 %v3660
  %4232 = vmatpush1.msra.mxu0 %v3659
  %4233 = vmatprep.subr.mxu0 %v3666
  %4234 = vmatpush1.msra.mxu0 %v3665
  %4235 = vmatprep.subr.mxu0 %v3672
  %4236 = vmatpush1.msra.mxu0 %v3671
  %4237 = vmatprep.subr.mxu0 %v3678
  %4238 = vmatpush1.msra.mxu0 %v3677
  %4239 = vmatprep.subr.mxu0 %v3684
  %4240 = vmatpush1.msra.mxu0 %v3683
  %4241 = vmatprep.mubr.f32.mxu0 %v3482
  %4242 = vmatmul.mubr.f32.gmra.mrb[0].mxu0 %v3481
  %v4243 = vpop.f32.mrb[0].mxu0
  %v4244 = vadd.f32 %v3823, %v4243
  %v4245 = vpop.f32.mrb[0].mxu0
  %v4246 = vadd.f32 %v3823, %v4245
  %4247 = vmatprep.mubr.f32.mxu0 %v3486
  %4248 = vmatmul.mubr.f32.gmra.mrb[0].mxu0 %v3485
  %v4249 = vpop.f32.mrb[0].mxu0
  %v4250 = vadd.f32 %v3828, %v4249
  %v4251 = vpop.f32.mrb[0].mxu0
  %v4252 = vadd.f32 %v3828, %v4251
  %4253 = vmatprep.mubr.f32.mxu0 %v3490
  %4254 = vmatmul.mubr.f32.gmra.mrb[0].mxu0 %v3489
  %v4255 = vpop.f32.mrb[0].mxu0
  %v4256 = vadd.f32 %v3833, %v4255
  %v4257 = vpop.f32.mrb[0].mxu0
  %v4258 = vadd.f32 %v3833, %v4257
  %4259 = vdwg.mxu0
  %4260 = vmatprep.subr.mxu0 %v3690
  %4261 = vmatpush1.msra.mxu0 %v3689
  %4262 = vmatprep.subr.mxu0 %v3696
  %4263 = vmatpush1.msra.mxu0 %v3695
  %4264 = vmatprep.subr.mxu0 %v3702
  %4265 = vmatpush1.msra.mxu0 %v3701
  %4266 = vmatprep.subr.mxu0 %v3708
  %4267 = vmatpush1.msra.mxu0 %v3707
  %4268 = vmatprep.subr.mxu0 %v3714
  %4269 = vmatpush1.msra.mxu0 %v3713
  %4270 = vmatprep.subr.mxu0 %v3720
  %4271 = vmatpush1.msra.mxu0 %v3719
  %4272 = vmatprep.subr.mxu0 %v3726
  %4273 = vmatpush1.msra.mxu0 %v3725
  %4274 = vmatprep.subr.mxu0 %v3732
  %4275 = vmatpush1.msra.mxu0 %v3731
  %4276 = vmatprep.subr.mxu0 %v3738
  %4277 = vmatpush1.msra.mxu0 %v3737
  %4278 = vmatprep.subr.mxu0 %v3744
  %4279 = vmatpush1.msra.mxu0 %v3743
  %4280 = vmatprep.subr.mxu0 %v3750
  %4281 = vmatpush1.msra.mxu0 %v3749
  %4282 = vmatprep.subr.mxu0 %v3756
  %4283 = vmatpush1.msra.mxu0 %v3755
  %4284 = vmatprep.subr.mxu0 %v3762
  %4285 = vmatpush1.msra.mxu0 %v3761
  %4286 = vmatprep.subr.mxu0 %v3768
  %4287 = vmatpush1.msra.mxu0 %v3767
  %4288 = vmatprep.subr.mxu0 %v3774
  %4289 = vmatpush1.msra.mxu0 %v3773
  %4290 = vmatprep.subr.mxu0 %v3780
  %4291 = vmatpush1.msra.mxu0 %v3779
  %4292 = vmatprep.subr.mxu0 %v3786
  %4293 = vmatpush1.msra.mxu0 %v3785
  %4294 = vmatprep.subr.mxu0 %v3792
  %4295 = vmatpush1.msra.mxu0 %v3791
  %4296 = vmatprep.subr.mxu0 %v3798
  %4297 = vmatpush1.msra.mxu0 %v3797
  %4298 = vmatprep.subr.mxu0 %v3804
  %4299 = vmatpush1.msra.mxu0 %v3803
  %4300 = vmatprep.subr.mxu0 %v3810
  %4301 = vmatpush1.msra.mxu0 %v3809
  %4302 = vmatprep.subr.mxu0 %v3816
  %4303 = vmatpush1.msra.mxu0 %v3815
  %4304 = vmatprep.subr.mxu0 0.0
  %4305 = vmatpush1.msra.mxu0 0.0
  %4306 = vmatprep.subr.mxu0 0.0
  %4307 = vmatpush1.msra.mxu0 0.0
  %4308 = vmatprep.subr.mxu0 0.0
  %4309 = vmatpush1.msra.mxu0 0.0
  %4310 = vmatprep.subr.mxu0 0.0
  %4311 = vmatpush1.msra.mxu0 0.0
  %4312 = vmatprep.subr.mxu0 0.0
  %4313 = vmatpush1.msra.mxu0 0.0
  %4314 = vmatprep.subr.mxu0 0.0
  %4315 = vmatpush1.msra.mxu0 0.0
  %4316 = vmatprep.subr.mxu0 0.0
  %4317 = vmatpush1.msra.mxu0 0.0
  %4318 = vmatprep.subr.mxu0 0.0
  %4319 = vmatpush1.msra.mxu0 0.0
  %4320 = vmatprep.subr.mxu0 0.0
  %4321 = vmatpush1.msra.mxu0 0.0
  %4322 = vmatprep.subr.mxu0 0.0
  %4323 = vmatpush1.msra.mxu0 0.0
  %4324 = vmatprep.mubr.f32.mxu0 %v3837
  %4325 = vmatmul.mubr.f32.gmra.mrb[0].mxu0 %v3483
  %v4326 = vpop.f32.mrb[0].mxu0
  %v4327 = vadd.f32 %v4244, %v4326
  %v4328 = vpop.f32.mrb[0].mxu0
  %v4329 = vadd.f32 %v4246, %v4328
  %4330 = vmatprep.mubr.f32.mxu0 %v3840
  %4331 = vmatmul.mubr.f32.gmra.mrb[0].mxu0 %v3487
  %v4332 = vpop.f32.mrb[0].mxu0
  %v4333 = vadd.f32 %v4250, %v4332
  %v4334 = vpop.f32.mrb[0].mxu0
  %v4335 = vadd.f32 %v4252, %v4334
  %4336 = vmatprep.mubr.f32.mxu0 %v3843
  %4337 = vmatmul.mubr.f32.gmra.mrb[0].mxu0 %v3491
  %v4338 = vpop.f32.mrb[0].mxu0
  %v4339 = vadd.f32 %v4256, %v4338
  %v4340 = vpop.f32.mrb[0].mxu0
  %v4341 = vadd.f32 %v4258, %v4340
  %4342 = vdwg.mxu0
  %v4343 = vmax.f32 %v3995, 0.0
  %v4344 = vmax.f32 %v3997, 0.0
  %v4345 = vmax.f32 %v4161, 0.0
  %v4346 = vmax.f32 %v4163, 0.0
  %v4347 = vmax.f32 %v4327, 0.0
  %v4348 = vmax.f32 %v4329, 0.0
  %v4349 = vmax.f32 %v4001, 0.0
  %v4350 = vmax.f32 %v4003, 0.0
  %v4351 = vmax.f32 %v4167, 0.0
  %v4352 = vmax.f32 %v4169, 0.0
  %v4353 = vmax.f32 %v4333, 0.0
  %v4354 = vmax.f32 %v4335, 0.0
  %v4355 = vmax.f32 %v4007, 0.0
  %v4356 = vmax.f32 %v4009, 0.0
  %v4357 = vmax.f32 %v4173, 0.0
  %v4358 = vmax.f32 %v4175, 0.0
  %v4359 = vmax.f32 %v4339, 0.0
  %v4360 = vmax.f32 %v4341, 0.0
  %v4361 = vsel %vm931, %v4343, 0.0
  %v4362 = vsel %vm932, %v4344, 0.0
  %v4363 = vsel %vm933, %v4345, 0.0
  %v4364 = vsel %vm934, %v4346, 0.0
  %v4365 = vsel %vm935, %v4347, 0.0
  %v4366 = vsel %vm936, %v4348, 0.0
  %v4367 = vsel %vm931, %v4349, 0.0
  %v4368 = vsel %vm932, %v4350, 0.0
  %v4369 = vsel %vm933, %v4351, 0.0
  %v4370 = vsel %vm934, %v4352, 0.0
  %v4371 = vsel %vm935, %v4353, 0.0
  %v4372 = vsel %vm936, %v4354, 0.0
  %v4373 = vsel %vm931, %v4355, 0.0
  %v4374 = vsel %vm932, %v4356, 0.0
  %v4375 = vsel %vm933, %v4357, 0.0
  %v4376 = vsel %vm934, %v4358, 0.0
  %v4377 = vsel %vm935, %v4359, 0.0
  %v4378 = vsel %vm936, %v4360, 0.0
  %4379 = vst [vmem:[#allocation4 + $0x8] sm:$0xff] %v4361
  %4380 = vst [vmem:[#allocation4 + $0x10] sm:$0xff] %v4362
  %4381 = vst [vmem:[#allocation4 + $0x18] sm:$0xff] %v4363
  %4382 = vst [vmem:[#allocation4 + $0x58] sm:$0xff] %v4367
  %4383 = vst [vmem:[#allocation4 + $0x60] sm:$0xff] %v4368
  %4384 = vst [vmem:[#allocation4 + $0x68] sm:$0xff] %v4369
  %4385 = vst [vmem:[#allocation4 + $0xa8] sm:$0xff] %v4373
  %4386 = vst [vmem:[#allocation4 + $0xb0] sm:$0xff] %v4374
  %4387 = vst [vmem:[#allocation4 + $0xb8] sm:$0xff] %v4375
  %4388 = vst [vmem:[#allocation4 + $0x30] sm:$0xff] %v4364
  %4389 = vst [vmem:[#allocation4 + $0x38] sm:$0xff] %v4365
  %4390 = vst [vmem:[#allocation4 + $0x40] sm:$0xff] %v4366
  %4391 = vst [vmem:[#allocation4 + $0x80] sm:$0xff] %v4370
  %4392 = vst [vmem:[#allocation4 + $0x88] sm:$0xff] %v4371
  %4393 = vst [vmem:[#allocation4 + $0x90] sm:$0xff] %v4372
  %4394 = vst [vmem:[#allocation4 + $0xd0] sm:$0xff] %v4376
  %4395 = vst [vmem:[#allocation4 + $0xd8] sm:$0xff] %v4377
  %4396 = vst [vmem:[#allocation4 + $0xe0] sm:$0xff] %v4378
  %v4397 = vld [vmem:[#allocation4] sm:$0xff]
  %v4398 = vld [vmem:[#allocation4 + $0x8] sm:$0xff]
  %v4399 = vld [vmem:[#allocation4 + $0x10] sm:$0xff]
  %v4400 = vld [vmem:[#allocation4 + $0x18] sm:$0xff]
  %v4401 = vld [vmem:[#allocation4 + $0x50] sm:$0xff]
  %v4402 = vld [vmem:[#allocation4 + $0x58] sm:$0xff]
  %v4403 = vld [vmem:[#allocation4 + $0x60] sm:$0xff]
  %v4404 = vld [vmem:[#allocation4 + $0x68] sm:$0xff]
  %v4405 = vld [vmem:[#allocation4 + $0xa0] sm:$0xff]
  %v4406 = vld [vmem:[#allocation4 + $0xa8] sm:$0xff]
  %v4407 = vld [vmem:[#allocation4 + $0xb0] sm:$0xff]
  %v4408 = vld [vmem:[#allocation4 + $0xb8] sm:$0xff]
  %4421 = vrot.lane.b32.xlu0 %v4397, 19
  %v4422 = vpop.permute.xlu0 %4421
  %4423 = vrot.lane.b32.xlu0 %v4398, 19
  %v4424 = vpop.permute.xlu0 %4423
  %4425 = vrot.lane.b32.xlu0 %v4399, 19
  %v4426 = vpop.permute.xlu0 %4425
  %4427 = vrot.lane.b32.xlu0 %v4400, 19
  %v4428 = vpop.permute.xlu0 %4427
  %4429 = vrot.lane.b32.xlu0 %v4401, 19
  %v4430 = vpop.permute.xlu0 %4429
  %4431 = vrot.lane.b32.xlu0 %v4402, 19
  %v4432 = vpop.permute.xlu0 %4431
  %4433 = vrot.lane.b32.xlu0 %v4403, 19
  %v4434 = vpop.permute.xlu0 %4433
  %4435 = vrot.lane.b32.xlu0 %v4404, 19
  %v4436 = vpop.permute.xlu0 %4435
  %4437 = vrot.lane.b32.xlu0 %v4405, 19
  %v4438 = vpop.permute.xlu0 %4437
  %4439 = vrot.lane.b32.xlu0 %v4406, 19
  %v4440 = vpop.permute.xlu0 %4439
  %4441 = vrot.lane.b32.xlu0 %v4407, 19
  %v4442 = vpop.permute.xlu0 %4441
  %4443 = vrot.lane.b32.xlu0 %v4408, 19
  %v4444 = vpop.permute.xlu0 %4443
  %v4445 = vsel %vm48, %v4422, %v4424
  %v4446 = vsel %vm48, %v4424, %v4426
  %v4447 = vsel %vm48, %v4426, %v4428
  %v4448 = vsel %vm48, %v4430, %v4432
  %v4449 = vsel %vm48, %v4432, %v4434
  %v4450 = vsel %vm48, %v4434, %v4436
  %v4451 = vsel %vm48, %v4438, %v4440
  %v4452 = vsel %vm48, %v4440, %v4442
  %v4453 = vsel %vm48, %v4442, %v4444
  %4463 = vst [vmem:[#allocation5] sm:$0xff] %v4445
  %4464 = vst [vmem:[#allocation5 + $0x8] sm:$0xff] %v4446
  %4465 = vst [vmem:[#allocation5 + $0x10] sm:$0xff] %v4447
  %4466 = vst [vmem:[#allocation5 + $0x30] sm:$0xff] %v4448
  %4467 = vst [vmem:[#allocation5 + $0x38] sm:$0xff] %v4449
  %4468 = vst [vmem:[#allocation5 + $0x40] sm:$0xff] %v4450
  %4469 = vst [vmem:[#allocation5 + $0x60] sm:$0xff] %v4451
  %4470 = vst [vmem:[#allocation5 + $0x68] sm:$0xff] %v4452
  %4471 = vst [vmem:[#allocation5 + $0x70] sm:$0xff] %v4453
  %v4472 = vld [vmem:[#allocation4 + $0x28] sm:$0xff]
  %v4473 = vld [vmem:[#allocation4 + $0x30] sm:$0xff]
  %v4474 = vld [vmem:[#allocation4 + $0x38] sm:$0xff]
  %v4475 = vld [vmem:[#allocation4 + $0x40] sm:$0xff]
  %v4476 = vld [vmem:[#allocation4 + $0x78] sm:$0xff]
  %v4477 = vld [vmem:[#allocation4 + $0x80] sm:$0xff]
  %v4478 = vld [vmem:[#allocation4 + $0x88] sm:$0xff]
  %v4479 = vld [vmem:[#allocation4 + $0x90] sm:$0xff]
  %v4480 = vld [vmem:[#allocation4 + $0xc8] sm:$0xff]
  %v4481 = vld [vmem:[#allocation4 + $0xd0] sm:$0xff]
  %v4482 = vld [vmem:[#allocation4 + $0xd8] sm:$0xff]
  %v4483 = vld [vmem:[#allocation4 + $0xe0] sm:$0xff]
  %4496 = vrot.lane.b32.xlu0 %v4472, 19
  %v4497 = vpop.permute.xlu0 %4496
  %4498 = vrot.lane.b32.xlu0 %v4473, 19
  %v4499 = vpop.permute.xlu0 %4498
  %4500 = vrot.lane.b32.xlu0 %v4474, 19
  %v4501 = vpop.permute.xlu0 %4500
  %4502 = vrot.lane.b32.xlu0 %v4475, 19
  %v4503 = vpop.permute.xlu0 %4502
  %4504 = vrot.lane.b32.xlu0 %v4476, 19
  %v4505 = vpop.permute.xlu0 %4504
  %4506 = vrot.lane.b32.xlu0 %v4477, 19
  %v4507 = vpop.permute.xlu0 %4506
  %4508 = vrot.lane.b32.xlu0 %v4478, 19
  %v4509 = vpop.permute.xlu0 %4508
  %4510 = vrot.lane.b32.xlu0 %v4479, 19
  %v4511 = vpop.permute.xlu0 %4510
  %4512 = vrot.lane.b32.xlu0 %v4480, 19
  %v4513 = vpop.permute.xlu0 %4512
  %4514 = vrot.lane.b32.xlu0 %v4481, 19
  %v4515 = vpop.permute.xlu0 %4514
  %4516 = vrot.lane.b32.xlu0 %v4482, 19
  %v4517 = vpop.permute.xlu0 %4516
  %4518 = vrot.lane.b32.xlu0 %v4483, 19
  %v4519 = vpop.permute.xlu0 %4518
  %v4520 = vsel %vm48, %v4497, %v4499
  %v4521 = vsel %vm48, %v4499, %v4501
  %v4522 = vsel %vm48, %v4501, %v4503
  %v4523 = vsel %vm48, %v4505, %v4507
  %v4524 = vsel %vm48, %v4507, %v4509
  %v4525 = vsel %vm48, %v4509, %v4511
  %v4526 = vsel %vm48, %v4513, %v4515
  %v4527 = vsel %vm48, %v4515, %v4517
  %v4528 = vsel %vm48, %v4517, %v4519
  %4538 = vst [vmem:[#allocation5 + $0x18] sm:$0xff] %v4520
  %4539 = vst [vmem:[#allocation5 + $0x20] sm:$0xff] %v4521
  %4540 = vst [vmem:[#allocation5 + $0x28] sm:$0xff] %v4522
  %4541 = vst [vmem:[#allocation5 + $0x48] sm:$0xff] %v4523
  %4542 = vst [vmem:[#allocation5 + $0x50] sm:$0xff] %v4524
  %4543 = vst [vmem:[#allocation5 + $0x58] sm:$0xff] %v4525
  %4544 = vst [vmem:[#allocation5 + $0x78] sm:$0xff] %v4526
  %4545 = vst [vmem:[#allocation5 + $0x80] sm:$0xff] %v4527
  %4546 = vst [vmem:[#allocation5 + $0x88] sm:$0xff] %v4528
  %v4547 = vld [vmem:[#allocation4] sm:$0xff]
  %v4548 = vld [vmem:[#allocation4 + $0x8] sm:$0xff]
  %v4549 = vld [vmem:[#allocation4 + $0x10] sm:$0xff]
  %v4550 = vld [vmem:[#allocation4 + $0x18] sm:$0xff]
  %v4551 = vld [vmem:[#allocation4 + $0x50] sm:$0xff]
  %v4552 = vld [vmem:[#allocation4 + $0x58] sm:$0xff]
  %v4553 = vld [vmem:[#allocation4 + $0x60] sm:$0xff]
  %v4554 = vld [vmem:[#allocation4 + $0x68] sm:$0xff]
  %v4555 = vld [vmem:[#allocation4 + $0xa0] sm:$0xff]
  %v4556 = vld [vmem:[#allocation4 + $0xa8] sm:$0xff]
  %v4557 = vld [vmem:[#allocation4 + $0xb0] sm:$0xff]
  %v4558 = vld [vmem:[#allocation4 + $0xb8] sm:$0xff]
  %4571 = vrot.lane.b32.xlu0 %v4547, 18
  %v4572 = vpop.permute.xlu0 %4571
  %4573 = vrot.lane.b32.xlu0 %v4548, 18
  %v4574 = vpop.permute.xlu0 %4573
  %4575 = vrot.lane.b32.xlu0 %v4549, 18
  %v4576 = vpop.permute.xlu0 %4575
  %4577 = vrot.lane.b32.xlu0 %v4550, 18
  %v4578 = vpop.permute.xlu0 %4577
  %4579 = vrot.lane.b32.xlu0 %v4551, 18
  %v4580 = vpop.permute.xlu0 %4579
  %4581 = vrot.lane.b32.xlu0 %v4552, 18
  %v4582 = vpop.permute.xlu0 %4581
  %4583 = vrot.lane.b32.xlu0 %v4553, 18
  %v4584 = vpop.permute.xlu0 %4583
  %4585 = vrot.lane.b32.xlu0 %v4554, 18
  %v4586 = vpop.permute.xlu0 %4585
  %4587 = vrot.lane.b32.xlu0 %v4555, 18
  %v4588 = vpop.permute.xlu0 %4587
  %4589 = vrot.lane.b32.xlu0 %v4556, 18
  %v4590 = vpop.permute.xlu0 %4589
  %4591 = vrot.lane.b32.xlu0 %v4557, 18
  %v4592 = vpop.permute.xlu0 %4591
  %4593 = vrot.lane.b32.xlu0 %v4558, 18
  %v4594 = vpop.permute.xlu0 %4593
  %v4595 = vsel %vm99, %v4572, %v4574
  %v4596 = vsel %vm99, %v4574, %v4576
  %v4597 = vsel %vm99, %v4576, %v4578
  %v4598 = vsel %vm99, %v4580, %v4582
  %v4599 = vsel %vm99, %v4582, %v4584
  %v4600 = vsel %vm99, %v4584, %v4586
  %v4601 = vsel %vm99, %v4588, %v4590
  %v4602 = vsel %vm99, %v4590, %v4592
  %v4603 = vsel %vm99, %v4592, %v4594
  %4613 = vst [vmem:[#allocation5 + $0x90] sm:$0xff] %v4595
  %4614 = vst [vmem:[#allocation5 + $0x98] sm:$0xff] %v4596
  %4615 = vst [vmem:[#allocation5 + $0xa0] sm:$0xff] %v4597
  %4616 = vst [vmem:[#allocation5 + $0xc0] sm:$0xff] %v4598
  %4617 = vst [vmem:[#allocation5 + $0xc8] sm:$0xff] %v4599
  %4618 = vst [vmem:[#allocation5 + $0xd0] sm:$0xff] %v4600
  %4619 = vst [vmem:[#allocation5 + $0xf0] sm:$0xff] %v4601
  %4620 = vst [vmem:[#allocation5 + $0xf8] sm:$0xff] %v4602
  %4621 = vst [vmem:[#allocation5 + $0x100] sm:$0xff] %v4603
  %v4622 = vld [vmem:[#allocation4 + $0x28] sm:$0xff]
  %v4623 = vld [vmem:[#allocation4 + $0x30] sm:$0xff]
  %v4624 = vld [vmem:[#allocation4 + $0x38] sm:$0xff]
  %v4625 = vld [vmem:[#allocation4 + $0x40] sm:$0xff]
  %v4626 = vld [vmem:[#allocation4 + $0x78] sm:$0xff]
  %v4627 = vld [vmem:[#allocation4 + $0x80] sm:$0xff]
  %v4628 = vld [vmem:[#allocation4 + $0x88] sm:$0xff]
  %v4629 = vld [vmem:[#allocation4 + $0x90] sm:$0xff]
  %v4630 = vld [vmem:[#allocation4 + $0xc8] sm:$0xff]
  %v4631 = vld [vmem:[#allocation4 + $0xd0] sm:$0xff]
  %v4632 = vld [vmem:[#allocation4 + $0xd8] sm:$0xff]
  %v4633 = vld [vmem:[#allocation4 + $0xe0] sm:$0xff]
  %4646 = vrot.lane.b32.xlu0 %v4622, 18
  %v4647 = vpop.permute.xlu0 %4646
  %4648 = vrot.lane.b32.xlu0 %v4623, 18
  %v4649 = vpop.permute.xlu0 %4648
  %4650 = vrot.lane.b32.xlu0 %v4624, 18
  %v4651 = vpop.permute.xlu0 %4650
  %4652 = vrot.lane.b32.xlu0 %v4625, 18
  %v4653 = vpop.permute.xlu0 %4652
  %4654 = vrot.lane.b32.xlu0 %v4626, 18
  %v4655 = vpop.permute.xlu0 %4654
  %4656 = vrot.lane.b32.xlu0 %v4627, 18
  %v4657 = vpop.permute.xlu0 %4656
  %4658 = vrot.lane.b32.xlu0 %v4628, 18
  %v4659 = vpop.permute.xlu0 %4658
  %4660 = vrot.lane.b32.xlu0 %v4629, 18
  %v4661 = vpop.permute.xlu0 %4660
  %4662 = vrot.lane.b32.xlu0 %v4630, 18
  %v4663 = vpop.permute.xlu0 %4662
  %4664 = vrot.lane.b32.xlu0 %v4631, 18
  %v4665 = vpop.permute.xlu0 %4664
  %4666 = vrot.lane.b32.xlu0 %v4632, 18
  %v4667 = vpop.permute.xlu0 %4666
  %4668 = vrot.lane.b32.xlu0 %v4633, 18
  %v4669 = vpop.permute.xlu0 %4668
  %v4670 = vsel %vm99, %v4647, %v4649
  %v4671 = vsel %vm99, %v4649, %v4651
  %v4672 = vsel %vm99, %v4651, %v4653
  %v4673 = vsel %vm99, %v4655, %v4657
  %v4674 = vsel %vm99, %v4657, %v4659
  %v4675 = vsel %vm99, %v4659, %v4661
  %v4676 = vsel %vm99, %v4663, %v4665
  %v4677 = vsel %vm99, %v4665, %v4667
  %v4678 = vsel %vm99, %v4667, %v4669
  %4688 = vst [vmem:[#allocation5 + $0xa8] sm:$0xff] %v4670
  %4689 = vst [vmem:[#allocation5 + $0xb0] sm:$0xff] %v4671
  %4690 = vst [vmem:[#allocation5 + $0xb8] sm:$0xff] %v4672
  %4691 = vst [vmem:[#allocation5 + $0xd8] sm:$0xff] %v4673
  %4692 = vst [vmem:[#allocation5 + $0xe0] sm:$0xff] %v4674
  %4693 = vst [vmem:[#allocation5 + $0xe8] sm:$0xff] %v4675
  %4694 = vst [vmem:[#allocation5 + $0x108] sm:$0xff] %v4676
  %4695 = vst [vmem:[#allocation5 + $0x110] sm:$0xff] %v4677
  %4696 = vst [vmem:[#allocation5 + $0x118] sm:$0xff] %v4678
  %v4697 = vld [vmem:[#allocation4] sm:$0xff]
  %v4698 = vld [vmem:[#allocation4 + $0x8] sm:$0xff]
  %v4699 = vld [vmem:[#allocation4 + $0x10] sm:$0xff]
  %v4700 = vld [vmem:[#allocation4 + $0x18] sm:$0xff]
  %v4701 = vld [vmem:[#allocation4 + $0x50] sm:$0xff]
  %v4702 = vld [vmem:[#allocation4 + $0x58] sm:$0xff]
  %v4703 = vld [vmem:[#allocation4 + $0x60] sm:$0xff]
  %v4704 = vld [vmem:[#allocation4 + $0x68] sm:$0xff]
  %v4705 = vld [vmem:[#allocation4 + $0xa0] sm:$0xff]
  %v4706 = vld [vmem:[#allocation4 + $0xa8] sm:$0xff]
  %v4707 = vld [vmem:[#allocation4 + $0xb0] sm:$0xff]
  %v4708 = vld [vmem:[#allocation4 + $0xb8] sm:$0xff]
  %4721 = vrot.lane.b32.xlu0 %v4697, 17
  %v4722 = vpop.permute.xlu0 %4721
  %4723 = vrot.lane.b32.xlu0 %v4698, 17
  %v4724 = vpop.permute.xlu0 %4723
  %4725 = vrot.lane.b32.xlu0 %v4699, 17
  %v4726 = vpop.permute.xlu0 %4725
  %4727 = vrot.lane.b32.xlu0 %v4700, 17
  %v4728 = vpop.permute.xlu0 %4727
  %4729 = vrot.lane.b32.xlu0 %v4701, 17
  %v4730 = vpop.permute.xlu0 %4729
  %4731 = vrot.lane.b32.xlu0 %v4702, 17
  %v4732 = vpop.permute.xlu0 %4731
  %4733 = vrot.lane.b32.xlu0 %v4703, 17
  %v4734 = vpop.permute.xlu0 %4733
  %4735 = vrot.lane.b32.xlu0 %v4704, 17
  %v4736 = vpop.permute.xlu0 %4735
  %4737 = vrot.lane.b32.xlu0 %v4705, 17
  %v4738 = vpop.permute.xlu0 %4737
  %4739 = vrot.lane.b32.xlu0 %v4706, 17
  %v4740 = vpop.permute.xlu0 %4739
  %4741 = vrot.lane.b32.xlu0 %v4707, 17
  %v4742 = vpop.permute.xlu0 %4741
  %4743 = vrot.lane.b32.xlu0 %v4708, 17
  %v4744 = vpop.permute.xlu0 %4743
  %v4745 = vsel %vm150, %v4722, %v4724
  %v4746 = vsel %vm150, %v4724, %v4726
  %v4747 = vsel %vm150, %v4726, %v4728
  %v4748 = vsel %vm150, %v4730, %v4732
  %v4749 = vsel %vm150, %v4732, %v4734
  %v4750 = vsel %vm150, %v4734, %v4736
  %v4751 = vsel %vm150, %v4738, %v4740
  %v4752 = vsel %vm150, %v4740, %v4742
  %v4753 = vsel %vm150, %v4742, %v4744
  %4763 = vst [vmem:[#allocation5 + $0x120] sm:$0xff] %v4745
  %4764 = vst [vmem:[#allocation5 + $0x128] sm:$0xff] %v4746
  %4765 = vst [vmem:[#allocation5 + $0x130] sm:$0xff] %v4747
  %4766 = vst [vmem:[#allocation5 + $0x150] sm:$0xff] %v4748
  %4767 = vst [vmem:[#allocation5 + $0x158] sm:$0xff] %v4749
  %4768 = vst [vmem:[#allocation5 + $0x160] sm:$0xff] %v4750
  %4769 = vst [vmem:[#allocation5 + $0x180] sm:$0xff] %v4751
  %4770 = vst [vmem:[#allocation5 + $0x188] sm:$0xff] %v4752
  %4771 = vst [vmem:[#allocation5 + $0x190] sm:$0xff] %v4753
  %v4772 = vld [vmem:[#allocation4 + $0x28] sm:$0xff]
  %v4773 = vld [vmem:[#allocation4 + $0x30] sm:$0xff]
  %v4774 = vld [vmem:[#allocation4 + $0x38] sm:$0xff]
  %v4775 = vld [vmem:[#allocation4 + $0x40] sm:$0xff]
  %v4776 = vld [vmem:[#allocation4 + $0x78] sm:$0xff]
  %v4777 = vld [vmem:[#allocation4 + $0x80] sm:$0xff]
  %v4778 = vld [vmem:[#allocation4 + $0x88] sm:$0xff]
  %v4779 = vld [vmem:[#allocation4 + $0x90] sm:$0xff]
  %v4780 = vld [vmem:[#allocation4 + $0xc8] sm:$0xff]
  %v4781 = vld [vmem:[#allocation4 + $0xd0] sm:$0xff]
  %v4782 = vld [vmem:[#allocation4 + $0xd8] sm:$0xff]
  %v4783 = vld [vmem:[#allocation4 + $0xe0] sm:$0xff]
  %4796 = vrot.lane.b32.xlu0 %v4772, 17
  %v4797 = vpop.permute.xlu0 %4796
  %4798 = vrot.lane.b32.xlu0 %v4773, 17
  %v4799 = vpop.permute.xlu0 %4798
  %4800 = vrot.lane.b32.xlu0 %v4774, 17
  %v4801 = vpop.permute.xlu0 %4800
  %4802 = vrot.lane.b32.xlu0 %v4775, 17
  %v4803 = vpop.permute.xlu0 %4802
  %4804 = vrot.lane.b32.xlu0 %v4776, 17
  %v4805 = vpop.permute.xlu0 %4804
  %4806 = vrot.lane.b32.xlu0 %v4777, 17
  %v4807 = vpop.permute.xlu0 %4806
  %4808 = vrot.lane.b32.xlu0 %v4778, 17
  %v4809 = vpop.permute.xlu0 %4808
  %4810 = vrot.lane.b32.xlu0 %v4779, 17
  %v4811 = vpop.permute.xlu0 %4810
  %4812 = vrot.lane.b32.xlu0 %v4780, 17
  %v4813 = vpop.permute.xlu0 %4812
  %4814 = vrot.lane.b32.xlu0 %v4781, 17
  %v4815 = vpop.permute.xlu0 %4814
  %4816 = vrot.lane.b32.xlu0 %v4782, 17
  %v4817 = vpop.permute.xlu0 %4816
  %4818 = vrot.lane.b32.xlu0 %v4783, 17
  %v4819 = vpop.permute.xlu0 %4818
  %v4820 = vsel %vm150, %v4797, %v4799
  %v4821 = vsel %vm150, %v4799, %v4801
  %v4822 = vsel %vm150, %v4801, %v4803
  %v4823 = vsel %vm150, %v4805, %v4807
  %v4824 = vsel %vm150, %v4807, %v4809
  %v4825 = vsel %vm150, %v4809, %v4811
  %v4826 = vsel %vm150, %v4813, %v4815
  %v4827 = vsel %vm150, %v4815, %v4817
  %v4828 = vsel %vm150, %v4817, %v4819
  %4838 = vst [vmem:[#allocation5 + $0x138] sm:$0xff] %v4820
  %4839 = vst [vmem:[#allocation5 + $0x140] sm:$0xff] %v4821
  %4840 = vst [vmem:[#allocation5 + $0x148] sm:$0xff] %v4822
  %4841 = vst [vmem:[#allocation5 + $0x168] sm:$0xff] %v4823
  %4842 = vst [vmem:[#allocation5 + $0x170] sm:$0xff] %v4824
  %4843 = vst [vmem:[#allocation5 + $0x178] sm:$0xff] %v4825
  %4844 = vst [vmem:[#allocation5 + $0x198] sm:$0xff] %v4826
  %4845 = vst [vmem:[#allocation5 + $0x1a0] sm:$0xff] %v4827
  %4846 = vst [vmem:[#allocation5 + $0x1a8] sm:$0xff] %v4828
  %v4847 = vld [vmem:[#allocation4] sm:$0xff]
  %v4848 = vld [vmem:[#allocation4 + $0x8] sm:$0xff]
  %v4849 = vld [vmem:[#allocation4 + $0x10] sm:$0xff]
  %v4850 = vld [vmem:[#allocation4 + $0x18] sm:$0xff]
  %v4851 = vld [vmem:[#allocation4 + $0x50] sm:$0xff]
  %v4852 = vld [vmem:[#allocation4 + $0x58] sm:$0xff]
  %v4853 = vld [vmem:[#allocation4 + $0x60] sm:$0xff]
  %v4854 = vld [vmem:[#allocation4 + $0x68] sm:$0xff]
  %v4855 = vld [vmem:[#allocation4 + $0xa0] sm:$0xff]
  %v4856 = vld [vmem:[#allocation4 + $0xa8] sm:$0xff]
  %v4857 = vld [vmem:[#allocation4 + $0xb0] sm:$0xff]
  %v4858 = vld [vmem:[#allocation4 + $0xb8] sm:$0xff]
  %4871 = vrot.lane.b32.xlu0 %v4847, 1
  %v4872 = vpop.permute.xlu0 %4871
  %4873 = vrot.lane.b32.xlu0 %v4848, 1
  %v4874 = vpop.permute.xlu0 %4873
  %4875 = vrot.lane.b32.xlu0 %v4849, 1
  %v4876 = vpop.permute.xlu0 %4875
  %4877 = vrot.lane.b32.xlu0 %v4850, 1
  %v4878 = vpop.permute.xlu0 %4877
  %4879 = vrot.lane.b32.xlu0 %v4851, 1
  %v4880 = vpop.permute.xlu0 %4879
  %4881 = vrot.lane.b32.xlu0 %v4852, 1
  %v4882 = vpop.permute.xlu0 %4881
  %4883 = vrot.lane.b32.xlu0 %v4853, 1
  %v4884 = vpop.permute.xlu0 %4883
  %4885 = vrot.lane.b32.xlu0 %v4854, 1
  %v4886 = vpop.permute.xlu0 %4885
  %4887 = vrot.lane.b32.xlu0 %v4855, 1
  %v4888 = vpop.permute.xlu0 %4887
  %4889 = vrot.lane.b32.xlu0 %v4856, 1
  %v4890 = vpop.permute.xlu0 %4889
  %4891 = vrot.lane.b32.xlu0 %v4857, 1
  %v4892 = vpop.permute.xlu0 %4891
  %4893 = vrot.lane.b32.xlu0 %v4858, 1
  %v4894 = vpop.permute.xlu0 %4893
  %v4895 = vsel %vm201, %v4872, %v4874
  %v4896 = vsel %vm201, %v4874, %v4876
  %v4897 = vsel %vm201, %v4876, %v4878
  %v4898 = vsel %vm201, %v4880, %v4882
  %v4899 = vsel %vm201, %v4882, %v4884
  %v4900 = vsel %vm201, %v4884, %v4886
  %v4901 = vsel %vm201, %v4888, %v4890
  %v4902 = vsel %vm201, %v4890, %v4892
  %v4903 = vsel %vm201, %v4892, %v4894
  %4913 = vst [vmem:[#allocation5 + $0x1b0] sm:$0xff] %v4895
  %4914 = vst [vmem:[#allocation5 + $0x1b8] sm:$0xff] %v4896
  %4915 = vst [vmem:[#allocation5 + $0x1c0] sm:$0xff] %v4897
  %4916 = vst [vmem:[#allocation5 + $0x1e0] sm:$0xff] %v4898
  %4917 = vst [vmem:[#allocation5 + $0x1e8] sm:$0xff] %v4899
  %4918 = vst [vmem:[#allocation5 + $0x1f0] sm:$0xff] %v4900
  %4919 = vst [vmem:[#allocation5 + $0x210] sm:$0xff] %v4901
  %4920 = vst [vmem:[#allocation5 + $0x218] sm:$0xff] %v4902
  %4921 = vst [vmem:[#allocation5 + $0x220] sm:$0xff] %v4903
  %v4922 = vld [vmem:[#allocation4 + $0x28] sm:$0xff]
  %v4923 = vld [vmem:[#allocation4 + $0x30] sm:$0xff]
  %v4924 = vld [vmem:[#allocation4 + $0x38] sm:$0xff]
  %v4925 = vld [vmem:[#allocation4 + $0x40] sm:$0xff]
  %v4926 = vld [vmem:[#allocation4 + $0x78] sm:$0xff]
  %v4927 = vld [vmem:[#allocation4 + $0x80] sm:$0xff]
  %v4928 = vld [vmem:[#allocation4 + $0x88] sm:$0xff]
  %v4929 = vld [vmem:[#allocation4 + $0x90] sm:$0xff]
  %v4930 = vld [vmem:[#allocation4 + $0xc8] sm:$0xff]
  %v4931 = vld [vmem:[#allocation4 + $0xd0] sm:$0xff]
  %v4932 = vld [vmem:[#allocation4 + $0xd8] sm:$0xff]
  %v4933 = vld [vmem:[#allocation4 + $0xe0] sm:$0xff]
  %4946 = vrot.lane.b32.xlu0 %v4922, 1
  %v4947 = vpop.permute.xlu0 %4946
  %4948 = vrot.lane.b32.xlu0 %v4923, 1
  %v4949 = vpop.permute.xlu0 %4948
  %4950 = vrot.lane.b32.xlu0 %v4924, 1
  %v4951 = vpop.permute.xlu0 %4950
  %4952 = vrot.lane.b32.xlu0 %v4925, 1
  %v4953 = vpop.permute.xlu0 %4952
  %4954 = vrot.lane.b32.xlu0 %v4926, 1
  %v4955 = vpop.permute.xlu0 %4954
  %4956 = vrot.lane.b32.xlu0 %v4927, 1
  %v4957 = vpop.permute.xlu0 %4956
  %4958 = vrot.lane.b32.xlu0 %v4928, 1
  %v4959 = vpop.permute.xlu0 %4958
  %4960 = vrot.lane.b32.xlu0 %v4929, 1
  %v4961 = vpop.permute.xlu0 %4960
  %4962 = vrot.lane.b32.xlu0 %v4930, 1
  %v4963 = vpop.permute.xlu0 %4962
  %4964 = vrot.lane.b32.xlu0 %v4931, 1
  %v4965 = vpop.permute.xlu0 %4964
  %4966 = vrot.lane.b32.xlu0 %v4932, 1
  %v4967 = vpop.permute.xlu0 %4966
  %4968 = vrot.lane.b32.xlu0 %v4933, 1
  %v4969 = vpop.permute.xlu0 %4968
  %v4970 = vsel %vm201, %v4947, %v4949
  %v4971 = vsel %vm201, %v4949, %v4951
  %v4972 = vsel %vm201, %v4951, %v4953
  %v4973 = vsel %vm201, %v4955, %v4957
  %v4974 = vsel %vm201, %v4957, %v4959
  %v4975 = vsel %vm201, %v4959, %v4961
  %v4976 = vsel %vm201, %v4963, %v4965
  %v4977 = vsel %vm201, %v4965, %v4967
  %v4978 = vsel %vm201, %v4967, %v4969
  %4988 = vst [vmem:[#allocation5 + $0x1c8] sm:$0xff] %v4970
  %4989 = vst [vmem:[#allocation5 + $0x1d0] sm:$0xff] %v4971
  %4990 = vst [vmem:[#allocation5 + $0x1d8] sm:$0xff] %v4972
  %4991 = vst [vmem:[#allocation5 + $0x1f8] sm:$0xff] %v4973
  %4992 = vst [vmem:[#allocation5 + $0x200] sm:$0xff] %v4974
  %4993 = vst [vmem:[#allocation5 + $0x208] sm:$0xff] %v4975
  %4994 = vst [vmem:[#allocation5 + $0x228] sm:$0xff] %v4976
  %4995 = vst [vmem:[#allocation5 + $0x230] sm:$0xff] %v4977
  %4996 = vst [vmem:[#allocation5 + $0x238] sm:$0xff] %v4978
  %v4997 = vld [vmem:[#allocation4 + $0x8] sm:$0xff]
  %v4998 = vld [vmem:[#allocation4 + $0x10] sm:$0xff]
  %v4999 = vld [vmem:[#allocation4 + $0x18] sm:$0xff]
  %v5000 = vld [vmem:[#allocation4 + $0x58] sm:$0xff]
  %v5001 = vld [vmem:[#allocation4 + $0x60] sm:$0xff]
  %v5002 = vld [vmem:[#allocation4 + $0x68] sm:$0xff]
  %v5003 = vld [vmem:[#allocation4 + $0xa8] sm:$0xff]
  %v5004 = vld [vmem:[#allocation4 + $0xb0] sm:$0xff]
  %v5005 = vld [vmem:[#allocation4 + $0xb8] sm:$0xff]
  %5006 = vst [vmem:[#allocation5 + $0x240] sm:$0xff] %v4997
  %5007 = vst [vmem:[#allocation5 + $0x248] sm:$0xff] %v4998
  %5008 = vst [vmem:[#allocation5 + $0x250] sm:$0xff] %v4999
  %5009 = vst [vmem:[#allocation5 + $0x270] sm:$0xff] %v5000
  %5010 = vst [vmem:[#allocation5 + $0x278] sm:$0xff] %v5001
  %5011 = vst [vmem:[#allocation5 + $0x280] sm:$0xff] %v5002
  %5012 = vst [vmem:[#allocation5 + $0x2a0] sm:$0xff] %v5003
  %5013 = vst [vmem:[#allocation5 + $0x2a8] sm:$0xff] %v5004
  %5014 = vst [vmem:[#allocation5 + $0x2b0] sm:$0xff] %v5005
  %v5015 = vld [vmem:[#allocation4 + $0x30] sm:$0xff]
  %v5016 = vld [vmem:[#allocation4 + $0x38] sm:$0xff]
  %v5017 = vld [vmem:[#allocation4 + $0x40] sm:$0xff]
  %v5018 = vld [vmem:[#allocation4 + $0x80] sm:$0xff]
  %v5019 = vld [vmem:[#allocation4 + $0x88] sm:$0xff]
  %v5020 = vld [vmem:[#allocation4 + $0x90] sm:$0xff]
  %v5021 = vld [vmem:[#allocation4 + $0xd0] sm:$0xff]
  %v5022 = vld [vmem:[#allocation4 + $0xd8] sm:$0xff]
  %v5023 = vld [vmem:[#allocation4 + $0xe0] sm:$0xff]
  %5024 = vst [vmem:[#allocation5 + $0x258] sm:$0xff] %v5015
  %5025 = vst [vmem:[#allocation5 + $0x260] sm:$0xff] %v5016
  %5026 = vst [vmem:[#allocation5 + $0x268] sm:$0xff] %v5017
  %5027 = vst [vmem:[#allocation5 + $0x288] sm:$0xff] %v5018
  %5028 = vst [vmem:[#allocation5 + $0x290] sm:$0xff] %v5019
  %5029 = vst [vmem:[#allocation5 + $0x298] sm:$0xff] %v5020
  %5030 = vst [vmem:[#allocation5 + $0x2b8] sm:$0xff] %v5021
  %5031 = vst [vmem:[#allocation5 + $0x2c0] sm:$0xff] %v5022
  %5032 = vst [vmem:[#allocation5 + $0x2c8] sm:$0xff] %v5023
  %v5033 = vld [vmem:[#allocation4 + $0x8] sm:$0xff]
  %v5034 = vld [vmem:[#allocation4 + $0x10] sm:$0xff]
  %v5035 = vld [vmem:[#allocation4 + $0x18] sm:$0xff]
  %v5036 = vld [vmem:[#allocation4 + $0x20] sm:$0xff]
  %v5037 = vld [vmem:[#allocation4 + $0x58] sm:$0xff]
  %v5038 = vld [vmem:[#allocation4 + $0x60] sm:$0xff]
  %v5039 = vld [vmem:[#allocation4 + $0x68] sm:$0xff]
  %v5040 = vld [vmem:[#allocation4 + $0x70] sm:$0xff]
  %v5041 = vld [vmem:[#allocation4 + $0xa8] sm:$0xff]
  %v5042 = vld [vmem:[#allocation4 + $0xb0] sm:$0xff]
  %v5043 = vld [vmem:[#allocation4 + $0xb8] sm:$0xff]
  %v5044 = vld [vmem:[#allocation4 + $0xc0] sm:$0xff]
  %5057 = vrot.lane.b32.xlu0 %v5033, 127
  %v5058 = vpop.permute.xlu0 %5057
  %5059 = vrot.lane.b32.xlu0 %v5034, 127
  %v5060 = vpop.permute.xlu0 %5059
  %5061 = vrot.lane.b32.xlu0 %v5035, 127
  %v5062 = vpop.permute.xlu0 %5061
  %5063 = vrot.lane.b32.xlu0 %v5036, 127
  %v5064 = vpop.permute.xlu0 %5063
  %5065 = vrot.lane.b32.xlu0 %v5037, 127
  %v5066 = vpop.permute.xlu0 %5065
  %5067 = vrot.lane.b32.xlu0 %v5038, 127
  %v5068 = vpop.permute.xlu0 %5067
  %5069 = vrot.lane.b32.xlu0 %v5039, 127
  %v5070 = vpop.permute.xlu0 %5069
  %5071 = vrot.lane.b32.xlu0 %v5040, 127
  %v5072 = vpop.permute.xlu0 %5071
  %5073 = vrot.lane.b32.xlu0 %v5041, 127
  %v5074 = vpop.permute.xlu0 %5073
  %5075 = vrot.lane.b32.xlu0 %v5042, 127
  %v5076 = vpop.permute.xlu0 %5075
  %5077 = vrot.lane.b32.xlu0 %v5043, 127
  %v5078 = vpop.permute.xlu0 %5077
  %5079 = vrot.lane.b32.xlu0 %v5044, 127
  %v5080 = vpop.permute.xlu0 %5079
  %v5081 = vsel %vm264, %v5058, %v5060
  %v5082 = vsel %vm264, %v5060, %v5062
  %v5083 = vsel %vm264, %v5062, %v5064
  %v5084 = vsel %vm264, %v5066, %v5068
  %v5085 = vsel %vm264, %v5068, %v5070
  %v5086 = vsel %vm264, %v5070, %v5072
  %v5087 = vsel %vm264, %v5074, %v5076
  %v5088 = vsel %vm264, %v5076, %v5078
  %v5089 = vsel %vm264, %v5078, %v5080
  %5099 = vst [vmem:[#allocation5 + $0x2d0] sm:$0xff] %v5081
  %5100 = vst [vmem:[#allocation5 + $0x2d8] sm:$0xff] %v5082
  %5101 = vst [vmem:[#allocation5 + $0x2e0] sm:$0xff] %v5083
  %5102 = vst [vmem:[#allocation5 + $0x300] sm:$0xff] %v5084
  %5103 = vst [vmem:[#allocation5 + $0x308] sm:$0xff] %v5085
  %5104 = vst [vmem:[#allocation5 + $0x310] sm:$0xff] %v5086
  %5105 = vst [vmem:[#allocation5 + $0x330] sm:$0xff] %v5087
  %5106 = vst [vmem:[#allocation5 + $0x338] sm:$0xff] %v5088
  %5107 = vst [vmem:[#allocation5 + $0x340] sm:$0xff] %v5089
  %v5108 = vld [vmem:[#allocation4 + $0x30] sm:$0xff]
  %v5109 = vld [vmem:[#allocation4 + $0x38] sm:$0xff]
  %v5110 = vld [vmem:[#allocation4 + $0x40] sm:$0xff]
  %v5111 = vld [vmem:[#allocation4 + $0x48] sm:$0xff]
  %v5112 = vld [vmem:[#allocation4 + $0x80] sm:$0xff]
  %v5113 = vld [vmem:[#allocation4 + $0x88] sm:$0xff]
  %v5114 = vld [vmem:[#allocation4 + $0x90] sm:$0xff]
  %v5115 = vld [vmem:[#allocation4 + $0x98] sm:$0xff]
  %v5116 = vld [vmem:[#allocation4 + $0xd0] sm:$0xff]
  %v5117 = vld [vmem:[#allocation4 + $0xd8] sm:$0xff]
  %v5118 = vld [vmem:[#allocation4 + $0xe0] sm:$0xff]
  %v5119 = vld [vmem:[#allocation4 + $0xe8] sm:$0xff]
  %5132 = vrot.lane.b32.xlu0 %v5108, 127
  %v5133 = vpop.permute.xlu0 %5132
  %5134 = vrot.lane.b32.xlu0 %v5109, 127
  %v5135 = vpop.permute.xlu0 %5134
  %5136 = vrot.lane.b32.xlu0 %v5110, 127
  %v5137 = vpop.permute.xlu0 %5136
  %5138 = vrot.lane.b32.xlu0 %v5111, 127
  %v5139 = vpop.permute.xlu0 %5138
  %5140 = vrot.lane.b32.xlu0 %v5112, 127
  %v5141 = vpop.permute.xlu0 %5140
  %5142 = vrot.lane.b32.xlu0 %v5113, 127
  %v5143 = vpop.permute.xlu0 %5142
  %5144 = vrot.lane.b32.xlu0 %v5114, 127
  %v5145 = vpop.permute.xlu0 %5144
  %5146 = vrot.lane.b32.xlu0 %v5115, 127
  %v5147 = vpop.permute.xlu0 %5146
  %5148 = vrot.lane.b32.xlu0 %v5116, 127
  %v5149 = vpop.permute.xlu0 %5148
  %5150 = vrot.lane.b32.xlu0 %v5117, 127
  %v5151 = vpop.permute.xlu0 %5150
  %5152 = vrot.lane.b32.xlu0 %v5118, 127
  %v5153 = vpop.permute.xlu0 %5152
  %5154 = vrot.lane.b32.xlu0 %v5119, 127
  %v5155 = vpop.permute.xlu0 %5154
  %v5156 = vsel %vm264, %v5133, %v5135
  %v5157 = vsel %vm264, %v5135, %v5137
  %v5158 = vsel %vm264, %v5137, %v5139
  %v5159 = vsel %vm264, %v5141, %v5143
  %v5160 = vsel %vm264, %v5143, %v5145
  %v5161 = vsel %vm264, %v5145, %v5147
  %v5162 = vsel %vm264, %v5149, %v5151
  %v5163 = vsel %vm264, %v5151, %v5153
  %v5164 = vsel %vm264, %v5153, %v5155
  %5174 = vst [vmem:[#allocation5 + $0x2e8] sm:$0xff] %v5156
  %5175 = vst [vmem:[#allocation5 + $0x2f0] sm:$0xff] %v5157
  %5176 = vst [vmem:[#allocation5 + $0x2f8] sm:$0xff] %v5158
  %5177 = vst [vmem:[#allocation5 + $0x318] sm:$0xff] %v5159
  %5178 = vst [vmem:[#allocation5 + $0x320] sm:$0xff] %v5160
  %5179 = vst [vmem:[#allocation5 + $0x328] sm:$0xff] %v5161
  %5180 = vst [vmem:[#allocation5 + $0x348] sm:$0xff] %v5162
  %5181 = vst [vmem:[#allocation5 + $0x350] sm:$0xff] %v5163
  %5182 = vst [vmem:[#allocation5 + $0x358] sm:$0xff] %v5164
  %v5183 = vld [vmem:[#allocation4 + $0x8] sm:$0xff]
  %v5184 = vld [vmem:[#allocation4 + $0x10] sm:$0xff]
  %v5185 = vld [vmem:[#allocation4 + $0x18] sm:$0xff]
  %v5186 = vld [vmem:[#allocation4 + $0x20] sm:$0xff]
  %v5187 = vld [vmem:[#allocation4 + $0x58] sm:$0xff]
  %v5188 = vld [vmem:[#allocation4 + $0x60] sm:$0xff]
  %v5189 = vld [vmem:[#allocation4 + $0x68] sm:$0xff]
  %v5190 = vld [vmem:[#allocation4 + $0x70] sm:$0xff]
  %v5191 = vld [vmem:[#allocation4 + $0xa8] sm:$0xff]
  %v5192 = vld [vmem:[#allocation4 + $0xb0] sm:$0xff]
  %v5193 = vld [vmem:[#allocation4 + $0xb8] sm:$0xff]
  %v5194 = vld [vmem:[#allocation4 + $0xc0] sm:$0xff]
  %5207 = vrot.lane.b32.xlu0 %v5183, 111
  %v5208 = vpop.permute.xlu0 %5207
  %5209 = vrot.lane.b32.xlu0 %v5184, 111
  %v5210 = vpop.permute.xlu0 %5209
  %5211 = vrot.lane.b32.xlu0 %v5185, 111
  %v5212 = vpop.permute.xlu0 %5211
  %5213 = vrot.lane.b32.xlu0 %v5186, 111
  %v5214 = vpop.permute.xlu0 %5213
  %5215 = vrot.lane.b32.xlu0 %v5187, 111
  %v5216 = vpop.permute.xlu0 %5215
  %5217 = vrot.lane.b32.xlu0 %v5188, 111
  %v5218 = vpop.permute.xlu0 %5217
  %5219 = vrot.lane.b32.xlu0 %v5189, 111
  %v5220 = vpop.permute.xlu0 %5219
  %5221 = vrot.lane.b32.xlu0 %v5190, 111
  %v5222 = vpop.permute.xlu0 %5221
  %5223 = vrot.lane.b32.xlu0 %v5191, 111
  %v5224 = vpop.permute.xlu0 %5223
  %5225 = vrot.lane.b32.xlu0 %v5192, 111
  %v5226 = vpop.permute.xlu0 %5225
  %5227 = vrot.lane.b32.xlu0 %v5193, 111
  %v5228 = vpop.permute.xlu0 %5227
  %5229 = vrot.lane.b32.xlu0 %v5194, 111
  %v5230 = vpop.permute.xlu0 %5229
  %v5231 = vsel %vm315, %v5208, %v5210
  %v5232 = vsel %vm315, %v5210, %v5212
  %v5233 = vsel %vm315, %v5212, %v5214
  %v5234 = vsel %vm315, %v5216, %v5218
  %v5235 = vsel %vm315, %v5218, %v5220
  %v5236 = vsel %vm315, %v5220, %v5222
  %v5237 = vsel %vm315, %v5224, %v5226
  %v5238 = vsel %vm315, %v5226, %v5228
  %v5239 = vsel %vm315, %v5228, %v5230
  %5249 = vst [vmem:[#allocation5 + $0x360] sm:$0xff] %v5231
  %5250 = vst [vmem:[#allocation5 + $0x368] sm:$0xff] %v5232
  %5251 = vst [vmem:[#allocation5 + $0x370] sm:$0xff] %v5233
  %5252 = vst [vmem:[#allocation5 + $0x390] sm:$0xff] %v5234
  %5253 = vst [vmem:[#allocation5 + $0x398] sm:$0xff] %v5235
  %5254 = vst [vmem:[#allocation5 + $0x3a0] sm:$0xff] %v5236
  %5255 = vst [vmem:[#allocation5 + $0x3c0] sm:$0xff] %v5237
  %5256 = vst [vmem:[#allocation5 + $0x3c8] sm:$0xff] %v5238
  %5257 = vst [vmem:[#allocation5 + $0x3d0] sm:$0xff] %v5239
  %v5258 = vld [vmem:[#allocation4 + $0x30] sm:$0xff]
  %v5259 = vld [vmem:[#allocation4 + $0x38] sm:$0xff]
  %v5260 = vld [vmem:[#allocation4 + $0x40] sm:$0xff]
  %v5261 = vld [vmem:[#allocation4 + $0x48] sm:$0xff]
  %v5262 = vld [vmem:[#allocation4 + $0x80] sm:$0xff]
  %v5263 = vld [vmem:[#allocation4 + $0x88] sm:$0xff]
  %v5264 = vld [vmem:[#allocation4 + $0x90] sm:$0xff]
  %v5265 = vld [vmem:[#allocation4 + $0x98] sm:$0xff]
  %v5266 = vld [vmem:[#allocation4 + $0xd0] sm:$0xff]
  %v5267 = vld [vmem:[#allocation4 + $0xd8] sm:$0xff]
  %v5268 = vld [vmem:[#allocation4 + $0xe0] sm:$0xff]
  %v5269 = vld [vmem:[#allocation4 + $0xe8] sm:$0xff]
  %5282 = vrot.lane.b32.xlu0 %v5258, 111
  %v5283 = vpop.permute.xlu0 %5282
  %5284 = vrot.lane.b32.xlu0 %v5259, 111
  %v5285 = vpop.permute.xlu0 %5284
  %5286 = vrot.lane.b32.xlu0 %v5260, 111
  %v5287 = vpop.permute.xlu0 %5286
  %5288 = vrot.lane.b32.xlu0 %v5261, 111
  %v5289 = vpop.permute.xlu0 %5288
  %5290 = vrot.lane.b32.xlu0 %v5262, 111
  %v5291 = vpop.permute.xlu0 %5290
  %5292 = vrot.lane.b32.xlu0 %v5263, 111
  %v5293 = vpop.permute.xlu0 %5292
  %5294 = vrot.lane.b32.xlu0 %v5264, 111
  %v5295 = vpop.permute.xlu0 %5294
  %5296 = vrot.lane.b32.xlu0 %v5265, 111
  %v5297 = vpop.permute.xlu0 %5296
  %5298 = vrot.lane.b32.xlu0 %v5266, 111
  %v5299 = vpop.permute.xlu0 %5298
  %5300 = vrot.lane.b32.xlu0 %v5267, 111
  %v5301 = vpop.permute.xlu0 %5300
  %5302 = vrot.lane.b32.xlu0 %v5268, 111
  %v5303 = vpop.permute.xlu0 %5302
  %5304 = vrot.lane.b32.xlu0 %v5269, 111
  %v5305 = vpop.permute.xlu0 %5304
  %v5306 = vsel %vm315, %v5283, %v5285
  %v5307 = vsel %vm315, %v5285, %v5287
  %v5308 = vsel %vm315, %v5287, %v5289
  %v5309 = vsel %vm315, %v5291, %v5293
  %v5310 = vsel %vm315, %v5293, %v5295
  %v5311 = vsel %vm315, %v5295, %v5297
  %v5312 = vsel %vm315, %v5299, %v5301
  %v5313 = vsel %vm315, %v5301, %v5303
  %v5314 = vsel %vm315, %v5303, %v5305
  %5324 = vst [vmem:[#allocation5 + $0x378] sm:$0xff] %v5306
  %5325 = vst [vmem:[#allocation5 + $0x380] sm:$0xff] %v5307
  %5326 = vst [vmem:[#allocation5 + $0x388] sm:$0xff] %v5308
  %5327 = vst [vmem:[#allocation5 + $0x3a8] sm:$0xff] %v5309
  %5328 = vst [vmem:[#allocation5 + $0x3b0] sm:$0xff] %v5310
  %5329 = vst [vmem:[#allocation5 + $0x3b8] sm:$0xff] %v5311
  %5330 = vst [vmem:[#allocation5 + $0x3d8] sm:$0xff] %v5312
  %5331 = vst [vmem:[#allocation5 + $0x3e0] sm:$0xff] %v5313
  %5332 = vst [vmem:[#allocation5 + $0x3e8] sm:$0xff] %v5314
  %v5333 = vld [vmem:[#allocation4 + $0x8] sm:$0xff]
  %v5334 = vld [vmem:[#allocation4 + $0x10] sm:$0xff]
  %v5335 = vld [vmem:[#allocation4 + $0x18] sm:$0xff]
  %v5336 = vld [vmem:[#allocation4 + $0x20] sm:$0xff]
  %v5337 = vld [vmem:[#allocation4 + $0x58] sm:$0xff]
  %v5338 = vld [vmem:[#allocation4 + $0x60] sm:$0xff]
  %v5339 = vld [vmem:[#allocation4 + $0x68] sm:$0xff]
  %v5340 = vld [vmem:[#allocation4 + $0x70] sm:$0xff]
  %v5341 = vld [vmem:[#allocation4 + $0xa8] sm:$0xff]
  %v5342 = vld [vmem:[#allocation4 + $0xb0] sm:$0xff]
  %v5343 = vld [vmem:[#allocation4 + $0xb8] sm:$0xff]
  %v5344 = vld [vmem:[#allocation4 + $0xc0] sm:$0xff]
  %5357 = vrot.lane.b32.xlu0 %v5333, 110
  %v5358 = vpop.permute.xlu0 %5357
  %5359 = vrot.lane.b32.xlu0 %v5334, 110
  %v5360 = vpop.permute.xlu0 %5359
  %5361 = vrot.lane.b32.xlu0 %v5335, 110
  %v5362 = vpop.permute.xlu0 %5361
  %5363 = vrot.lane.b32.xlu0 %v5336, 110
  %v5364 = vpop.permute.xlu0 %5363
  %5365 = vrot.lane.b32.xlu0 %v5337, 110
  %v5366 = vpop.permute.xlu0 %5365
  %5367 = vrot.lane.b32.xlu0 %v5338, 110
  %v5368 = vpop.permute.xlu0 %5367
  %5369 = vrot.lane.b32.xlu0 %v5339, 110
  %v5370 = vpop.permute.xlu0 %5369
  %5371 = vrot.lane.b32.xlu0 %v5340, 110
  %v5372 = vpop.permute.xlu0 %5371
  %5373 = vrot.lane.b32.xlu0 %v5341, 110
  %v5374 = vpop.permute.xlu0 %5373
  %5375 = vrot.lane.b32.xlu0 %v5342, 110
  %v5376 = vpop.permute.xlu0 %5375
  %5377 = vrot.lane.b32.xlu0 %v5343, 110
  %v5378 = vpop.permute.xlu0 %5377
  %5379 = vrot.lane.b32.xlu0 %v5344, 110
  %v5380 = vpop.permute.xlu0 %5379
  %v5381 = vsel %vm366, %v5358, %v5360
  %v5382 = vsel %vm366, %v5360, %v5362
  %v5383 = vsel %vm366, %v5362, %v5364
  %v5384 = vsel %vm366, %v5366, %v5368
  %v5385 = vsel %vm366, %v5368, %v5370
  %v5386 = vsel %vm366, %v5370, %v5372
  %v5387 = vsel %vm366, %v5374, %v5376
  %v5388 = vsel %vm366, %v5376, %v5378
  %v5389 = vsel %vm366, %v5378, %v5380
  %5399 = vst [vmem:[#allocation5 + $0x3f0] sm:$0xff] %v5381
  %5400 = vst [vmem:[#allocation5 + $0x3f8] sm:$0xff] %v5382
  %5401 = vst [vmem:[#allocation5 + $0x400] sm:$0xff] %v5383
  %5402 = vst [vmem:[#allocation5 + $0x420] sm:$0xff] %v5384
  %5403 = vst [vmem:[#allocation5 + $0x428] sm:$0xff] %v5385
  %5404 = vst [vmem:[#allocation5 + $0x430] sm:$0xff] %v5386
  %5405 = vst [vmem:[#allocation5 + $0x450] sm:$0xff] %v5387
  %5406 = vst [vmem:[#allocation5 + $0x458] sm:$0xff] %v5388
  %5407 = vst [vmem:[#allocation5 + $0x460] sm:$0xff] %v5389
  %v5408 = vld [vmem:[#allocation4 + $0x30] sm:$0xff]
  %v5409 = vld [vmem:[#allocation4 + $0x38] sm:$0xff]
  %v5410 = vld [vmem:[#allocation4 + $0x40] sm:$0xff]
  %v5411 = vld [vmem:[#allocation4 + $0x48] sm:$0xff]
  %v5412 = vld [vmem:[#allocation4 + $0x80] sm:$0xff]
  %v5413 = vld [vmem:[#allocation4 + $0x88] sm:$0xff]
  %v5414 = vld [vmem:[#allocation4 + $0x90] sm:$0xff]
  %v5415 = vld [vmem:[#allocation4 + $0x98] sm:$0xff]
  %v5416 = vld [vmem:[#allocation4 + $0xd0] sm:$0xff]
  %v5417 = vld [vmem:[#allocation4 + $0xd8] sm:$0xff]
  %v5418 = vld [vmem:[#allocation4 + $0xe0] sm:$0xff]
  %v5419 = vld [vmem:[#allocation4 + $0xe8] sm:$0xff]
  %5432 = vrot.lane.b32.xlu0 %v5408, 110
  %v5433 = vpop.permute.xlu0 %5432
  %5434 = vrot.lane.b32.xlu0 %v5409, 110
  %v5435 = vpop.permute.xlu0 %5434
  %5436 = vrot.lane.b32.xlu0 %v5410, 110
  %v5437 = vpop.permute.xlu0 %5436
  %5438 = vrot.lane.b32.xlu0 %v5411, 110
  %v5439 = vpop.permute.xlu0 %5438
  %5440 = vrot.lane.b32.xlu0 %v5412, 110
  %v5441 = vpop.permute.xlu0 %5440
  %5442 = vrot.lane.b32.xlu0 %v5413, 110
  %v5443 = vpop.permute.xlu0 %5442
  %5444 = vrot.lane.b32.xlu0 %v5414, 110
  %v5445 = vpop.permute.xlu0 %5444
  %5446 = vrot.lane.b32.xlu0 %v5415, 110
  %v5447 = vpop.permute.xlu0 %5446
  %5448 = vrot.lane.b32.xlu0 %v5416, 110
  %v5449 = vpop.permute.xlu0 %5448
  %5450 = vrot.lane.b32.xlu0 %v5417, 110
  %v5451 = vpop.permute.xlu0 %5450
  %5452 = vrot.lane.b32.xlu0 %v5418, 110
  %v5453 = vpop.permute.xlu0 %5452
  %5454 = vrot.lane.b32.xlu0 %v5419, 110
  %v5455 = vpop.permute.xlu0 %5454
  %v5456 = vsel %vm366, %v5433, %v5435
  %v5457 = vsel %vm366, %v5435, %v5437
  %v5458 = vsel %vm366, %v5437, %v5439
  %v5459 = vsel %vm366, %v5441, %v5443
  %v5460 = vsel %vm366, %v5443, %v5445
  %v5461 = vsel %vm366, %v5445, %v5447
  %v5462 = vsel %vm366, %v5449, %v5451
  %v5463 = vsel %vm366, %v5451, %v5453
  %v5464 = vsel %vm366, %v5453, %v5455
  %5474 = vst [vmem:[#allocation5 + $0x408] sm:$0xff] %v5456
  %5475 = vst [vmem:[#allocation5 + $0x410] sm:$0xff] %v5457
  %5476 = vst [vmem:[#allocation5 + $0x418] sm:$0xff] %v5458
  %5477 = vst [vmem:[#allocation5 + $0x438] sm:$0xff] %v5459
  %5478 = vst [vmem:[#allocation5 + $0x440] sm:$0xff] %v5460
  %5479 = vst [vmem:[#allocation5 + $0x448] sm:$0xff] %v5461
  %5480 = vst [vmem:[#allocation5 + $0x468] sm:$0xff] %v5462
  %5481 = vst [vmem:[#allocation5 + $0x470] sm:$0xff] %v5463
  %5482 = vst [vmem:[#allocation5 + $0x478] sm:$0xff] %v5464
  %v5483 = vld [vmem:[#allocation4 + $0x8] sm:$0xff]
  %v5484 = vld [vmem:[#allocation4 + $0x10] sm:$0xff]
  %v5485 = vld [vmem:[#allocation4 + $0x18] sm:$0xff]
  %v5486 = vld [vmem:[#allocation4 + $0x20] sm:$0xff]
  %v5487 = vld [vmem:[#allocation4 + $0x58] sm:$0xff]
  %v5488 = vld [vmem:[#allocation4 + $0x60] sm:$0xff]
  %v5489 = vld [vmem:[#allocation4 + $0x68] sm:$0xff]
  %v5490 = vld [vmem:[#allocation4 + $0x70] sm:$0xff]
  %v5491 = vld [vmem:[#allocation4 + $0xa8] sm:$0xff]
  %v5492 = vld [vmem:[#allocation4 + $0xb0] sm:$0xff]
  %v5493 = vld [vmem:[#allocation4 + $0xb8] sm:$0xff]
  %v5494 = vld [vmem:[#allocation4 + $0xc0] sm:$0xff]
  %5507 = vrot.lane.b32.xlu0 %v5483, 109
  %v5508 = vpop.permute.xlu0 %5507
  %5509 = vrot.lane.b32.xlu0 %v5484, 109
  %v5510 = vpop.permute.xlu0 %5509
  %5511 = vrot.lane.b32.xlu0 %v5485, 109
  %v5512 = vpop.permute.xlu0 %5511
  %5513 = vrot.lane.b32.xlu0 %v5486, 109
  %v5514 = vpop.permute.xlu0 %5513
  %5515 = vrot.lane.b32.xlu0 %v5487, 109
  %v5516 = vpop.permute.xlu0 %5515
  %5517 = vrot.lane.b32.xlu0 %v5488, 109
  %v5518 = vpop.permute.xlu0 %5517
  %5519 = vrot.lane.b32.xlu0 %v5489, 109
  %v5520 = vpop.permute.xlu0 %5519
  %5521 = vrot.lane.b32.xlu0 %v5490, 109
  %v5522 = vpop.permute.xlu0 %5521
  %5523 = vrot.lane.b32.xlu0 %v5491, 109
  %v5524 = vpop.permute.xlu0 %5523
  %5525 = vrot.lane.b32.xlu0 %v5492, 109
  %v5526 = vpop.permute.xlu0 %5525
  %5527 = vrot.lane.b32.xlu0 %v5493, 109
  %v5528 = vpop.permute.xlu0 %5527
  %5529 = vrot.lane.b32.xlu0 %v5494, 109
  %v5530 = vpop.permute.xlu0 %5529
  %v5531 = vsel %vm417, %v5508, %v5510
  %v5532 = vsel %vm417, %v5510, %v5512
  %v5533 = vsel %vm417, %v5512, %v5514
  %v5534 = vsel %vm417, %v5516, %v5518
  %v5535 = vsel %vm417, %v5518, %v5520
  %v5536 = vsel %vm417, %v5520, %v5522
  %v5537 = vsel %vm417, %v5524, %v5526
  %v5538 = vsel %vm417, %v5526, %v5528
  %v5539 = vsel %vm417, %v5528, %v5530
  %5549 = vst [vmem:[#allocation5 + $0x480] sm:$0xff] %v5531
  %5550 = vst [vmem:[#allocation5 + $0x488] sm:$0xff] %v5532
  %5551 = vst [vmem:[#allocation5 + $0x490] sm:$0xff] %v5533
  %5552 = vst [vmem:[#allocation5 + $0x4b0] sm:$0xff] %v5534
  %5553 = vst [vmem:[#allocation5 + $0x4b8] sm:$0xff] %v5535
  %5554 = vst [vmem:[#allocation5 + $0x4c0] sm:$0xff] %v5536
  %5555 = vst [vmem:[#allocation5 + $0x4e0] sm:$0xff] %v5537
  %5556 = vst [vmem:[#allocation5 + $0x4e8] sm:$0xff] %v5538
  %5557 = vst [vmem:[#allocation5 + $0x4f0] sm:$0xff] %v5539
  %v5558 = vld [vmem:[#allocation4 + $0x30] sm:$0xff]
  %v5559 = vld [vmem:[#allocation4 + $0x38] sm:$0xff]
  %v5560 = vld [vmem:[#allocation4 + $0x40] sm:$0xff]
  %v5561 = vld [vmem:[#allocation4 + $0x48] sm:$0xff]
  %v5562 = vld [vmem:[#allocation4 + $0x80] sm:$0xff]
  %v5563 = vld [vmem:[#allocation4 + $0x88] sm:$0xff]
  %v5564 = vld [vmem:[#allocation4 + $0x90] sm:$0xff]
  %v5565 = vld [vmem:[#allocation4 + $0x98] sm:$0xff]
  %v5566 = vld [vmem:[#allocation4 + $0xd0] sm:$0xff]
  %v5567 = vld [vmem:[#allocation4 + $0xd8] sm:$0xff]
  %v5568 = vld [vmem:[#allocation4 + $0xe0] sm:$0xff]
  %v5569 = vld [vmem:[#allocation4 + $0xe8] sm:$0xff]
  %5582 = vrot.lane.b32.xlu0 %v5558, 109
  %v5583 = vpop.permute.xlu0 %5582
  %5584 = vrot.lane.b32.xlu0 %v5559, 109
  %v5585 = vpop.permute.xlu0 %5584
  %5586 = vrot.lane.b32.xlu0 %v5560, 109
  %v5587 = vpop.permute.xlu0 %5586
  %5588 = vrot.lane.b32.xlu0 %v5561, 109
  %v5589 = vpop.permute.xlu0 %5588
  %5590 = vrot.lane.b32.xlu0 %v5562, 109
  %v5591 = vpop.permute.xlu0 %5590
  %5592 = vrot.lane.b32.xlu0 %v5563, 109
  %v5593 = vpop.permute.xlu0 %5592
  %5594 = vrot.lane.b32.xlu0 %v5564, 109
  %v5595 = vpop.permute.xlu0 %5594
  %5596 = vrot.lane.b32.xlu0 %v5565, 109
  %v5597 = vpop.permute.xlu0 %5596
  %5598 = vrot.lane.b32.xlu0 %v5566, 109
  %v5599 = vpop.permute.xlu0 %5598
  %5600 = vrot.lane.b32.xlu0 %v5567, 109
  %v5601 = vpop.permute.xlu0 %5600
  %5602 = vrot.lane.b32.xlu0 %v5568, 109
  %v5603 = vpop.permute.xlu0 %5602
  %5604 = vrot.lane.b32.xlu0 %v5569, 109
  %v5605 = vpop.permute.xlu0 %5604
  %v5606 = vsel %vm417, %v5583, %v5585
  %v5607 = vsel %vm417, %v5585, %v5587
  %v5608 = vsel %vm417, %v5587, %v5589
  %v5609 = vsel %vm417, %v5591, %v5593
  %v5610 = vsel %vm417, %v5593, %v5595
  %v5611 = vsel %vm417, %v5595, %v5597
  %v5612 = vsel %vm417, %v5599, %v5601
  %v5613 = vsel %vm417, %v5601, %v5603
  %v5614 = vsel %vm417, %v5603, %v5605
  %5624 = vst [vmem:[#allocation5 + $0x498] sm:$0xff] %v5606
  %5625 = vst [vmem:[#allocation5 + $0x4a0] sm:$0xff] %v5607
  %5626 = vst [vmem:[#allocation5 + $0x4a8] sm:$0xff] %v5608
  %5627 = vst [vmem:[#allocation5 + $0x4c8] sm:$0xff] %v5609
  %5628 = vst [vmem:[#allocation5 + $0x4d0] sm:$0xff] %v5610
  %5629 = vst [vmem:[#allocation5 + $0x4d8] sm:$0xff] %v5611
  %5630 = vst [vmem:[#allocation5 + $0x4f8] sm:$0xff] %v5612
  %5631 = vst [vmem:[#allocation5 + $0x500] sm:$0xff] %v5613
  %5632 = vst [vmem:[#allocation5 + $0x508] sm:$0xff] %v5614
  %v5633 = vld [vmem:[%s2 + $0x120] sm:$0xff]
  %v5634 = vld [vmem:[%s2 + $0x128] sm:$0xff]
  %v5635 = vld [vmem:[#allocation5] sm:$0xff]
  %v5636 = vld [vmem:[#allocation5 + $0x8] sm:$0xff]
  %v5637 = vld [vmem:[#allocation5 + $0x10] sm:$0xff]
  %v5638 = vld [vmem:[#allocation5 + $0x18] sm:$0xff]
  %v5639 = vld [vmem:[#allocation5 + $0x20] sm:$0xff]
  %v5640 = vld [vmem:[#allocation5 + $0x28] sm:$0xff]
  %v5641 = vld [vmem:[#allocation5 + $0x30] sm:$0xff]
  %v5642 = vld [vmem:[#allocation5 + $0x38] sm:$0xff]
  %v5643 = vld [vmem:[#allocation5 + $0x40] sm:$0xff]
  %v5644 = vld [vmem:[#allocation5 + $0x48] sm:$0xff]
  %v5645 = vld [vmem:[#allocation5 + $0x50] sm:$0xff]
  %v5646 = vld [vmem:[#allocation5 + $0x58] sm:$0xff]
  %v5647 = vld [vmem:[#allocation5 + $0x60] sm:$0xff]
  %v5648 = vld [vmem:[#allocation5 + $0x68] sm:$0xff]
  %v5649 = vld [vmem:[#allocation5 + $0x70] sm:$0xff]
  %v5650 = vld [vmem:[#allocation5 + $0x78] sm:$0xff]
  %v5651 = vld [vmem:[#allocation5 + $0x80] sm:$0xff]
  %v5652 = vld [vmem:[#allocation5 + $0x88] sm:$0xff]
  %v5653 = vld [vmem:[#allocation5 + $0x90] sm:$0xff]
  %v5654 = vld [vmem:[#allocation5 + $0x98] sm:$0xff]
  %v5655 = vld [vmem:[#allocation5 + $0xa0] sm:$0xff]
  %v5656 = vld [vmem:[#allocation5 + $0xa8] sm:$0xff]
  %v5657 = vld [vmem:[#allocation5 + $0xb0] sm:$0xff]
  %v5658 = vld [vmem:[#allocation5 + $0xb8] sm:$0xff]
  %v5659 = vld [vmem:[#allocation5 + $0xc0] sm:$0xff]
  %v5660 = vld [vmem:[#allocation5 + $0xc8] sm:$0xff]
  %v5661 = vld [vmem:[#allocation5 + $0xd0] sm:$0xff]
  %v5662 = vld [vmem:[#allocation5 + $0xd8] sm:$0xff]
  %v5663 = vld [vmem:[#allocation5 + $0xe0] sm:$0xff]
  %v5664 = vld [vmem:[#allocation5 + $0xe8] sm:$0xff]
  %v5665 = vld [vmem:[#allocation5 + $0xf0] sm:$0xff]
  %v5666 = vld [vmem:[#allocation5 + $0xf8] sm:$0xff]
  %v5667 = vld [vmem:[#allocation5 + $0x100] sm:$0xff]
  %v5668 = vld [vmem:[#allocation5 + $0x108] sm:$0xff]
  %v5669 = vld [vmem:[#allocation5 + $0x110] sm:$0xff]
  %v5670 = vld [vmem:[#allocation5 + $0x118] sm:$0xff]
  %v5671 = vld [vmem:[#allocation5 + $0x120] sm:$0xff]
  %v5672 = vld [vmem:[#allocation5 + $0x128] sm:$0xff]
  %v5673 = vld [vmem:[#allocation5 + $0x130] sm:$0xff]
  %v5674 = vld [vmem:[#allocation5 + $0x138] sm:$0xff]
  %v5675 = vld [vmem:[#allocation5 + $0x140] sm:$0xff]
  %v5676 = vld [vmem:[#allocation5 + $0x148] sm:$0xff]
  %v5677 = vld [vmem:[#allocation5 + $0x150] sm:$0xff]
  %v5678 = vld [vmem:[#allocation5 + $0x158] sm:$0xff]
  %v5679 = vld [vmem:[#allocation5 + $0x160] sm:$0xff]
  %v5680 = vld [vmem:[#allocation5 + $0x168] sm:$0xff]
  %v5681 = vld [vmem:[#allocation5 + $0x170] sm:$0xff]
  %v5682 = vld [vmem:[#allocation5 + $0x178] sm:$0xff]
  %v5683 = vld [vmem:[#allocation5 + $0x180] sm:$0xff]
  %v5684 = vld [vmem:[#allocation5 + $0x188] sm:$0xff]
  %v5685 = vld [vmem:[#allocation5 + $0x190] sm:$0xff]
  %v5686 = vld [vmem:[#allocation5 + $0x198] sm:$0xff]
  %v5687 = vld [vmem:[#allocation5 + $0x1a0] sm:$0xff]
  %v5688 = vld [vmem:[#allocation5 + $0x1a8] sm:$0xff]
  %v5689 = vld [vmem:[#allocation5 + $0x1b0] sm:$0xff]
  %v5690 = vld [vmem:[#allocation5 + $0x1b8] sm:$0xff]
  %v5691 = vld [vmem:[#allocation5 + $0x1c0] sm:$0xff]
  %v5692 = vld [vmem:[#allocation5 + $0x1c8] sm:$0xff]
  %v5693 = vld [vmem:[#allocation5 + $0x1d0] sm:$0xff]
  %v5694 = vld [vmem:[#allocation5 + $0x1d8] sm:$0xff]
  %v5695 = vld [vmem:[#allocation5 + $0x1e0] sm:$0xff]
  %v5696 = vld [vmem:[#allocation5 + $0x1e8] sm:$0xff]
  %v5697 = vld [vmem:[#allocation5 + $0x1f0] sm:$0xff]
  %v5698 = vld [vmem:[#allocation5 + $0x1f8] sm:$0xff]
  %v5699 = vld [vmem:[#allocation5 + $0x200] sm:$0xff]
  %v5700 = vld [vmem:[#allocation5 + $0x208] sm:$0xff]
  %v5701 = vld [vmem:[#allocation5 + $0x210] sm:$0xff]
  %v5702 = vld [vmem:[#allocation5 + $0x218] sm:$0xff]
  %v5703 = vld [vmem:[#allocation5 + $0x220] sm:$0xff]
  %v5704 = vld [vmem:[#allocation5 + $0x228] sm:$0xff]
  %v5705 = vld [vmem:[#allocation5 + $0x230] sm:$0xff]
  %v5706 = vld [vmem:[#allocation5 + $0x238] sm:$0xff]
  %v5707 = vld [vmem:[#allocation5 + $0x240] sm:$0xff]
  %v5708 = vld [vmem:[#allocation5 + $0x248] sm:$0xff]
  %v5709 = vld [vmem:[#allocation5 + $0x250] sm:$0xff]
  %v5710 = vld [vmem:[#allocation5 + $0x258] sm:$0xff]
  %v5711 = vld [vmem:[#allocation5 + $0x260] sm:$0xff]
  %v5712 = vld [vmem:[#allocation5 + $0x268] sm:$0xff]
  %v5713 = vld [vmem:[#allocation5 + $0x270] sm:$0xff]
  %v5714 = vld [vmem:[#allocation5 + $0x278] sm:$0xff]
  %v5715 = vld [vmem:[#allocation5 + $0x280] sm:$0xff]
  %v5716 = vld [vmem:[#allocation5 + $0x288] sm:$0xff]
  %v5717 = vld [vmem:[#allocation5 + $0x290] sm:$0xff]
  %v5718 = vld [vmem:[#allocation5 + $0x298] sm:$0xff]
  %v5719 = vld [vmem:[#allocation5 + $0x2a0] sm:$0xff]
  %v5720 = vld [vmem:[#allocation5 + $0x2a8] sm:$0xff]
  %v5721 = vld [vmem:[#allocation5 + $0x2b0] sm:$0xff]
  %v5722 = vld [vmem:[#allocation5 + $0x2b8] sm:$0xff]
  %v5723 = vld [vmem:[#allocation5 + $0x2c0] sm:$0xff]
  %v5724 = vld [vmem:[#allocation5 + $0x2c8] sm:$0xff]
  %v5725 = vld [vmem:[#allocation5 + $0x2d0] sm:$0xff]
  %v5726 = vld [vmem:[#allocation5 + $0x2d8] sm:$0xff]
  %v5727 = vld [vmem:[#allocation5 + $0x2e0] sm:$0xff]
  %v5728 = vld [vmem:[#allocation5 + $0x2e8] sm:$0xff]
  %v5729 = vld [vmem:[#allocation5 + $0x2f0] sm:$0xff]
  %v5730 = vld [vmem:[#allocation5 + $0x2f8] sm:$0xff]
  %v5731 = vld [vmem:[#allocation5 + $0x300] sm:$0xff]
  %v5732 = vld [vmem:[#allocation5 + $0x308] sm:$0xff]
  %v5733 = vld [vmem:[#allocation5 + $0x310] sm:$0xff]
  %v5734 = vld [vmem:[#allocation5 + $0x318] sm:$0xff]
  %v5735 = vld [vmem:[#allocation5 + $0x320] sm:$0xff]
  %v5736 = vld [vmem:[#allocation5 + $0x328] sm:$0xff]
  %v5737 = vld [vmem:[#allocation5 + $0x330] sm:$0xff]
  %v5738 = vld [vmem:[#allocation5 + $0x338] sm:$0xff]
  %v5739 = vld [vmem:[#allocation5 + $0x340] sm:$0xff]
  %v5740 = vld [vmem:[#allocation5 + $0x348] sm:$0xff]
  %v5741 = vld [vmem:[#allocation5 + $0x350] sm:$0xff]
  %v5742 = vld [vmem:[#allocation5 + $0x358] sm:$0xff]
  %v5743 = vld [vmem:[#allocation5 + $0x360] sm:$0xff]
  %v5744 = vld [vmem:[#allocation5 + $0x368] sm:$0xff]
  %v5745 = vld [vmem:[#allocation5 + $0x370] sm:$0xff]
  %v5746 = vld [vmem:[#allocation5 + $0x378] sm:$0xff]
  %v5747 = vld [vmem:[#allocation5 + $0x380] sm:$0xff]
  %v5748 = vld [vmem:[#allocation5 + $0x388] sm:$0xff]
  %v5749 = vld [vmem:[#allocation5 + $0x390] sm:$0xff]
  %v5750 = vld [vmem:[#allocation5 + $0x398] sm:$0xff]
  %v5751 = vld [vmem:[#allocation5 + $0x3a0] sm:$0xff]
  %v5752 = vld [vmem:[#allocation5 + $0x3a8] sm:$0xff]
  %v5753 = vld [vmem:[#allocation5 + $0x3b0] sm:$0xff]
  %v5754 = vld [vmem:[#allocation5 + $0x3b8] sm:$0xff]
  %v5755 = vld [vmem:[#allocation5 + $0x3c0] sm:$0xff]
  %v5756 = vld [vmem:[#allocation5 + $0x3c8] sm:$0xff]
  %v5757 = vld [vmem:[#allocation5 + $0x3d0] sm:$0xff]
  %v5758 = vld [vmem:[#allocation5 + $0x3d8] sm:$0xff]
  %v5759 = vld [vmem:[#allocation5 + $0x3e0] sm:$0xff]
  %v5760 = vld [vmem:[#allocation5 + $0x3e8] sm:$0xff]
  %v5761 = vld [vmem:[#allocation5 + $0x3f0] sm:$0xff]
  %v5762 = vld [vmem:[#allocation5 + $0x3f8] sm:$0xff]
  %v5763 = vld [vmem:[#allocation5 + $0x400] sm:$0xff]
  %v5764 = vld [vmem:[#allocation5 + $0x408] sm:$0xff]
  %v5765 = vld [vmem:[#allocation5 + $0x410] sm:$0xff]
  %v5766 = vld [vmem:[#allocation5 + $0x418] sm:$0xff]
  %v5767 = vld [vmem:[#allocation5 + $0x420] sm:$0xff]
  %v5768 = vld [vmem:[#allocation5 + $0x428] sm:$0xff]
  %v5769 = vld [vmem:[#allocation5 + $0x430] sm:$0xff]
  %v5770 = vld [vmem:[#allocation5 + $0x438] sm:$0xff]
  %v5771 = vld [vmem:[#allocation5 + $0x440] sm:$0xff]
  %v5772 = vld [vmem:[#allocation5 + $0x448] sm:$0xff]
  %v5773 = vld [vmem:[#allocation5 + $0x450] sm:$0xff]
  %v5774 = vld [vmem:[#allocation5 + $0x458] sm:$0xff]
  %v5775 = vld [vmem:[#allocation5 + $0x460] sm:$0xff]
  %v5776 = vld [vmem:[#allocation5 + $0x468] sm:$0xff]
  %v5777 = vld [vmem:[#allocation5 + $0x470] sm:$0xff]
  %v5778 = vld [vmem:[#allocation5 + $0x478] sm:$0xff]
  %v5779 = vld [vmem:[#allocation5 + $0x480] sm:$0xff]
  %v5780 = vld [vmem:[#allocation5 + $0x488] sm:$0xff]
  %v5781 = vld [vmem:[#allocation5 + $0x490] sm:$0xff]
  %v5782 = vld [vmem:[#allocation5 + $0x498] sm:$0xff]
  %v5783 = vld [vmem:[#allocation5 + $0x4a0] sm:$0xff]
  %v5784 = vld [vmem:[#allocation5 + $0x4a8] sm:$0xff]
  %v5785 = vld [vmem:[#allocation5 + $0x4b0] sm:$0xff]
  %v5786 = vld [vmem:[#allocation5 + $0x4b8] sm:$0xff]
  %v5787 = vld [vmem:[#allocation5 + $0x4c0] sm:$0xff]
  %v5788 = vld [vmem:[#allocation5 + $0x4c8] sm:$0xff]
  %v5789 = vld [vmem:[#allocation5 + $0x4d0] sm:$0xff]
  %v5790 = vld [vmem:[#allocation5 + $0x4d8] sm:$0xff]
  %v5791 = vld [vmem:[#allocation5 + $0x4e0] sm:$0xff]
  %v5792 = vld [vmem:[#allocation5 + $0x4e8] sm:$0xff]
  %v5793 = vld [vmem:[#allocation5 + $0x4f0] sm:$0xff]
  %v5794 = vld [vmem:[#allocation5 + $0x4f8] sm:$0xff]
  %v5795 = vld [vmem:[#allocation5 + $0x500] sm:$0xff]
  %v5796 = vld [vmem:[#allocation5 + $0x508] sm:$0xff]
  %v5797 = vld [vmem:[%s3 + $0x48] sm:$0xff]
  %5799 = vset.pattern.permute.xlu0 0
  %5800 = vperm.xlu0 %5799, %v5797
  %v5801 = vpop.permute.xlu0 %5800
  %vm5803 = vcmask 719872
  %v5805 = vsel %vm5803, %v5634, 0
  %5807 = vmatprep.subr.mxu0 %v5636
  %5808 = vmatpush1.msra.mxu0 %v5635
  %5809 = vmatprep.subr.mxu0 %v5642
  %5810 = vmatpush1.msra.mxu0 %v5641
  %5811 = vmatprep.subr.mxu0 %v5648
  %5812 = vmatpush1.msra.mxu0 %v5647
  %5813 = vmatprep.subr.mxu0 %v5654
  %5814 = vmatpush1.msra.mxu0 %v5653
  %5815 = vmatprep.subr.mxu0 %v5660
  %5816 = vmatpush1.msra.mxu0 %v5659
  %5817 = vmatprep.subr.mxu0 %v5666
  %5818 = vmatpush1.msra.mxu0 %v5665
  %5819 = vmatprep.subr.mxu0 %v5672
  %5820 = vmatpush1.msra.mxu0 %v5671
  %5821 = vmatprep.subr.mxu0 %v5678
  %5822 = vmatpush1.msra.mxu0 %v5677
  %5823 = vmatprep.subr.mxu0 %v5684
  %5824 = vmatpush1.msra.mxu0 %v5683
  %5825 = vmatprep.subr.mxu0 %v5690
  %5826 = vmatpush1.msra.mxu0 %v5689
  %5827 = vmatprep.subr.mxu0 %v5696
  %5828 = vmatpush1.msra.mxu0 %v5695
  %5829 = vmatprep.subr.mxu0 %v5702
  %5830 = vmatpush1.msra.mxu0 %v5701
  %5831 = vmatprep.subr.mxu0 %v5708
  %5832 = vmatpush1.msra.mxu0 %v5707
  %5833 = vmatprep.subr.mxu0 %v5714
  %5834 = vmatpush1.msra.mxu0 %v5713
  %5835 = vmatprep.subr.mxu0 %v5720
  %5836 = vmatpush1.msra.mxu0 %v5719
  %5837 = vmatprep.subr.mxu0 %v5726
  %5838 = vmatpush1.msra.mxu0 %v5725
  %5839 = vmatprep.subr.mxu0 %v5732
  %5840 = vmatpush1.msra.mxu0 %v5731
  %5841 = vmatprep.subr.mxu0 %v5738
  %5842 = vmatpush1.msra.mxu0 %v5737
  %5843 = vmatprep.subr.mxu0 %v5744
  %5844 = vmatpush1.msra.mxu0 %v5743
  %5845 = vmatprep.subr.mxu0 %v5750
  %5846 = vmatpush1.msra.mxu0 %v5749
  %5847 = vmatprep.subr.mxu0 %v5756
  %5848 = vmatpush1.msra.mxu0 %v5755
  %5849 = vmatprep.subr.mxu0 %v5762
  %5850 = vmatpush1.msra.mxu0 %v5761
  %5851 = vmatprep.subr.mxu0 %v5768
  %5852 = vmatpush1.msra.mxu0 %v5767
  %5853 = vmatprep.subr.mxu0 %v5774
  %5854 = vmatpush1.msra.mxu0 %v5773
  %5855 = vmatprep.subr.mxu0 %v5780
  %5856 = vmatpush1.msra.mxu0 %v5779
  %5857 = vmatprep.subr.mxu0 %v5786
  %5858 = vmatpush1.msra.mxu0 %v5785
  %5859 = vmatprep.subr.mxu0 %v5792
  %5860 = vmatpush1.msra.mxu0 %v5791
  %5861 = vmatprep.subr.mxu0 0.0
  %5862 = vmatpush1.msra.mxu0 0.0
  %5863 = vmatprep.subr.mxu0 0.0
  %5864 = vmatpush1.msra.mxu0 0.0
  %5865 = vmatprep.subr.mxu0 0.0
  %5866 = vmatpush1.msra.mxu0 0.0
  %5867 = vmatprep.subr.mxu0 0.0
  %5868 = vmatpush1.msra.mxu0 0.0
  %5869 = vmatprep.subr.mxu0 0.0
  %5870 = vmatpush1.msra.mxu0 0.0
  %5871 = vmatprep.mubr.f32.mxu0 %v5805
  %5872 = vmatmul.mubr.f32.gmra.mrb[0].mxu0 %v5633
  %v5873 = vpop.f32.mrb[0].mxu0
  %v5874 = vadd.f32 %v5801, %v5873
  %v5875 = vpop.f32.mrb[0].mxu0
  %v5876 = vadd.f32 %v5801, %v5875
  %5877 = vdwg.mxu0
  %5878 = vmatprep.subr.mxu0 %v5638
  %5879 = vmatpush1.msra.mxu0 %v5637
  %5880 = vmatprep.subr.mxu0 %v5644
  %5881 = vmatpush1.msra.mxu0 %v5643
  %5882 = vmatprep.subr.mxu0 %v5650
  %5883 = vmatpush1.msra.mxu0 %v5649
  %5884 = vmatprep.subr.mxu0 %v5656
  %5885 = vmatpush1.msra.mxu0 %v5655
  %5886 = vmatprep.subr.mxu0 %v5662
  %5887 = vmatpush1.msra.mxu0 %v5661
  %5888 = vmatprep.subr.mxu0 %v5668
  %5889 = vmatpush1.msra.mxu0 %v5667
  %5890 = vmatprep.subr.mxu0 %v5674
  %5891 = vmatpush1.msra.mxu0 %v5673
  %5892 = vmatprep.subr.mxu0 %v5680
  %5893 = vmatpush1.msra.mxu0 %v5679
  %5894 = vmatprep.subr.mxu0 %v5686
  %5895 = vmatpush1.msra.mxu0 %v5685
  %5896 = vmatprep.subr.mxu0 %v5692
  %5897 = vmatpush1.msra.mxu0 %v5691
  %5898 = vmatprep.subr.mxu0 %v5698
  %5899 = vmatpush1.msra.mxu0 %v5697
  %5900 = vmatprep.subr.mxu0 %v5704
  %5901 = vmatpush1.msra.mxu0 %v5703
  %5902 = vmatprep.subr.mxu0 %v5710
  %5903 = vmatpush1.msra.mxu0 %v5709
  %5904 = vmatprep.subr.mxu0 %v5716
  %5905 = vmatpush1.msra.mxu0 %v5715
  %5906 = vmatprep.subr.mxu0 %v5722
  %5907 = vmatpush1.msra.mxu0 %v5721
  %5908 = vmatprep.subr.mxu0 %v5728
  %5909 = vmatpush1.msra.mxu0 %v5727
  %5910 = vmatprep.subr.mxu0 %v5734
  %5911 = vmatpush1.msra.mxu0 %v5733
  %5912 = vmatprep.subr.mxu0 %v5740
  %5913 = vmatpush1.msra.mxu0 %v5739
  %5914 = vmatprep.subr.mxu0 %v5746
  %5915 = vmatpush1.msra.mxu0 %v5745
  %5916 = vmatprep.subr.mxu0 %v5752
  %5917 = vmatpush1.msra.mxu0 %v5751
  %5918 = vmatprep.subr.mxu0 %v5758
  %5919 = vmatpush1.msra.mxu0 %v5757
  %5920 = vmatprep.subr.mxu0 %v5764
  %5921 = vmatpush1.msra.mxu0 %v5763
  %5922 = vmatprep.subr.mxu0 %v5770
  %5923 = vmatpush1.msra.mxu0 %v5769
  %5924 = vmatprep.subr.mxu0 %v5776
  %5925 = vmatpush1.msra.mxu0 %v5775
  %5926 = vmatprep.subr.mxu0 %v5782
  %5927 = vmatpush1.msra.mxu0 %v5781
  %5928 = vmatprep.subr.mxu0 %v5788
  %5929 = vmatpush1.msra.mxu0 %v5787
  %5930 = vmatprep.subr.mxu0 %v5794
  %5931 = vmatpush1.msra.mxu0 %v5793
  %5932 = vmatprep.subr.mxu0 0.0
  %5933 = vmatpush1.msra.mxu0 0.0
  %5934 = vmatprep.subr.mxu0 0.0
  %5935 = vmatpush1.msra.mxu0 0.0
  %5936 = vmatprep.subr.mxu0 0.0
  %5937 = vmatpush1.msra.mxu0 0.0
  %5938 = vmatprep.subr.mxu0 0.0
  %5939 = vmatpush1.msra.mxu0 0.0
  %5940 = vmatprep.subr.mxu0 0.0
  %5941 = vmatpush1.msra.mxu0 0.0
  %5942 = vmatprep.mubr.f32.mxu0 %v5805
  %5943 = vmatmul.mubr.f32.gmra.mrb[0].mxu0 %v5633
  %v5944 = vpop.f32.mrb[0].mxu0
  %v5945 = vadd.f32 %v5801, %v5944
  %v5946 = vpop.f32.mrb[0].mxu0
  %v5947 = vadd.f32 %v5801, %v5946
  %5948 = vdwg.mxu0
  %5949 = vmatprep.subr.mxu0 %v5640
  %5950 = vmatpush1.msra.mxu0 %v5639
  %5951 = vmatprep.subr.mxu0 %v5646
  %5952 = vmatpush1.msra.mxu0 %v5645
  %5953 = vmatprep.subr.mxu0 %v5652
  %5954 = vmatpush1.msra.mxu0 %v5651
  %5955 = vmatprep.subr.mxu0 %v5658
  %5956 = vmatpush1.msra.mxu0 %v5657
  %5957 = vmatprep.subr.mxu0 %v5664
  %5958 = vmatpush1.msra.mxu0 %v5663
  %5959 = vmatprep.subr.mxu0 %v5670
  %5960 = vmatpush1.msra.mxu0 %v5669
  %5961 = vmatprep.subr.mxu0 %v5676
  %5962 = vmatpush1.msra.mxu0 %v5675
  %5963 = vmatprep.subr.mxu0 %v5682
  %5964 = vmatpush1.msra.mxu0 %v5681
  %5965 = vmatprep.subr.mxu0 %v5688
  %5966 = vmatpush1.msra.mxu0 %v5687
  %5967 = vmatprep.subr.mxu0 %v5694
  %5968 = vmatpush1.msra.mxu0 %v5693
  %5969 = vmatprep.subr.mxu0 %v5700
  %5970 = vmatpush1.msra.mxu0 %v5699
  %5971 = vmatprep.subr.mxu0 %v5706
  %5972 = vmatpush1.msra.mxu0 %v5705
  %5973 = vmatprep.subr.mxu0 %v5712
  %5974 = vmatpush1.msra.mxu0 %v5711
  %5975 = vmatprep.subr.mxu0 %v5718
  %5976 = vmatpush1.msra.mxu0 %v5717
  %5977 = vmatprep.subr.mxu0 %v5724
  %5978 = vmatpush1.msra.mxu0 %v5723
  %5979 = vmatprep.subr.mxu0 %v5730
  %5980 = vmatpush1.msra.mxu0 %v5729
  %5981 = vmatprep.subr.mxu0 %v5736
  %5982 = vmatpush1.msra.mxu0 %v5735
  %5983 = vmatprep.subr.mxu0 %v5742
  %5984 = vmatpush1.msra.mxu0 %v5741
  %5985 = vmatprep.subr.mxu0 %v5748
  %5986 = vmatpush1.msra.mxu0 %v5747
  %5987 = vmatprep.subr.mxu0 %v5754
  %5988 = vmatpush1.msra.mxu0 %v5753
  %5989 = vmatprep.subr.mxu0 %v5760
  %5990 = vmatpush1.msra.mxu0 %v5759
  %5991 = vmatprep.subr.mxu0 %v5766
  %5992 = vmatpush1.msra.mxu0 %v5765
  %5993 = vmatprep.subr.mxu0 %v5772
  %5994 = vmatpush1.msra.mxu0 %v5771
  %5995 = vmatprep.subr.mxu0 %v5778
  %5996 = vmatpush1.msra.mxu0 %v5777
  %5997 = vmatprep.subr.mxu0 %v5784
  %5998 = vmatpush1.msra.mxu0 %v5783
  %5999 = vmatprep.subr.mxu0 %v5790
  %6000 = vmatpush1.msra.mxu0 %v5789
  %6001 = vmatprep.subr.mxu0 %v5796
  %6002 = vmatpush1.msra.mxu0 %v5795
  %6003 = vmatprep.subr.mxu0 0.0
  %6004 = vmatpush1.msra.mxu0 0.0
  %6005 = vmatprep.subr.mxu0 0.0
  %6006 = vmatpush1.msra.mxu0 0.0
  %6007 = vmatprep.subr.mxu0 0.0
  %6008 = vmatpush1.msra.mxu0 0.0
  %6009 = vmatprep.subr.mxu0 0.0
  %6010 = vmatpush1.msra.mxu0 0.0
  %6011 = vmatprep.subr.mxu0 0.0
  %6012 = vmatpush1.msra.mxu0 0.0
  %6013 = vmatprep.mubr.f32.mxu0 %v5805
  %6014 = vmatmul.mubr.f32.gmra.mrb[0].mxu0 %v5633
  %v6015 = vpop.f32.mrb[0].mxu0
  %v6016 = vadd.f32 %v5801, %v6015
  %v6017 = vpop.f32.mrb[0].mxu0
  %v6018 = vadd.f32 %v5801, %v6017
  %6019 = vdwg.mxu0
  %v6020 = vsel %vm931, %v5874, 0.0
  %v6021 = vsel %vm932, %v5876, 0.0
  %v6022 = vsel %vm933, %v5945, 0.0
  %v6023 = vsel %vm934, %v5947, 0.0
  %v6024 = vsel %vm935, %v6016, 0.0
  %v6025 = vsel %vm936, %v6018, 0.0
  %v6026 = vtanh.pop %v6020
  %v6027 = vtanh.pop %v6021
  %v6028 = vtanh.pop %v6022
  %v6029 = vtanh.pop %v6023
  %v6030 = vtanh.pop %v6024
  %v6031 = vtanh.pop %v6025
  %6032 = vst [vmem:[%s4] sm:$0xff] %v6026
  %6033 = vst [vmem:[%s4 + $0x8] sm:$0xff] %v6027
  %6034 = vst [vmem:[%s4 + $0x10] sm:$0xff] %v6028
  %6035 = vst [vmem:[%s4 + $0x18] sm:$0xff] %v6029
  %6036 = vst [vmem:[%s4 + $0x20] sm:$0xff] %v6030
  %6037 = vst [vmem:[%s4 + $0x28] sm:$0xff] %v6031
  // Predicated region
  $region18: #{ec_network.1} parent=0 // pred_check
    _
  $region19: #{ec_network.1} parent=0 // pred_check_branch
    %6039 = sbr.rel (0) target = $region21
  $region20: #{ec_network.1} parent=0 // pred_region
    _
  $region21: #{ec_network.1} parent=0 // pred_fallthru
    _
  // Predicated region
  $region22: #{ec_network.1} parent=0 // pred_check
    _
  $region23: #{ec_network.1} parent=0 // pred_check_branch
    %6041 = sbr.rel (0) target = $region25
  $region24: #{ec_network.1} parent=0 // pred_region
    _
  $region25: #{ec_network.1} parent=0 // pred_fallthru
    _

</llo_original>
